<compile_context>
chip_gen: v6e
topology: v6e:2x2x1
jax: 0.10.0
libtpu: 0.0.40
codegen_flags: <defaults>
</compile_context>

<pallas_src>
import functools

import jax
import jax.numpy as jnp
from jax.experimental import pallas as pl
from jax.experimental.pallas import tpu as pltpu


def _fast_recip(x):
    """EUP approximate reciprocal + one Newton refinement (~full f32 accuracy)."""
    r = pl.reciprocal(x, approx=True)
    return r * (2.0 - x * r)


def mem_attention_kernel(x_ref, mem_ref, wx_ref, bx_ref, wo_ref, bo_ref, out_ref):
    x = x_ref[...].astype(jnp.float32)            # (TB, x_dim)
    mem = mem_ref[...].astype(jnp.float32)        # (TB, S, D) — bf16 storage upcast once
    slots = mem.shape[1]

    # h = relu(x @ Wx + bx)  — MXU
    h = jnp.dot(x, wx_ref[...], preferred_element_type=jnp.float32) + bx_ref[...]
    h = jnp.maximum(h, 0.0)                       # (TB, mem_dim)

    # Cosine similarity along mem_dim. Matches ATen's CosineSimilarity:
    #   w12 / sqrt(clamp_min(w1 * w2, eps^2)), eps = 1e-6.
    hb = h[:, None, :]                                           # (TB, 1, D)
    dot = jnp.sum(mem * hb, axis=-1)                             # (TB, S)
    mem_sq = jnp.sum(mem * mem, axis=-1)                         # (TB, S)
    h_sq = jnp.sum(h * h, axis=-1, keepdims=True)                # (TB, 1)
    cos = dot * jax.lax.rsqrt(jnp.maximum(mem_sq * h_sq, 1e-12))  # (TB, S)
    # TODO(synk): if a bundle profile shows the XLU/vex slot saturating, offload
    # the two lane reductions above onto the idle MXU via a reduce-by-ones
    # matmul ((TB*S, D) @ (D, 1)); not enabled blind because vmatmul pushes
    # share the same vex slots as the rotates they would replace and the (M, 1)
    # result needs an S sublane->lane relayout before the softmax.

    # softmax over slots: cos is bounded in [-1, 1] so no max-subtraction is
    # needed; 1/S of the subsequent mean is folded into the weights and the
    # denominator reciprocal runs on the EUP.
    e = jnp.exp(cos)
    w_scaled = e * _fast_recip(jnp.sum(e, axis=1, keepdims=True) * float(slots))

    # weighted mean over slots: m = sum(mem * softmax(cos) / S)
    m = jnp.sum(mem * w_scaled[:, :, None], axis=1)              # (TB, mem_dim)

    # out = relu((m * h) @ Wo + bo)  — MXU.  (out_dim < 128 -> masked stores;
    # accepted per review since the output is ~3% of HBM bytes.)
    out = jnp.dot(m * h, wo_ref[...], preferred_element_type=jnp.float32) + bo_ref[...]
    out_ref[...] = jnp.maximum(out, 0.0)


def _tpu_caps():
    """Best-effort (tensorcores_per_chip, vmem_bytes_per_core) with safe fallbacks."""
    vmem = None
    cores = None
    try:
        info = pltpu.get_tpu_info()
        v = int(getattr(info, "vmem_capacity_bytes", 0))
        vmem = v if v > 0 else None
        for name in ("num_cores", "tensorcores_per_chip", "core_count"):
            c = getattr(info, name, None)
            if c:
                cores = int(c)
                break
    except Exception:
        pass
    if cores is None:
        try:
            c = getattr(jax.devices()[0], "num_cores", None)
            if c:
                cores = int(c)
        except Exception:
            pass
    if vmem is None:
        vmem = 64 << 20        # conservative: v7x per-TC size
    if cores is None:
        # v7x is the only generation with 2 TCs/chip and also the only one with
        # 64 MiB VMEM/TC, so VMEM size is a usable proxy when nothing else is.
        cores = 2 if vmem <= (96 << 20) else 1
    return cores, vmem


def _choose_block_b(n, slots, mem_dim, *, num_cores, target_f32_bytes, max_block=4096):
    """Batch-tile size: big enough to amortize the ~0.35us/step overhead, small
    enough that the f32 working tile stays under `target_f32_bytes`, a multiple
    of 8 (sublane), and on 2-TensorCore chips an even grid count >= 2."""
    bytes_per_row = 4 * slots * mem_dim
    cap = int(min(max_block, max(8, target_f32_bytes // max(bytes_per_row, 1))))
    cap -= cap % 8
    if n <= 8:
        return n                                   # single tiny full block
    steps = pl.cdiv(n, cap)
    if num_cores >= 2:
        steps = max(2, steps + (steps % 2))        # even, >= 2 (both v7x TCs busy)
    block = pl.cdiv(pl.cdiv(n, steps), 8) * 8
    block = max(8, min(block, cap))
    if block >= n:
        return n                                   # full dim is always legal
    if num_cores >= 2:
        while block > 8 and pl.cdiv(n, block) % 2 == 1:
            block -= 8                             # keep the realized grid even
    return block


@functools.partial(jax.jit, static_argnames=("block_b",))
def mem_attention(x, mem, wx, bx, wo, bo, *, block_b=None):
    n, x_dim = x.shape
    n2, slots, mem_dim = mem.shape
    assert n2 == n, (n2, n)
    out_dim = wo.shape[1]

    num_cores, vmem_phys = _tpu_caps()
    # Per-step f32 working-set target: ~8 MiB on 64 MiB-VMEM chips (v7x),
    # ~16 MiB on 128 MiB-VMEM chips (v5e / v6e).
    target_f32 = (8 << 20) if vmem_phys <= (96 << 20) else (16 << 20)
    if block_b is None:
        block_b = _choose_block_b(n, slots, mem_dim,
                                  num_cores=num_cores, target_f32_bytes=target_f32)
    grid = (pl.cdiv(n, block_b),)                  # ragged tail handled by Pallas

    # Explicit VMEM accounting (no blanket clamp): double-buffered in/out tiles
    # + resident weights + ~3 f32 mem-tile-sized in-kernel temporaries (upcast
    # and elementwise products) + fixed slack, capped at 80% of physical VMEM.
    mem_tile = block_b * slots * mem_dim * mem.dtype.itemsize
    mem_tile_f32 = block_b * slots * mem_dim * 4
    io_tiles = mem_tile + 4 * block_b * (x_dim + out_dim)
    weight_bytes = 4 * (x_dim * mem_dim + mem_dim + mem_dim * out_dim + out_dim)
    need = 2 * io_tiles + 2 * weight_bytes + 3 * mem_tile_f32 + (4 << 20)
    vmem_limit = int(min(max(need, 32 << 20), (vmem_phys * 4) // 5))

    # Advisory cost: bandwidth-bound (mem dominates bytes), tiny FLOP count.
    flops = int(n * (2 * x_dim * mem_dim + 2 * mem_dim * out_dim + 6 * slots * mem_dim))
    transcendentals = int(n * (2 * slots + 2))
    bytes_accessed = int(n * (4 * x_dim + slots * mem_dim * mem.dtype.itemsize
                              + 4 * out_dim) + weight_bytes)
    cost = pl.CostEstimate(flops=flops, transcendentals=transcendentals,
                           bytes_accessed=bytes_accessed)

    return pl.pallas_call(
        mem_attention_kernel,
        out_shape=jax.ShapeDtypeStruct((n, out_dim), jnp.float32),
        grid_spec=pltpu.PrefetchScalarGridSpec(
            num_scalar_prefetch=0,
            grid=grid,
            in_specs=[
                pl.BlockSpec((block_b, x_dim), lambda i: (i, 0)),
                pl.BlockSpec((block_b, slots, mem_dim), lambda i: (i, 0, 0)),
                # Weights/biases: constant block index -> resident across the
                # grid; Pallas does not re-DMA them between steps.
                pl.BlockSpec((x_dim, mem_dim), lambda i: (0, 0)),
                pl.BlockSpec((1, mem_dim), lambda i: (0, 0)),
                pl.BlockSpec((mem_dim, out_dim), lambda i: (0, 0)),
                pl.BlockSpec((1, out_dim), lambda i: (0, 0)),
            ],
            out_specs=pl.BlockSpec((block_b, out_dim), lambda i: (i, 0)),
        ),
        compiler_params=pltpu.CompilerParams(
            dimension_semantics=("parallel",),
            vmem_limit_bytes=vmem_limit,
        ),
        cost_estimate=cost,
    )(x, mem, wx, bx, wo, bo)


def mem_attention_ref(x, mem, wx, bx, wo, bo):
    """Pure-JAX reference of the PyTorch forward (cos method), all-f32 math."""
    h = jax.nn.relu(x @ wx + bx[0])
    hb = h[:, None, :]
    dot = jnp.sum(mem * hb, axis=-1)
    cos = dot / jnp.maximum(
        jnp.linalg.norm(mem, axis=-1) * jnp.linalg.norm(hb, axis=-1), 1e-6)
    w = jax.nn.softmax(cos, axis=1)
    m = jnp.mean(mem * w[:, :, None], axis=1)
    return jax.nn.relu((m * h) @ wo + bo[0])


if __name__ == "__main__":
    # Small shapes consistent with the module's forward signature.
    N, X_DIM, MEM_DIM, OUT_DIM, SLOTS = 256, 32, 128, 32, 8

    key = jax.random.PRNGKey(0)
    kx, kmem, kwx, kbx, kwo, kbo = jax.random.split(key, 6)

    x = jax.random.normal(kx, (N, X_DIM), dtype=jnp.float32)
    mem_f32 = jax.random.normal(kmem, (N, SLOTS, MEM_DIM), dtype=jnp.float32)

    # Deterministic parameter init (synthetic; stands in for utils.init_linear).
    wx = jax.random.normal(kwx, (X_DIM, MEM_DIM), dtype=jnp.float32) * 0.05
    bx = jax.random.normal(kbx, (1, MEM_DIM), dtype=jnp.float32) * 0.05
    wo = jax.random.normal(kwo, (MEM_DIM, OUT_DIM), dtype=jnp.float32) * 0.05
    bo = jax.random.normal(kbo, (1, OUT_DIM), dtype=jnp.float32) * 0.05

    # mem stored as bf16 in HBM (halves the dominant HBM stream); compute is f32.
    mem_bf16 = mem_f32.astype(jnp.bfloat16)

    out = jax.block_until_ready(mem_attention(x, mem_bf16, wx, bx, wo, bo))
    ref = mem_attention_ref(x, mem_bf16.astype(jnp.float32), wx, bx, wo, bo)
    assert out.shape == (N, OUT_DIM)
    assert jnp.allclose(out, ref, atol=1e-4, rtol=1e-4), "mismatch vs reference (bf16 mem)"

    # f32-storage path still supported (kernel is storage-dtype agnostic).
    out32 = jax.block_until_ready(mem_attention(x, mem_f32, wx, bx, wo, bo))
    ref32 = mem_attention_ref(x, mem_f32, wx, bx, wo, bo)
    assert jnp.allclose(out32, ref32, atol=1e-4, rtol=1e-4), "mismatch vs reference (f32 mem)"

    # Ragged batch (N not a multiple of the block): exercised via an explicit
    # block_b so the cdiv grid + masked tail block path is covered on any chip.
    N2 = 100
    kx2, kmem2 = jax.random.split(jax.random.PRNGKey(1), 2)
    x2 = jax.random.normal(kx2, (N2, X_DIM), dtype=jnp.float32)
    mem2 = jax.random.normal(kmem2, (N2, SLOTS, MEM_DIM), dtype=jnp.float32)
    out2 = jax.block_until_ready(mem_attention(x2, mem2, wx, bx, wo, bo, block_b=48))
    ref2 = mem_attention_ref(x2, mem2, wx, bx, wo, bo)
    assert out2.shape == (N2, OUT_DIM)
    assert jnp.allclose(out2, ref2, atol=1e-4, rtol=1e-4), "mismatch vs reference (ragged N)"

    print("KERNEL_OK")
</pallas_src>

<mosaic_0001>
module attributes {stable_mosaic.version = 11 : i64} {
  func.func @mem_attention_kernel(%arg0: i32, %arg1: memref<128x32xf32, #tpu.memory_space<vmem>>, %arg2: memref<128x8x128xbf16, #tpu.memory_space<vmem>>, %arg3: memref<32x128xf32, #tpu.memory_space<vmem>>, %arg4: memref<1x128xf32, #tpu.memory_space<vmem>>, %arg5: memref<128x32xf32, #tpu.memory_space<vmem>>, %arg6: memref<1x32xf32, #tpu.memory_space<vmem>>, %arg7: memref<128x32xf32, #tpu.memory_space<vmem>>) attributes {dimension_semantics = [#tpu.dimension_semantics<parallel>], iteration_bounds = array<i64: 2>, scalar_prefetch = 0 : i64, scratch_operands = 0 : i64, tpu.core_type = #tpu.core_type<tc>, window_params = [{transform_indices = @transform_0, window_bounds = array<i64: 128, 32>}, {transform_indices = @transform_1, window_bounds = array<i64: 128, 8, 128>}, {pipeline_mode = #tpu.pipeline_mode<synchronous>, transform_indices = @transform_2, window_bounds = array<i64: 32, 128>}, {pipeline_mode = #tpu.pipeline_mode<synchronous>, transform_indices = @transform_3, window_bounds = array<i64: 1, 128>}, {pipeline_mode = #tpu.pipeline_mode<synchronous>, transform_indices = @transform_4, window_bounds = array<i64: 128, 32>}, {pipeline_mode = #tpu.pipeline_mode<synchronous>, transform_indices = @transform_5, window_bounds = array<i64: 1, 32>}, {transform_indices = @transform_6, window_bounds = array<i64: 128, 32>}]} {
    %c0 = arith.constant 0 : index
    %c0_0 = arith.constant 0 : index
    %0 = vector.load %arg1[%c0, %c0_0] : memref<128x32xf32, #tpu.memory_space<vmem>>, vector<128x32xf32>
    %c0_1 = arith.constant 0 : index
    %c0_2 = arith.constant 0 : index
    %c0_3 = arith.constant 0 : index
    %1 = vector.load %arg2[%c0_1, %c0_2, %c0_3] : memref<128x8x128xbf16, #tpu.memory_space<vmem>>, vector<128x8x128xbf16>
    %2 = arith.extf %1 : vector<128x8x128xbf16> to vector<128x8x128xf32>
    %c0_4 = arith.constant 0 : index
    %c0_5 = arith.constant 0 : index
    %3 = vector.load %arg3[%c0_4, %c0_5] : memref<32x128xf32, #tpu.memory_space<vmem>>, vector<32x128xf32>
    %cst = arith.constant dense<0.000000e+00> : vector<128x128xf32>
    %4 = tpu.matmul %0, %3, %cst {dimension_numbers = #tpu.dot_dimension_numbers<[1], [0], [0], [1], [0, 0, 1, 1], [], []>} : vector<128x32xf32>, vector<32x128xf32>, vector<128x128xf32> -> vector<128x128xf32>
    %c0_6 = arith.constant 0 : index
    %c0_7 = arith.constant 0 : index
    %5 = vector.load %arg4[%c0_6, %c0_7] : memref<1x128xf32, #tpu.memory_space<vmem>>, vector<1x128xf32>
    %6 = vector.broadcast %5 : vector<1x128xf32> to vector<128x128xf32>
    %7 = arith.addf %4, %6 : vector<128x128xf32>
    %cst_8 = arith.constant 0.000000e+00 : f32
    %8 = vector.broadcast %cst_8 : f32 to vector<128x128xf32>
    %9 = arith.maximumf %7, %8 : vector<128x128xf32>
    %10 = vector.shape_cast %9 : vector<128x128xf32> to vector<128x1x128xf32>
    %11 = vector.broadcast %10 : vector<128x1x128xf32> to vector<128x8x128xf32>
    %12 = arith.mulf %2, %11 : vector<128x8x128xf32>
    %cst_9 = arith.constant dense<0.000000e+00> : vector<128x8xf32>
    %13 = vector.multi_reduction <add>, %12, %cst_9 [2] : vector<128x8x128xf32> to vector<128x8xf32>
    %14 = arith.mulf %2, %2 : vector<128x8x128xf32>
    %cst_10 = arith.constant dense<0.000000e+00> : vector<128x8xf32>
    %15 = vector.multi_reduction <add>, %14, %cst_10 [2] : vector<128x8x128xf32> to vector<128x8xf32>
    %16 = arith.mulf %9, %9 : vector<128x128xf32>
    %cst_11 = arith.constant dense<0.000000e+00> : vector<128xf32>
    %17 = vector.multi_reduction <add>, %16, %cst_11 [1] : vector<128x128xf32> to vector<128xf32>
    %18 = vector.shape_cast %17 : vector<128xf32> to vector<128x1xf32>
    %19 = vector.broadcast %18 : vector<128x1xf32> to vector<128x8xf32>
    %20 = arith.mulf %15, %19 : vector<128x8xf32>
    %cst_12 = arith.constant 9.99999996E-13 : f32
    %21 = vector.broadcast %cst_12 : f32 to vector<128x8xf32>
    %22 = arith.maximumf %20, %21 : vector<128x8xf32>
    %23 = math.rsqrt %22 : vector<128x8xf32>
    %24 = arith.mulf %13, %23 : vector<128x8xf32>
    %25 = math.exp %24 : vector<128x8xf32>
    %cst_13 = arith.constant dense<0.000000e+00> : vector<128xf32>
    %26 = vector.multi_reduction <add>, %25, %cst_13 [1] : vector<128x8xf32> to vector<128xf32>
    %27 = vector.shape_cast %26 : vector<128xf32> to vector<128x1xf32>
    %cst_14 = arith.constant 8.000000e+00 : f32
    %28 = vector.broadcast %cst_14 : f32 to vector<128x1xf32>
    %29 = arith.mulf %27, %28 : vector<128x1xf32>
    %30 = tpu.reciprocal %29 {approx = true} : vector<128x1xf32> -> vector<128x1xf32>
    %31 = arith.mulf %29, %30 : vector<128x1xf32>
    %cst_15 = arith.constant 2.000000e+00 : f32
    %32 = vector.broadcast %cst_15 : f32 to vector<128x1xf32>
    %33 = arith.subf %32, %31 : vector<128x1xf32>
    %34 = arith.mulf %30, %33 : vector<128x1xf32>
    %35 = vector.broadcast %34 : vector<128x1xf32> to vector<128x8xf32>
    %36 = arith.mulf %25, %35 : vector<128x8xf32>
    %37 = vector.shape_cast %36 : vector<128x8xf32> to vector<128x8x1xf32>
    %38 = vector.broadcast %37 : vector<128x8x1xf32> to vector<128x8x128xf32>
    %39 = arith.mulf %2, %38 : vector<128x8x128xf32>
    %cst_16 = arith.constant dense<0.000000e+00> : vector<128x128xf32>
    %40 = vector.multi_reduction <add>, %39, %cst_16 [1] : vector<128x8x128xf32> to vector<128x128xf32>
    %41 = arith.mulf %40, %9 : vector<128x128xf32>
    %c0_17 = arith.constant 0 : index
    %c0_18 = arith.constant 0 : index
    %42 = vector.load %arg5[%c0_17, %c0_18] : memref<128x32xf32, #tpu.memory_space<vmem>>, vector<128x32xf32>
    %cst_19 = arith.constant dense<0.000000e+00> : vector<128x32xf32>
    %43 = tpu.matmul %41, %42, %cst_19 {dimension_numbers = #tpu.dot_dimension_numbers<[1], [0], [0], [1], [0, 0, 1, 1], [], []>} : vector<128x128xf32>, vector<128x32xf32>, vector<128x32xf32> -> vector<128x32xf32>
    %c0_20 = arith.constant 0 : index
    %c0_21 = arith.constant 0 : index
    %44 = vector.load %arg6[%c0_20, %c0_21] : memref<1x32xf32, #tpu.memory_space<vmem>>, vector<1x32xf32>
    %45 = vector.broadcast %44 : vector<1x32xf32> to vector<128x32xf32>
    %46 = arith.addf %43, %45 : vector<128x32xf32>
    %cst_22 = arith.constant 0.000000e+00 : f32
    %47 = vector.broadcast %cst_22 : f32 to vector<128x32xf32>
    %48 = arith.maximumf %46, %47 : vector<128x32xf32>
    %c0_23 = arith.constant 0 : index
    %c0_24 = arith.constant 0 : index
    %49 = vector.load %arg7[%c0_23, %c0_24] : memref<128x32xf32, #tpu.memory_space<vmem>>, vector<128x32xf32>
    tpu.vector_store %arg7[%c0_23, %c0_24], %48 {strides = array<i32>} : memref<128x32xf32, #tpu.memory_space<vmem>>, vector<128x32xf32>,
    return
  }
  func.func @transform_0(%arg0: i32) -> (i32, i32) {
    %c0_i32 = arith.constant 0 : i32
    %c0_i32_0 = arith.constant 0 : i32
    return %arg0, %c0_i32 : i32, i32
  }
  func.func @transform_1(%arg0: i32) -> (i32, i32, i32) {
    %c0_i32 = arith.constant 0 : i32
    %c0_i32_0 = arith.constant 0 : i32
    %c0_i32_1 = arith.constant 0 : i32
    return %arg0, %c0_i32, %c0_i32_0 : i32, i32, i32
  }
  func.func @transform_2(%arg0: i32) -> (i32, i32) {
    %c0_i32 = arith.constant 0 : i32
    %c0_i32_0 = arith.constant 0 : i32
    %c0_i32_1 = arith.constant 0 : i32
    return %c0_i32, %c0_i32_0 : i32, i32
  }
  func.func @transform_3(%arg0: i32) -> (i32, i32) {
    %c0_i32 = arith.constant 0 : i32
    %c0_i32_0 = arith.constant 0 : i32
    %c0_i32_1 = arith.constant 0 : i32
    return %c0_i32, %c0_i32_0 : i32, i32
  }
  func.func @transform_4(%arg0: i32) -> (i32, i32) {
    %c0_i32 = arith.constant 0 : i32
    %c0_i32_0 = arith.constant 0 : i32
    %c0_i32_1 = arith.constant 0 : i32
    return %c0_i32, %c0_i32_0 : i32, i32
  }
  func.func @transform_5(%arg0: i32) -> (i32, i32) {
    %c0_i32 = arith.constant 0 : i32
    %c0_i32_0 = arith.constant 0 : i32
    %c0_i32_1 = arith.constant 0 : i32
    return %c0_i32, %c0_i32_0 : i32, i32
  }
  func.func @transform_6(%arg0: i32) -> (i32, i32) {
    %c0_i32 = arith.constant 0 : i32
    %c0_i32_0 = arith.constant 0 : i32
    return %arg0, %c0_i32 : i32, i32
  }
}

</mosaic_0001>

<llo_original>
// kernel: mem_attention.1
$region0: #{mem_attention.1}
  #allocation0 [shape = 'u32[]', space=smem, size = 0x4, offset = 0x4, fixed_abs, tag = 'smem constant byte address 0x4 - core index']
  #allocation1 [shape = 'u32[144,128]{1,0:T(1,128)}', space=vmem, size = 0x12000, scoped, tag = 'internal scratch']
  %s0 = inlined_call_operand.vmem [shape: f32[256,32], index: 0, kind: input, shape index: {}]
  %s1 = inlined_call_operand.hbm [shape: bf16[256,8,128], index: 1, kind: input, shape index: {}]
  %s2 = inlined_call_operand.vmem [shape: f32[32,128], index: 2, kind: input, shape index: {}]
  %s3 = inlined_call_operand.vmem [shape: f32[1,128], index: 3, kind: input, shape index: {}]
  %s4 = inlined_call_operand.vmem [shape: f32[128,32], index: 4, kind: input, shape index: {}]
  %s5 = inlined_call_operand.vmem [shape: f32[1,32], index: 5, kind: input, shape index: {}]
  %s6 = inlined_call_operand.vmem [shape: f32[256,32], index: 6, kind: output, shape index: {}]
  %s7 = sld [smem:[#allocation0]]
  $region61: #{mem_attention.1} parent=0
    _
  %s9 = ssub.s32 1, %s7
  %s10 = scalar_select 0, %s9, %s7
  $region1: #{mem_attention.1} parent=0
    #allocation2 [shape = 'u8[524288]{0}', space=vmem, size = 0x80000, scoped, tag = 'input window, operand 1']
    #allocation3 [shape = 's32[2]{0}', space=sflag, size = 0x8, scoped, tag = 'scoped memory for mem_attention.1']
    %11 = vsyncpa [#allocation3], 0
    %s12 = scalar_lea.sflag [#allocation3], 1
    %13 = vsyncpa %s12, 0
    loop: start=0, step=1, limit=4
    $region2: #{mem_attention.1} parent=1 // loop_pre_header
      _
    $region3: #{mem_attention.1} parent=1 // loop_header
      %s15 = sphi 0, %s19
      %p16 = scmp.ge.s32.totalorder %s15, 4
      %s25 = sphi 0, %s27
      %s28 = sphi 0, %s25
      %s29 = sphi 0, %s28
      %s45 = sphi 0, %s29
      %s51 = sphi 0, %s53
      %s54 = sphi 0, %s51
      %s55 = sphi 0, %s54
      %s71 = sphi 0, %s55
      %s75 = sphi 0, %s75
      %s77 = sphi 0, %s75
      %s78 = sphi 0, %s77
      %s92 = sphi 0, %s78
      %s96 = sphi 0, %s96
      %s98 = sphi 0, %s96
      %s99 = sphi 0, %s98
      %s113 = sphi 0, %s99
      %s117 = sphi 0, %s117
      %s119 = sphi 0, %s117
      %s120 = sphi 0, %s119
      %s134 = sphi 0, %s120
      %s138 = sphi 0, %s138
      %s140 = sphi 0, %s138
      %s141 = sphi 0, %s140
      %s155 = sphi 0, %s141
      %s161 = sphi 0, %s163
      %s164 = sphi 0, %s161
      %s165 = sphi 0, %s164
      %s181 = sphi 0, %s165
    $region4: #{mem_attention.1} parent=1 // loop_header_branch
      %18 = sbr.rel (%p16) target = $region8
    $region5: #{mem_attention.1} parent=1 // loop_body
      %s20 = ssub.s32 %s15, 1
      %s21 = ssub.s32 %s15, 2
      %s22 = sadd.s32 %s15, 1
      %s23 = ssub.s32 %s15, %s22
      %p24 = scmp.eq.s32.totalorder %s23, 0
      %s26 = sadd.s32 %s25, 1
      %s27 = scalar_select %p24, %s25, %s26
      %p30 = pneg %p24
      %p31 = scmp.eq.s32.totalorder %s15, 1
      %p32 = por %p30, %p31
      %p33 = scmp.ne.s32.totalorder %s25, %s28
      %p34 = scmp.eq.s32.totalorder %s15, 0
      %p35 = por %p33, %p34
      %p36 = scmp.ne.s32.totalorder %s25, %s28
      %p37 = scmp.eq.s32.totalorder %s20, 1
      %p38 = por %p36, %p37
      %p39 = scmp.ne.s32.totalorder %s28, %s29
      %p40 = scmp.eq.s32.totalorder %s20, 0
      %p41 = por %p39, %p40
      %p42 = scmp.ne.s32.totalorder %s28, %s29
      %p43 = scmp.eq.s32.totalorder %s21, 1
      %p44 = por %p42, %p43
      %p46 = scmp.ne.s32.totalorder %s29, %s45
      %p47 = scmp.eq.s32.totalorder %s21, 0
      %p48 = por %p46, %p47
      %s49 = ssub.s32 %s15, %s22
      %p50 = scmp.eq.s32.totalorder %s49, 0
      %s52 = sadd.s32 %s51, 1
      %s53 = scalar_select %p50, %s51, %s52
      %p56 = pneg %p50
      %p57 = scmp.eq.s32.totalorder %s15, 1
      %p58 = por %p56, %p57
      %p59 = scmp.ne.s32.totalorder %s51, %s54
      %p60 = scmp.eq.s32.totalorder %s15, 0
      %p61 = por %p59, %p60
      %p62 = scmp.ne.s32.totalorder %s51, %s54
      %p63 = scmp.eq.s32.totalorder %s20, 1
      %p64 = por %p62, %p63
      %p65 = scmp.ne.s32.totalorder %s54, %s55
      %p66 = scmp.eq.s32.totalorder %s20, 0
      %p67 = por %p65, %p66
      %p68 = scmp.ne.s32.totalorder %s54, %s55
      %p69 = scmp.eq.s32.totalorder %s21, 1
      %p70 = por %p68, %p69
      %p72 = scmp.ne.s32.totalorder %s55, %s71
      %p73 = scmp.eq.s32.totalorder %s21, 0
      %p74 = por %p72, %p73
      %s76 = sadd.s32 %s75, 1
      %p79 = scmp.eq.s32.totalorder %s15, 1
      %p80 = scmp.ne.s32.totalorder %s75, %s77
      %p81 = scmp.eq.s32.totalorder %s15, 0
      %p82 = por %p80, %p81
      %p83 = scmp.ne.s32.totalorder %s75, %s77
      %p84 = scmp.eq.s32.totalorder %s20, 1
      %p85 = por %p83, %p84
      %p86 = scmp.ne.s32.totalorder %s77, %s78
      %p87 = scmp.eq.s32.totalorder %s20, 0
      %p88 = por %p86, %p87
      %p89 = scmp.ne.s32.totalorder %s77, %s78
      %p90 = scmp.eq.s32.totalorder %s21, 1
      %p91 = por %p89, %p90
      %p93 = scmp.ne.s32.totalorder %s78, %s92
      %p94 = scmp.eq.s32.totalorder %s21, 0
      %p95 = por %p93, %p94
      %s97 = sadd.s32 %s96, 1
      %p100 = scmp.eq.s32.totalorder %s15, 1
      %p101 = scmp.ne.s32.totalorder %s96, %s98
      %p102 = scmp.eq.s32.totalorder %s15, 0
      %p103 = por %p101, %p102
      %p104 = scmp.ne.s32.totalorder %s96, %s98
      %p105 = scmp.eq.s32.totalorder %s20, 1
      %p106 = por %p104, %p105
      %p107 = scmp.ne.s32.totalorder %s98, %s99
      %p108 = scmp.eq.s32.totalorder %s20, 0
      %p109 = por %p107, %p108
      %p110 = scmp.ne.s32.totalorder %s98, %s99
      %p111 = scmp.eq.s32.totalorder %s21, 1
      %p112 = por %p110, %p111
      %p114 = scmp.ne.s32.totalorder %s99, %s113
      %p115 = scmp.eq.s32.totalorder %s21, 0
      %p116 = por %p114, %p115
      %s118 = sadd.s32 %s117, 1
      %p121 = scmp.eq.s32.totalorder %s15, 1
      %p122 = scmp.ne.s32.totalorder %s117, %s119
      %p123 = scmp.eq.s32.totalorder %s15, 0
      %p124 = por %p122, %p123
      %p125 = scmp.ne.s32.totalorder %s117, %s119
      %p126 = scmp.eq.s32.totalorder %s20, 1
      %p127 = por %p125, %p126
      %p128 = scmp.ne.s32.totalorder %s119, %s120
      %p129 = scmp.eq.s32.totalorder %s20, 0
      %p130 = por %p128, %p129
      %p131 = scmp.ne.s32.totalorder %s119, %s120
      %p132 = scmp.eq.s32.totalorder %s21, 1
      %p133 = por %p131, %p132
      %p135 = scmp.ne.s32.totalorder %s120, %s134
      %p136 = scmp.eq.s32.totalorder %s21, 0
      %p137 = por %p135, %p136
      %s139 = sadd.s32 %s138, 1
      %p142 = scmp.eq.s32.totalorder %s15, 1
      %p143 = scmp.ne.s32.totalorder %s138, %s140
      %p144 = scmp.eq.s32.totalorder %s15, 0
      %p145 = por %p143, %p144
      %p146 = scmp.ne.s32.totalorder %s138, %s140
      %p147 = scmp.eq.s32.totalorder %s20, 1
      %p148 = por %p146, %p147
      %p149 = scmp.ne.s32.totalorder %s140, %s141
      %p150 = scmp.eq.s32.totalorder %s20, 0
      %p151 = por %p149, %p150
      %p152 = scmp.ne.s32.totalorder %s140, %s141
      %p153 = scmp.eq.s32.totalorder %s21, 1
      %p154 = por %p152, %p153
      %p156 = scmp.ne.s32.totalorder %s141, %s155
      %p157 = scmp.eq.s32.totalorder %s21, 0
      %p158 = por %p156, %p157
      %s159 = ssub.s32 %s15, %s22
      %p160 = scmp.eq.s32.totalorder %s159, 0
      %s162 = sadd.s32 %s161, 1
      %s163 = scalar_select %p160, %s161, %s162
      %p166 = pneg %p160
      %p167 = scmp.eq.s32.totalorder %s15, 1
      %p168 = por %p166, %p167
      %p169 = scmp.ne.s32.totalorder %s161, %s164
      %p170 = scmp.eq.s32.totalorder %s15, 0
      %p171 = por %p169, %p170
      %p172 = scmp.ne.s32.totalorder %s161, %s164
      %p173 = scmp.eq.s32.totalorder %s20, 1
      %p174 = por %p172, %p173
      %p175 = scmp.ne.s32.totalorder %s164, %s165
      %p176 = scmp.eq.s32.totalorder %s20, 0
      %p177 = por %p175, %p176
      %p178 = scmp.ne.s32.totalorder %s164, %s165
      %p179 = scmp.eq.s32.totalorder %s21, 1
      %p180 = por %p178, %p179
      %p182 = scmp.ne.s32.totalorder %s165, %s181
      %p183 = scmp.eq.s32.totalorder %s21, 0
      %p184 = por %p182, %p183
      %p185 = scmp.le.s32.totalorder 1, %s15
      %p186 = scmp.lt.s32.totalorder %s15, 3
      %p187 = pnand %p185, %p186
      %p188 = pneg %p187
      // Predicated region
      $region9: #{mem_attention.1} parent=5 // pred_check
        _
      $region10: #{mem_attention.1} parent=5 // pred_check_branch
        %190 = sbr.rel (%p187) target = $region12
      $region11: #{mem_attention.1} parent=5 // pred_region
        %s191 = ssub.s32 %s15, 1
        // Predicated region
        $region13: #{mem_attention.1} parent=11 // pred_check
          %p192 = pneg %p88
        $region14: #{mem_attention.1} parent=11 // pred_check_branch
          %194 = sbr.rel (%p192) target = $region16
        $region15: #{mem_attention.1} parent=11 // pred_region
          _
        $region16: #{mem_attention.1} parent=11 // pred_fallthru
          _
        // Predicated region
        $region17: #{mem_attention.1} parent=11 // pred_check
          %p195 = pneg %p109
        $region18: #{mem_attention.1} parent=11 // pred_check_branch
          %197 = sbr.rel (%p195) target = $region20
        $region19: #{mem_attention.1} parent=11 // pred_region
          _
        $region20: #{mem_attention.1} parent=11 // pred_fallthru
          _
        // Predicated region
        $region21: #{mem_attention.1} parent=11 // pred_check
          %p198 = pneg %p130
        $region22: #{mem_attention.1} parent=11 // pred_check_branch
          %200 = sbr.rel (%p198) target = $region24
        $region23: #{mem_attention.1} parent=11 // pred_region
          _
        $region24: #{mem_attention.1} parent=11 // pred_fallthru
          _
        // Predicated region
        $region25: #{mem_attention.1} parent=11 // pred_check
          %p201 = pneg %p151
        $region26: #{mem_attention.1} parent=11 // pred_check_branch
          %203 = sbr.rel (%p201) target = $region28
        $region27: #{mem_attention.1} parent=11 // pred_region
          _
        $region28: #{mem_attention.1} parent=11 // pred_fallthru
          _
      $region12: #{mem_attention.1} parent=5 // pred_fallthru
        _
      %p204 = scmp.lt.s32.totalorder %s15, 2
      // Predicated region
      $region29: #{mem_attention.1} parent=5 // pred_check
        %p205 = pneg %p204
      $region30: #{mem_attention.1} parent=5 // pred_check_branch
        %207 = sbr.rel (%p205) target = $region32
      $region31: #{mem_attention.1} parent=5 // pred_region
        // Predicated region
        $region33: #{mem_attention.1} parent=31 // pred_check
          %p208 = pneg %p35
        $region34: #{mem_attention.1} parent=31 // pred_check_branch
          %210 = sbr.rel (%p208) target = $region36
        $region35: #{mem_attention.1} parent=31 // pred_region
          %s211 = smul.u32 16, %s15
          %p212 = scmp.lt.s32.totalorder %s211, 31
          %s213 = scalar_select %p212, %s211, 31
          %s214 = smul.addr %s213, 8
          %s215 = scalar_lea.vmem %s0, %s214
          %s216 = smul.u32 16, %s15
        $region36: #{mem_attention.1} parent=31 // pred_fallthru
          _
        // Predicated region
        $region37: #{mem_attention.1} parent=31 // pred_check
          %p217 = pneg %p61
        $region38: #{mem_attention.1} parent=31 // pred_check_branch
          %219 = sbr.rel (%p217) target = $region40
        $region39: #{mem_attention.1} parent=31 // pred_region
          %s220 = sand.u32 %s51, 1
          %s221 = scalar_lea.sflag [#allocation3], %s220
          %s222 = sand.u32 %s51, 1
          %s223 = smul.addr %s222, 512
          %s224 = scalar_lea.vmem [#allocation2], %s223
          %s225 = smul.u32 128, %s15
          %s227 = ssub.s32 8192, 8192
          %228 = vsyncadd %s221, %s227
          %s229 = smul.addr %s225, 64
          %s230 = scalar_lea.hbm %s1, %s229
          %s231 = sshll.u32 %s224, 4
          %s232 = int_to_ptr.vmem [resolvable:$true] %s231
          %237 = dma.hbm_to_vmem [thread:$0]  %s230, 8192, %s232, %s221, 64, 64, 4
        $region40: #{mem_attention.1} parent=31 // pred_fallthru
          _
      $region32: #{mem_attention.1} parent=5 // pred_fallthru
        _
      %p238 = scmp.le.s32.totalorder 1, %s15
      %p239 = scmp.lt.s32.totalorder %s15, 3
      %p240 = pnand %p238, %p239
      %p241 = pneg %p240
      // Predicated region
      $region41: #{mem_attention.1} parent=5 // pred_check
        _
      $region42: #{mem_attention.1} parent=5 // pred_check_branch
        %243 = sbr.rel (%p240) target = $region44
      $region43: #{mem_attention.1} parent=5 // pred_region
        %s244 = ssub.s32 %s15, 1
        %s245 = sand.u32 %s54, 1
        %s246 = scalar_lea.sflag [#allocation3], %s245
        %s247 = sand.u32 %s54, 1
        %s248 = smul.addr %s247, 512
        %s249 = scalar_lea.vmem [#allocation2], %s248
        // Predicated region
        $region45: #{mem_attention.1} parent=43 // pred_check
          %p250 = pneg %p67
        $region46: #{mem_attention.1} parent=43 // pred_check_branch
          %252 = sbr.rel (%p250) target = $region48
        $region47: #{mem_attention.1} parent=43 // pred_region
          %253 = dma.done %s246, 8192
        $region48: #{mem_attention.1} parent=43 // pred_fallthru
          _
        %s254 = smul.u32 16, %s20
        %p255 = scmp.lt.s32.totalorder %s254, 31
        %s256 = scalar_select %p255, %s254, 31
        %s257 = smul.addr %s256, 8
        %s258 = scalar_lea.vmem %s0, %s257
        %p259 = pneg %p41
        %p260 = pneg %p38
        %s261 = sand.u32 %s54, 1
        %s262 = scalar_lea.sflag [#allocation3], %s261
        %s263 = sand.u32 %s54, 1
        %s264 = smul.addr %s263, 512
        %s265 = scalar_lea.vmem [#allocation2], %s264
        %p266 = pneg %p67
        %p267 = pneg %p64
        %p268 = pneg %p88
        %p269 = pneg %p85
        %p270 = pneg %p109
        %p271 = pneg %p106
        %p272 = pneg %p130
        %p273 = pneg %p127
        %p274 = pneg %p151
        %p275 = pneg %p148
        %p276 = pneg %p177
        %p277 = pneg %p174
        %s278 = smul.u32 16, %s20
        %p279 = scmp.lt.s32.totalorder %s278, 31
        %s280 = scalar_select %p279, %s278, 31
        %s281 = smul.addr %s280, 8
        %s282 = scalar_lea.vmem %s6, %s281
        %s283 = smul.u32 16, %s20
        %p284 = scmp.lt.s32.totalorder %s283, 31
        %s285 = scalar_select %p284, %s283, 31
        %s286 = smul.addr %s285, 8
        %s287 = scalar_lea.vmem %s0, %s286
        %s288 = smul.u32 16, %s20
        %s289 = smul.u32 128, %s20
        %s290 = smul.u32 16, %s20
        %p291 = scmp.lt.s32.totalorder %s290, 31
        %s292 = scalar_select %p291, %s290, 31
        %s293 = smul.addr %s292, 8
        %s294 = scalar_lea.vmem %s6, %s293
        %s295 = smul.u32 16, %s20
        %v296 = vld [vmem:[%s287] sm:$0xff]
        %v297 = vld [vmem:[%s287 + $0x8] sm:$0xff]
        %v298 = vld [vmem:[%s287 + $0x10] sm:$0xff]
        %v299 = vld [vmem:[%s287 + $0x18] sm:$0xff]
        %v300 = vld [vmem:[%s287 + $0x20] sm:$0xff]
        %v301 = vld [vmem:[%s287 + $0x28] sm:$0xff]
        %v302 = vld [vmem:[%s287 + $0x30] sm:$0xff]
        %v303 = vld [vmem:[%s287 + $0x38] sm:$0xff]
        %v304 = vld [vmem:[%s287 + $0x40] sm:$0xff]
        %v305 = vld [vmem:[%s287 + $0x48] sm:$0xff]
        %v306 = vld [vmem:[%s287 + $0x50] sm:$0xff]
        %v307 = vld [vmem:[%s287 + $0x58] sm:$0xff]
        %v308 = vld [vmem:[%s287 + $0x60] sm:$0xff]
        %v309 = vld [vmem:[%s287 + $0x68] sm:$0xff]
        %v310 = vld [vmem:[%s287 + $0x70] sm:$0xff]
        %v311 = vld [vmem:[%s287 + $0x78] sm:$0xff]
        %v312 = vld [vmem:[%s249] sm:$0xf]
        %v313 = vld [vmem:[%s249 + $0x4] sm:$0xf]
        %v314 = vld [vmem:[%s249 + $0x8] sm:$0xf]
        %v315 = vld [vmem:[%s249 + $0xc] sm:$0xf]
        %v316 = vld [vmem:[%s249 + $0x10] sm:$0xf]
        %v317 = vld [vmem:[%s249 + $0x14] sm:$0xf]
        %v318 = vld [vmem:[%s249 + $0x18] sm:$0xf]
        %v319 = vld [vmem:[%s249 + $0x1c] sm:$0xf]
        %v320 = vld [vmem:[%s249 + $0x20] sm:$0xf]
        %v321 = vld [vmem:[%s249 + $0x24] sm:$0xf]
        %v322 = vld [vmem:[%s249 + $0x28] sm:$0xf]
        %v323 = vld [vmem:[%s249 + $0x2c] sm:$0xf]
        %v324 = vld [vmem:[%s249 + $0x30] sm:$0xf]
        %v325 = vld [vmem:[%s249 + $0x34] sm:$0xf]
        %v326 = vld [vmem:[%s249 + $0x38] sm:$0xf]
        %v327 = vld [vmem:[%s249 + $0x3c] sm:$0xf]
        %v328 = vld [vmem:[%s249 + $0x40] sm:$0xf]
        %v329 = vld [vmem:[%s249 + $0x44] sm:$0xf]
        %v330 = vld [vmem:[%s249 + $0x48] sm:$0xf]
        %v331 = vld [vmem:[%s249 + $0x4c] sm:$0xf]
        %v332 = vld [vmem:[%s249 + $0x50] sm:$0xf]
        %v333 = vld [vmem:[%s249 + $0x54] sm:$0xf]
        %v334 = vld [vmem:[%s249 + $0x58] sm:$0xf]
        %v335 = vld [vmem:[%s249 + $0x5c] sm:$0xf]
        %v336 = vld [vmem:[%s249 + $0x60] sm:$0xf]
        %v337 = vld [vmem:[%s249 + $0x64] sm:$0xf]
        %v338 = vld [vmem:[%s249 + $0x68] sm:$0xf]
        %v339 = vld [vmem:[%s249 + $0x6c] sm:$0xf]
        %v340 = vld [vmem:[%s249 + $0x70] sm:$0xf]
        %v341 = vld [vmem:[%s249 + $0x74] sm:$0xf]
        %v342 = vld [vmem:[%s249 + $0x78] sm:$0xf]
        %v343 = vld [vmem:[%s249 + $0x7c] sm:$0xf]
        %v344 = vld [vmem:[%s249 + $0x80] sm:$0xf]
        %v345 = vld [vmem:[%s249 + $0x84] sm:$0xf]
        %v346 = vld [vmem:[%s249 + $0x88] sm:$0xf]
        %v347 = vld [vmem:[%s249 + $0x8c] sm:$0xf]
        %v348 = vld [vmem:[%s249 + $0x90] sm:$0xf]
        %v349 = vld [vmem:[%s249 + $0x94] sm:$0xf]
        %v350 = vld [vmem:[%s249 + $0x98] sm:$0xf]
        %v351 = vld [vmem:[%s249 + $0x9c] sm:$0xf]
        %v352 = vld [vmem:[%s249 + $0xa0] sm:$0xf]
        %v353 = vld [vmem:[%s249 + $0xa4] sm:$0xf]
        %v354 = vld [vmem:[%s249 + $0xa8] sm:$0xf]
        %v355 = vld [vmem:[%s249 + $0xac] sm:$0xf]
        %v356 = vld [vmem:[%s249 + $0xb0] sm:$0xf]
        %v357 = vld [vmem:[%s249 + $0xb4] sm:$0xf]
        %v358 = vld [vmem:[%s249 + $0xb8] sm:$0xf]
        %v359 = vld [vmem:[%s249 + $0xbc] sm:$0xf]
        %v360 = vld [vmem:[%s249 + $0xc0] sm:$0xf]
        %v361 = vld [vmem:[%s249 + $0xc4] sm:$0xf]
        %v362 = vld [vmem:[%s249 + $0xc8] sm:$0xf]
        %v363 = vld [vmem:[%s249 + $0xcc] sm:$0xf]
        %v364 = vld [vmem:[%s249 + $0xd0] sm:$0xf]
        %v365 = vld [vmem:[%s249 + $0xd4] sm:$0xf]
        %v366 = vld [vmem:[%s249 + $0xd8] sm:$0xf]
        %v367 = vld [vmem:[%s249 + $0xdc] sm:$0xf]
        %v368 = vld [vmem:[%s249 + $0xe0] sm:$0xf]
        %v369 = vld [vmem:[%s249 + $0xe4] sm:$0xf]
        %v370 = vld [vmem:[%s249 + $0xe8] sm:$0xf]
        %v371 = vld [vmem:[%s249 + $0xec] sm:$0xf]
        %v372 = vld [vmem:[%s249 + $0xf0] sm:$0xf]
        %v373 = vld [vmem:[%s249 + $0xf4] sm:$0xf]
        %v374 = vld [vmem:[%s249 + $0xf8] sm:$0xf]
        %v375 = vld [vmem:[%s249 + $0xfc] sm:$0xf]
        %v376 = vld [vmem:[%s249 + $0x100] sm:$0xf]
        %v377 = vld [vmem:[%s249 + $0x104] sm:$0xf]
        %v378 = vld [vmem:[%s249 + $0x108] sm:$0xf]
        %v379 = vld [vmem:[%s249 + $0x10c] sm:$0xf]
        %v380 = vld [vmem:[%s249 + $0x110] sm:$0xf]
        %v381 = vld [vmem:[%s249 + $0x114] sm:$0xf]
        %v382 = vld [vmem:[%s249 + $0x118] sm:$0xf]
        %v383 = vld [vmem:[%s249 + $0x11c] sm:$0xf]
        %v384 = vld [vmem:[%s249 + $0x120] sm:$0xf]
        %v385 = vld [vmem:[%s249 + $0x124] sm:$0xf]
        %v386 = vld [vmem:[%s249 + $0x128] sm:$0xf]
        %v387 = vld [vmem:[%s249 + $0x12c] sm:$0xf]
        %v388 = vld [vmem:[%s249 + $0x130] sm:$0xf]
        %v389 = vld [vmem:[%s249 + $0x134] sm:$0xf]
        %v390 = vld [vmem:[%s249 + $0x138] sm:$0xf]
        %v391 = vld [vmem:[%s249 + $0x13c] sm:$0xf]
        %v392 = vld [vmem:[%s249 + $0x140] sm:$0xf]
        %v393 = vld [vmem:[%s249 + $0x144] sm:$0xf]
        %v394 = vld [vmem:[%s249 + $0x148] sm:$0xf]
        %v395 = vld [vmem:[%s249 + $0x14c] sm:$0xf]
        %v396 = vld [vmem:[%s249 + $0x150] sm:$0xf]
        %v397 = vld [vmem:[%s249 + $0x154] sm:$0xf]
        %v398 = vld [vmem:[%s249 + $0x158] sm:$0xf]
        %v399 = vld [vmem:[%s249 + $0x15c] sm:$0xf]
        %v400 = vld [vmem:[%s249 + $0x160] sm:$0xf]
        %v401 = vld [vmem:[%s249 + $0x164] sm:$0xf]
        %v402 = vld [vmem:[%s249 + $0x168] sm:$0xf]
        %v403 = vld [vmem:[%s249 + $0x16c] sm:$0xf]
        %v404 = vld [vmem:[%s249 + $0x170] sm:$0xf]
        %v405 = vld [vmem:[%s249 + $0x174] sm:$0xf]
        %v406 = vld [vmem:[%s249 + $0x178] sm:$0xf]
        %v407 = vld [vmem:[%s249 + $0x17c] sm:$0xf]
        %v408 = vld [vmem:[%s249 + $0x180] sm:$0xf]
        %v409 = vld [vmem:[%s249 + $0x184] sm:$0xf]
        %v410 = vld [vmem:[%s249 + $0x188] sm:$0xf]
        %v411 = vld [vmem:[%s249 + $0x18c] sm:$0xf]
        %v412 = vld [vmem:[%s249 + $0x190] sm:$0xf]
        %v413 = vld [vmem:[%s249 + $0x194] sm:$0xf]
        %v414 = vld [vmem:[%s249 + $0x198] sm:$0xf]
        %v415 = vld [vmem:[%s249 + $0x19c] sm:$0xf]
        %v416 = vld [vmem:[%s249 + $0x1a0] sm:$0xf]
        %v417 = vld [vmem:[%s249 + $0x1a4] sm:$0xf]
        %v418 = vld [vmem:[%s249 + $0x1a8] sm:$0xf]
        %v419 = vld [vmem:[%s249 + $0x1ac] sm:$0xf]
        %v420 = vld [vmem:[%s249 + $0x1b0] sm:$0xf]
        %v421 = vld [vmem:[%s249 + $0x1b4] sm:$0xf]
        %v422 = vld [vmem:[%s249 + $0x1b8] sm:$0xf]
        %v423 = vld [vmem:[%s249 + $0x1bc] sm:$0xf]
        %v424 = vld [vmem:[%s249 + $0x1c0] sm:$0xf]
        %v425 = vld [vmem:[%s249 + $0x1c4] sm:$0xf]
        %v426 = vld [vmem:[%s249 + $0x1c8] sm:$0xf]
        %v427 = vld [vmem:[%s249 + $0x1cc] sm:$0xf]
        %v428 = vld [vmem:[%s249 + $0x1d0] sm:$0xf]
        %v429 = vld [vmem:[%s249 + $0x1d4] sm:$0xf]
        %v430 = vld [vmem:[%s249 + $0x1d8] sm:$0xf]
        %v431 = vld [vmem:[%s249 + $0x1dc] sm:$0xf]
        %v432 = vld [vmem:[%s249 + $0x1e0] sm:$0xf]
        %v433 = vld [vmem:[%s249 + $0x1e4] sm:$0xf]
        %v434 = vld [vmem:[%s249 + $0x1e8] sm:$0xf]
        %v435 = vld [vmem:[%s249 + $0x1ec] sm:$0xf]
        %v436 = vld [vmem:[%s249 + $0x1f0] sm:$0xf]
        %v437 = vld [vmem:[%s249 + $0x1f4] sm:$0xf]
        %v438 = vld [vmem:[%s249 + $0x1f8] sm:$0xf]
        %v439 = vld [vmem:[%s249 + $0x1fc] sm:$0xf]
        %v440 = vunpack.c.l.bf16 %v312
        %v441 = vunpack.c.l.bf16 %v313
        %v442 = vunpack.c.l.bf16 %v314
        %v443 = vunpack.c.l.bf16 %v315
        %v444 = vunpack.c.l.bf16 %v316
        %v445 = vunpack.c.l.bf16 %v317
        %v446 = vunpack.c.l.bf16 %v318
        %v447 = vunpack.c.l.bf16 %v319
        %v448 = vunpack.c.l.bf16 %v320
        %v449 = vunpack.c.l.bf16 %v321
        %v450 = vunpack.c.l.bf16 %v322
        %v451 = vunpack.c.l.bf16 %v323
        %v452 = vunpack.c.l.bf16 %v324
        %v453 = vunpack.c.l.bf16 %v325
        %v454 = vunpack.c.l.bf16 %v326
        %v455 = vunpack.c.l.bf16 %v327
        %v456 = vunpack.c.l.bf16 %v328
        %v457 = vunpack.c.l.bf16 %v329
        %v458 = vunpack.c.l.bf16 %v330
        %v459 = vunpack.c.l.bf16 %v331
        %v460 = vunpack.c.l.bf16 %v332
        %v461 = vunpack.c.l.bf16 %v333
        %v462 = vunpack.c.l.bf16 %v334
        %v463 = vunpack.c.l.bf16 %v335
        %v464 = vunpack.c.l.bf16 %v336
        %v465 = vunpack.c.l.bf16 %v337
        %v466 = vunpack.c.l.bf16 %v338
        %v467 = vunpack.c.l.bf16 %v339
        %v468 = vunpack.c.l.bf16 %v340
        %v469 = vunpack.c.l.bf16 %v341
        %v470 = vunpack.c.l.bf16 %v342
        %v471 = vunpack.c.l.bf16 %v343
        %v472 = vunpack.c.l.bf16 %v344
        %v473 = vunpack.c.l.bf16 %v345
        %v474 = vunpack.c.l.bf16 %v346
        %v475 = vunpack.c.l.bf16 %v347
        %v476 = vunpack.c.l.bf16 %v348
        %v477 = vunpack.c.l.bf16 %v349
        %v478 = vunpack.c.l.bf16 %v350
        %v479 = vunpack.c.l.bf16 %v351
        %v480 = vunpack.c.l.bf16 %v352
        %v481 = vunpack.c.l.bf16 %v353
        %v482 = vunpack.c.l.bf16 %v354
        %v483 = vunpack.c.l.bf16 %v355
        %v484 = vunpack.c.l.bf16 %v356
        %v485 = vunpack.c.l.bf16 %v357
        %v486 = vunpack.c.l.bf16 %v358
        %v487 = vunpack.c.l.bf16 %v359
        %v488 = vunpack.c.l.bf16 %v360
        %v489 = vunpack.c.l.bf16 %v361
        %v490 = vunpack.c.l.bf16 %v362
        %v491 = vunpack.c.l.bf16 %v363
        %v492 = vunpack.c.l.bf16 %v364
        %v493 = vunpack.c.l.bf16 %v365
        %v494 = vunpack.c.l.bf16 %v366
        %v495 = vunpack.c.l.bf16 %v367
        %v496 = vunpack.c.l.bf16 %v368
        %v497 = vunpack.c.l.bf16 %v369
        %v498 = vunpack.c.l.bf16 %v370
        %v499 = vunpack.c.l.bf16 %v371
        %v500 = vunpack.c.l.bf16 %v372
        %v501 = vunpack.c.l.bf16 %v373
        %v502 = vunpack.c.l.bf16 %v374
        %v503 = vunpack.c.l.bf16 %v375
        %v504 = vunpack.c.l.bf16 %v376
        %v505 = vunpack.c.l.bf16 %v377
        %v506 = vunpack.c.l.bf16 %v378
        %v507 = vunpack.c.l.bf16 %v379
        %v508 = vunpack.c.l.bf16 %v380
        %v509 = vunpack.c.l.bf16 %v381
        %v510 = vunpack.c.l.bf16 %v382
        %v511 = vunpack.c.l.bf16 %v383
        %v512 = vunpack.c.l.bf16 %v384
        %v513 = vunpack.c.l.bf16 %v385
        %v514 = vunpack.c.l.bf16 %v386
        %v515 = vunpack.c.l.bf16 %v387
        %v516 = vunpack.c.l.bf16 %v388
        %v517 = vunpack.c.l.bf16 %v389
        %v518 = vunpack.c.l.bf16 %v390
        %v519 = vunpack.c.l.bf16 %v391
        %v520 = vunpack.c.l.bf16 %v392
        %v521 = vunpack.c.l.bf16 %v393
        %v522 = vunpack.c.l.bf16 %v394
        %v523 = vunpack.c.l.bf16 %v395
        %v524 = vunpack.c.l.bf16 %v396
        %v525 = vunpack.c.l.bf16 %v397
        %v526 = vunpack.c.l.bf16 %v398
        %v527 = vunpack.c.l.bf16 %v399
        %v528 = vunpack.c.l.bf16 %v400
        %v529 = vunpack.c.l.bf16 %v401
        %v530 = vunpack.c.l.bf16 %v402
        %v531 = vunpack.c.l.bf16 %v403
        %v532 = vunpack.c.l.bf16 %v404
        %v533 = vunpack.c.l.bf16 %v405
        %v534 = vunpack.c.l.bf16 %v406
        %v535 = vunpack.c.l.bf16 %v407
        %v536 = vunpack.c.l.bf16 %v408
        %v537 = vunpack.c.l.bf16 %v409
        %v538 = vunpack.c.l.bf16 %v410
        %v539 = vunpack.c.l.bf16 %v411
        %v540 = vunpack.c.l.bf16 %v412
        %v541 = vunpack.c.l.bf16 %v413
        %v542 = vunpack.c.l.bf16 %v414
        %v543 = vunpack.c.l.bf16 %v415
        %v544 = vunpack.c.l.bf16 %v416
        %v545 = vunpack.c.l.bf16 %v417
        %v546 = vunpack.c.l.bf16 %v418
        %v547 = vunpack.c.l.bf16 %v419
        %v548 = vunpack.c.l.bf16 %v420
        %v549 = vunpack.c.l.bf16 %v421
        %v550 = vunpack.c.l.bf16 %v422
        %v551 = vunpack.c.l.bf16 %v423
        %v552 = vunpack.c.l.bf16 %v424
        %v553 = vunpack.c.l.bf16 %v425
        %v554 = vunpack.c.l.bf16 %v426
        %v555 = vunpack.c.l.bf16 %v427
        %v556 = vunpack.c.l.bf16 %v428
        %v557 = vunpack.c.l.bf16 %v429
        %v558 = vunpack.c.l.bf16 %v430
        %v559 = vunpack.c.l.bf16 %v431
        %v560 = vunpack.c.l.bf16 %v432
        %v561 = vunpack.c.l.bf16 %v433
        %v562 = vunpack.c.l.bf16 %v434
        %v563 = vunpack.c.l.bf16 %v435
        %v564 = vunpack.c.l.bf16 %v436
        %v565 = vunpack.c.l.bf16 %v437
        %v566 = vunpack.c.l.bf16 %v438
        %v567 = vunpack.c.l.bf16 %v439
        %v568 = vld [vmem:[%s2] sm:$0xff]
        %v569 = vld [vmem:[%s2 + $0x8] sm:$0xff]
        %v570 = vld [vmem:[%s2 + $0x10] sm:$0xff]
        %v571 = vld [vmem:[%s2 + $0x18] sm:$0xff]
        %v572 = vld [vmem:[%s3] sm:$0x1]
        %v574 = vlaneseq
        %v575 = vshrl.u32 %v574, 7
        %v576 = vsub.s32 0, %v575
        %v577 = vrot.slane %v572, %v576
        %vm579 = vcmask 261120
        %v581 = vsel %vm579, %v296, 0
        %v584 = vsel %vm579, %v297, 0
        %v587 = vsel %vm579, %v298, 0
        %v590 = vsel %vm579, %v299, 0
        %v593 = vsel %vm579, %v300, 0
        %v596 = vsel %vm579, %v301, 0
        %v599 = vsel %vm579, %v302, 0
        %v602 = vsel %vm579, %v303, 0
        %v605 = vsel %vm579, %v304, 0
        %v608 = vsel %vm579, %v305, 0
        %v611 = vsel %vm579, %v306, 0
        %v614 = vsel %vm579, %v307, 0
        %v617 = vsel %vm579, %v308, 0
        %v620 = vsel %vm579, %v309, 0
        %v623 = vsel %vm579, %v310, 0
        %v626 = vsel %vm579, %v311, 0
        %628 = vmatprep.subr.mxu0 0.0
        %629 = vmatpush1.msra.mxu0 0.0
        %630 = vmatprep.subr.mxu0 0.0
        %631 = vmatpush1.msra.mxu0 0.0
        %632 = vmatprep.subr.mxu0 0.0
        %633 = vmatpush1.msra.mxu0 0.0
        %634 = vmatprep.subr.mxu0 0.0
        %635 = vmatpush1.msra.mxu0 0.0
        %636 = vmatprep.subr.mxu0 0.0
        %637 = vmatpush1.msra.mxu0 0.0
        %638 = vmatprep.subr.mxu0 0.0
        %639 = vmatpush1.msra.mxu0 0.0
        %640 = vmatprep.subr.mxu0 0.0
        %641 = vmatpush1.msra.mxu0 0.0
        %642 = vmatprep.subr.mxu0 0.0
        %643 = vmatpush1.msra.mxu0 0.0
        %644 = vmatprep.subr.mxu0 0.0
        %645 = vmatpush1.msra.mxu0 0.0
        %646 = vmatprep.subr.mxu0 0.0
        %647 = vmatpush1.msra.mxu0 0.0
        %648 = vmatprep.subr.mxu0 0.0
        %649 = vmatpush1.msra.mxu0 0.0
        %650 = vmatprep.subr.mxu0 0.0
        %651 = vmatpush1.msra.mxu0 0.0
        %652 = vmatprep.subr.mxu0 0.0
        %653 = vmatpush1.msra.mxu0 %v571
        %654 = vmatprep.subr.mxu0 0.0
        %655 = vmatpush1.msra.mxu0 %v570
        %656 = vmatprep.subr.mxu0 0.0
        %657 = vmatpush1.msra.mxu0 %v569
        %658 = vmatprep.subr.mxu0 0.0
        %659 = vmatpush1.msra.mxu0 %v568
        %660 = vmatprep.subr.mxu0 0.0
        %661 = vmatpush2.msra.mxu0 0.0
        %662 = vmatprep.subr.mxu0 0.0
        %663 = vmatpush2.msra.mxu0 0.0
        %664 = vmatprep.subr.mxu0 0.0
        %665 = vmatpush2.msra.mxu0 0.0
        %666 = vmatprep.subr.mxu0 0.0
        %667 = vmatpush2.msra.mxu0 0.0
        %668 = vmatprep.subr.mxu0 0.0
        %669 = vmatpush2.msra.mxu0 0.0
        %670 = vmatprep.subr.mxu0 0.0
        %671 = vmatpush2.msra.mxu0 0.0
        %672 = vmatprep.subr.mxu0 0.0
        %673 = vmatpush2.msra.mxu0 0.0
        %674 = vmatprep.subr.mxu0 0.0
        %675 = vmatpush2.msra.mxu0 0.0
        %676 = vmatprep.subr.mxu0 0.0
        %677 = vmatpush2.msra.mxu0 0.0
        %678 = vmatprep.subr.mxu0 0.0
        %679 = vmatpush2.msra.mxu0 0.0
        %680 = vmatprep.subr.mxu0 0.0
        %681 = vmatpush2.msra.mxu0 0.0
        %682 = vmatprep.subr.mxu0 0.0
        %683 = vmatpush2.msra.mxu0 0.0
        %684 = vmatprep.subr.mxu0 0.0
        %685 = vmatpush2.msra.mxu0 0.0
        %686 = vmatprep.subr.mxu0 0.0
        %687 = vmatpush2.msra.mxu0 0.0
        %688 = vmatprep.subr.mxu0 0.0
        %689 = vmatpush2.msra.mxu0 0.0
        %690 = vmatprep.subr.mxu0 0.0
        %691 = vmatpush2.msra.mxu0 0.0
        %692 = vmatprep.mubr.f32.mxu0 0.0
        %693 = vmatmul.mubr.f32.gmra.mxu0 %v581
        %v694 = vpop.f32.mrf.mxu0
        %v695 = vadd.f32 %v577, %v694
        %v696 = vpop.f32.mrf.mxu0
        %697 = vmatprep.mubr.f32.mxu0 0.0
        %698 = vmatmul.mubr.f32.gmra.mxu0 %v584
        %v699 = vpop.f32.mrf.mxu0
        %v700 = vadd.f32 %v577, %v699
        %v701 = vpop.f32.mrf.mxu0
        %702 = vmatprep.mubr.f32.mxu0 0.0
        %703 = vmatmul.mubr.f32.gmra.mxu0 %v587
        %v704 = vpop.f32.mrf.mxu0
        %v705 = vadd.f32 %v577, %v704
        %v706 = vpop.f32.mrf.mxu0
        %707 = vmatprep.mubr.f32.mxu0 0.0
        %708 = vmatmul.mubr.f32.gmra.mxu0 %v590
        %v709 = vpop.f32.mrf.mxu0
        %v710 = vadd.f32 %v577, %v709
        %v711 = vpop.f32.mrf.mxu0
        %712 = vmatprep.mubr.f32.mxu0 0.0
        %713 = vmatmul.mubr.f32.gmra.mxu0 %v593
        %v714 = vpop.f32.mrf.mxu0
        %v715 = vadd.f32 %v577, %v714
        %v716 = vpop.f32.mrf.mxu0
        %717 = vmatprep.mubr.f32.mxu0 0.0
        %718 = vmatmul.mubr.f32.gmra.mxu0 %v596
        %v719 = vpop.f32.mrf.mxu0
        %v720 = vadd.f32 %v577, %v719
        %v721 = vpop.f32.mrf.mxu0
        %722 = vmatprep.mubr.f32.mxu0 0.0
        %723 = vmatmul.mubr.f32.gmra.mxu0 %v599
        %v724 = vpop.f32.mrf.mxu0
        %v725 = vadd.f32 %v577, %v724
        %v726 = vpop.f32.mrf.mxu0
        %727 = vmatprep.mubr.f32.mxu0 0.0
        %728 = vmatmul.mubr.f32.gmra.mxu0 %v602
        %v729 = vpop.f32.mrf.mxu0
        %v730 = vadd.f32 %v577, %v729
        %v731 = vpop.f32.mrf.mxu0
        %732 = vmatprep.mubr.f32.mxu0 0.0
        %733 = vmatmul.mubr.f32.gmra.mxu0 %v605
        %v734 = vpop.f32.mrf.mxu0
        %v735 = vadd.f32 %v577, %v734
        %v736 = vpop.f32.mrf.mxu0
        %737 = vmatprep.mubr.f32.mxu0 0.0
        %738 = vmatmul.mubr.f32.gmra.mxu0 %v608
        %v739 = vpop.f32.mrf.mxu0
        %v740 = vadd.f32 %v577, %v739
        %v741 = vpop.f32.mrf.mxu0
        %742 = vmatprep.mubr.f32.mxu0 0.0
        %743 = vmatmul.mubr.f32.gmra.mxu0 %v611
        %v744 = vpop.f32.mrf.mxu0
        %v745 = vadd.f32 %v577, %v744
        %v746 = vpop.f32.mrf.mxu0
        %747 = vmatprep.mubr.f32.mxu0 0.0
        %748 = vmatmul.mubr.f32.gmra.mxu0 %v614
        %v749 = vpop.f32.mrf.mxu0
        %v750 = vadd.f32 %v577, %v749
        %v751 = vpop.f32.mrf.mxu0
        %752 = vmatprep.mubr.f32.mxu0 0.0
        %753 = vmatmul.mubr.f32.gmra.mxu0 %v617
        %v754 = vpop.f32.mrf.mxu0
        %v755 = vadd.f32 %v577, %v754
        %v756 = vpop.f32.mrf.mxu0
        %757 = vmatprep.mubr.f32.mxu0 0.0
        %758 = vmatmul.mubr.f32.gmra.mxu0 %v620
        %v759 = vpop.f32.mrf.mxu0
        %v760 = vadd.f32 %v577, %v759
        %v761 = vpop.f32.mrf.mxu0
        %762 = vmatprep.mubr.f32.mxu0 0.0
        %763 = vmatmul.mubr.f32.gmra.mxu0 %v623
        %v764 = vpop.f32.mrf.mxu0
        %v765 = vadd.f32 %v577, %v764
        %v766 = vpop.f32.mrf.mxu0
        %767 = vmatprep.mubr.f32.mxu0 0.0
        %768 = vmatmul.mubr.f32.gmra.mxu0 %v626
        %v769 = vpop.f32.mrf.mxu0
        %v770 = vadd.f32 %v577, %v769
        %v771 = vpop.f32.mrf.mxu0
        %772 = vdwg.mxu0
        %v773 = vmax.f32 %v695, 0.0
        %v774 = vmax.f32 %v700, 0.0
        %v775 = vmax.f32 %v705, 0.0
        %v776 = vmax.f32 %v710, 0.0
        %v777 = vmax.f32 %v715, 0.0
        %v778 = vmax.f32 %v720, 0.0
        %v779 = vmax.f32 %v725, 0.0
        %v780 = vmax.f32 %v730, 0.0
        %v781 = vmax.f32 %v735, 0.0
        %v782 = vmax.f32 %v740, 0.0
        %v783 = vmax.f32 %v745, 0.0
        %v784 = vmax.f32 %v750, 0.0
        %v785 = vmax.f32 %v755, 0.0
        %v786 = vmax.f32 %v760, 0.0
        %v787 = vmax.f32 %v765, 0.0
        %v788 = vmax.f32 %v770, 0.0
        %v805 = vcombine.high %v773, %v773
        %v807 = vunpack.c.l.s4 1966171168
        %v808 = vunpack.c.0.s8 %v807
        %v809 = vlaneseq
        %v810 = vshrl.u32 %v809, 7
        %v811 = vsub.s32 %v808, %v810
        %v812 = vrot.slane %v773, %v811
        %v814 = vunpack.c.l.s4 1966171168
        %v815 = vunpack.c.0.s8 %v814
        %v816 = vlaneseq
        %v817 = vshrl.u32 %v816, 7
        %v818 = vsub.s32 %v815, %v817
        %v819 = vrot.slane %v805, %v818
        %v820 = vcombine.high %v812, %v812
        %v821 = vcombine.high %v819, %v819
        %v823 = vunpack.c.l.s4 1966171168
        %v824 = vunpack.c.0.s8 %v823
        %v825 = vlaneseq
        %v826 = vshrl.u32 %v825, 7
        %v827 = vsub.s32 %v824, %v826
        %v828 = vrot.slane %v812, %v827
        %v830 = vunpack.c.l.s4 1966171168
        %v831 = vunpack.c.0.s8 %v830
        %v832 = vlaneseq
        %v833 = vshrl.u32 %v832, 7
        %v834 = vsub.s32 %v831, %v833
        %v835 = vrot.slane %v819, %v834
        %v837 = vunpack.c.l.s4 1966171168
        %v838 = vunpack.c.0.s8 %v837
        %v839 = vlaneseq
        %v840 = vshrl.u32 %v839, 7
        %v841 = vsub.s32 %v838, %v840
        %v842 = vrot.slane %v820, %v841
        %v844 = vunpack.c.l.s4 1966171168
        %v845 = vunpack.c.0.s8 %v844
        %v846 = vlaneseq
        %v847 = vshrl.u32 %v846, 7
        %v848 = vsub.s32 %v845, %v847
        %v849 = vrot.slane %v821, %v848
        %v850 = vcombine.high %v828, %v828
        %v851 = vcombine.high %v835, %v835
        %v852 = vcombine.high %v842, %v842
        %v853 = vcombine.high %v849, %v849
        %v854 = vcombine.high %v774, %v774
        %v856 = vunpack.c.l.s4 1966171168
        %v857 = vunpack.c.0.s8 %v856
        %v858 = vlaneseq
        %v859 = vshrl.u32 %v858, 7
        %v860 = vsub.s32 %v857, %v859
        %v861 = vrot.slane %v774, %v860
        %v863 = vunpack.c.l.s4 1966171168
        %v864 = vunpack.c.0.s8 %v863
        %v865 = vlaneseq
        %v866 = vshrl.u32 %v865, 7
        %v867 = vsub.s32 %v864, %v866
        %v868 = vrot.slane %v854, %v867
        %v869 = vcombine.high %v861, %v861
        %v870 = vcombine.high %v868, %v868
        %v872 = vunpack.c.l.s4 1966171168
        %v873 = vunpack.c.0.s8 %v872
        %v874 = vlaneseq
        %v875 = vshrl.u32 %v874, 7
        %v876 = vsub.s32 %v873, %v875
        %v877 = vrot.slane %v861, %v876
        %v879 = vunpack.c.l.s4 1966171168
        %v880 = vunpack.c.0.s8 %v879
        %v881 = vlaneseq
        %v882 = vshrl.u32 %v881, 7
        %v883 = vsub.s32 %v880, %v882
        %v884 = vrot.slane %v868, %v883
        %v886 = vunpack.c.l.s4 1966171168
        %v887 = vunpack.c.0.s8 %v886
        %v888 = vlaneseq
        %v889 = vshrl.u32 %v888, 7
        %v890 = vsub.s32 %v887, %v889
        %v891 = vrot.slane %v869, %v890
        %v893 = vunpack.c.l.s4 1966171168
        %v894 = vunpack.c.0.s8 %v893
        %v895 = vlaneseq
        %v896 = vshrl.u32 %v895, 7
        %v897 = vsub.s32 %v894, %v896
        %v898 = vrot.slane %v870, %v897
        %v899 = vcombine.high %v877, %v877
        %v900 = vcombine.high %v884, %v884
        %v901 = vcombine.high %v891, %v891
        %v902 = vcombine.high %v898, %v898
        %v903 = vcombine.high %v775, %v775
        %v905 = vunpack.c.l.s4 1966171168
        %v906 = vunpack.c.0.s8 %v905
        %v907 = vlaneseq
        %v908 = vshrl.u32 %v907, 7
        %v909 = vsub.s32 %v906, %v908
        %v910 = vrot.slane %v775, %v909
        %v912 = vunpack.c.l.s4 1966171168
        %v913 = vunpack.c.0.s8 %v912
        %v914 = vlaneseq
        %v915 = vshrl.u32 %v914, 7
        %v916 = vsub.s32 %v913, %v915
        %v917 = vrot.slane %v903, %v916
        %v918 = vcombine.high %v910, %v910
        %v919 = vcombine.high %v917, %v917
        %v921 = vunpack.c.l.s4 1966171168
        %v922 = vunpack.c.0.s8 %v921
        %v923 = vlaneseq
        %v924 = vshrl.u32 %v923, 7
        %v925 = vsub.s32 %v922, %v924
        %v926 = vrot.slane %v910, %v925
        %v928 = vunpack.c.l.s4 1966171168
        %v929 = vunpack.c.0.s8 %v928
        %v930 = vlaneseq
        %v931 = vshrl.u32 %v930, 7
        %v932 = vsub.s32 %v929, %v931
        %v933 = vrot.slane %v917, %v932
        %v935 = vunpack.c.l.s4 1966171168
        %v936 = vunpack.c.0.s8 %v935
        %v937 = vlaneseq
        %v938 = vshrl.u32 %v937, 7
        %v939 = vsub.s32 %v936, %v938
        %v940 = vrot.slane %v918, %v939
        %v942 = vunpack.c.l.s4 1966171168
        %v943 = vunpack.c.0.s8 %v942
        %v944 = vlaneseq
        %v945 = vshrl.u32 %v944, 7
        %v946 = vsub.s32 %v943, %v945
        %v947 = vrot.slane %v919, %v946
        %v948 = vcombine.high %v926, %v926
        %v949 = vcombine.high %v933, %v933
        %v950 = vcombine.high %v940, %v940
        %v951 = vcombine.high %v947, %v947
        %v952 = vcombine.high %v776, %v776
        %v954 = vunpack.c.l.s4 1966171168
        %v955 = vunpack.c.0.s8 %v954
        %v956 = vlaneseq
        %v957 = vshrl.u32 %v956, 7
        %v958 = vsub.s32 %v955, %v957
        %v959 = vrot.slane %v776, %v958
        %v961 = vunpack.c.l.s4 1966171168
        %v962 = vunpack.c.0.s8 %v961
        %v963 = vlaneseq
        %v964 = vshrl.u32 %v963, 7
        %v965 = vsub.s32 %v962, %v964
        %v966 = vrot.slane %v952, %v965
        %v967 = vcombine.high %v959, %v959
        %v968 = vcombine.high %v966, %v966
        %v970 = vunpack.c.l.s4 1966171168
        %v971 = vunpack.c.0.s8 %v970
        %v972 = vlaneseq
        %v973 = vshrl.u32 %v972, 7
        %v974 = vsub.s32 %v971, %v973
        %v975 = vrot.slane %v959, %v974
        %v977 = vunpack.c.l.s4 1966171168
        %v978 = vunpack.c.0.s8 %v977
        %v979 = vlaneseq
        %v980 = vshrl.u32 %v979, 7
        %v981 = vsub.s32 %v978, %v980
        %v982 = vrot.slane %v966, %v981
        %v984 = vunpack.c.l.s4 1966171168
        %v985 = vunpack.c.0.s8 %v984
        %v986 = vlaneseq
        %v987 = vshrl.u32 %v986, 7
        %v988 = vsub.s32 %v985, %v987
        %v989 = vrot.slane %v967, %v988
        %v991 = vunpack.c.l.s4 1966171168
        %v992 = vunpack.c.0.s8 %v991
        %v993 = vlaneseq
        %v994 = vshrl.u32 %v993, 7
        %v995 = vsub.s32 %v992, %v994
        %v996 = vrot.slane %v968, %v995
        %v997 = vcombine.high %v975, %v975
        %v998 = vcombine.high %v982, %v982
        %v999 = vcombine.high %v989, %v989
        %v1000 = vcombine.high %v996, %v996
        %v1001 = vcombine.high %v777, %v777
        %v1003 = vunpack.c.l.s4 1966171168
        %v1004 = vunpack.c.0.s8 %v1003
        %v1005 = vlaneseq
        %v1006 = vshrl.u32 %v1005, 7
        %v1007 = vsub.s32 %v1004, %v1006
        %v1008 = vrot.slane %v777, %v1007
        %v1010 = vunpack.c.l.s4 1966171168
        %v1011 = vunpack.c.0.s8 %v1010
        %v1012 = vlaneseq
        %v1013 = vshrl.u32 %v1012, 7
        %v1014 = vsub.s32 %v1011, %v1013
        %v1015 = vrot.slane %v1001, %v1014
        %v1016 = vcombine.high %v1008, %v1008
        %v1017 = vcombine.high %v1015, %v1015
        %v1019 = vunpack.c.l.s4 1966171168
        %v1020 = vunpack.c.0.s8 %v1019
        %v1021 = vlaneseq
        %v1022 = vshrl.u32 %v1021, 7
        %v1023 = vsub.s32 %v1020, %v1022
        %v1024 = vrot.slane %v1008, %v1023
        %v1026 = vunpack.c.l.s4 1966171168
        %v1027 = vunpack.c.0.s8 %v1026
        %v1028 = vlaneseq
        %v1029 = vshrl.u32 %v1028, 7
        %v1030 = vsub.s32 %v1027, %v1029
        %v1031 = vrot.slane %v1015, %v1030
        %v1033 = vunpack.c.l.s4 1966171168
        %v1034 = vunpack.c.0.s8 %v1033
        %v1035 = vlaneseq
        %v1036 = vshrl.u32 %v1035, 7
        %v1037 = vsub.s32 %v1034, %v1036
        %v1038 = vrot.slane %v1016, %v1037
        %v1040 = vunpack.c.l.s4 1966171168
        %v1041 = vunpack.c.0.s8 %v1040
        %v1042 = vlaneseq
        %v1043 = vshrl.u32 %v1042, 7
        %v1044 = vsub.s32 %v1041, %v1043
        %v1045 = vrot.slane %v1017, %v1044
        %v1046 = vcombine.high %v1024, %v1024
        %v1047 = vcombine.high %v1031, %v1031
        %v1048 = vcombine.high %v1038, %v1038
        %v1049 = vcombine.high %v1045, %v1045
        %v1050 = vcombine.high %v778, %v778
        %v1052 = vunpack.c.l.s4 1966171168
        %v1053 = vunpack.c.0.s8 %v1052
        %v1054 = vlaneseq
        %v1055 = vshrl.u32 %v1054, 7
        %v1056 = vsub.s32 %v1053, %v1055
        %v1057 = vrot.slane %v778, %v1056
        %v1059 = vunpack.c.l.s4 1966171168
        %v1060 = vunpack.c.0.s8 %v1059
        %v1061 = vlaneseq
        %v1062 = vshrl.u32 %v1061, 7
        %v1063 = vsub.s32 %v1060, %v1062
        %v1064 = vrot.slane %v1050, %v1063
        %v1065 = vcombine.high %v1057, %v1057
        %v1066 = vcombine.high %v1064, %v1064
        %v1068 = vunpack.c.l.s4 1966171168
        %v1069 = vunpack.c.0.s8 %v1068
        %v1070 = vlaneseq
        %v1071 = vshrl.u32 %v1070, 7
        %v1072 = vsub.s32 %v1069, %v1071
        %v1073 = vrot.slane %v1057, %v1072
        %v1075 = vunpack.c.l.s4 1966171168
        %v1076 = vunpack.c.0.s8 %v1075
        %v1077 = vlaneseq
        %v1078 = vshrl.u32 %v1077, 7
        %v1079 = vsub.s32 %v1076, %v1078
        %v1080 = vrot.slane %v1064, %v1079
        %v1082 = vunpack.c.l.s4 1966171168
        %v1083 = vunpack.c.0.s8 %v1082
        %v1084 = vlaneseq
        %v1085 = vshrl.u32 %v1084, 7
        %v1086 = vsub.s32 %v1083, %v1085
        %v1087 = vrot.slane %v1065, %v1086
        %v1089 = vunpack.c.l.s4 1966171168
        %v1090 = vunpack.c.0.s8 %v1089
        %v1091 = vlaneseq
        %v1092 = vshrl.u32 %v1091, 7
        %v1093 = vsub.s32 %v1090, %v1092
        %v1094 = vrot.slane %v1066, %v1093
        %v1095 = vcombine.high %v1073, %v1073
        %v1096 = vcombine.high %v1080, %v1080
        %v1097 = vcombine.high %v1087, %v1087
        %v1098 = vcombine.high %v1094, %v1094
        %v1099 = vcombine.high %v779, %v779
        %v1101 = vunpack.c.l.s4 1966171168
        %v1102 = vunpack.c.0.s8 %v1101
        %v1103 = vlaneseq
        %v1104 = vshrl.u32 %v1103, 7
        %v1105 = vsub.s32 %v1102, %v1104
        %v1106 = vrot.slane %v779, %v1105
        %v1108 = vunpack.c.l.s4 1966171168
        %v1109 = vunpack.c.0.s8 %v1108
        %v1110 = vlaneseq
        %v1111 = vshrl.u32 %v1110, 7
        %v1112 = vsub.s32 %v1109, %v1111
        %v1113 = vrot.slane %v1099, %v1112
        %v1114 = vcombine.high %v1106, %v1106
        %v1115 = vcombine.high %v1113, %v1113
        %v1117 = vunpack.c.l.s4 1966171168
        %v1118 = vunpack.c.0.s8 %v1117
        %v1119 = vlaneseq
        %v1120 = vshrl.u32 %v1119, 7
        %v1121 = vsub.s32 %v1118, %v1120
        %v1122 = vrot.slane %v1106, %v1121
        %v1124 = vunpack.c.l.s4 1966171168
        %v1125 = vunpack.c.0.s8 %v1124
        %v1126 = vlaneseq
        %v1127 = vshrl.u32 %v1126, 7
        %v1128 = vsub.s32 %v1125, %v1127
        %v1129 = vrot.slane %v1113, %v1128
        %v1131 = vunpack.c.l.s4 1966171168
        %v1132 = vunpack.c.0.s8 %v1131
        %v1133 = vlaneseq
        %v1134 = vshrl.u32 %v1133, 7
        %v1135 = vsub.s32 %v1132, %v1134
        %v1136 = vrot.slane %v1114, %v1135
        %v1138 = vunpack.c.l.s4 1966171168
        %v1139 = vunpack.c.0.s8 %v1138
        %v1140 = vlaneseq
        %v1141 = vshrl.u32 %v1140, 7
        %v1142 = vsub.s32 %v1139, %v1141
        %v1143 = vrot.slane %v1115, %v1142
        %v1144 = vcombine.high %v1122, %v1122
        %v1145 = vcombine.high %v1129, %v1129
        %v1146 = vcombine.high %v1136, %v1136
        %v1147 = vcombine.high %v1143, %v1143
        %v1148 = vcombine.high %v780, %v780
        %v1150 = vunpack.c.l.s4 1966171168
        %v1151 = vunpack.c.0.s8 %v1150
        %v1152 = vlaneseq
        %v1153 = vshrl.u32 %v1152, 7
        %v1154 = vsub.s32 %v1151, %v1153
        %v1155 = vrot.slane %v780, %v1154
        %v1157 = vunpack.c.l.s4 1966171168
        %v1158 = vunpack.c.0.s8 %v1157
        %v1159 = vlaneseq
        %v1160 = vshrl.u32 %v1159, 7
        %v1161 = vsub.s32 %v1158, %v1160
        %v1162 = vrot.slane %v1148, %v1161
        %v1163 = vcombine.high %v1155, %v1155
        %v1164 = vcombine.high %v1162, %v1162
        %v1166 = vunpack.c.l.s4 1966171168
        %v1167 = vunpack.c.0.s8 %v1166
        %v1168 = vlaneseq
        %v1169 = vshrl.u32 %v1168, 7
        %v1170 = vsub.s32 %v1167, %v1169
        %v1171 = vrot.slane %v1155, %v1170
        %v1173 = vunpack.c.l.s4 1966171168
        %v1174 = vunpack.c.0.s8 %v1173
        %v1175 = vlaneseq
        %v1176 = vshrl.u32 %v1175, 7
        %v1177 = vsub.s32 %v1174, %v1176
        %v1178 = vrot.slane %v1162, %v1177
        %v1180 = vunpack.c.l.s4 1966171168
        %v1181 = vunpack.c.0.s8 %v1180
        %v1182 = vlaneseq
        %v1183 = vshrl.u32 %v1182, 7
        %v1184 = vsub.s32 %v1181, %v1183
        %v1185 = vrot.slane %v1163, %v1184
        %v1187 = vunpack.c.l.s4 1966171168
        %v1188 = vunpack.c.0.s8 %v1187
        %v1189 = vlaneseq
        %v1190 = vshrl.u32 %v1189, 7
        %v1191 = vsub.s32 %v1188, %v1190
        %v1192 = vrot.slane %v1164, %v1191
        %v1193 = vcombine.high %v1171, %v1171
        %v1194 = vcombine.high %v1178, %v1178
        %v1195 = vcombine.high %v1185, %v1185
        %v1196 = vcombine.high %v1192, %v1192
        %v1197 = vcombine.high %v781, %v781
        %v1199 = vunpack.c.l.s4 1966171168
        %v1200 = vunpack.c.0.s8 %v1199
        %v1201 = vlaneseq
        %v1202 = vshrl.u32 %v1201, 7
        %v1203 = vsub.s32 %v1200, %v1202
        %v1204 = vrot.slane %v781, %v1203
        %v1206 = vunpack.c.l.s4 1966171168
        %v1207 = vunpack.c.0.s8 %v1206
        %v1208 = vlaneseq
        %v1209 = vshrl.u32 %v1208, 7
        %v1210 = vsub.s32 %v1207, %v1209
        %v1211 = vrot.slane %v1197, %v1210
        %v1212 = vcombine.high %v1204, %v1204
        %v1213 = vcombine.high %v1211, %v1211
        %v1215 = vunpack.c.l.s4 1966171168
        %v1216 = vunpack.c.0.s8 %v1215
        %v1217 = vlaneseq
        %v1218 = vshrl.u32 %v1217, 7
        %v1219 = vsub.s32 %v1216, %v1218
        %v1220 = vrot.slane %v1204, %v1219
        %v1222 = vunpack.c.l.s4 1966171168
        %v1223 = vunpack.c.0.s8 %v1222
        %v1224 = vlaneseq
        %v1225 = vshrl.u32 %v1224, 7
        %v1226 = vsub.s32 %v1223, %v1225
        %v1227 = vrot.slane %v1211, %v1226
        %v1229 = vunpack.c.l.s4 1966171168
        %v1230 = vunpack.c.0.s8 %v1229
        %v1231 = vlaneseq
        %v1232 = vshrl.u32 %v1231, 7
        %v1233 = vsub.s32 %v1230, %v1232
        %v1234 = vrot.slane %v1212, %v1233
        %v1236 = vunpack.c.l.s4 1966171168
        %v1237 = vunpack.c.0.s8 %v1236
        %v1238 = vlaneseq
        %v1239 = vshrl.u32 %v1238, 7
        %v1240 = vsub.s32 %v1237, %v1239
        %v1241 = vrot.slane %v1213, %v1240
        %v1242 = vcombine.high %v1220, %v1220
        %v1243 = vcombine.high %v1227, %v1227
        %v1244 = vcombine.high %v1234, %v1234
        %v1245 = vcombine.high %v1241, %v1241
        %v1246 = vcombine.high %v782, %v782
        %v1248 = vunpack.c.l.s4 1966171168
        %v1249 = vunpack.c.0.s8 %v1248
        %v1250 = vlaneseq
        %v1251 = vshrl.u32 %v1250, 7
        %v1252 = vsub.s32 %v1249, %v1251
        %v1253 = vrot.slane %v782, %v1252
        %v1255 = vunpack.c.l.s4 1966171168
        %v1256 = vunpack.c.0.s8 %v1255
        %v1257 = vlaneseq
        %v1258 = vshrl.u32 %v1257, 7
        %v1259 = vsub.s32 %v1256, %v1258
        %v1260 = vrot.slane %v1246, %v1259
        %v1261 = vcombine.high %v1253, %v1253
        %v1262 = vcombine.high %v1260, %v1260
        %v1264 = vunpack.c.l.s4 1966171168
        %v1265 = vunpack.c.0.s8 %v1264
        %v1266 = vlaneseq
        %v1267 = vshrl.u32 %v1266, 7
        %v1268 = vsub.s32 %v1265, %v1267
        %v1269 = vrot.slane %v1253, %v1268
        %v1271 = vunpack.c.l.s4 1966171168
        %v1272 = vunpack.c.0.s8 %v1271
        %v1273 = vlaneseq
        %v1274 = vshrl.u32 %v1273, 7
        %v1275 = vsub.s32 %v1272, %v1274
        %v1276 = vrot.slane %v1260, %v1275
        %v1278 = vunpack.c.l.s4 1966171168
        %v1279 = vunpack.c.0.s8 %v1278
        %v1280 = vlaneseq
        %v1281 = vshrl.u32 %v1280, 7
        %v1282 = vsub.s32 %v1279, %v1281
        %v1283 = vrot.slane %v1261, %v1282
        %v1285 = vunpack.c.l.s4 1966171168
        %v1286 = vunpack.c.0.s8 %v1285
        %v1287 = vlaneseq
        %v1288 = vshrl.u32 %v1287, 7
        %v1289 = vsub.s32 %v1286, %v1288
        %v1290 = vrot.slane %v1262, %v1289
        %v1291 = vcombine.high %v1269, %v1269
        %v1292 = vcombine.high %v1276, %v1276
        %v1293 = vcombine.high %v1283, %v1283
        %v1294 = vcombine.high %v1290, %v1290
        %v1295 = vcombine.high %v783, %v783
        %v1297 = vunpack.c.l.s4 1966171168
        %v1298 = vunpack.c.0.s8 %v1297
        %v1299 = vlaneseq
        %v1300 = vshrl.u32 %v1299, 7
        %v1301 = vsub.s32 %v1298, %v1300
        %v1302 = vrot.slane %v783, %v1301
        %v1304 = vunpack.c.l.s4 1966171168
        %v1305 = vunpack.c.0.s8 %v1304
        %v1306 = vlaneseq
        %v1307 = vshrl.u32 %v1306, 7
        %v1308 = vsub.s32 %v1305, %v1307
        %v1309 = vrot.slane %v1295, %v1308
        %v1310 = vcombine.high %v1302, %v1302
        %v1311 = vcombine.high %v1309, %v1309
        %v1313 = vunpack.c.l.s4 1966171168
        %v1314 = vunpack.c.0.s8 %v1313
        %v1315 = vlaneseq
        %v1316 = vshrl.u32 %v1315, 7
        %v1317 = vsub.s32 %v1314, %v1316
        %v1318 = vrot.slane %v1302, %v1317
        %v1320 = vunpack.c.l.s4 1966171168
        %v1321 = vunpack.c.0.s8 %v1320
        %v1322 = vlaneseq
        %v1323 = vshrl.u32 %v1322, 7
        %v1324 = vsub.s32 %v1321, %v1323
        %v1325 = vrot.slane %v1309, %v1324
        %v1327 = vunpack.c.l.s4 1966171168
        %v1328 = vunpack.c.0.s8 %v1327
        %v1329 = vlaneseq
        %v1330 = vshrl.u32 %v1329, 7
        %v1331 = vsub.s32 %v1328, %v1330
        %v1332 = vrot.slane %v1310, %v1331
        %v1334 = vunpack.c.l.s4 1966171168
        %v1335 = vunpack.c.0.s8 %v1334
        %v1336 = vlaneseq
        %v1337 = vshrl.u32 %v1336, 7
        %v1338 = vsub.s32 %v1335, %v1337
        %v1339 = vrot.slane %v1311, %v1338
        %v1340 = vcombine.high %v1318, %v1318
        %v1341 = vcombine.high %v1325, %v1325
        %v1342 = vcombine.high %v1332, %v1332
        %v1343 = vcombine.high %v1339, %v1339
        %v1344 = vcombine.high %v784, %v784
        %v1346 = vunpack.c.l.s4 1966171168
        %v1347 = vunpack.c.0.s8 %v1346
        %v1348 = vlaneseq
        %v1349 = vshrl.u32 %v1348, 7
        %v1350 = vsub.s32 %v1347, %v1349
        %v1351 = vrot.slane %v784, %v1350
        %v1353 = vunpack.c.l.s4 1966171168
        %v1354 = vunpack.c.0.s8 %v1353
        %v1355 = vlaneseq
        %v1356 = vshrl.u32 %v1355, 7
        %v1357 = vsub.s32 %v1354, %v1356
        %v1358 = vrot.slane %v1344, %v1357
        %v1359 = vcombine.high %v1351, %v1351
        %v1360 = vcombine.high %v1358, %v1358
        %v1362 = vunpack.c.l.s4 1966171168
        %v1363 = vunpack.c.0.s8 %v1362
        %v1364 = vlaneseq
        %v1365 = vshrl.u32 %v1364, 7
        %v1366 = vsub.s32 %v1363, %v1365
        %v1367 = vrot.slane %v1351, %v1366
        %v1369 = vunpack.c.l.s4 1966171168
        %v1370 = vunpack.c.0.s8 %v1369
        %v1371 = vlaneseq
        %v1372 = vshrl.u32 %v1371, 7
        %v1373 = vsub.s32 %v1370, %v1372
        %v1374 = vrot.slane %v1358, %v1373
        %v1376 = vunpack.c.l.s4 1966171168
        %v1377 = vunpack.c.0.s8 %v1376
        %v1378 = vlaneseq
        %v1379 = vshrl.u32 %v1378, 7
        %v1380 = vsub.s32 %v1377, %v1379
        %v1381 = vrot.slane %v1359, %v1380
        %v1383 = vunpack.c.l.s4 1966171168
        %v1384 = vunpack.c.0.s8 %v1383
        %v1385 = vlaneseq
        %v1386 = vshrl.u32 %v1385, 7
        %v1387 = vsub.s32 %v1384, %v1386
        %v1388 = vrot.slane %v1360, %v1387
        %v1389 = vcombine.high %v1367, %v1367
        %v1390 = vcombine.high %v1374, %v1374
        %v1391 = vcombine.high %v1381, %v1381
        %v1392 = vcombine.high %v1388, %v1388
        %v1393 = vcombine.high %v785, %v785
        %v1395 = vunpack.c.l.s4 1966171168
        %v1396 = vunpack.c.0.s8 %v1395
        %v1397 = vlaneseq
        %v1398 = vshrl.u32 %v1397, 7
        %v1399 = vsub.s32 %v1396, %v1398
        %v1400 = vrot.slane %v785, %v1399
        %v1402 = vunpack.c.l.s4 1966171168
        %v1403 = vunpack.c.0.s8 %v1402
        %v1404 = vlaneseq
        %v1405 = vshrl.u32 %v1404, 7
        %v1406 = vsub.s32 %v1403, %v1405
        %v1407 = vrot.slane %v1393, %v1406
        %v1408 = vcombine.high %v1400, %v1400
        %v1409 = vcombine.high %v1407, %v1407
        %v1411 = vunpack.c.l.s4 1966171168
        %v1412 = vunpack.c.0.s8 %v1411
        %v1413 = vlaneseq
        %v1414 = vshrl.u32 %v1413, 7
        %v1415 = vsub.s32 %v1412, %v1414
        %v1416 = vrot.slane %v1400, %v1415
        %v1418 = vunpack.c.l.s4 1966171168
        %v1419 = vunpack.c.0.s8 %v1418
        %v1420 = vlaneseq
        %v1421 = vshrl.u32 %v1420, 7
        %v1422 = vsub.s32 %v1419, %v1421
        %v1423 = vrot.slane %v1407, %v1422
        %v1425 = vunpack.c.l.s4 1966171168
        %v1426 = vunpack.c.0.s8 %v1425
        %v1427 = vlaneseq
        %v1428 = vshrl.u32 %v1427, 7
        %v1429 = vsub.s32 %v1426, %v1428
        %v1430 = vrot.slane %v1408, %v1429
        %v1432 = vunpack.c.l.s4 1966171168
        %v1433 = vunpack.c.0.s8 %v1432
        %v1434 = vlaneseq
        %v1435 = vshrl.u32 %v1434, 7
        %v1436 = vsub.s32 %v1433, %v1435
        %v1437 = vrot.slane %v1409, %v1436
        %v1438 = vcombine.high %v1416, %v1416
        %v1439 = vcombine.high %v1423, %v1423
        %v1440 = vcombine.high %v1430, %v1430
        %v1441 = vcombine.high %v1437, %v1437
        %v1442 = vcombine.high %v786, %v786
        %v1444 = vunpack.c.l.s4 1966171168
        %v1445 = vunpack.c.0.s8 %v1444
        %v1446 = vlaneseq
        %v1447 = vshrl.u32 %v1446, 7
        %v1448 = vsub.s32 %v1445, %v1447
        %v1449 = vrot.slane %v786, %v1448
        %v1451 = vunpack.c.l.s4 1966171168
        %v1452 = vunpack.c.0.s8 %v1451
        %v1453 = vlaneseq
        %v1454 = vshrl.u32 %v1453, 7
        %v1455 = vsub.s32 %v1452, %v1454
        %v1456 = vrot.slane %v1442, %v1455
        %v1457 = vcombine.high %v1449, %v1449
        %v1458 = vcombine.high %v1456, %v1456
        %v1460 = vunpack.c.l.s4 1966171168
        %v1461 = vunpack.c.0.s8 %v1460
        %v1462 = vlaneseq
        %v1463 = vshrl.u32 %v1462, 7
        %v1464 = vsub.s32 %v1461, %v1463
        %v1465 = vrot.slane %v1449, %v1464
        %v1467 = vunpack.c.l.s4 1966171168
        %v1468 = vunpack.c.0.s8 %v1467
        %v1469 = vlaneseq
        %v1470 = vshrl.u32 %v1469, 7
        %v1471 = vsub.s32 %v1468, %v1470
        %v1472 = vrot.slane %v1456, %v1471
        %v1474 = vunpack.c.l.s4 1966171168
        %v1475 = vunpack.c.0.s8 %v1474
        %v1476 = vlaneseq
        %v1477 = vshrl.u32 %v1476, 7
        %v1478 = vsub.s32 %v1475, %v1477
        %v1479 = vrot.slane %v1457, %v1478
        %v1481 = vunpack.c.l.s4 1966171168
        %v1482 = vunpack.c.0.s8 %v1481
        %v1483 = vlaneseq
        %v1484 = vshrl.u32 %v1483, 7
        %v1485 = vsub.s32 %v1482, %v1484
        %v1486 = vrot.slane %v1458, %v1485
        %v1487 = vcombine.high %v1465, %v1465
        %v1488 = vcombine.high %v1472, %v1472
        %v1489 = vcombine.high %v1479, %v1479
        %v1490 = vcombine.high %v1486, %v1486
        %v1491 = vcombine.high %v787, %v787
        %v1493 = vunpack.c.l.s4 1966171168
        %v1494 = vunpack.c.0.s8 %v1493
        %v1495 = vlaneseq
        %v1496 = vshrl.u32 %v1495, 7
        %v1497 = vsub.s32 %v1494, %v1496
        %v1498 = vrot.slane %v787, %v1497
        %v1500 = vunpack.c.l.s4 1966171168
        %v1501 = vunpack.c.0.s8 %v1500
        %v1502 = vlaneseq
        %v1503 = vshrl.u32 %v1502, 7
        %v1504 = vsub.s32 %v1501, %v1503
        %v1505 = vrot.slane %v1491, %v1504
        %v1506 = vcombine.high %v1498, %v1498
        %v1507 = vcombine.high %v1505, %v1505
        %v1509 = vunpack.c.l.s4 1966171168
        %v1510 = vunpack.c.0.s8 %v1509
        %v1511 = vlaneseq
        %v1512 = vshrl.u32 %v1511, 7
        %v1513 = vsub.s32 %v1510, %v1512
        %v1514 = vrot.slane %v1498, %v1513
        %v1516 = vunpack.c.l.s4 1966171168
        %v1517 = vunpack.c.0.s8 %v1516
        %v1518 = vlaneseq
        %v1519 = vshrl.u32 %v1518, 7
        %v1520 = vsub.s32 %v1517, %v1519
        %v1521 = vrot.slane %v1505, %v1520
        %v1523 = vunpack.c.l.s4 1966171168
        %v1524 = vunpack.c.0.s8 %v1523
        %v1525 = vlaneseq
        %v1526 = vshrl.u32 %v1525, 7
        %v1527 = vsub.s32 %v1524, %v1526
        %v1528 = vrot.slane %v1506, %v1527
        %v1530 = vunpack.c.l.s4 1966171168
        %v1531 = vunpack.c.0.s8 %v1530
        %v1532 = vlaneseq
        %v1533 = vshrl.u32 %v1532, 7
        %v1534 = vsub.s32 %v1531, %v1533
        %v1535 = vrot.slane %v1507, %v1534
        %v1536 = vcombine.high %v1514, %v1514
        %v1537 = vcombine.high %v1521, %v1521
        %v1538 = vcombine.high %v1528, %v1528
        %v1539 = vcombine.high %v1535, %v1535
        %v1540 = vcombine.high %v788, %v788
        %v1542 = vunpack.c.l.s4 1966171168
        %v1543 = vunpack.c.0.s8 %v1542
        %v1544 = vlaneseq
        %v1545 = vshrl.u32 %v1544, 7
        %v1546 = vsub.s32 %v1543, %v1545
        %v1547 = vrot.slane %v788, %v1546
        %v1549 = vunpack.c.l.s4 1966171168
        %v1550 = vunpack.c.0.s8 %v1549
        %v1551 = vlaneseq
        %v1552 = vshrl.u32 %v1551, 7
        %v1553 = vsub.s32 %v1550, %v1552
        %v1554 = vrot.slane %v1540, %v1553
        %v1555 = vcombine.high %v1547, %v1547
        %v1556 = vcombine.high %v1554, %v1554
        %v1558 = vunpack.c.l.s4 1966171168
        %v1559 = vunpack.c.0.s8 %v1558
        %v1560 = vlaneseq
        %v1561 = vshrl.u32 %v1560, 7
        %v1562 = vsub.s32 %v1559, %v1561
        %v1563 = vrot.slane %v1547, %v1562
        %v1565 = vunpack.c.l.s4 1966171168
        %v1566 = vunpack.c.0.s8 %v1565
        %v1567 = vlaneseq
        %v1568 = vshrl.u32 %v1567, 7
        %v1569 = vsub.s32 %v1566, %v1568
        %v1570 = vrot.slane %v1554, %v1569
        %v1572 = vunpack.c.l.s4 1966171168
        %v1573 = vunpack.c.0.s8 %v1572
        %v1574 = vlaneseq
        %v1575 = vshrl.u32 %v1574, 7
        %v1576 = vsub.s32 %v1573, %v1575
        %v1577 = vrot.slane %v1555, %v1576
        %v1579 = vunpack.c.l.s4 1966171168
        %v1580 = vunpack.c.0.s8 %v1579
        %v1581 = vlaneseq
        %v1582 = vshrl.u32 %v1581, 7
        %v1583 = vsub.s32 %v1580, %v1582
        %v1584 = vrot.slane %v1556, %v1583
        %v1585 = vcombine.high %v1563, %v1563
        %v1586 = vcombine.high %v1570, %v1570
        %v1587 = vcombine.high %v1577, %v1577
        %v1588 = vcombine.high %v1584, %v1584
        %v1589 = vlaneseq
        %v1590 = vshrl.u32 %v1589, 7
        %v1591 = vsub.s32 0, %v1590
        %v1592 = vrot.slane %v828, %v1591
        %v1593 = vlaneseq
        %v1594 = vshrl.u32 %v1593, 7
        %v1595 = vsub.s32 0, %v1594
        %v1596 = vrot.slane %v842, %v1595
        %v1597 = vlaneseq
        %v1598 = vshrl.u32 %v1597, 7
        %v1599 = vsub.s32 0, %v1598
        %v1600 = vrot.slane %v850, %v1599
        %v1601 = vlaneseq
        %v1602 = vshrl.u32 %v1601, 7
        %v1603 = vsub.s32 0, %v1602
        %v1604 = vrot.slane %v852, %v1603
        %v1605 = vlaneseq
        %v1606 = vshrl.u32 %v1605, 7
        %v1607 = vsub.s32 0, %v1606
        %v1608 = vrot.slane %v835, %v1607
        %v1609 = vlaneseq
        %v1610 = vshrl.u32 %v1609, 7
        %v1611 = vsub.s32 0, %v1610
        %v1612 = vrot.slane %v849, %v1611
        %v1613 = vlaneseq
        %v1614 = vshrl.u32 %v1613, 7
        %v1615 = vsub.s32 0, %v1614
        %v1616 = vrot.slane %v851, %v1615
        %v1617 = vlaneseq
        %v1618 = vshrl.u32 %v1617, 7
        %v1619 = vsub.s32 0, %v1618
        %v1620 = vrot.slane %v853, %v1619
        %v1621 = vlaneseq
        %v1622 = vshrl.u32 %v1621, 7
        %v1623 = vsub.s32 0, %v1622
        %v1624 = vrot.slane %v877, %v1623
        %v1625 = vlaneseq
        %v1626 = vshrl.u32 %v1625, 7
        %v1627 = vsub.s32 0, %v1626
        %v1628 = vrot.slane %v891, %v1627
        %v1629 = vlaneseq
        %v1630 = vshrl.u32 %v1629, 7
        %v1631 = vsub.s32 0, %v1630
        %v1632 = vrot.slane %v899, %v1631
        %v1633 = vlaneseq
        %v1634 = vshrl.u32 %v1633, 7
        %v1635 = vsub.s32 0, %v1634
        %v1636 = vrot.slane %v901, %v1635
        %v1637 = vlaneseq
        %v1638 = vshrl.u32 %v1637, 7
        %v1639 = vsub.s32 0, %v1638
        %v1640 = vrot.slane %v884, %v1639
        %v1641 = vlaneseq
        %v1642 = vshrl.u32 %v1641, 7
        %v1643 = vsub.s32 0, %v1642
        %v1644 = vrot.slane %v898, %v1643
        %v1645 = vlaneseq
        %v1646 = vshrl.u32 %v1645, 7
        %v1647 = vsub.s32 0, %v1646
        %v1648 = vrot.slane %v900, %v1647
        %v1649 = vlaneseq
        %v1650 = vshrl.u32 %v1649, 7
        %v1651 = vsub.s32 0, %v1650
        %v1652 = vrot.slane %v902, %v1651
        %v1653 = vlaneseq
        %v1654 = vshrl.u32 %v1653, 7
        %v1655 = vsub.s32 0, %v1654
        %v1656 = vrot.slane %v926, %v1655
        %v1657 = vlaneseq
        %v1658 = vshrl.u32 %v1657, 7
        %v1659 = vsub.s32 0, %v1658
        %v1660 = vrot.slane %v940, %v1659
        %v1661 = vlaneseq
        %v1662 = vshrl.u32 %v1661, 7
        %v1663 = vsub.s32 0, %v1662
        %v1664 = vrot.slane %v948, %v1663
        %v1665 = vlaneseq
        %v1666 = vshrl.u32 %v1665, 7
        %v1667 = vsub.s32 0, %v1666
        %v1668 = vrot.slane %v950, %v1667
        %v1669 = vlaneseq
        %v1670 = vshrl.u32 %v1669, 7
        %v1671 = vsub.s32 0, %v1670
        %v1672 = vrot.slane %v933, %v1671
        %v1673 = vlaneseq
        %v1674 = vshrl.u32 %v1673, 7
        %v1675 = vsub.s32 0, %v1674
        %v1676 = vrot.slane %v947, %v1675
        %v1677 = vlaneseq
        %v1678 = vshrl.u32 %v1677, 7
        %v1679 = vsub.s32 0, %v1678
        %v1680 = vrot.slane %v949, %v1679
        %v1681 = vlaneseq
        %v1682 = vshrl.u32 %v1681, 7
        %v1683 = vsub.s32 0, %v1682
        %v1684 = vrot.slane %v951, %v1683
        %v1685 = vlaneseq
        %v1686 = vshrl.u32 %v1685, 7
        %v1687 = vsub.s32 0, %v1686
        %v1688 = vrot.slane %v975, %v1687
        %v1689 = vlaneseq
        %v1690 = vshrl.u32 %v1689, 7
        %v1691 = vsub.s32 0, %v1690
        %v1692 = vrot.slane %v989, %v1691
        %v1693 = vlaneseq
        %v1694 = vshrl.u32 %v1693, 7
        %v1695 = vsub.s32 0, %v1694
        %v1696 = vrot.slane %v997, %v1695
        %v1697 = vlaneseq
        %v1698 = vshrl.u32 %v1697, 7
        %v1699 = vsub.s32 0, %v1698
        %v1700 = vrot.slane %v999, %v1699
        %v1701 = vlaneseq
        %v1702 = vshrl.u32 %v1701, 7
        %v1703 = vsub.s32 0, %v1702
        %v1704 = vrot.slane %v982, %v1703
        %v1705 = vlaneseq
        %v1706 = vshrl.u32 %v1705, 7
        %v1707 = vsub.s32 0, %v1706
        %v1708 = vrot.slane %v996, %v1707
        %v1709 = vlaneseq
        %v1710 = vshrl.u32 %v1709, 7
        %v1711 = vsub.s32 0, %v1710
        %v1712 = vrot.slane %v998, %v1711
        %v1713 = vlaneseq
        %v1714 = vshrl.u32 %v1713, 7
        %v1715 = vsub.s32 0, %v1714
        %v1716 = vrot.slane %v1000, %v1715
        %v1717 = vlaneseq
        %v1718 = vshrl.u32 %v1717, 7
        %v1719 = vsub.s32 0, %v1718
        %v1720 = vrot.slane %v1024, %v1719
        %v1721 = vlaneseq
        %v1722 = vshrl.u32 %v1721, 7
        %v1723 = vsub.s32 0, %v1722
        %v1724 = vrot.slane %v1038, %v1723
        %v1725 = vlaneseq
        %v1726 = vshrl.u32 %v1725, 7
        %v1727 = vsub.s32 0, %v1726
        %v1728 = vrot.slane %v1046, %v1727
        %v1729 = vlaneseq
        %v1730 = vshrl.u32 %v1729, 7
        %v1731 = vsub.s32 0, %v1730
        %v1732 = vrot.slane %v1048, %v1731
        %v1733 = vlaneseq
        %v1734 = vshrl.u32 %v1733, 7
        %v1735 = vsub.s32 0, %v1734
        %v1736 = vrot.slane %v1031, %v1735
        %v1737 = vlaneseq
        %v1738 = vshrl.u32 %v1737, 7
        %v1739 = vsub.s32 0, %v1738
        %v1740 = vrot.slane %v1045, %v1739
        %v1741 = vlaneseq
        %v1742 = vshrl.u32 %v1741, 7
        %v1743 = vsub.s32 0, %v1742
        %v1744 = vrot.slane %v1047, %v1743
        %v1745 = vlaneseq
        %v1746 = vshrl.u32 %v1745, 7
        %v1747 = vsub.s32 0, %v1746
        %v1748 = vrot.slane %v1049, %v1747
        %v1749 = vlaneseq
        %v1750 = vshrl.u32 %v1749, 7
        %v1751 = vsub.s32 0, %v1750
        %v1752 = vrot.slane %v1073, %v1751
        %v1753 = vlaneseq
        %v1754 = vshrl.u32 %v1753, 7
        %v1755 = vsub.s32 0, %v1754
        %v1756 = vrot.slane %v1087, %v1755
        %v1757 = vlaneseq
        %v1758 = vshrl.u32 %v1757, 7
        %v1759 = vsub.s32 0, %v1758
        %v1760 = vrot.slane %v1095, %v1759
        %v1761 = vlaneseq
        %v1762 = vshrl.u32 %v1761, 7
        %v1763 = vsub.s32 0, %v1762
        %v1764 = vrot.slane %v1097, %v1763
        %v1765 = vlaneseq
        %v1766 = vshrl.u32 %v1765, 7
        %v1767 = vsub.s32 0, %v1766
        %v1768 = vrot.slane %v1080, %v1767
        %v1769 = vlaneseq
        %v1770 = vshrl.u32 %v1769, 7
        %v1771 = vsub.s32 0, %v1770
        %v1772 = vrot.slane %v1094, %v1771
        %v1773 = vlaneseq
        %v1774 = vshrl.u32 %v1773, 7
        %v1775 = vsub.s32 0, %v1774
        %v1776 = vrot.slane %v1096, %v1775
        %v1777 = vlaneseq
        %v1778 = vshrl.u32 %v1777, 7
        %v1779 = vsub.s32 0, %v1778
        %v1780 = vrot.slane %v1098, %v1779
        %v1781 = vlaneseq
        %v1782 = vshrl.u32 %v1781, 7
        %v1783 = vsub.s32 0, %v1782
        %v1784 = vrot.slane %v1122, %v1783
        %v1785 = vlaneseq
        %v1786 = vshrl.u32 %v1785, 7
        %v1787 = vsub.s32 0, %v1786
        %v1788 = vrot.slane %v1136, %v1787
        %v1789 = vlaneseq
        %v1790 = vshrl.u32 %v1789, 7
        %v1791 = vsub.s32 0, %v1790
        %v1792 = vrot.slane %v1144, %v1791
        %v1793 = vlaneseq
        %v1794 = vshrl.u32 %v1793, 7
        %v1795 = vsub.s32 0, %v1794
        %v1796 = vrot.slane %v1146, %v1795
        %v1797 = vlaneseq
        %v1798 = vshrl.u32 %v1797, 7
        %v1799 = vsub.s32 0, %v1798
        %v1800 = vrot.slane %v1129, %v1799
        %v1801 = vlaneseq
        %v1802 = vshrl.u32 %v1801, 7
        %v1803 = vsub.s32 0, %v1802
        %v1804 = vrot.slane %v1143, %v1803
        %v1805 = vlaneseq
        %v1806 = vshrl.u32 %v1805, 7
        %v1807 = vsub.s32 0, %v1806
        %v1808 = vrot.slane %v1145, %v1807
        %v1809 = vlaneseq
        %v1810 = vshrl.u32 %v1809, 7
        %v1811 = vsub.s32 0, %v1810
        %v1812 = vrot.slane %v1147, %v1811
        %v1813 = vlaneseq
        %v1814 = vshrl.u32 %v1813, 7
        %v1815 = vsub.s32 0, %v1814
        %v1816 = vrot.slane %v1171, %v1815
        %v1817 = vlaneseq
        %v1818 = vshrl.u32 %v1817, 7
        %v1819 = vsub.s32 0, %v1818
        %v1820 = vrot.slane %v1185, %v1819
        %v1821 = vlaneseq
        %v1822 = vshrl.u32 %v1821, 7
        %v1823 = vsub.s32 0, %v1822
        %v1824 = vrot.slane %v1193, %v1823
        %v1825 = vlaneseq
        %v1826 = vshrl.u32 %v1825, 7
        %v1827 = vsub.s32 0, %v1826
        %v1828 = vrot.slane %v1195, %v1827
        %v1829 = vlaneseq
        %v1830 = vshrl.u32 %v1829, 7
        %v1831 = vsub.s32 0, %v1830
        %v1832 = vrot.slane %v1178, %v1831
        %v1833 = vlaneseq
        %v1834 = vshrl.u32 %v1833, 7
        %v1835 = vsub.s32 0, %v1834
        %v1836 = vrot.slane %v1192, %v1835
        %v1837 = vlaneseq
        %v1838 = vshrl.u32 %v1837, 7
        %v1839 = vsub.s32 0, %v1838
        %v1840 = vrot.slane %v1194, %v1839
        %v1841 = vlaneseq
        %v1842 = vshrl.u32 %v1841, 7
        %v1843 = vsub.s32 0, %v1842
        %v1844 = vrot.slane %v1196, %v1843
        %v1845 = vlaneseq
        %v1846 = vshrl.u32 %v1845, 7
        %v1847 = vsub.s32 0, %v1846
        %v1848 = vrot.slane %v1220, %v1847
        %v1849 = vlaneseq
        %v1850 = vshrl.u32 %v1849, 7
        %v1851 = vsub.s32 0, %v1850
        %v1852 = vrot.slane %v1234, %v1851
        %v1853 = vlaneseq
        %v1854 = vshrl.u32 %v1853, 7
        %v1855 = vsub.s32 0, %v1854
        %v1856 = vrot.slane %v1242, %v1855
        %v1857 = vlaneseq
        %v1858 = vshrl.u32 %v1857, 7
        %v1859 = vsub.s32 0, %v1858
        %v1860 = vrot.slane %v1244, %v1859
        %v1861 = vlaneseq
        %v1862 = vshrl.u32 %v1861, 7
        %v1863 = vsub.s32 0, %v1862
        %v1864 = vrot.slane %v1227, %v1863
        %v1865 = vlaneseq
        %v1866 = vshrl.u32 %v1865, 7
        %v1867 = vsub.s32 0, %v1866
        %v1868 = vrot.slane %v1241, %v1867
        %v1869 = vlaneseq
        %v1870 = vshrl.u32 %v1869, 7
        %v1871 = vsub.s32 0, %v1870
        %v1872 = vrot.slane %v1243, %v1871
        %v1873 = vlaneseq
        %v1874 = vshrl.u32 %v1873, 7
        %v1875 = vsub.s32 0, %v1874
        %v1876 = vrot.slane %v1245, %v1875
        %v1877 = vlaneseq
        %v1878 = vshrl.u32 %v1877, 7
        %v1879 = vsub.s32 0, %v1878
        %v1880 = vrot.slane %v1269, %v1879
        %v1881 = vlaneseq
        %v1882 = vshrl.u32 %v1881, 7
        %v1883 = vsub.s32 0, %v1882
        %v1884 = vrot.slane %v1283, %v1883
        %v1885 = vlaneseq
        %v1886 = vshrl.u32 %v1885, 7
        %v1887 = vsub.s32 0, %v1886
        %v1888 = vrot.slane %v1291, %v1887
        %v1889 = vlaneseq
        %v1890 = vshrl.u32 %v1889, 7
        %v1891 = vsub.s32 0, %v1890
        %v1892 = vrot.slane %v1293, %v1891
        %v1893 = vlaneseq
        %v1894 = vshrl.u32 %v1893, 7
        %v1895 = vsub.s32 0, %v1894
        %v1896 = vrot.slane %v1276, %v1895
        %v1897 = vlaneseq
        %v1898 = vshrl.u32 %v1897, 7
        %v1899 = vsub.s32 0, %v1898
        %v1900 = vrot.slane %v1290, %v1899
        %v1901 = vlaneseq
        %v1902 = vshrl.u32 %v1901, 7
        %v1903 = vsub.s32 0, %v1902
        %v1904 = vrot.slane %v1292, %v1903
        %v1905 = vlaneseq
        %v1906 = vshrl.u32 %v1905, 7
        %v1907 = vsub.s32 0, %v1906
        %v1908 = vrot.slane %v1294, %v1907
        %v1909 = vlaneseq
        %v1910 = vshrl.u32 %v1909, 7
        %v1911 = vsub.s32 0, %v1910
        %v1912 = vrot.slane %v1318, %v1911
        %v1913 = vlaneseq
        %v1914 = vshrl.u32 %v1913, 7
        %v1915 = vsub.s32 0, %v1914
        %v1916 = vrot.slane %v1332, %v1915
        %v1917 = vlaneseq
        %v1918 = vshrl.u32 %v1917, 7
        %v1919 = vsub.s32 0, %v1918
        %v1920 = vrot.slane %v1340, %v1919
        %v1921 = vlaneseq
        %v1922 = vshrl.u32 %v1921, 7
        %v1923 = vsub.s32 0, %v1922
        %v1924 = vrot.slane %v1342, %v1923
        %v1925 = vlaneseq
        %v1926 = vshrl.u32 %v1925, 7
        %v1927 = vsub.s32 0, %v1926
        %v1928 = vrot.slane %v1325, %v1927
        %v1929 = vlaneseq
        %v1930 = vshrl.u32 %v1929, 7
        %v1931 = vsub.s32 0, %v1930
        %v1932 = vrot.slane %v1339, %v1931
        %v1933 = vlaneseq
        %v1934 = vshrl.u32 %v1933, 7
        %v1935 = vsub.s32 0, %v1934
        %v1936 = vrot.slane %v1341, %v1935
        %v1937 = vlaneseq
        %v1938 = vshrl.u32 %v1937, 7
        %v1939 = vsub.s32 0, %v1938
        %v1940 = vrot.slane %v1343, %v1939
        %v1941 = vlaneseq
        %v1942 = vshrl.u32 %v1941, 7
        %v1943 = vsub.s32 0, %v1942
        %v1944 = vrot.slane %v1367, %v1943
        %v1945 = vlaneseq
        %v1946 = vshrl.u32 %v1945, 7
        %v1947 = vsub.s32 0, %v1946
        %v1948 = vrot.slane %v1381, %v1947
        %v1949 = vlaneseq
        %v1950 = vshrl.u32 %v1949, 7
        %v1951 = vsub.s32 0, %v1950
        %v1952 = vrot.slane %v1389, %v1951
        %v1953 = vlaneseq
        %v1954 = vshrl.u32 %v1953, 7
        %v1955 = vsub.s32 0, %v1954
        %v1956 = vrot.slane %v1391, %v1955
        %v1957 = vlaneseq
        %v1958 = vshrl.u32 %v1957, 7
        %v1959 = vsub.s32 0, %v1958
        %v1960 = vrot.slane %v1374, %v1959
        %v1961 = vlaneseq
        %v1962 = vshrl.u32 %v1961, 7
        %v1963 = vsub.s32 0, %v1962
        %v1964 = vrot.slane %v1388, %v1963
        %v1965 = vlaneseq
        %v1966 = vshrl.u32 %v1965, 7
        %v1967 = vsub.s32 0, %v1966
        %v1968 = vrot.slane %v1390, %v1967
        %v1969 = vlaneseq
        %v1970 = vshrl.u32 %v1969, 7
        %v1971 = vsub.s32 0, %v1970
        %v1972 = vrot.slane %v1392, %v1971
        %v1973 = vlaneseq
        %v1974 = vshrl.u32 %v1973, 7
        %v1975 = vsub.s32 0, %v1974
        %v1976 = vrot.slane %v1416, %v1975
        %v1977 = vlaneseq
        %v1978 = vshrl.u32 %v1977, 7
        %v1979 = vsub.s32 0, %v1978
        %v1980 = vrot.slane %v1430, %v1979
        %v1981 = vlaneseq
        %v1982 = vshrl.u32 %v1981, 7
        %v1983 = vsub.s32 0, %v1982
        %v1984 = vrot.slane %v1438, %v1983
        %v1985 = vlaneseq
        %v1986 = vshrl.u32 %v1985, 7
        %v1987 = vsub.s32 0, %v1986
        %v1988 = vrot.slane %v1440, %v1987
        %v1989 = vlaneseq
        %v1990 = vshrl.u32 %v1989, 7
        %v1991 = vsub.s32 0, %v1990
        %v1992 = vrot.slane %v1423, %v1991
        %v1993 = vlaneseq
        %v1994 = vshrl.u32 %v1993, 7
        %v1995 = vsub.s32 0, %v1994
        %v1996 = vrot.slane %v1437, %v1995
        %v1997 = vlaneseq
        %v1998 = vshrl.u32 %v1997, 7
        %v1999 = vsub.s32 0, %v1998
        %v2000 = vrot.slane %v1439, %v1999
        %v2001 = vlaneseq
        %v2002 = vshrl.u32 %v2001, 7
        %v2003 = vsub.s32 0, %v2002
        %v2004 = vrot.slane %v1441, %v2003
        %v2005 = vlaneseq
        %v2006 = vshrl.u32 %v2005, 7
        %v2007 = vsub.s32 0, %v2006
        %v2008 = vrot.slane %v1465, %v2007
        %v2009 = vlaneseq
        %v2010 = vshrl.u32 %v2009, 7
        %v2011 = vsub.s32 0, %v2010
        %v2012 = vrot.slane %v1479, %v2011
        %v2013 = vlaneseq
        %v2014 = vshrl.u32 %v2013, 7
        %v2015 = vsub.s32 0, %v2014
        %v2016 = vrot.slane %v1487, %v2015
        %v2017 = vlaneseq
        %v2018 = vshrl.u32 %v2017, 7
        %v2019 = vsub.s32 0, %v2018
        %v2020 = vrot.slane %v1489, %v2019
        %v2021 = vlaneseq
        %v2022 = vshrl.u32 %v2021, 7
        %v2023 = vsub.s32 0, %v2022
        %v2024 = vrot.slane %v1472, %v2023
        %v2025 = vlaneseq
        %v2026 = vshrl.u32 %v2025, 7
        %v2027 = vsub.s32 0, %v2026
        %v2028 = vrot.slane %v1486, %v2027
        %v2029 = vlaneseq
        %v2030 = vshrl.u32 %v2029, 7
        %v2031 = vsub.s32 0, %v2030
        %v2032 = vrot.slane %v1488, %v2031
        %v2033 = vlaneseq
        %v2034 = vshrl.u32 %v2033, 7
        %v2035 = vsub.s32 0, %v2034
        %v2036 = vrot.slane %v1490, %v2035
        %v2037 = vlaneseq
        %v2038 = vshrl.u32 %v2037, 7
        %v2039 = vsub.s32 0, %v2038
        %v2040 = vrot.slane %v1514, %v2039
        %v2041 = vlaneseq
        %v2042 = vshrl.u32 %v2041, 7
        %v2043 = vsub.s32 0, %v2042
        %v2044 = vrot.slane %v1528, %v2043
        %v2045 = vlaneseq
        %v2046 = vshrl.u32 %v2045, 7
        %v2047 = vsub.s32 0, %v2046
        %v2048 = vrot.slane %v1536, %v2047
        %v2049 = vlaneseq
        %v2050 = vshrl.u32 %v2049, 7
        %v2051 = vsub.s32 0, %v2050
        %v2052 = vrot.slane %v1538, %v2051
        %v2053 = vlaneseq
        %v2054 = vshrl.u32 %v2053, 7
        %v2055 = vsub.s32 0, %v2054
        %v2056 = vrot.slane %v1521, %v2055
        %v2057 = vlaneseq
        %v2058 = vshrl.u32 %v2057, 7
        %v2059 = vsub.s32 0, %v2058
        %v2060 = vrot.slane %v1535, %v2059
        %v2061 = vlaneseq
        %v2062 = vshrl.u32 %v2061, 7
        %v2063 = vsub.s32 0, %v2062
        %v2064 = vrot.slane %v1537, %v2063
        %v2065 = vlaneseq
        %v2066 = vshrl.u32 %v2065, 7
        %v2067 = vsub.s32 0, %v2066
        %v2068 = vrot.slane %v1539, %v2067
        %v2069 = vlaneseq
        %v2070 = vshrl.u32 %v2069, 7
        %v2071 = vsub.s32 0, %v2070
        %v2072 = vrot.slane %v1563, %v2071
        %v2073 = vlaneseq
        %v2074 = vshrl.u32 %v2073, 7
        %v2075 = vsub.s32 0, %v2074
        %v2076 = vrot.slane %v1577, %v2075
        %v2077 = vlaneseq
        %v2078 = vshrl.u32 %v2077, 7
        %v2079 = vsub.s32 0, %v2078
        %v2080 = vrot.slane %v1585, %v2079
        %v2081 = vlaneseq
        %v2082 = vshrl.u32 %v2081, 7
        %v2083 = vsub.s32 0, %v2082
        %v2084 = vrot.slane %v1587, %v2083
        %v2085 = vlaneseq
        %v2086 = vshrl.u32 %v2085, 7
        %v2087 = vsub.s32 0, %v2086
        %v2088 = vrot.slane %v1570, %v2087
        %v2089 = vlaneseq
        %v2090 = vshrl.u32 %v2089, 7
        %v2091 = vsub.s32 0, %v2090
        %v2092 = vrot.slane %v1584, %v2091
        %v2093 = vlaneseq
        %v2094 = vshrl.u32 %v2093, 7
        %v2095 = vsub.s32 0, %v2094
        %v2096 = vrot.slane %v1586, %v2095
        %v2097 = vlaneseq
        %v2098 = vshrl.u32 %v2097, 7
        %v2099 = vsub.s32 0, %v2098
        %v2100 = vrot.slane %v1588, %v2099
        %v2229 = vmul.f32 %v440, %v1592
        %v2230 = vmul.f32 %v441, %v1596
        %v2231 = vmul.f32 %v442, %v1600
        %v2232 = vmul.f32 %v443, %v1604
        %v2233 = vmul.f32 %v444, %v1608
        %v2234 = vmul.f32 %v445, %v1612
        %v2235 = vmul.f32 %v446, %v1616
        %v2236 = vmul.f32 %v447, %v1620
        %v2237 = vmul.f32 %v448, %v1624
        %v2238 = vmul.f32 %v449, %v1628
        %v2239 = vmul.f32 %v450, %v1632
        %v2240 = vmul.f32 %v451, %v1636
        %v2241 = vmul.f32 %v452, %v1640
        %v2242 = vmul.f32 %v453, %v1644
        %v2243 = vmul.f32 %v454, %v1648
        %v2244 = vmul.f32 %v455, %v1652
        %v2245 = vmul.f32 %v456, %v1656
        %v2246 = vmul.f32 %v457, %v1660
        %v2247 = vmul.f32 %v458, %v1664
        %v2248 = vmul.f32 %v459, %v1668
        %v2249 = vmul.f32 %v460, %v1672
        %v2250 = vmul.f32 %v461, %v1676
        %v2251 = vmul.f32 %v462, %v1680
        %v2252 = vmul.f32 %v463, %v1684
        %v2253 = vmul.f32 %v464, %v1688
        %v2254 = vmul.f32 %v465, %v1692
        %v2255 = vmul.f32 %v466, %v1696
        %v2256 = vmul.f32 %v467, %v1700
        %v2257 = vmul.f32 %v468, %v1704
        %v2258 = vmul.f32 %v469, %v1708
        %v2259 = vmul.f32 %v470, %v1712
        %v2260 = vmul.f32 %v471, %v1716
        %v2261 = vmul.f32 %v472, %v1720
        %v2262 = vmul.f32 %v473, %v1724
        %v2263 = vmul.f32 %v474, %v1728
        %v2264 = vmul.f32 %v475, %v1732
        %v2265 = vmul.f32 %v476, %v1736
        %v2266 = vmul.f32 %v477, %v1740
        %v2267 = vmul.f32 %v478, %v1744
        %v2268 = vmul.f32 %v479, %v1748
        %v2269 = vmul.f32 %v480, %v1752
        %v2270 = vmul.f32 %v481, %v1756
        %v2271 = vmul.f32 %v482, %v1760
        %v2272 = vmul.f32 %v483, %v1764
        %v2273 = vmul.f32 %v484, %v1768
        %v2274 = vmul.f32 %v485, %v1772
        %v2275 = vmul.f32 %v486, %v1776
        %v2276 = vmul.f32 %v487, %v1780
        %v2277 = vmul.f32 %v488, %v1784
        %v2278 = vmul.f32 %v489, %v1788
        %v2279 = vmul.f32 %v490, %v1792
        %v2280 = vmul.f32 %v491, %v1796
        %v2281 = vmul.f32 %v492, %v1800
        %v2282 = vmul.f32 %v493, %v1804
        %v2283 = vmul.f32 %v494, %v1808
        %v2284 = vmul.f32 %v495, %v1812
        %v2285 = vmul.f32 %v496, %v1816
        %v2286 = vmul.f32 %v497, %v1820
        %v2287 = vmul.f32 %v498, %v1824
        %v2288 = vmul.f32 %v499, %v1828
        %v2289 = vmul.f32 %v500, %v1832
        %v2290 = vmul.f32 %v501, %v1836
        %v2291 = vmul.f32 %v502, %v1840
        %v2292 = vmul.f32 %v503, %v1844
        %v2293 = vmul.f32 %v504, %v1848
        %v2294 = vmul.f32 %v505, %v1852
        %v2295 = vmul.f32 %v506, %v1856
        %v2296 = vmul.f32 %v507, %v1860
        %v2297 = vmul.f32 %v508, %v1864
        %v2298 = vmul.f32 %v509, %v1868
        %v2299 = vmul.f32 %v510, %v1872
        %v2300 = vmul.f32 %v511, %v1876
        %v2301 = vmul.f32 %v512, %v1880
        %v2302 = vmul.f32 %v513, %v1884
        %v2303 = vmul.f32 %v514, %v1888
        %v2304 = vmul.f32 %v515, %v1892
        %v2305 = vmul.f32 %v516, %v1896
        %v2306 = vmul.f32 %v517, %v1900
        %v2307 = vmul.f32 %v518, %v1904
        %v2308 = vmul.f32 %v519, %v1908
        %v2309 = vmul.f32 %v520, %v1912
        %v2310 = vmul.f32 %v521, %v1916
        %v2311 = vmul.f32 %v522, %v1920
        %v2312 = vmul.f32 %v523, %v1924
        %v2313 = vmul.f32 %v524, %v1928
        %v2314 = vmul.f32 %v525, %v1932
        %v2315 = vmul.f32 %v526, %v1936
        %v2316 = vmul.f32 %v527, %v1940
        %v2317 = vmul.f32 %v528, %v1944
        %v2318 = vmul.f32 %v529, %v1948
        %v2319 = vmul.f32 %v530, %v1952
        %v2320 = vmul.f32 %v531, %v1956
        %v2321 = vmul.f32 %v532, %v1960
        %v2322 = vmul.f32 %v533, %v1964
        %v2323 = vmul.f32 %v534, %v1968
        %v2324 = vmul.f32 %v535, %v1972
        %v2325 = vmul.f32 %v536, %v1976
        %v2326 = vmul.f32 %v537, %v1980
        %v2327 = vmul.f32 %v538, %v1984
        %v2328 = vmul.f32 %v539, %v1988
        %v2329 = vmul.f32 %v540, %v1992
        %v2330 = vmul.f32 %v541, %v1996
        %v2331 = vmul.f32 %v542, %v2000
        %v2332 = vmul.f32 %v543, %v2004
        %v2333 = vmul.f32 %v544, %v2008
        %v2334 = vmul.f32 %v545, %v2012
        %v2335 = vmul.f32 %v546, %v2016
        %v2336 = vmul.f32 %v547, %v2020
        %v2337 = vmul.f32 %v548, %v2024
        %v2338 = vmul.f32 %v549, %v2028
        %v2339 = vmul.f32 %v550, %v2032
        %v2340 = vmul.f32 %v551, %v2036
        %v2341 = vmul.f32 %v552, %v2040
        %v2342 = vmul.f32 %v553, %v2044
        %v2343 = vmul.f32 %v554, %v2048
        %v2344 = vmul.f32 %v555, %v2052
        %v2345 = vmul.f32 %v556, %v2056
        %v2346 = vmul.f32 %v557, %v2060
        %v2347 = vmul.f32 %v558, %v2064
        %v2348 = vmul.f32 %v559, %v2068
        %v2349 = vmul.f32 %v560, %v2072
        %v2350 = vmul.f32 %v561, %v2076
        %v2351 = vmul.f32 %v562, %v2080
        %v2352 = vmul.f32 %v563, %v2084
        %v2353 = vmul.f32 %v564, %v2088
        %v2354 = vmul.f32 %v565, %v2092
        %v2355 = vmul.f32 %v566, %v2096
        %v2356 = vmul.f32 %v567, %v2100
        %2357 = vadd.xlane.f32.xlu0 %v2229
        %v2358 = vpop.xlane.xlu0 %2357
        %2359 = vadd.xlane.f32.xlu0 %v2230
        %v2360 = vpop.xlane.xlu0 %2359
        %2361 = vadd.xlane.f32.xlu0 %v2231
        %v2362 = vpop.xlane.xlu0 %2361
        %2363 = vadd.xlane.f32.xlu0 %v2232
        %v2364 = vpop.xlane.xlu0 %2363
        %2365 = vadd.xlane.f32.xlu0 %v2233
        %v2366 = vpop.xlane.xlu0 %2365
        %2367 = vadd.xlane.f32.xlu0 %v2234
        %v2368 = vpop.xlane.xlu0 %2367
        %2369 = vadd.xlane.f32.xlu0 %v2235
        %v2370 = vpop.xlane.xlu0 %2369
        %2371 = vadd.xlane.f32.xlu0 %v2236
        %v2372 = vpop.xlane.xlu0 %2371
        %2373 = vadd.xlane.f32.xlu0 %v2237
        %v2374 = vpop.xlane.xlu0 %2373
        %2375 = vadd.xlane.f32.xlu0 %v2238
        %v2376 = vpop.xlane.xlu0 %2375
        %2377 = vadd.xlane.f32.xlu0 %v2239
        %v2378 = vpop.xlane.xlu0 %2377
        %2379 = vadd.xlane.f32.xlu0 %v2240
        %v2380 = vpop.xlane.xlu0 %2379
        %2381 = vadd.xlane.f32.xlu0 %v2241
        %v2382 = vpop.xlane.xlu0 %2381
        %2383 = vadd.xlane.f32.xlu0 %v2242
        %v2384 = vpop.xlane.xlu0 %2383
        %2385 = vadd.xlane.f32.xlu0 %v2243
        %v2386 = vpop.xlane.xlu0 %2385
        %2387 = vadd.xlane.f32.xlu0 %v2244
        %v2388 = vpop.xlane.xlu0 %2387
        %2389 = vadd.xlane.f32.xlu0 %v2245
        %v2390 = vpop.xlane.xlu0 %2389
        %2391 = vadd.xlane.f32.xlu0 %v2246
        %v2392 = vpop.xlane.xlu0 %2391
        %2393 = vadd.xlane.f32.xlu0 %v2247
        %v2394 = vpop.xlane.xlu0 %2393
        %2395 = vadd.xlane.f32.xlu0 %v2248
        %v2396 = vpop.xlane.xlu0 %2395
        %2397 = vadd.xlane.f32.xlu0 %v2249
        %v2398 = vpop.xlane.xlu0 %2397
        %2399 = vadd.xlane.f32.xlu0 %v2250
        %v2400 = vpop.xlane.xlu0 %2399
        %2401 = vadd.xlane.f32.xlu0 %v2251
        %v2402 = vpop.xlane.xlu0 %2401
        %2403 = vadd.xlane.f32.xlu0 %v2252
        %v2404 = vpop.xlane.xlu0 %2403
        %2405 = vadd.xlane.f32.xlu0 %v2253
        %v2406 = vpop.xlane.xlu0 %2405
        %2407 = vadd.xlane.f32.xlu0 %v2254
        %v2408 = vpop.xlane.xlu0 %2407
        %2409 = vadd.xlane.f32.xlu0 %v2255
        %v2410 = vpop.xlane.xlu0 %2409
        %2411 = vadd.xlane.f32.xlu0 %v2256
        %v2412 = vpop.xlane.xlu0 %2411
        %2413 = vadd.xlane.f32.xlu0 %v2257
        %v2414 = vpop.xlane.xlu0 %2413
        %2415 = vadd.xlane.f32.xlu0 %v2258
        %v2416 = vpop.xlane.xlu0 %2415
        %2417 = vadd.xlane.f32.xlu0 %v2259
        %v2418 = vpop.xlane.xlu0 %2417
        %2419 = vadd.xlane.f32.xlu0 %v2260
        %v2420 = vpop.xlane.xlu0 %2419
        %2421 = vadd.xlane.f32.xlu0 %v2261
        %v2422 = vpop.xlane.xlu0 %2421
        %2423 = vadd.xlane.f32.xlu0 %v2262
        %v2424 = vpop.xlane.xlu0 %2423
        %2425 = vadd.xlane.f32.xlu0 %v2263
        %v2426 = vpop.xlane.xlu0 %2425
        %2427 = vadd.xlane.f32.xlu0 %v2264
        %v2428 = vpop.xlane.xlu0 %2427
        %2429 = vadd.xlane.f32.xlu0 %v2265
        %v2430 = vpop.xlane.xlu0 %2429
        %2431 = vadd.xlane.f32.xlu0 %v2266
        %v2432 = vpop.xlane.xlu0 %2431
        %2433 = vadd.xlane.f32.xlu0 %v2267
        %v2434 = vpop.xlane.xlu0 %2433
        %2435 = vadd.xlane.f32.xlu0 %v2268
        %v2436 = vpop.xlane.xlu0 %2435
        %2437 = vadd.xlane.f32.xlu0 %v2269
        %v2438 = vpop.xlane.xlu0 %2437
        %2439 = vadd.xlane.f32.xlu0 %v2270
        %v2440 = vpop.xlane.xlu0 %2439
        %2441 = vadd.xlane.f32.xlu0 %v2271
        %v2442 = vpop.xlane.xlu0 %2441
        %2443 = vadd.xlane.f32.xlu0 %v2272
        %v2444 = vpop.xlane.xlu0 %2443
        %2445 = vadd.xlane.f32.xlu0 %v2273
        %v2446 = vpop.xlane.xlu0 %2445
        %2447 = vadd.xlane.f32.xlu0 %v2274
        %v2448 = vpop.xlane.xlu0 %2447
        %2449 = vadd.xlane.f32.xlu0 %v2275
        %v2450 = vpop.xlane.xlu0 %2449
        %2451 = vadd.xlane.f32.xlu0 %v2276
        %v2452 = vpop.xlane.xlu0 %2451
        %2453 = vadd.xlane.f32.xlu0 %v2277
        %v2454 = vpop.xlane.xlu0 %2453
        %2455 = vadd.xlane.f32.xlu0 %v2278
        %v2456 = vpop.xlane.xlu0 %2455
        %2457 = vadd.xlane.f32.xlu0 %v2279
        %v2458 = vpop.xlane.xlu0 %2457
        %2459 = vadd.xlane.f32.xlu0 %v2280
        %v2460 = vpop.xlane.xlu0 %2459
        %2461 = vadd.xlane.f32.xlu0 %v2281
        %v2462 = vpop.xlane.xlu0 %2461
        %2463 = vadd.xlane.f32.xlu0 %v2282
        %v2464 = vpop.xlane.xlu0 %2463
        %2465 = vadd.xlane.f32.xlu0 %v2283
        %v2466 = vpop.xlane.xlu0 %2465
        %2467 = vadd.xlane.f32.xlu0 %v2284
        %v2468 = vpop.xlane.xlu0 %2467
        %2469 = vadd.xlane.f32.xlu0 %v2285
        %v2470 = vpop.xlane.xlu0 %2469
        %2471 = vadd.xlane.f32.xlu0 %v2286
        %v2472 = vpop.xlane.xlu0 %2471
        %2473 = vadd.xlane.f32.xlu0 %v2287
        %v2474 = vpop.xlane.xlu0 %2473
        %2475 = vadd.xlane.f32.xlu0 %v2288
        %v2476 = vpop.xlane.xlu0 %2475
        %2477 = vadd.xlane.f32.xlu0 %v2289
        %v2478 = vpop.xlane.xlu0 %2477
        %2479 = vadd.xlane.f32.xlu0 %v2290
        %v2480 = vpop.xlane.xlu0 %2479
        %2481 = vadd.xlane.f32.xlu0 %v2291
        %v2482 = vpop.xlane.xlu0 %2481
        %2483 = vadd.xlane.f32.xlu0 %v2292
        %v2484 = vpop.xlane.xlu0 %2483
        %2485 = vadd.xlane.f32.xlu0 %v2293
        %v2486 = vpop.xlane.xlu0 %2485
        %2487 = vadd.xlane.f32.xlu0 %v2294
        %v2488 = vpop.xlane.xlu0 %2487
        %2489 = vadd.xlane.f32.xlu0 %v2295
        %v2490 = vpop.xlane.xlu0 %2489
        %2491 = vadd.xlane.f32.xlu0 %v2296
        %v2492 = vpop.xlane.xlu0 %2491
        %2493 = vadd.xlane.f32.xlu0 %v2297
        %v2494 = vpop.xlane.xlu0 %2493
        %2495 = vadd.xlane.f32.xlu0 %v2298
        %v2496 = vpop.xlane.xlu0 %2495
        %2497 = vadd.xlane.f32.xlu0 %v2299
        %v2498 = vpop.xlane.xlu0 %2497
        %2499 = vadd.xlane.f32.xlu0 %v2300
        %v2500 = vpop.xlane.xlu0 %2499
        %2501 = vadd.xlane.f32.xlu0 %v2301
        %v2502 = vpop.xlane.xlu0 %2501
        %2503 = vadd.xlane.f32.xlu0 %v2302
        %v2504 = vpop.xlane.xlu0 %2503
        %2505 = vadd.xlane.f32.xlu0 %v2303
        %v2506 = vpop.xlane.xlu0 %2505
        %2507 = vadd.xlane.f32.xlu0 %v2304
        %v2508 = vpop.xlane.xlu0 %2507
        %2509 = vadd.xlane.f32.xlu0 %v2305
        %v2510 = vpop.xlane.xlu0 %2509
        %2511 = vadd.xlane.f32.xlu0 %v2306
        %v2512 = vpop.xlane.xlu0 %2511
        %2513 = vadd.xlane.f32.xlu0 %v2307
        %v2514 = vpop.xlane.xlu0 %2513
        %2515 = vadd.xlane.f32.xlu0 %v2308
        %v2516 = vpop.xlane.xlu0 %2515
        %2517 = vadd.xlane.f32.xlu0 %v2309
        %v2518 = vpop.xlane.xlu0 %2517
        %2519 = vadd.xlane.f32.xlu0 %v2310
        %v2520 = vpop.xlane.xlu0 %2519
        %2521 = vadd.xlane.f32.xlu0 %v2311
        %v2522 = vpop.xlane.xlu0 %2521
        %2523 = vadd.xlane.f32.xlu0 %v2312
        %v2524 = vpop.xlane.xlu0 %2523
        %2525 = vadd.xlane.f32.xlu0 %v2313
        %v2526 = vpop.xlane.xlu0 %2525
        %2527 = vadd.xlane.f32.xlu0 %v2314
        %v2528 = vpop.xlane.xlu0 %2527
        %2529 = vadd.xlane.f32.xlu0 %v2315
        %v2530 = vpop.xlane.xlu0 %2529
        %2531 = vadd.xlane.f32.xlu0 %v2316
        %v2532 = vpop.xlane.xlu0 %2531
        %2533 = vadd.xlane.f32.xlu0 %v2317
        %v2534 = vpop.xlane.xlu0 %2533
        %2535 = vadd.xlane.f32.xlu0 %v2318
        %v2536 = vpop.xlane.xlu0 %2535
        %2537 = vadd.xlane.f32.xlu0 %v2319
        %v2538 = vpop.xlane.xlu0 %2537
        %2539 = vadd.xlane.f32.xlu0 %v2320
        %v2540 = vpop.xlane.xlu0 %2539
        %2541 = vadd.xlane.f32.xlu0 %v2321
        %v2542 = vpop.xlane.xlu0 %2541
        %2543 = vadd.xlane.f32.xlu0 %v2322
        %v2544 = vpop.xlane.xlu0 %2543
        %2545 = vadd.xlane.f32.xlu0 %v2323
        %v2546 = vpop.xlane.xlu0 %2545
        %2547 = vadd.xlane.f32.xlu0 %v2324
        %v2548 = vpop.xlane.xlu0 %2547
        %2549 = vadd.xlane.f32.xlu0 %v2325
        %v2550 = vpop.xlane.xlu0 %2549
        %2551 = vadd.xlane.f32.xlu0 %v2326
        %v2552 = vpop.xlane.xlu0 %2551
        %2553 = vadd.xlane.f32.xlu0 %v2327
        %v2554 = vpop.xlane.xlu0 %2553
        %2555 = vadd.xlane.f32.xlu0 %v2328
        %v2556 = vpop.xlane.xlu0 %2555
        %2557 = vadd.xlane.f32.xlu0 %v2329
        %v2558 = vpop.xlane.xlu0 %2557
        %2559 = vadd.xlane.f32.xlu0 %v2330
        %v2560 = vpop.xlane.xlu0 %2559
        %2561 = vadd.xlane.f32.xlu0 %v2331
        %v2562 = vpop.xlane.xlu0 %2561
        %2563 = vadd.xlane.f32.xlu0 %v2332
        %v2564 = vpop.xlane.xlu0 %2563
        %2565 = vadd.xlane.f32.xlu0 %v2333
        %v2566 = vpop.xlane.xlu0 %2565
        %2567 = vadd.xlane.f32.xlu0 %v2334
        %v2568 = vpop.xlane.xlu0 %2567
        %2569 = vadd.xlane.f32.xlu0 %v2335
        %v2570 = vpop.xlane.xlu0 %2569
        %2571 = vadd.xlane.f32.xlu0 %v2336
        %v2572 = vpop.xlane.xlu0 %2571
        %2573 = vadd.xlane.f32.xlu0 %v2337
        %v2574 = vpop.xlane.xlu0 %2573
        %2575 = vadd.xlane.f32.xlu0 %v2338
        %v2576 = vpop.xlane.xlu0 %2575
        %2577 = vadd.xlane.f32.xlu0 %v2339
        %v2578 = vpop.xlane.xlu0 %2577
        %2579 = vadd.xlane.f32.xlu0 %v2340
        %v2580 = vpop.xlane.xlu0 %2579
        %2581 = vadd.xlane.f32.xlu0 %v2341
        %v2582 = vpop.xlane.xlu0 %2581
        %2583 = vadd.xlane.f32.xlu0 %v2342
        %v2584 = vpop.xlane.xlu0 %2583
        %2585 = vadd.xlane.f32.xlu0 %v2343
        %v2586 = vpop.xlane.xlu0 %2585
        %2587 = vadd.xlane.f32.xlu0 %v2344
        %v2588 = vpop.xlane.xlu0 %2587
        %2589 = vadd.xlane.f32.xlu0 %v2345
        %v2590 = vpop.xlane.xlu0 %2589
        %2591 = vadd.xlane.f32.xlu0 %v2346
        %v2592 = vpop.xlane.xlu0 %2591
        %2593 = vadd.xlane.f32.xlu0 %v2347
        %v2594 = vpop.xlane.xlu0 %2593
        %2595 = vadd.xlane.f32.xlu0 %v2348
        %v2596 = vpop.xlane.xlu0 %2595
        %2597 = vadd.xlane.f32.xlu0 %v2349
        %v2598 = vpop.xlane.xlu0 %2597
        %2599 = vadd.xlane.f32.xlu0 %v2350
        %v2600 = vpop.xlane.xlu0 %2599
        %2601 = vadd.xlane.f32.xlu0 %v2351
        %v2602 = vpop.xlane.xlu0 %2601
        %2603 = vadd.xlane.f32.xlu0 %v2352
        %v2604 = vpop.xlane.xlu0 %2603
        %2605 = vadd.xlane.f32.xlu0 %v2353
        %v2606 = vpop.xlane.xlu0 %2605
        %2607 = vadd.xlane.f32.xlu0 %v2354
        %v2608 = vpop.xlane.xlu0 %2607
        %2609 = vadd.xlane.f32.xlu0 %v2355
        %v2610 = vpop.xlane.xlu0 %2609
        %2611 = vadd.xlane.f32.xlu0 %v2356
        %v2612 = vpop.xlane.xlu0 %2611
        %v2613 = vmul.f32 %v440, %v440
        %v2614 = vmul.f32 %v441, %v441
        %v2615 = vmul.f32 %v442, %v442
        %v2616 = vmul.f32 %v443, %v443
        %v2617 = vmul.f32 %v444, %v444
        %v2618 = vmul.f32 %v445, %v445
        %v2619 = vmul.f32 %v446, %v446
        %v2620 = vmul.f32 %v447, %v447
        %v2621 = vmul.f32 %v448, %v448
        %v2622 = vmul.f32 %v449, %v449
        %v2623 = vmul.f32 %v450, %v450
        %v2624 = vmul.f32 %v451, %v451
        %v2625 = vmul.f32 %v452, %v452
        %v2626 = vmul.f32 %v453, %v453
        %v2627 = vmul.f32 %v454, %v454
        %v2628 = vmul.f32 %v455, %v455
        %v2629 = vmul.f32 %v456, %v456
        %v2630 = vmul.f32 %v457, %v457
        %v2631 = vmul.f32 %v458, %v458
        %v2632 = vmul.f32 %v459, %v459
        %v2633 = vmul.f32 %v460, %v460
        %v2634 = vmul.f32 %v461, %v461
        %v2635 = vmul.f32 %v462, %v462
        %v2636 = vmul.f32 %v463, %v463
        %v2637 = vmul.f32 %v464, %v464
        %v2638 = vmul.f32 %v465, %v465
        %v2639 = vmul.f32 %v466, %v466
        %v2640 = vmul.f32 %v467, %v467
        %v2641 = vmul.f32 %v468, %v468
        %v2642 = vmul.f32 %v469, %v469
        %v2643 = vmul.f32 %v470, %v470
        %v2644 = vmul.f32 %v471, %v471
        %v2645 = vmul.f32 %v472, %v472
        %v2646 = vmul.f32 %v473, %v473
        %v2647 = vmul.f32 %v474, %v474
        %v2648 = vmul.f32 %v475, %v475
        %v2649 = vmul.f32 %v476, %v476
        %v2650 = vmul.f32 %v477, %v477
        %v2651 = vmul.f32 %v478, %v478
        %v2652 = vmul.f32 %v479, %v479
        %v2653 = vmul.f32 %v480, %v480
        %v2654 = vmul.f32 %v481, %v481
        %v2655 = vmul.f32 %v482, %v482
        %v2656 = vmul.f32 %v483, %v483
        %v2657 = vmul.f32 %v484, %v484
        %v2658 = vmul.f32 %v485, %v485
        %v2659 = vmul.f32 %v486, %v486
        %v2660 = vmul.f32 %v487, %v487
        %v2661 = vmul.f32 %v488, %v488
        %v2662 = vmul.f32 %v489, %v489
        %v2663 = vmul.f32 %v490, %v490
        %v2664 = vmul.f32 %v491, %v491
        %v2665 = vmul.f32 %v492, %v492
        %v2666 = vmul.f32 %v493, %v493
        %v2667 = vmul.f32 %v494, %v494
        %v2668 = vmul.f32 %v495, %v495
        %v2669 = vmul.f32 %v496, %v496
        %v2670 = vmul.f32 %v497, %v497
        %v2671 = vmul.f32 %v498, %v498
        %v2672 = vmul.f32 %v499, %v499
        %v2673 = vmul.f32 %v500, %v500
        %v2674 = vmul.f32 %v501, %v501
        %v2675 = vmul.f32 %v502, %v502
        %v2676 = vmul.f32 %v503, %v503
        %v2677 = vmul.f32 %v504, %v504
        %v2678 = vmul.f32 %v505, %v505
        %v2679 = vmul.f32 %v506, %v506
        %v2680 = vmul.f32 %v507, %v507
        %v2681 = vmul.f32 %v508, %v508
        %v2682 = vmul.f32 %v509, %v509
        %v2683 = vmul.f32 %v510, %v510
        %v2684 = vmul.f32 %v511, %v511
        %v2685 = vmul.f32 %v512, %v512
        %v2686 = vmul.f32 %v513, %v513
        %v2687 = vmul.f32 %v514, %v514
        %v2688 = vmul.f32 %v515, %v515
        %v2689 = vmul.f32 %v516, %v516
        %v2690 = vmul.f32 %v517, %v517
        %v2691 = vmul.f32 %v518, %v518
        %v2692 = vmul.f32 %v519, %v519
        %v2693 = vmul.f32 %v520, %v520
        %v2694 = vmul.f32 %v521, %v521
        %v2695 = vmul.f32 %v522, %v522
        %v2696 = vmul.f32 %v523, %v523
        %v2697 = vmul.f32 %v524, %v524
        %v2698 = vmul.f32 %v525, %v525
        %v2699 = vmul.f32 %v526, %v526
        %v2700 = vmul.f32 %v527, %v527
        %v2701 = vmul.f32 %v528, %v528
        %v2702 = vmul.f32 %v529, %v529
        %v2703 = vmul.f32 %v530, %v530
        %v2704 = vmul.f32 %v531, %v531
        %v2705 = vmul.f32 %v532, %v532
        %v2706 = vmul.f32 %v533, %v533
        %v2707 = vmul.f32 %v534, %v534
        %v2708 = vmul.f32 %v535, %v535
        %v2709 = vmul.f32 %v536, %v536
        %v2710 = vmul.f32 %v537, %v537
        %v2711 = vmul.f32 %v538, %v538
        %v2712 = vmul.f32 %v539, %v539
        %v2713 = vmul.f32 %v540, %v540
        %v2714 = vmul.f32 %v541, %v541
        %v2715 = vmul.f32 %v542, %v542
        %v2716 = vmul.f32 %v543, %v543
        %v2717 = vmul.f32 %v544, %v544
        %v2718 = vmul.f32 %v545, %v545
        %v2719 = vmul.f32 %v546, %v546
        %v2720 = vmul.f32 %v547, %v547
        %v2721 = vmul.f32 %v548, %v548
        %v2722 = vmul.f32 %v549, %v549
        %v2723 = vmul.f32 %v550, %v550
        %v2724 = vmul.f32 %v551, %v551
        %v2725 = vmul.f32 %v552, %v552
        %v2726 = vmul.f32 %v553, %v553
        %v2727 = vmul.f32 %v554, %v554
        %v2728 = vmul.f32 %v555, %v555
        %v2729 = vmul.f32 %v556, %v556
        %v2730 = vmul.f32 %v557, %v557
        %v2731 = vmul.f32 %v558, %v558
        %v2732 = vmul.f32 %v559, %v559
        %v2733 = vmul.f32 %v560, %v560
        %v2734 = vmul.f32 %v561, %v561
        %v2735 = vmul.f32 %v562, %v562
        %v2736 = vmul.f32 %v563, %v563
        %v2737 = vmul.f32 %v564, %v564
        %v2738 = vmul.f32 %v565, %v565
        %v2739 = vmul.f32 %v566, %v566
        %v2740 = vmul.f32 %v567, %v567
        %2741 = vadd.xlane.f32.xlu0 %v2613
        %v2742 = vpop.xlane.xlu0 %2741
        %2743 = vadd.xlane.f32.xlu0 %v2614
        %v2744 = vpop.xlane.xlu0 %2743
        %2745 = vadd.xlane.f32.xlu0 %v2615
        %v2746 = vpop.xlane.xlu0 %2745
        %2747 = vadd.xlane.f32.xlu0 %v2616
        %v2748 = vpop.xlane.xlu0 %2747
        %2749 = vadd.xlane.f32.xlu0 %v2617
        %v2750 = vpop.xlane.xlu0 %2749
        %2751 = vadd.xlane.f32.xlu0 %v2618
        %v2752 = vpop.xlane.xlu0 %2751
        %2753 = vadd.xlane.f32.xlu0 %v2619
        %v2754 = vpop.xlane.xlu0 %2753
        %2755 = vadd.xlane.f32.xlu0 %v2620
        %v2756 = vpop.xlane.xlu0 %2755
        %2757 = vadd.xlane.f32.xlu0 %v2621
        %v2758 = vpop.xlane.xlu0 %2757
        %2759 = vadd.xlane.f32.xlu0 %v2622
        %v2760 = vpop.xlane.xlu0 %2759
        %2761 = vadd.xlane.f32.xlu0 %v2623
        %v2762 = vpop.xlane.xlu0 %2761
        %2763 = vadd.xlane.f32.xlu0 %v2624
        %v2764 = vpop.xlane.xlu0 %2763
        %2765 = vadd.xlane.f32.xlu0 %v2625
        %v2766 = vpop.xlane.xlu0 %2765
        %2767 = vadd.xlane.f32.xlu0 %v2626
        %v2768 = vpop.xlane.xlu0 %2767
        %2769 = vadd.xlane.f32.xlu0 %v2627
        %v2770 = vpop.xlane.xlu0 %2769
        %2771 = vadd.xlane.f32.xlu0 %v2628
        %v2772 = vpop.xlane.xlu0 %2771
        %2773 = vadd.xlane.f32.xlu0 %v2629
        %v2774 = vpop.xlane.xlu0 %2773
        %2775 = vadd.xlane.f32.xlu0 %v2630
        %v2776 = vpop.xlane.xlu0 %2775
        %2777 = vadd.xlane.f32.xlu0 %v2631
        %v2778 = vpop.xlane.xlu0 %2777
        %2779 = vadd.xlane.f32.xlu0 %v2632
        %v2780 = vpop.xlane.xlu0 %2779
        %2781 = vadd.xlane.f32.xlu0 %v2633
        %v2782 = vpop.xlane.xlu0 %2781
        %2783 = vadd.xlane.f32.xlu0 %v2634
        %v2784 = vpop.xlane.xlu0 %2783
        %2785 = vadd.xlane.f32.xlu0 %v2635
        %v2786 = vpop.xlane.xlu0 %2785
        %2787 = vadd.xlane.f32.xlu0 %v2636
        %v2788 = vpop.xlane.xlu0 %2787
        %2789 = vadd.xlane.f32.xlu0 %v2637
        %v2790 = vpop.xlane.xlu0 %2789
        %2791 = vadd.xlane.f32.xlu0 %v2638
        %v2792 = vpop.xlane.xlu0 %2791
        %2793 = vadd.xlane.f32.xlu0 %v2639
        %v2794 = vpop.xlane.xlu0 %2793
        %2795 = vadd.xlane.f32.xlu0 %v2640
        %v2796 = vpop.xlane.xlu0 %2795
        %2797 = vadd.xlane.f32.xlu0 %v2641
        %v2798 = vpop.xlane.xlu0 %2797
        %2799 = vadd.xlane.f32.xlu0 %v2642
        %v2800 = vpop.xlane.xlu0 %2799
        %2801 = vadd.xlane.f32.xlu0 %v2643
        %v2802 = vpop.xlane.xlu0 %2801
        %2803 = vadd.xlane.f32.xlu0 %v2644
        %v2804 = vpop.xlane.xlu0 %2803
        %2805 = vadd.xlane.f32.xlu0 %v2645
        %v2806 = vpop.xlane.xlu0 %2805
        %2807 = vadd.xlane.f32.xlu0 %v2646
        %v2808 = vpop.xlane.xlu0 %2807
        %2809 = vadd.xlane.f32.xlu0 %v2647
        %v2810 = vpop.xlane.xlu0 %2809
        %2811 = vadd.xlane.f32.xlu0 %v2648
        %v2812 = vpop.xlane.xlu0 %2811
        %2813 = vadd.xlane.f32.xlu0 %v2649
        %v2814 = vpop.xlane.xlu0 %2813
        %2815 = vadd.xlane.f32.xlu0 %v2650
        %v2816 = vpop.xlane.xlu0 %2815
        %2817 = vadd.xlane.f32.xlu0 %v2651
        %v2818 = vpop.xlane.xlu0 %2817
        %2819 = vadd.xlane.f32.xlu0 %v2652
        %v2820 = vpop.xlane.xlu0 %2819
        %2821 = vadd.xlane.f32.xlu0 %v2653
        %v2822 = vpop.xlane.xlu0 %2821
        %2823 = vadd.xlane.f32.xlu0 %v2654
        %v2824 = vpop.xlane.xlu0 %2823
        %2825 = vadd.xlane.f32.xlu0 %v2655
        %v2826 = vpop.xlane.xlu0 %2825
        %2827 = vadd.xlane.f32.xlu0 %v2656
        %v2828 = vpop.xlane.xlu0 %2827
        %2829 = vadd.xlane.f32.xlu0 %v2657
        %v2830 = vpop.xlane.xlu0 %2829
        %2831 = vadd.xlane.f32.xlu0 %v2658
        %v2832 = vpop.xlane.xlu0 %2831
        %2833 = vadd.xlane.f32.xlu0 %v2659
        %v2834 = vpop.xlane.xlu0 %2833
        %2835 = vadd.xlane.f32.xlu0 %v2660
        %v2836 = vpop.xlane.xlu0 %2835
        %2837 = vadd.xlane.f32.xlu0 %v2661
        %v2838 = vpop.xlane.xlu0 %2837
        %2839 = vadd.xlane.f32.xlu0 %v2662
        %v2840 = vpop.xlane.xlu0 %2839
        %2841 = vadd.xlane.f32.xlu0 %v2663
        %v2842 = vpop.xlane.xlu0 %2841
        %2843 = vadd.xlane.f32.xlu0 %v2664
        %v2844 = vpop.xlane.xlu0 %2843
        %2845 = vadd.xlane.f32.xlu0 %v2665
        %v2846 = vpop.xlane.xlu0 %2845
        %2847 = vadd.xlane.f32.xlu0 %v2666
        %v2848 = vpop.xlane.xlu0 %2847
        %2849 = vadd.xlane.f32.xlu0 %v2667
        %v2850 = vpop.xlane.xlu0 %2849
        %2851 = vadd.xlane.f32.xlu0 %v2668
        %v2852 = vpop.xlane.xlu0 %2851
        %2853 = vadd.xlane.f32.xlu0 %v2669
        %v2854 = vpop.xlane.xlu0 %2853
        %2855 = vadd.xlane.f32.xlu0 %v2670
        %v2856 = vpop.xlane.xlu0 %2855
        %2857 = vadd.xlane.f32.xlu0 %v2671
        %v2858 = vpop.xlane.xlu0 %2857
        %2859 = vadd.xlane.f32.xlu0 %v2672
        %v2860 = vpop.xlane.xlu0 %2859
        %2861 = vadd.xlane.f32.xlu0 %v2673
        %v2862 = vpop.xlane.xlu0 %2861
        %2863 = vadd.xlane.f32.xlu0 %v2674
        %v2864 = vpop.xlane.xlu0 %2863
        %2865 = vadd.xlane.f32.xlu0 %v2675
        %v2866 = vpop.xlane.xlu0 %2865
        %2867 = vadd.xlane.f32.xlu0 %v2676
        %v2868 = vpop.xlane.xlu0 %2867
        %2869 = vadd.xlane.f32.xlu0 %v2677
        %v2870 = vpop.xlane.xlu0 %2869
        %2871 = vadd.xlane.f32.xlu0 %v2678
        %v2872 = vpop.xlane.xlu0 %2871
        %2873 = vadd.xlane.f32.xlu0 %v2679
        %v2874 = vpop.xlane.xlu0 %2873
        %2875 = vadd.xlane.f32.xlu0 %v2680
        %v2876 = vpop.xlane.xlu0 %2875
        %2877 = vadd.xlane.f32.xlu0 %v2681
        %v2878 = vpop.xlane.xlu0 %2877
        %2879 = vadd.xlane.f32.xlu0 %v2682
        %v2880 = vpop.xlane.xlu0 %2879
        %2881 = vadd.xlane.f32.xlu0 %v2683
        %v2882 = vpop.xlane.xlu0 %2881
        %2883 = vadd.xlane.f32.xlu0 %v2684
        %v2884 = vpop.xlane.xlu0 %2883
        %2885 = vadd.xlane.f32.xlu0 %v2685
        %v2886 = vpop.xlane.xlu0 %2885
        %2887 = vadd.xlane.f32.xlu0 %v2686
        %v2888 = vpop.xlane.xlu0 %2887
        %2889 = vadd.xlane.f32.xlu0 %v2687
        %v2890 = vpop.xlane.xlu0 %2889
        %2891 = vadd.xlane.f32.xlu0 %v2688
        %v2892 = vpop.xlane.xlu0 %2891
        %2893 = vadd.xlane.f32.xlu0 %v2689
        %v2894 = vpop.xlane.xlu0 %2893
        %2895 = vadd.xlane.f32.xlu0 %v2690
        %v2896 = vpop.xlane.xlu0 %2895
        %2897 = vadd.xlane.f32.xlu0 %v2691
        %v2898 = vpop.xlane.xlu0 %2897
        %2899 = vadd.xlane.f32.xlu0 %v2692
        %v2900 = vpop.xlane.xlu0 %2899
        %2901 = vadd.xlane.f32.xlu0 %v2693
        %v2902 = vpop.xlane.xlu0 %2901
        %2903 = vadd.xlane.f32.xlu0 %v2694
        %v2904 = vpop.xlane.xlu0 %2903
        %2905 = vadd.xlane.f32.xlu0 %v2695
        %v2906 = vpop.xlane.xlu0 %2905
        %2907 = vadd.xlane.f32.xlu0 %v2696
        %v2908 = vpop.xlane.xlu0 %2907
        %2909 = vadd.xlane.f32.xlu0 %v2697
        %v2910 = vpop.xlane.xlu0 %2909
        %2911 = vadd.xlane.f32.xlu0 %v2698
        %v2912 = vpop.xlane.xlu0 %2911
        %2913 = vadd.xlane.f32.xlu0 %v2699
        %v2914 = vpop.xlane.xlu0 %2913
        %2915 = vadd.xlane.f32.xlu0 %v2700
        %v2916 = vpop.xlane.xlu0 %2915
        %2917 = vadd.xlane.f32.xlu0 %v2701
        %v2918 = vpop.xlane.xlu0 %2917
        %2919 = vadd.xlane.f32.xlu0 %v2702
        %v2920 = vpop.xlane.xlu0 %2919
        %2921 = vadd.xlane.f32.xlu0 %v2703
        %v2922 = vpop.xlane.xlu0 %2921
        %2923 = vadd.xlane.f32.xlu0 %v2704
        %v2924 = vpop.xlane.xlu0 %2923
        %2925 = vadd.xlane.f32.xlu0 %v2705
        %v2926 = vpop.xlane.xlu0 %2925
        %2927 = vadd.xlane.f32.xlu0 %v2706
        %v2928 = vpop.xlane.xlu0 %2927
        %2929 = vadd.xlane.f32.xlu0 %v2707
        %v2930 = vpop.xlane.xlu0 %2929
        %2931 = vadd.xlane.f32.xlu0 %v2708
        %v2932 = vpop.xlane.xlu0 %2931
        %2933 = vadd.xlane.f32.xlu0 %v2709
        %v2934 = vpop.xlane.xlu0 %2933
        %2935 = vadd.xlane.f32.xlu0 %v2710
        %v2936 = vpop.xlane.xlu0 %2935
        %2937 = vadd.xlane.f32.xlu0 %v2711
        %v2938 = vpop.xlane.xlu0 %2937
        %2939 = vadd.xlane.f32.xlu0 %v2712
        %v2940 = vpop.xlane.xlu0 %2939
        %2941 = vadd.xlane.f32.xlu0 %v2713
        %v2942 = vpop.xlane.xlu0 %2941
        %2943 = vadd.xlane.f32.xlu0 %v2714
        %v2944 = vpop.xlane.xlu0 %2943
        %2945 = vadd.xlane.f32.xlu0 %v2715
        %v2946 = vpop.xlane.xlu0 %2945
        %2947 = vadd.xlane.f32.xlu0 %v2716
        %v2948 = vpop.xlane.xlu0 %2947
        %2949 = vadd.xlane.f32.xlu0 %v2717
        %v2950 = vpop.xlane.xlu0 %2949
        %2951 = vadd.xlane.f32.xlu0 %v2718
        %v2952 = vpop.xlane.xlu0 %2951
        %2953 = vadd.xlane.f32.xlu0 %v2719
        %v2954 = vpop.xlane.xlu0 %2953
        %2955 = vadd.xlane.f32.xlu0 %v2720
        %v2956 = vpop.xlane.xlu0 %2955
        %2957 = vadd.xlane.f32.xlu0 %v2721
        %v2958 = vpop.xlane.xlu0 %2957
        %2959 = vadd.xlane.f32.xlu0 %v2722
        %v2960 = vpop.xlane.xlu0 %2959
        %2961 = vadd.xlane.f32.xlu0 %v2723
        %v2962 = vpop.xlane.xlu0 %2961
        %2963 = vadd.xlane.f32.xlu0 %v2724
        %v2964 = vpop.xlane.xlu0 %2963
        %2965 = vadd.xlane.f32.xlu0 %v2725
        %v2966 = vpop.xlane.xlu0 %2965
        %2967 = vadd.xlane.f32.xlu0 %v2726
        %v2968 = vpop.xlane.xlu0 %2967
        %2969 = vadd.xlane.f32.xlu0 %v2727
        %v2970 = vpop.xlane.xlu0 %2969
        %2971 = vadd.xlane.f32.xlu0 %v2728
        %v2972 = vpop.xlane.xlu0 %2971
        %2973 = vadd.xlane.f32.xlu0 %v2729
        %v2974 = vpop.xlane.xlu0 %2973
        %2975 = vadd.xlane.f32.xlu0 %v2730
        %v2976 = vpop.xlane.xlu0 %2975
        %2977 = vadd.xlane.f32.xlu0 %v2731
        %v2978 = vpop.xlane.xlu0 %2977
        %2979 = vadd.xlane.f32.xlu0 %v2732
        %v2980 = vpop.xlane.xlu0 %2979
        %2981 = vadd.xlane.f32.xlu0 %v2733
        %v2982 = vpop.xlane.xlu0 %2981
        %2983 = vadd.xlane.f32.xlu0 %v2734
        %v2984 = vpop.xlane.xlu0 %2983
        %2985 = vadd.xlane.f32.xlu0 %v2735
        %v2986 = vpop.xlane.xlu0 %2985
        %2987 = vadd.xlane.f32.xlu0 %v2736
        %v2988 = vpop.xlane.xlu0 %2987
        %2989 = vadd.xlane.f32.xlu0 %v2737
        %v2990 = vpop.xlane.xlu0 %2989
        %2991 = vadd.xlane.f32.xlu0 %v2738
        %v2992 = vpop.xlane.xlu0 %2991
        %2993 = vadd.xlane.f32.xlu0 %v2739
        %v2994 = vpop.xlane.xlu0 %2993
        %2995 = vadd.xlane.f32.xlu0 %v2740
        %v2996 = vpop.xlane.xlu0 %2995
        %v2997 = vmul.f32 %v773, %v773
        %v2998 = vmul.f32 %v774, %v774
        %v2999 = vmul.f32 %v775, %v775
        %v3000 = vmul.f32 %v776, %v776
        %v3001 = vmul.f32 %v777, %v777
        %v3002 = vmul.f32 %v778, %v778
        %v3003 = vmul.f32 %v779, %v779
        %v3004 = vmul.f32 %v780, %v780
        %v3005 = vmul.f32 %v781, %v781
        %v3006 = vmul.f32 %v782, %v782
        %v3007 = vmul.f32 %v783, %v783
        %v3008 = vmul.f32 %v784, %v784
        %v3009 = vmul.f32 %v785, %v785
        %v3010 = vmul.f32 %v786, %v786
        %v3011 = vmul.f32 %v787, %v787
        %v3012 = vmul.f32 %v788, %v788
        %3013 = vadd.xlane.f32.xlu0 %v2997
        %v3014 = vpop.xlane.xlu0 %3013
        %3015 = vadd.xlane.f32.xlu0 %v2998
        %v3016 = vpop.xlane.xlu0 %3015
        %3017 = vadd.xlane.f32.xlu0 %v2999
        %v3018 = vpop.xlane.xlu0 %3017
        %3019 = vadd.xlane.f32.xlu0 %v3000
        %v3020 = vpop.xlane.xlu0 %3019
        %3021 = vadd.xlane.f32.xlu0 %v3001
        %v3022 = vpop.xlane.xlu0 %3021
        %3023 = vadd.xlane.f32.xlu0 %v3002
        %v3024 = vpop.xlane.xlu0 %3023
        %3025 = vadd.xlane.f32.xlu0 %v3003
        %v3026 = vpop.xlane.xlu0 %3025
        %3027 = vadd.xlane.f32.xlu0 %v3004
        %v3028 = vpop.xlane.xlu0 %3027
        %3029 = vadd.xlane.f32.xlu0 %v3005
        %v3030 = vpop.xlane.xlu0 %3029
        %3031 = vadd.xlane.f32.xlu0 %v3006
        %v3032 = vpop.xlane.xlu0 %3031
        %3033 = vadd.xlane.f32.xlu0 %v3007
        %v3034 = vpop.xlane.xlu0 %3033
        %3035 = vadd.xlane.f32.xlu0 %v3008
        %v3036 = vpop.xlane.xlu0 %3035
        %3037 = vadd.xlane.f32.xlu0 %v3009
        %v3038 = vpop.xlane.xlu0 %3037
        %3039 = vadd.xlane.f32.xlu0 %v3010
        %v3040 = vpop.xlane.xlu0 %3039
        %3041 = vadd.xlane.f32.xlu0 %v3011
        %v3042 = vpop.xlane.xlu0 %3041
        %3043 = vadd.xlane.f32.xlu0 %v3012
        %v3044 = vpop.xlane.xlu0 %3043
        %v3061 = vlaneseq
        %v3062 = vshrl.u32 %v3061, 7
        %v3063 = vsub.s32 0, %v3062
        %v3064 = vrot.slane %v3014, %v3063
        %v3065 = vlaneseq
        %v3066 = vshrl.u32 %v3065, 7
        %v3067 = vsub.s32 1, %v3066
        %v3068 = vrot.slane %v3014, %v3067
        %v3069 = vlaneseq
        %v3070 = vshrl.u32 %v3069, 7
        %v3071 = vsub.s32 2, %v3070
        %v3072 = vrot.slane %v3014, %v3071
        %v3073 = vlaneseq
        %v3074 = vshrl.u32 %v3073, 7
        %v3075 = vsub.s32 3, %v3074
        %v3076 = vrot.slane %v3014, %v3075
        %v3077 = vlaneseq
        %v3078 = vshrl.u32 %v3077, 7
        %v3079 = vsub.s32 4, %v3078
        %v3080 = vrot.slane %v3014, %v3079
        %v3081 = vlaneseq
        %v3082 = vshrl.u32 %v3081, 7
        %v3083 = vsub.s32 5, %v3082
        %v3084 = vrot.slane %v3014, %v3083
        %v3085 = vlaneseq
        %v3086 = vshrl.u32 %v3085, 7
        %v3087 = vsub.s32 6, %v3086
        %v3088 = vrot.slane %v3014, %v3087
        %v3089 = vlaneseq
        %v3090 = vshrl.u32 %v3089, 7
        %v3091 = vsub.s32 7, %v3090
        %v3092 = vrot.slane %v3014, %v3091
        %v3093 = vlaneseq
        %v3094 = vshrl.u32 %v3093, 7
        %v3095 = vsub.s32 0, %v3094
        %v3096 = vrot.slane %v3016, %v3095
        %v3097 = vlaneseq
        %v3098 = vshrl.u32 %v3097, 7
        %v3099 = vsub.s32 1, %v3098
        %v3100 = vrot.slane %v3016, %v3099
        %v3101 = vlaneseq
        %v3102 = vshrl.u32 %v3101, 7
        %v3103 = vsub.s32 2, %v3102
        %v3104 = vrot.slane %v3016, %v3103
        %v3105 = vlaneseq
        %v3106 = vshrl.u32 %v3105, 7
        %v3107 = vsub.s32 3, %v3106
        %v3108 = vrot.slane %v3016, %v3107
        %v3109 = vlaneseq
        %v3110 = vshrl.u32 %v3109, 7
        %v3111 = vsub.s32 4, %v3110
        %v3112 = vrot.slane %v3016, %v3111
        %v3113 = vlaneseq
        %v3114 = vshrl.u32 %v3113, 7
        %v3115 = vsub.s32 5, %v3114
        %v3116 = vrot.slane %v3016, %v3115
        %v3117 = vlaneseq
        %v3118 = vshrl.u32 %v3117, 7
        %v3119 = vsub.s32 6, %v3118
        %v3120 = vrot.slane %v3016, %v3119
        %v3121 = vlaneseq
        %v3122 = vshrl.u32 %v3121, 7
        %v3123 = vsub.s32 7, %v3122
        %v3124 = vrot.slane %v3016, %v3123
        %v3125 = vlaneseq
        %v3126 = vshrl.u32 %v3125, 7
        %v3127 = vsub.s32 0, %v3126
        %v3128 = vrot.slane %v3018, %v3127
        %v3129 = vlaneseq
        %v3130 = vshrl.u32 %v3129, 7
        %v3131 = vsub.s32 1, %v3130
        %v3132 = vrot.slane %v3018, %v3131
        %v3133 = vlaneseq
        %v3134 = vshrl.u32 %v3133, 7
        %v3135 = vsub.s32 2, %v3134
        %v3136 = vrot.slane %v3018, %v3135
        %v3137 = vlaneseq
        %v3138 = vshrl.u32 %v3137, 7
        %v3139 = vsub.s32 3, %v3138
        %v3140 = vrot.slane %v3018, %v3139
        %v3141 = vlaneseq
        %v3142 = vshrl.u32 %v3141, 7
        %v3143 = vsub.s32 4, %v3142
        %v3144 = vrot.slane %v3018, %v3143
        %v3145 = vlaneseq
        %v3146 = vshrl.u32 %v3145, 7
        %v3147 = vsub.s32 5, %v3146
        %v3148 = vrot.slane %v3018, %v3147
        %v3149 = vlaneseq
        %v3150 = vshrl.u32 %v3149, 7
        %v3151 = vsub.s32 6, %v3150
        %v3152 = vrot.slane %v3018, %v3151
        %v3153 = vlaneseq
        %v3154 = vshrl.u32 %v3153, 7
        %v3155 = vsub.s32 7, %v3154
        %v3156 = vrot.slane %v3018, %v3155
        %v3157 = vlaneseq
        %v3158 = vshrl.u32 %v3157, 7
        %v3159 = vsub.s32 0, %v3158
        %v3160 = vrot.slane %v3020, %v3159
        %v3161 = vlaneseq
        %v3162 = vshrl.u32 %v3161, 7
        %v3163 = vsub.s32 1, %v3162
        %v3164 = vrot.slane %v3020, %v3163
        %v3165 = vlaneseq
        %v3166 = vshrl.u32 %v3165, 7
        %v3167 = vsub.s32 2, %v3166
        %v3168 = vrot.slane %v3020, %v3167
        %v3169 = vlaneseq
        %v3170 = vshrl.u32 %v3169, 7
        %v3171 = vsub.s32 3, %v3170
        %v3172 = vrot.slane %v3020, %v3171
        %v3173 = vlaneseq
        %v3174 = vshrl.u32 %v3173, 7
        %v3175 = vsub.s32 4, %v3174
        %v3176 = vrot.slane %v3020, %v3175
        %v3177 = vlaneseq
        %v3178 = vshrl.u32 %v3177, 7
        %v3179 = vsub.s32 5, %v3178
        %v3180 = vrot.slane %v3020, %v3179
        %v3181 = vlaneseq
        %v3182 = vshrl.u32 %v3181, 7
        %v3183 = vsub.s32 6, %v3182
        %v3184 = vrot.slane %v3020, %v3183
        %v3185 = vlaneseq
        %v3186 = vshrl.u32 %v3185, 7
        %v3187 = vsub.s32 7, %v3186
        %v3188 = vrot.slane %v3020, %v3187
        %v3189 = vlaneseq
        %v3190 = vshrl.u32 %v3189, 7
        %v3191 = vsub.s32 0, %v3190
        %v3192 = vrot.slane %v3022, %v3191
        %v3193 = vlaneseq
        %v3194 = vshrl.u32 %v3193, 7
        %v3195 = vsub.s32 1, %v3194
        %v3196 = vrot.slane %v3022, %v3195
        %v3197 = vlaneseq
        %v3198 = vshrl.u32 %v3197, 7
        %v3199 = vsub.s32 2, %v3198
        %v3200 = vrot.slane %v3022, %v3199
        %v3201 = vlaneseq
        %v3202 = vshrl.u32 %v3201, 7
        %v3203 = vsub.s32 3, %v3202
        %v3204 = vrot.slane %v3022, %v3203
        %v3205 = vlaneseq
        %v3206 = vshrl.u32 %v3205, 7
        %v3207 = vsub.s32 4, %v3206
        %v3208 = vrot.slane %v3022, %v3207
        %v3209 = vlaneseq
        %v3210 = vshrl.u32 %v3209, 7
        %v3211 = vsub.s32 5, %v3210
        %v3212 = vrot.slane %v3022, %v3211
        %v3213 = vlaneseq
        %v3214 = vshrl.u32 %v3213, 7
        %v3215 = vsub.s32 6, %v3214
        %v3216 = vrot.slane %v3022, %v3215
        %v3217 = vlaneseq
        %v3218 = vshrl.u32 %v3217, 7
        %v3219 = vsub.s32 7, %v3218
        %v3220 = vrot.slane %v3022, %v3219
        %v3221 = vlaneseq
        %v3222 = vshrl.u32 %v3221, 7
        %v3223 = vsub.s32 0, %v3222
        %v3224 = vrot.slane %v3024, %v3223
        %v3225 = vlaneseq
        %v3226 = vshrl.u32 %v3225, 7
        %v3227 = vsub.s32 1, %v3226
        %v3228 = vrot.slane %v3024, %v3227
        %v3229 = vlaneseq
        %v3230 = vshrl.u32 %v3229, 7
        %v3231 = vsub.s32 2, %v3230
        %v3232 = vrot.slane %v3024, %v3231
        %v3233 = vlaneseq
        %v3234 = vshrl.u32 %v3233, 7
        %v3235 = vsub.s32 3, %v3234
        %v3236 = vrot.slane %v3024, %v3235
        %v3237 = vlaneseq
        %v3238 = vshrl.u32 %v3237, 7
        %v3239 = vsub.s32 4, %v3238
        %v3240 = vrot.slane %v3024, %v3239
        %v3241 = vlaneseq
        %v3242 = vshrl.u32 %v3241, 7
        %v3243 = vsub.s32 5, %v3242
        %v3244 = vrot.slane %v3024, %v3243
        %v3245 = vlaneseq
        %v3246 = vshrl.u32 %v3245, 7
        %v3247 = vsub.s32 6, %v3246
        %v3248 = vrot.slane %v3024, %v3247
        %v3249 = vlaneseq
        %v3250 = vshrl.u32 %v3249, 7
        %v3251 = vsub.s32 7, %v3250
        %v3252 = vrot.slane %v3024, %v3251
        %v3253 = vlaneseq
        %v3254 = vshrl.u32 %v3253, 7
        %v3255 = vsub.s32 0, %v3254
        %v3256 = vrot.slane %v3026, %v3255
        %v3257 = vlaneseq
        %v3258 = vshrl.u32 %v3257, 7
        %v3259 = vsub.s32 1, %v3258
        %v3260 = vrot.slane %v3026, %v3259
        %v3261 = vlaneseq
        %v3262 = vshrl.u32 %v3261, 7
        %v3263 = vsub.s32 2, %v3262
        %v3264 = vrot.slane %v3026, %v3263
        %v3265 = vlaneseq
        %v3266 = vshrl.u32 %v3265, 7
        %v3267 = vsub.s32 3, %v3266
        %v3268 = vrot.slane %v3026, %v3267
        %v3269 = vlaneseq
        %v3270 = vshrl.u32 %v3269, 7
        %v3271 = vsub.s32 4, %v3270
        %v3272 = vrot.slane %v3026, %v3271
        %v3273 = vlaneseq
        %v3274 = vshrl.u32 %v3273, 7
        %v3275 = vsub.s32 5, %v3274
        %v3276 = vrot.slane %v3026, %v3275
        %v3277 = vlaneseq
        %v3278 = vshrl.u32 %v3277, 7
        %v3279 = vsub.s32 6, %v3278
        %v3280 = vrot.slane %v3026, %v3279
        %v3281 = vlaneseq
        %v3282 = vshrl.u32 %v3281, 7
        %v3283 = vsub.s32 7, %v3282
        %v3284 = vrot.slane %v3026, %v3283
        %v3285 = vlaneseq
        %v3286 = vshrl.u32 %v3285, 7
        %v3287 = vsub.s32 0, %v3286
        %v3288 = vrot.slane %v3028, %v3287
        %v3289 = vlaneseq
        %v3290 = vshrl.u32 %v3289, 7
        %v3291 = vsub.s32 1, %v3290
        %v3292 = vrot.slane %v3028, %v3291
        %v3293 = vlaneseq
        %v3294 = vshrl.u32 %v3293, 7
        %v3295 = vsub.s32 2, %v3294
        %v3296 = vrot.slane %v3028, %v3295
        %v3297 = vlaneseq
        %v3298 = vshrl.u32 %v3297, 7
        %v3299 = vsub.s32 3, %v3298
        %v3300 = vrot.slane %v3028, %v3299
        %v3301 = vlaneseq
        %v3302 = vshrl.u32 %v3301, 7
        %v3303 = vsub.s32 4, %v3302
        %v3304 = vrot.slane %v3028, %v3303
        %v3305 = vlaneseq
        %v3306 = vshrl.u32 %v3305, 7
        %v3307 = vsub.s32 5, %v3306
        %v3308 = vrot.slane %v3028, %v3307
        %v3309 = vlaneseq
        %v3310 = vshrl.u32 %v3309, 7
        %v3311 = vsub.s32 6, %v3310
        %v3312 = vrot.slane %v3028, %v3311
        %v3313 = vlaneseq
        %v3314 = vshrl.u32 %v3313, 7
        %v3315 = vsub.s32 7, %v3314
        %v3316 = vrot.slane %v3028, %v3315
        %v3317 = vlaneseq
        %v3318 = vshrl.u32 %v3317, 7
        %v3319 = vsub.s32 0, %v3318
        %v3320 = vrot.slane %v3030, %v3319
        %v3321 = vlaneseq
        %v3322 = vshrl.u32 %v3321, 7
        %v3323 = vsub.s32 1, %v3322
        %v3324 = vrot.slane %v3030, %v3323
        %v3325 = vlaneseq
        %v3326 = vshrl.u32 %v3325, 7
        %v3327 = vsub.s32 2, %v3326
        %v3328 = vrot.slane %v3030, %v3327
        %v3329 = vlaneseq
        %v3330 = vshrl.u32 %v3329, 7
        %v3331 = vsub.s32 3, %v3330
        %v3332 = vrot.slane %v3030, %v3331
        %v3333 = vlaneseq
        %v3334 = vshrl.u32 %v3333, 7
        %v3335 = vsub.s32 4, %v3334
        %v3336 = vrot.slane %v3030, %v3335
        %v3337 = vlaneseq
        %v3338 = vshrl.u32 %v3337, 7
        %v3339 = vsub.s32 5, %v3338
        %v3340 = vrot.slane %v3030, %v3339
        %v3341 = vlaneseq
        %v3342 = vshrl.u32 %v3341, 7
        %v3343 = vsub.s32 6, %v3342
        %v3344 = vrot.slane %v3030, %v3343
        %v3345 = vlaneseq
        %v3346 = vshrl.u32 %v3345, 7
        %v3347 = vsub.s32 7, %v3346
        %v3348 = vrot.slane %v3030, %v3347
        %v3349 = vlaneseq
        %v3350 = vshrl.u32 %v3349, 7
        %v3351 = vsub.s32 0, %v3350
        %v3352 = vrot.slane %v3032, %v3351
        %v3353 = vlaneseq
        %v3354 = vshrl.u32 %v3353, 7
        %v3355 = vsub.s32 1, %v3354
        %v3356 = vrot.slane %v3032, %v3355
        %v3357 = vlaneseq
        %v3358 = vshrl.u32 %v3357, 7
        %v3359 = vsub.s32 2, %v3358
        %v3360 = vrot.slane %v3032, %v3359
        %v3361 = vlaneseq
        %v3362 = vshrl.u32 %v3361, 7
        %v3363 = vsub.s32 3, %v3362
        %v3364 = vrot.slane %v3032, %v3363
        %v3365 = vlaneseq
        %v3366 = vshrl.u32 %v3365, 7
        %v3367 = vsub.s32 4, %v3366
        %v3368 = vrot.slane %v3032, %v3367
        %v3369 = vlaneseq
        %v3370 = vshrl.u32 %v3369, 7
        %v3371 = vsub.s32 5, %v3370
        %v3372 = vrot.slane %v3032, %v3371
        %v3373 = vlaneseq
        %v3374 = vshrl.u32 %v3373, 7
        %v3375 = vsub.s32 6, %v3374
        %v3376 = vrot.slane %v3032, %v3375
        %v3377 = vlaneseq
        %v3378 = vshrl.u32 %v3377, 7
        %v3379 = vsub.s32 7, %v3378
        %v3380 = vrot.slane %v3032, %v3379
        %v3381 = vlaneseq
        %v3382 = vshrl.u32 %v3381, 7
        %v3383 = vsub.s32 0, %v3382
        %v3384 = vrot.slane %v3034, %v3383
        %v3385 = vlaneseq
        %v3386 = vshrl.u32 %v3385, 7
        %v3387 = vsub.s32 1, %v3386
        %v3388 = vrot.slane %v3034, %v3387
        %v3389 = vlaneseq
        %v3390 = vshrl.u32 %v3389, 7
        %v3391 = vsub.s32 2, %v3390
        %v3392 = vrot.slane %v3034, %v3391
        %v3393 = vlaneseq
        %v3394 = vshrl.u32 %v3393, 7
        %v3395 = vsub.s32 3, %v3394
        %v3396 = vrot.slane %v3034, %v3395
        %v3397 = vlaneseq
        %v3398 = vshrl.u32 %v3397, 7
        %v3399 = vsub.s32 4, %v3398
        %v3400 = vrot.slane %v3034, %v3399
        %v3401 = vlaneseq
        %v3402 = vshrl.u32 %v3401, 7
        %v3403 = vsub.s32 5, %v3402
        %v3404 = vrot.slane %v3034, %v3403
        %v3405 = vlaneseq
        %v3406 = vshrl.u32 %v3405, 7
        %v3407 = vsub.s32 6, %v3406
        %v3408 = vrot.slane %v3034, %v3407
        %v3409 = vlaneseq
        %v3410 = vshrl.u32 %v3409, 7
        %v3411 = vsub.s32 7, %v3410
        %v3412 = vrot.slane %v3034, %v3411
        %v3413 = vlaneseq
        %v3414 = vshrl.u32 %v3413, 7
        %v3415 = vsub.s32 0, %v3414
        %v3416 = vrot.slane %v3036, %v3415
        %v3417 = vlaneseq
        %v3418 = vshrl.u32 %v3417, 7
        %v3419 = vsub.s32 1, %v3418
        %v3420 = vrot.slane %v3036, %v3419
        %v3421 = vlaneseq
        %v3422 = vshrl.u32 %v3421, 7
        %v3423 = vsub.s32 2, %v3422
        %v3424 = vrot.slane %v3036, %v3423
        %v3425 = vlaneseq
        %v3426 = vshrl.u32 %v3425, 7
        %v3427 = vsub.s32 3, %v3426
        %v3428 = vrot.slane %v3036, %v3427
        %v3429 = vlaneseq
        %v3430 = vshrl.u32 %v3429, 7
        %v3431 = vsub.s32 4, %v3430
        %v3432 = vrot.slane %v3036, %v3431
        %v3433 = vlaneseq
        %v3434 = vshrl.u32 %v3433, 7
        %v3435 = vsub.s32 5, %v3434
        %v3436 = vrot.slane %v3036, %v3435
        %v3437 = vlaneseq
        %v3438 = vshrl.u32 %v3437, 7
        %v3439 = vsub.s32 6, %v3438
        %v3440 = vrot.slane %v3036, %v3439
        %v3441 = vlaneseq
        %v3442 = vshrl.u32 %v3441, 7
        %v3443 = vsub.s32 7, %v3442
        %v3444 = vrot.slane %v3036, %v3443
        %v3445 = vlaneseq
        %v3446 = vshrl.u32 %v3445, 7
        %v3447 = vsub.s32 0, %v3446
        %v3448 = vrot.slane %v3038, %v3447
        %v3449 = vlaneseq
        %v3450 = vshrl.u32 %v3449, 7
        %v3451 = vsub.s32 1, %v3450
        %v3452 = vrot.slane %v3038, %v3451
        %v3453 = vlaneseq
        %v3454 = vshrl.u32 %v3453, 7
        %v3455 = vsub.s32 2, %v3454
        %v3456 = vrot.slane %v3038, %v3455
        %v3457 = vlaneseq
        %v3458 = vshrl.u32 %v3457, 7
        %v3459 = vsub.s32 3, %v3458
        %v3460 = vrot.slane %v3038, %v3459
        %v3461 = vlaneseq
        %v3462 = vshrl.u32 %v3461, 7
        %v3463 = vsub.s32 4, %v3462
        %v3464 = vrot.slane %v3038, %v3463
        %v3465 = vlaneseq
        %v3466 = vshrl.u32 %v3465, 7
        %v3467 = vsub.s32 5, %v3466
        %v3468 = vrot.slane %v3038, %v3467
        %v3469 = vlaneseq
        %v3470 = vshrl.u32 %v3469, 7
        %v3471 = vsub.s32 6, %v3470
        %v3472 = vrot.slane %v3038, %v3471
        %v3473 = vlaneseq
        %v3474 = vshrl.u32 %v3473, 7
        %v3475 = vsub.s32 7, %v3474
        %v3476 = vrot.slane %v3038, %v3475
        %v3477 = vlaneseq
        %v3478 = vshrl.u32 %v3477, 7
        %v3479 = vsub.s32 0, %v3478
        %v3480 = vrot.slane %v3040, %v3479
        %v3481 = vlaneseq
        %v3482 = vshrl.u32 %v3481, 7
        %v3483 = vsub.s32 1, %v3482
        %v3484 = vrot.slane %v3040, %v3483
        %v3485 = vlaneseq
        %v3486 = vshrl.u32 %v3485, 7
        %v3487 = vsub.s32 2, %v3486
        %v3488 = vrot.slane %v3040, %v3487
        %v3489 = vlaneseq
        %v3490 = vshrl.u32 %v3489, 7
        %v3491 = vsub.s32 3, %v3490
        %v3492 = vrot.slane %v3040, %v3491
        %v3493 = vlaneseq
        %v3494 = vshrl.u32 %v3493, 7
        %v3495 = vsub.s32 4, %v3494
        %v3496 = vrot.slane %v3040, %v3495
        %v3497 = vlaneseq
        %v3498 = vshrl.u32 %v3497, 7
        %v3499 = vsub.s32 5, %v3498
        %v3500 = vrot.slane %v3040, %v3499
        %v3501 = vlaneseq
        %v3502 = vshrl.u32 %v3501, 7
        %v3503 = vsub.s32 6, %v3502
        %v3504 = vrot.slane %v3040, %v3503
        %v3505 = vlaneseq
        %v3506 = vshrl.u32 %v3505, 7
        %v3507 = vsub.s32 7, %v3506
        %v3508 = vrot.slane %v3040, %v3507
        %v3509 = vlaneseq
        %v3510 = vshrl.u32 %v3509, 7
        %v3511 = vsub.s32 0, %v3510
        %v3512 = vrot.slane %v3042, %v3511
        %v3513 = vlaneseq
        %v3514 = vshrl.u32 %v3513, 7
        %v3515 = vsub.s32 1, %v3514
        %v3516 = vrot.slane %v3042, %v3515
        %v3517 = vlaneseq
        %v3518 = vshrl.u32 %v3517, 7
        %v3519 = vsub.s32 2, %v3518
        %v3520 = vrot.slane %v3042, %v3519
        %v3521 = vlaneseq
        %v3522 = vshrl.u32 %v3521, 7
        %v3523 = vsub.s32 3, %v3522
        %v3524 = vrot.slane %v3042, %v3523
        %v3525 = vlaneseq
        %v3526 = vshrl.u32 %v3525, 7
        %v3527 = vsub.s32 4, %v3526
        %v3528 = vrot.slane %v3042, %v3527
        %v3529 = vlaneseq
        %v3530 = vshrl.u32 %v3529, 7
        %v3531 = vsub.s32 5, %v3530
        %v3532 = vrot.slane %v3042, %v3531
        %v3533 = vlaneseq
        %v3534 = vshrl.u32 %v3533, 7
        %v3535 = vsub.s32 6, %v3534
        %v3536 = vrot.slane %v3042, %v3535
        %v3537 = vlaneseq
        %v3538 = vshrl.u32 %v3537, 7
        %v3539 = vsub.s32 7, %v3538
        %v3540 = vrot.slane %v3042, %v3539
        %v3541 = vlaneseq
        %v3542 = vshrl.u32 %v3541, 7
        %v3543 = vsub.s32 0, %v3542
        %v3544 = vrot.slane %v3044, %v3543
        %v3545 = vlaneseq
        %v3546 = vshrl.u32 %v3545, 7
        %v3547 = vsub.s32 1, %v3546
        %v3548 = vrot.slane %v3044, %v3547
        %v3549 = vlaneseq
        %v3550 = vshrl.u32 %v3549, 7
        %v3551 = vsub.s32 2, %v3550
        %v3552 = vrot.slane %v3044, %v3551
        %v3553 = vlaneseq
        %v3554 = vshrl.u32 %v3553, 7
        %v3555 = vsub.s32 3, %v3554
        %v3556 = vrot.slane %v3044, %v3555
        %v3557 = vlaneseq
        %v3558 = vshrl.u32 %v3557, 7
        %v3559 = vsub.s32 4, %v3558
        %v3560 = vrot.slane %v3044, %v3559
        %v3561 = vlaneseq
        %v3562 = vshrl.u32 %v3561, 7
        %v3563 = vsub.s32 5, %v3562
        %v3564 = vrot.slane %v3044, %v3563
        %v3565 = vlaneseq
        %v3566 = vshrl.u32 %v3565, 7
        %v3567 = vsub.s32 6, %v3566
        %v3568 = vrot.slane %v3044, %v3567
        %v3569 = vlaneseq
        %v3570 = vshrl.u32 %v3569, 7
        %v3571 = vsub.s32 7, %v3570
        %v3572 = vrot.slane %v3044, %v3571
        %v3701 = vmul.f32 %v2742, %v3064
        %v3702 = vmul.f32 %v2744, %v3068
        %v3703 = vmul.f32 %v2746, %v3072
        %v3704 = vmul.f32 %v2748, %v3076
        %v3705 = vmul.f32 %v2750, %v3080
        %v3706 = vmul.f32 %v2752, %v3084
        %v3707 = vmul.f32 %v2754, %v3088
        %v3708 = vmul.f32 %v2756, %v3092
        %v3709 = vmul.f32 %v2758, %v3096
        %v3710 = vmul.f32 %v2760, %v3100
        %v3711 = vmul.f32 %v2762, %v3104
        %v3712 = vmul.f32 %v2764, %v3108
        %v3713 = vmul.f32 %v2766, %v3112
        %v3714 = vmul.f32 %v2768, %v3116
        %v3715 = vmul.f32 %v2770, %v3120
        %v3716 = vmul.f32 %v2772, %v3124
        %v3717 = vmul.f32 %v2774, %v3128
        %v3718 = vmul.f32 %v2776, %v3132
        %v3719 = vmul.f32 %v2778, %v3136
        %v3720 = vmul.f32 %v2780, %v3140
        %v3721 = vmul.f32 %v2782, %v3144
        %v3722 = vmul.f32 %v2784, %v3148
        %v3723 = vmul.f32 %v2786, %v3152
        %v3724 = vmul.f32 %v2788, %v3156
        %v3725 = vmul.f32 %v2790, %v3160
        %v3726 = vmul.f32 %v2792, %v3164
        %v3727 = vmul.f32 %v2794, %v3168
        %v3728 = vmul.f32 %v2796, %v3172
        %v3729 = vmul.f32 %v2798, %v3176
        %v3730 = vmul.f32 %v2800, %v3180
        %v3731 = vmul.f32 %v2802, %v3184
        %v3732 = vmul.f32 %v2804, %v3188
        %v3733 = vmul.f32 %v2806, %v3192
        %v3734 = vmul.f32 %v2808, %v3196
        %v3735 = vmul.f32 %v2810, %v3200
        %v3736 = vmul.f32 %v2812, %v3204
        %v3737 = vmul.f32 %v2814, %v3208
        %v3738 = vmul.f32 %v2816, %v3212
        %v3739 = vmul.f32 %v2818, %v3216
        %v3740 = vmul.f32 %v2820, %v3220
        %v3741 = vmul.f32 %v2822, %v3224
        %v3742 = vmul.f32 %v2824, %v3228
        %v3743 = vmul.f32 %v2826, %v3232
        %v3744 = vmul.f32 %v2828, %v3236
        %v3745 = vmul.f32 %v2830, %v3240
        %v3746 = vmul.f32 %v2832, %v3244
        %v3747 = vmul.f32 %v2834, %v3248
        %v3748 = vmul.f32 %v2836, %v3252
        %v3749 = vmul.f32 %v2838, %v3256
        %v3750 = vmul.f32 %v2840, %v3260
        %v3751 = vmul.f32 %v2842, %v3264
        %v3752 = vmul.f32 %v2844, %v3268
        %v3753 = vmul.f32 %v2846, %v3272
        %v3754 = vmul.f32 %v2848, %v3276
        %v3755 = vmul.f32 %v2850, %v3280
        %v3756 = vmul.f32 %v2852, %v3284
        %v3757 = vmul.f32 %v2854, %v3288
        %v3758 = vmul.f32 %v2856, %v3292
        %v3759 = vmul.f32 %v2858, %v3296
        %v3760 = vmul.f32 %v2860, %v3300
        %v3761 = vmul.f32 %v2862, %v3304
        %v3762 = vmul.f32 %v2864, %v3308
        %v3763 = vmul.f32 %v2866, %v3312
        %v3764 = vmul.f32 %v2868, %v3316
        %v3765 = vmul.f32 %v2870, %v3320
        %v3766 = vmul.f32 %v2872, %v3324
        %v3767 = vmul.f32 %v2874, %v3328
        %v3768 = vmul.f32 %v2876, %v3332
        %v3769 = vmul.f32 %v2878, %v3336
        %v3770 = vmul.f32 %v2880, %v3340
        %v3771 = vmul.f32 %v2882, %v3344
        %v3772 = vmul.f32 %v2884, %v3348
        %v3773 = vmul.f32 %v2886, %v3352
        %v3774 = vmul.f32 %v2888, %v3356
        %v3775 = vmul.f32 %v2890, %v3360
        %v3776 = vmul.f32 %v2892, %v3364
        %v3777 = vmul.f32 %v2894, %v3368
        %v3778 = vmul.f32 %v2896, %v3372
        %v3779 = vmul.f32 %v2898, %v3376
        %v3780 = vmul.f32 %v2900, %v3380
        %v3781 = vmul.f32 %v2902, %v3384
        %v3782 = vmul.f32 %v2904, %v3388
        %v3783 = vmul.f32 %v2906, %v3392
        %v3784 = vmul.f32 %v2908, %v3396
        %v3785 = vmul.f32 %v2910, %v3400
        %v3786 = vmul.f32 %v2912, %v3404
        %v3787 = vmul.f32 %v2914, %v3408
        %v3788 = vmul.f32 %v2916, %v3412
        %v3789 = vmul.f32 %v2918, %v3416
        %v3790 = vmul.f32 %v2920, %v3420
        %v3791 = vmul.f32 %v2922, %v3424
        %v3792 = vmul.f32 %v2924, %v3428
        %v3793 = vmul.f32 %v2926, %v3432
        %v3794 = vmul.f32 %v2928, %v3436
        %v3795 = vmul.f32 %v2930, %v3440
        %v3796 = vmul.f32 %v2932, %v3444
        %v3797 = vmul.f32 %v2934, %v3448
        %v3798 = vmul.f32 %v2936, %v3452
        %v3799 = vmul.f32 %v2938, %v3456
        %v3800 = vmul.f32 %v2940, %v3460
        %v3801 = vmul.f32 %v2942, %v3464
        %v3802 = vmul.f32 %v2944, %v3468
        %v3803 = vmul.f32 %v2946, %v3472
        %v3804 = vmul.f32 %v2948, %v3476
        %v3805 = vmul.f32 %v2950, %v3480
        %v3806 = vmul.f32 %v2952, %v3484
        %v3807 = vmul.f32 %v2954, %v3488
        %v3808 = vmul.f32 %v2956, %v3492
        %v3809 = vmul.f32 %v2958, %v3496
        %v3810 = vmul.f32 %v2960, %v3500
        %v3811 = vmul.f32 %v2962, %v3504
        %v3812 = vmul.f32 %v2964, %v3508
        %v3813 = vmul.f32 %v2966, %v3512
        %v3814 = vmul.f32 %v2968, %v3516
        %v3815 = vmul.f32 %v2970, %v3520
        %v3816 = vmul.f32 %v2972, %v3524
        %v3817 = vmul.f32 %v2974, %v3528
        %v3818 = vmul.f32 %v2976, %v3532
        %v3819 = vmul.f32 %v2978, %v3536
        %v3820 = vmul.f32 %v2980, %v3540
        %v3821 = vmul.f32 %v2982, %v3544
        %v3822 = vmul.f32 %v2984, %v3548
        %v3823 = vmul.f32 %v2986, %v3552
        %v3824 = vmul.f32 %v2988, %v3556
        %v3825 = vmul.f32 %v2990, %v3560
        %v3826 = vmul.f32 %v2992, %v3564
        %v3827 = vmul.f32 %v2994, %v3568
        %v3828 = vmul.f32 %v2996, %v3572
        %v3829 = vmax.f32 %v3701, 1e-12
        %v3830 = vmax.f32 %v3702, 1e-12
        %v3831 = vmax.f32 %v3703, 1e-12
        %v3832 = vmax.f32 %v3704, 1e-12
        %v3833 = vmax.f32 %v3705, 1e-12
        %v3834 = vmax.f32 %v3706, 1e-12
        %v3835 = vmax.f32 %v3707, 1e-12
        %v3836 = vmax.f32 %v3708, 1e-12
        %v3837 = vmax.f32 %v3709, 1e-12
        %v3838 = vmax.f32 %v3710, 1e-12
        %v3839 = vmax.f32 %v3711, 1e-12
        %v3840 = vmax.f32 %v3712, 1e-12
        %v3841 = vmax.f32 %v3713, 1e-12
        %v3842 = vmax.f32 %v3714, 1e-12
        %v3843 = vmax.f32 %v3715, 1e-12
        %v3844 = vmax.f32 %v3716, 1e-12
        %v3845 = vmax.f32 %v3717, 1e-12
        %v3846 = vmax.f32 %v3718, 1e-12
        %v3847 = vmax.f32 %v3719, 1e-12
        %v3848 = vmax.f32 %v3720, 1e-12
        %v3849 = vmax.f32 %v3721, 1e-12
        %v3850 = vmax.f32 %v3722, 1e-12
        %v3851 = vmax.f32 %v3723, 1e-12
        %v3852 = vmax.f32 %v3724, 1e-12
        %v3853 = vmax.f32 %v3725, 1e-12
        %v3854 = vmax.f32 %v3726, 1e-12
        %v3855 = vmax.f32 %v3727, 1e-12
        %v3856 = vmax.f32 %v3728, 1e-12
        %v3857 = vmax.f32 %v3729, 1e-12
        %v3858 = vmax.f32 %v3730, 1e-12
        %v3859 = vmax.f32 %v3731, 1e-12
        %v3860 = vmax.f32 %v3732, 1e-12
        %v3861 = vmax.f32 %v3733, 1e-12
        %v3862 = vmax.f32 %v3734, 1e-12
        %v3863 = vmax.f32 %v3735, 1e-12
        %v3864 = vmax.f32 %v3736, 1e-12
        %v3865 = vmax.f32 %v3737, 1e-12
        %v3866 = vmax.f32 %v3738, 1e-12
        %v3867 = vmax.f32 %v3739, 1e-12
        %v3868 = vmax.f32 %v3740, 1e-12
        %v3869 = vmax.f32 %v3741, 1e-12
        %v3870 = vmax.f32 %v3742, 1e-12
        %v3871 = vmax.f32 %v3743, 1e-12
        %v3872 = vmax.f32 %v3744, 1e-12
        %v3873 = vmax.f32 %v3745, 1e-12
        %v3874 = vmax.f32 %v3746, 1e-12
        %v3875 = vmax.f32 %v3747, 1e-12
        %v3876 = vmax.f32 %v3748, 1e-12
        %v3877 = vmax.f32 %v3749, 1e-12
        %v3878 = vmax.f32 %v3750, 1e-12
        %v3879 = vmax.f32 %v3751, 1e-12
        %v3880 = vmax.f32 %v3752, 1e-12
        %v3881 = vmax.f32 %v3753, 1e-12
        %v3882 = vmax.f32 %v3754, 1e-12
        %v3883 = vmax.f32 %v3755, 1e-12
        %v3884 = vmax.f32 %v3756, 1e-12
        %v3885 = vmax.f32 %v3757, 1e-12
        %v3886 = vmax.f32 %v3758, 1e-12
        %v3887 = vmax.f32 %v3759, 1e-12
        %v3888 = vmax.f32 %v3760, 1e-12
        %v3889 = vmax.f32 %v3761, 1e-12
        %v3890 = vmax.f32 %v3762, 1e-12
        %v3891 = vmax.f32 %v3763, 1e-12
        %v3892 = vmax.f32 %v3764, 1e-12
        %v3893 = vmax.f32 %v3765, 1e-12
        %v3894 = vmax.f32 %v3766, 1e-12
        %v3895 = vmax.f32 %v3767, 1e-12
        %v3896 = vmax.f32 %v3768, 1e-12
        %v3897 = vmax.f32 %v3769, 1e-12
        %v3898 = vmax.f32 %v3770, 1e-12
        %v3899 = vmax.f32 %v3771, 1e-12
        %v3900 = vmax.f32 %v3772, 1e-12
        %v3901 = vmax.f32 %v3773, 1e-12
        %v3902 = vmax.f32 %v3774, 1e-12
        %v3903 = vmax.f32 %v3775, 1e-12
        %v3904 = vmax.f32 %v3776, 1e-12
        %v3905 = vmax.f32 %v3777, 1e-12
        %v3906 = vmax.f32 %v3778, 1e-12
        %v3907 = vmax.f32 %v3779, 1e-12
        %v3908 = vmax.f32 %v3780, 1e-12
        %v3909 = vmax.f32 %v3781, 1e-12
        %v3910 = vmax.f32 %v3782, 1e-12
        %v3911 = vmax.f32 %v3783, 1e-12
        %v3912 = vmax.f32 %v3784, 1e-12
        %v3913 = vmax.f32 %v3785, 1e-12
        %v3914 = vmax.f32 %v3786, 1e-12
        %v3915 = vmax.f32 %v3787, 1e-12
        %v3916 = vmax.f32 %v3788, 1e-12
        %v3917 = vmax.f32 %v3789, 1e-12
        %v3918 = vmax.f32 %v3790, 1e-12
        %v3919 = vmax.f32 %v3791, 1e-12
        %v3920 = vmax.f32 %v3792, 1e-12
        %v3921 = vmax.f32 %v3793, 1e-12
        %v3922 = vmax.f32 %v3794, 1e-12
        %v3923 = vmax.f32 %v3795, 1e-12
        %v3924 = vmax.f32 %v3796, 1e-12
        %v3925 = vmax.f32 %v3797, 1e-12
        %v3926 = vmax.f32 %v3798, 1e-12
        %v3927 = vmax.f32 %v3799, 1e-12
        %v3928 = vmax.f32 %v3800, 1e-12
        %v3929 = vmax.f32 %v3801, 1e-12
        %v3930 = vmax.f32 %v3802, 1e-12
        %v3931 = vmax.f32 %v3803, 1e-12
        %v3932 = vmax.f32 %v3804, 1e-12
        %v3933 = vmax.f32 %v3805, 1e-12
        %v3934 = vmax.f32 %v3806, 1e-12
        %v3935 = vmax.f32 %v3807, 1e-12
        %v3936 = vmax.f32 %v3808, 1e-12
        %v3937 = vmax.f32 %v3809, 1e-12
        %v3938 = vmax.f32 %v3810, 1e-12
        %v3939 = vmax.f32 %v3811, 1e-12
        %v3940 = vmax.f32 %v3812, 1e-12
        %v3941 = vmax.f32 %v3813, 1e-12
        %v3942 = vmax.f32 %v3814, 1e-12
        %v3943 = vmax.f32 %v3815, 1e-12
        %v3944 = vmax.f32 %v3816, 1e-12
        %v3945 = vmax.f32 %v3817, 1e-12
        %v3946 = vmax.f32 %v3818, 1e-12
        %v3947 = vmax.f32 %v3819, 1e-12
        %v3948 = vmax.f32 %v3820, 1e-12
        %v3949 = vmax.f32 %v3821, 1e-12
        %v3950 = vmax.f32 %v3822, 1e-12
        %v3951 = vmax.f32 %v3823, 1e-12
        %v3952 = vmax.f32 %v3824, 1e-12
        %v3953 = vmax.f32 %v3825, 1e-12
        %v3954 = vmax.f32 %v3826, 1e-12
        %v3955 = vmax.f32 %v3827, 1e-12
        %v3956 = vmax.f32 %v3828, 1e-12
        %v3957 = vrsqrt.pop %v3829
        %v3958 = vrsqrt.pop %v3830
        %v3959 = vrsqrt.pop %v3831
        %v3960 = vrsqrt.pop %v3832
        %v3961 = vrsqrt.pop %v3833
        %v3962 = vrsqrt.pop %v3834
        %v3963 = vrsqrt.pop %v3835
        %v3964 = vrsqrt.pop %v3836
        %v3965 = vrsqrt.pop %v3837
        %v3966 = vrsqrt.pop %v3838
        %v3967 = vrsqrt.pop %v3839
        %v3968 = vrsqrt.pop %v3840
        %v3969 = vrsqrt.pop %v3841
        %v3970 = vrsqrt.pop %v3842
        %v3971 = vrsqrt.pop %v3843
        %v3972 = vrsqrt.pop %v3844
        %v3973 = vrsqrt.pop %v3845
        %v3974 = vrsqrt.pop %v3846
        %v3975 = vrsqrt.pop %v3847
        %v3976 = vrsqrt.pop %v3848
        %v3977 = vrsqrt.pop %v3849
        %v3978 = vrsqrt.pop %v3850
        %v3979 = vrsqrt.pop %v3851
        %v3980 = vrsqrt.pop %v3852
        %v3981 = vrsqrt.pop %v3853
        %v3982 = vrsqrt.pop %v3854
        %v3983 = vrsqrt.pop %v3855
        %v3984 = vrsqrt.pop %v3856
        %v3985 = vrsqrt.pop %v3857
        %v3986 = vrsqrt.pop %v3858
        %v3987 = vrsqrt.pop %v3859
        %v3988 = vrsqrt.pop %v3860
        %v3989 = vrsqrt.pop %v3861
        %v3990 = vrsqrt.pop %v3862
        %v3991 = vrsqrt.pop %v3863
        %v3992 = vrsqrt.pop %v3864
        %v3993 = vrsqrt.pop %v3865
        %v3994 = vrsqrt.pop %v3866
        %v3995 = vrsqrt.pop %v3867
        %v3996 = vrsqrt.pop %v3868
        %v3997 = vrsqrt.pop %v3869
        %v3998 = vrsqrt.pop %v3870
        %v3999 = vrsqrt.pop %v3871
        %v4000 = vrsqrt.pop %v3872
        %v4001 = vrsqrt.pop %v3873
        %v4002 = vrsqrt.pop %v3874
        %v4003 = vrsqrt.pop %v3875
        %v4004 = vrsqrt.pop %v3876
        %v4005 = vrsqrt.pop %v3877
        %v4006 = vrsqrt.pop %v3878
        %v4007 = vrsqrt.pop %v3879
        %v4008 = vrsqrt.pop %v3880
        %v4009 = vrsqrt.pop %v3881
        %v4010 = vrsqrt.pop %v3882
        %v4011 = vrsqrt.pop %v3883
        %v4012 = vrsqrt.pop %v3884
        %v4013 = vrsqrt.pop %v3885
        %v4014 = vrsqrt.pop %v3886
        %v4015 = vrsqrt.pop %v3887
        %v4016 = vrsqrt.pop %v3888
        %v4017 = vrsqrt.pop %v3889
        %v4018 = vrsqrt.pop %v3890
        %v4019 = vrsqrt.pop %v3891
        %v4020 = vrsqrt.pop %v3892
        %v4021 = vrsqrt.pop %v3893
        %v4022 = vrsqrt.pop %v3894
        %v4023 = vrsqrt.pop %v3895
        %v4024 = vrsqrt.pop %v3896
        %v4025 = vrsqrt.pop %v3897
        %v4026 = vrsqrt.pop %v3898
        %v4027 = vrsqrt.pop %v3899
        %v4028 = vrsqrt.pop %v3900
        %v4029 = vrsqrt.pop %v3901
        %v4030 = vrsqrt.pop %v3902
        %v4031 = vrsqrt.pop %v3903
        %v4032 = vrsqrt.pop %v3904
        %v4033 = vrsqrt.pop %v3905
        %v4034 = vrsqrt.pop %v3906
        %v4035 = vrsqrt.pop %v3907
        %v4036 = vrsqrt.pop %v3908
        %v4037 = vrsqrt.pop %v3909
        %v4038 = vrsqrt.pop %v3910
        %v4039 = vrsqrt.pop %v3911
        %v4040 = vrsqrt.pop %v3912
        %v4041 = vrsqrt.pop %v3913
        %v4042 = vrsqrt.pop %v3914
        %v4043 = vrsqrt.pop %v3915
        %v4044 = vrsqrt.pop %v3916
        %v4045 = vrsqrt.pop %v3917
        %v4046 = vrsqrt.pop %v3918
        %v4047 = vrsqrt.pop %v3919
        %v4048 = vrsqrt.pop %v3920
        %v4049 = vrsqrt.pop %v3921
        %v4050 = vrsqrt.pop %v3922
        %v4051 = vrsqrt.pop %v3923
        %v4052 = vrsqrt.pop %v3924
        %v4053 = vrsqrt.pop %v3925
        %v4054 = vrsqrt.pop %v3926
        %v4055 = vrsqrt.pop %v3927
        %v4056 = vrsqrt.pop %v3928
        %v4057 = vrsqrt.pop %v3929
        %v4058 = vrsqrt.pop %v3930
        %v4059 = vrsqrt.pop %v3931
        %v4060 = vrsqrt.pop %v3932
        %v4061 = vrsqrt.pop %v3933
        %v4062 = vrsqrt.pop %v3934
        %v4063 = vrsqrt.pop %v3935
        %v4064 = vrsqrt.pop %v3936
        %v4065 = vrsqrt.pop %v3937
        %v4066 = vrsqrt.pop %v3938
        %v4067 = vrsqrt.pop %v3939
        %v4068 = vrsqrt.pop %v3940
        %v4069 = vrsqrt.pop %v3941
        %v4070 = vrsqrt.pop %v3942
        %v4071 = vrsqrt.pop %v3943
        %v4072 = vrsqrt.pop %v3944
        %v4073 = vrsqrt.pop %v3945
        %v4074 = vrsqrt.pop %v3946
        %v4075 = vrsqrt.pop %v3947
        %v4076 = vrsqrt.pop %v3948
        %v4077 = vrsqrt.pop %v3949
        %v4078 = vrsqrt.pop %v3950
        %v4079 = vrsqrt.pop %v3951
        %v4080 = vrsqrt.pop %v3952
        %v4081 = vrsqrt.pop %v3953
        %v4082 = vrsqrt.pop %v3954
        %v4083 = vrsqrt.pop %v3955
        %v4084 = vrsqrt.pop %v3956
        %v4085 = vmul.f32 %v2358, %v3957
        %v4086 = vmul.f32 %v2360, %v3958
        %v4087 = vmul.f32 %v2362, %v3959
        %v4088 = vmul.f32 %v2364, %v3960
        %v4089 = vmul.f32 %v2366, %v3961
        %v4090 = vmul.f32 %v2368, %v3962
        %v4091 = vmul.f32 %v2370, %v3963
        %v4092 = vmul.f32 %v2372, %v3964
        %v4093 = vmul.f32 %v2374, %v3965
        %v4094 = vmul.f32 %v2376, %v3966
        %v4095 = vmul.f32 %v2378, %v3967
        %v4096 = vmul.f32 %v2380, %v3968
        %v4097 = vmul.f32 %v2382, %v3969
        %v4098 = vmul.f32 %v2384, %v3970
        %v4099 = vmul.f32 %v2386, %v3971
        %v4100 = vmul.f32 %v2388, %v3972
        %v4101 = vmul.f32 %v2390, %v3973
        %v4102 = vmul.f32 %v2392, %v3974
        %v4103 = vmul.f32 %v2394, %v3975
        %v4104 = vmul.f32 %v2396, %v3976
        %v4105 = vmul.f32 %v2398, %v3977
        %v4106 = vmul.f32 %v2400, %v3978
        %v4107 = vmul.f32 %v2402, %v3979
        %v4108 = vmul.f32 %v2404, %v3980
        %v4109 = vmul.f32 %v2406, %v3981
        %v4110 = vmul.f32 %v2408, %v3982
        %v4111 = vmul.f32 %v2410, %v3983
        %v4112 = vmul.f32 %v2412, %v3984
        %v4113 = vmul.f32 %v2414, %v3985
        %v4114 = vmul.f32 %v2416, %v3986
        %v4115 = vmul.f32 %v2418, %v3987
        %v4116 = vmul.f32 %v2420, %v3988
        %v4117 = vmul.f32 %v2422, %v3989
        %v4118 = vmul.f32 %v2424, %v3990
        %v4119 = vmul.f32 %v2426, %v3991
        %v4120 = vmul.f32 %v2428, %v3992
        %v4121 = vmul.f32 %v2430, %v3993
        %v4122 = vmul.f32 %v2432, %v3994
        %v4123 = vmul.f32 %v2434, %v3995
        %v4124 = vmul.f32 %v2436, %v3996
        %v4125 = vmul.f32 %v2438, %v3997
        %v4126 = vmul.f32 %v2440, %v3998
        %v4127 = vmul.f32 %v2442, %v3999
        %v4128 = vmul.f32 %v2444, %v4000
        %v4129 = vmul.f32 %v2446, %v4001
        %v4130 = vmul.f32 %v2448, %v4002
        %v4131 = vmul.f32 %v2450, %v4003
        %v4132 = vmul.f32 %v2452, %v4004
        %v4133 = vmul.f32 %v2454, %v4005
        %v4134 = vmul.f32 %v2456, %v4006
        %v4135 = vmul.f32 %v2458, %v4007
        %v4136 = vmul.f32 %v2460, %v4008
        %v4137 = vmul.f32 %v2462, %v4009
        %v4138 = vmul.f32 %v2464, %v4010
        %v4139 = vmul.f32 %v2466, %v4011
        %v4140 = vmul.f32 %v2468, %v4012
        %v4141 = vmul.f32 %v2470, %v4013
        %v4142 = vmul.f32 %v2472, %v4014
        %v4143 = vmul.f32 %v2474, %v4015
        %v4144 = vmul.f32 %v2476, %v4016
        %v4145 = vmul.f32 %v2478, %v4017
        %v4146 = vmul.f32 %v2480, %v4018
        %v4147 = vmul.f32 %v2482, %v4019
        %v4148 = vmul.f32 %v2484, %v4020
        %v4149 = vmul.f32 %v2486, %v4021
        %v4150 = vmul.f32 %v2488, %v4022
        %v4151 = vmul.f32 %v2490, %v4023
        %v4152 = vmul.f32 %v2492, %v4024
        %v4153 = vmul.f32 %v2494, %v4025
        %v4154 = vmul.f32 %v2496, %v4026
        %v4155 = vmul.f32 %v2498, %v4027
        %v4156 = vmul.f32 %v2500, %v4028
        %v4157 = vmul.f32 %v2502, %v4029
        %v4158 = vmul.f32 %v2504, %v4030
        %v4159 = vmul.f32 %v2506, %v4031
        %v4160 = vmul.f32 %v2508, %v4032
        %v4161 = vmul.f32 %v2510, %v4033
        %v4162 = vmul.f32 %v2512, %v4034
        %v4163 = vmul.f32 %v2514, %v4035
        %v4164 = vmul.f32 %v2516, %v4036
        %v4165 = vmul.f32 %v2518, %v4037
        %v4166 = vmul.f32 %v2520, %v4038
        %v4167 = vmul.f32 %v2522, %v4039
        %v4168 = vmul.f32 %v2524, %v4040
        %v4169 = vmul.f32 %v2526, %v4041
        %v4170 = vmul.f32 %v2528, %v4042
        %v4171 = vmul.f32 %v2530, %v4043
        %v4172 = vmul.f32 %v2532, %v4044
        %v4173 = vmul.f32 %v2534, %v4045
        %v4174 = vmul.f32 %v2536, %v4046
        %v4175 = vmul.f32 %v2538, %v4047
        %v4176 = vmul.f32 %v2540, %v4048
        %v4177 = vmul.f32 %v2542, %v4049
        %v4178 = vmul.f32 %v2544, %v4050
        %v4179 = vmul.f32 %v2546, %v4051
        %v4180 = vmul.f32 %v2548, %v4052
        %v4181 = vmul.f32 %v2550, %v4053
        %v4182 = vmul.f32 %v2552, %v4054
        %v4183 = vmul.f32 %v2554, %v4055
        %v4184 = vmul.f32 %v2556, %v4056
        %v4185 = vmul.f32 %v2558, %v4057
        %v4186 = vmul.f32 %v2560, %v4058
        %v4187 = vmul.f32 %v2562, %v4059
        %v4188 = vmul.f32 %v2564, %v4060
        %v4189 = vmul.f32 %v2566, %v4061
        %v4190 = vmul.f32 %v2568, %v4062
        %v4191 = vmul.f32 %v2570, %v4063
        %v4192 = vmul.f32 %v2572, %v4064
        %v4193 = vmul.f32 %v2574, %v4065
        %v4194 = vmul.f32 %v2576, %v4066
        %v4195 = vmul.f32 %v2578, %v4067
        %v4196 = vmul.f32 %v2580, %v4068
        %v4197 = vmul.f32 %v2582, %v4069
        %v4198 = vmul.f32 %v2584, %v4070
        %v4199 = vmul.f32 %v2586, %v4071
        %v4200 = vmul.f32 %v2588, %v4072
        %v4201 = vmul.f32 %v2590, %v4073
        %v4202 = vmul.f32 %v2592, %v4074
        %v4203 = vmul.f32 %v2594, %v4075
        %v4204 = vmul.f32 %v2596, %v4076
        %v4205 = vmul.f32 %v2598, %v4077
        %v4206 = vmul.f32 %v2600, %v4078
        %v4207 = vmul.f32 %v2602, %v4079
        %v4208 = vmul.f32 %v2604, %v4080
        %v4209 = vmul.f32 %v2606, %v4081
        %v4210 = vmul.f32 %v2608, %v4082
        %v4211 = vmul.f32 %v2610, %v4083
        %v4212 = vmul.f32 %v2612, %v4084
        %v4213 = vmul.f32 %v4085, 1.442695
        %v4214 = vpow.pop %v4213
        %v4215 = vmul.f32 %v4086, 1.442695
        %v4216 = vpow.pop %v4215
        %v4217 = vmul.f32 %v4087, 1.442695
        %v4218 = vpow.pop %v4217
        %v4219 = vmul.f32 %v4088, 1.442695
        %v4220 = vpow.pop %v4219
        %v4221 = vmul.f32 %v4089, 1.442695
        %v4222 = vpow.pop %v4221
        %v4223 = vmul.f32 %v4090, 1.442695
        %v4224 = vpow.pop %v4223
        %v4225 = vmul.f32 %v4091, 1.442695
        %v4226 = vpow.pop %v4225
        %v4227 = vmul.f32 %v4092, 1.442695
        %v4228 = vpow.pop %v4227
        %v4229 = vmul.f32 %v4093, 1.442695
        %v4230 = vpow.pop %v4229
        %v4231 = vmul.f32 %v4094, 1.442695
        %v4232 = vpow.pop %v4231
        %v4233 = vmul.f32 %v4095, 1.442695
        %v4234 = vpow.pop %v4233
        %v4235 = vmul.f32 %v4096, 1.442695
        %v4236 = vpow.pop %v4235
        %v4237 = vmul.f32 %v4097, 1.442695
        %v4238 = vpow.pop %v4237
        %v4239 = vmul.f32 %v4098, 1.442695
        %v4240 = vpow.pop %v4239
        %v4241 = vmul.f32 %v4099, 1.442695
        %v4242 = vpow.pop %v4241
        %v4243 = vmul.f32 %v4100, 1.442695
        %v4244 = vpow.pop %v4243
        %v4245 = vmul.f32 %v4101, 1.442695
        %v4246 = vpow.pop %v4245
        %v4247 = vmul.f32 %v4102, 1.442695
        %v4248 = vpow.pop %v4247
        %v4249 = vmul.f32 %v4103, 1.442695
        %v4250 = vpow.pop %v4249
        %v4251 = vmul.f32 %v4104, 1.442695
        %v4252 = vpow.pop %v4251
        %v4253 = vmul.f32 %v4105, 1.442695
        %v4254 = vpow.pop %v4253
        %v4255 = vmul.f32 %v4106, 1.442695
        %v4256 = vpow.pop %v4255
        %v4257 = vmul.f32 %v4107, 1.442695
        %v4258 = vpow.pop %v4257
        %v4259 = vmul.f32 %v4108, 1.442695
        %v4260 = vpow.pop %v4259
        %v4261 = vmul.f32 %v4109, 1.442695
        %v4262 = vpow.pop %v4261
        %v4263 = vmul.f32 %v4110, 1.442695
        %v4264 = vpow.pop %v4263
        %v4265 = vmul.f32 %v4111, 1.442695
        %v4266 = vpow.pop %v4265
        %v4267 = vmul.f32 %v4112, 1.442695
        %v4268 = vpow.pop %v4267
        %v4269 = vmul.f32 %v4113, 1.442695
        %v4270 = vpow.pop %v4269
        %v4271 = vmul.f32 %v4114, 1.442695
        %v4272 = vpow.pop %v4271
        %v4273 = vmul.f32 %v4115, 1.442695
        %v4274 = vpow.pop %v4273
        %v4275 = vmul.f32 %v4116, 1.442695
        %v4276 = vpow.pop %v4275
        %v4277 = vmul.f32 %v4117, 1.442695
        %v4278 = vpow.pop %v4277
        %v4279 = vmul.f32 %v4118, 1.442695
        %v4280 = vpow.pop %v4279
        %v4281 = vmul.f32 %v4119, 1.442695
        %v4282 = vpow.pop %v4281
        %v4283 = vmul.f32 %v4120, 1.442695
        %v4284 = vpow.pop %v4283
        %v4285 = vmul.f32 %v4121, 1.442695
        %v4286 = vpow.pop %v4285
        %v4287 = vmul.f32 %v4122, 1.442695
        %v4288 = vpow.pop %v4287
        %v4289 = vmul.f32 %v4123, 1.442695
        %v4290 = vpow.pop %v4289
        %v4291 = vmul.f32 %v4124, 1.442695
        %v4292 = vpow.pop %v4291
        %v4293 = vmul.f32 %v4125, 1.442695
        %v4294 = vpow.pop %v4293
        %v4295 = vmul.f32 %v4126, 1.442695
        %v4296 = vpow.pop %v4295
        %v4297 = vmul.f32 %v4127, 1.442695
        %v4298 = vpow.pop %v4297
        %v4299 = vmul.f32 %v4128, 1.442695
        %v4300 = vpow.pop %v4299
        %v4301 = vmul.f32 %v4129, 1.442695
        %v4302 = vpow.pop %v4301
        %v4303 = vmul.f32 %v4130, 1.442695
        %v4304 = vpow.pop %v4303
        %v4305 = vmul.f32 %v4131, 1.442695
        %v4306 = vpow.pop %v4305
        %v4307 = vmul.f32 %v4132, 1.442695
        %v4308 = vpow.pop %v4307
        %v4309 = vmul.f32 %v4133, 1.442695
        %v4310 = vpow.pop %v4309
        %v4311 = vmul.f32 %v4134, 1.442695
        %v4312 = vpow.pop %v4311
        %v4313 = vmul.f32 %v4135, 1.442695
        %v4314 = vpow.pop %v4313
        %v4315 = vmul.f32 %v4136, 1.442695
        %v4316 = vpow.pop %v4315
        %v4317 = vmul.f32 %v4137, 1.442695
        %v4318 = vpow.pop %v4317
        %v4319 = vmul.f32 %v4138, 1.442695
        %v4320 = vpow.pop %v4319
        %v4321 = vmul.f32 %v4139, 1.442695
        %v4322 = vpow.pop %v4321
        %v4323 = vmul.f32 %v4140, 1.442695
        %v4324 = vpow.pop %v4323
        %v4325 = vmul.f32 %v4141, 1.442695
        %v4326 = vpow.pop %v4325
        %v4327 = vmul.f32 %v4142, 1.442695
        %v4328 = vpow.pop %v4327
        %v4329 = vmul.f32 %v4143, 1.442695
        %v4330 = vpow.pop %v4329
        %v4331 = vmul.f32 %v4144, 1.442695
        %v4332 = vpow.pop %v4331
        %v4333 = vmul.f32 %v4145, 1.442695
        %v4334 = vpow.pop %v4333
        %v4335 = vmul.f32 %v4146, 1.442695
        %v4336 = vpow.pop %v4335
        %v4337 = vmul.f32 %v4147, 1.442695
        %v4338 = vpow.pop %v4337
        %v4339 = vmul.f32 %v4148, 1.442695
        %v4340 = vpow.pop %v4339
        %v4341 = vmul.f32 %v4149, 1.442695
        %v4342 = vpow.pop %v4341
        %v4343 = vmul.f32 %v4150, 1.442695
        %v4344 = vpow.pop %v4343
        %v4345 = vmul.f32 %v4151, 1.442695
        %v4346 = vpow.pop %v4345
        %v4347 = vmul.f32 %v4152, 1.442695
        %v4348 = vpow.pop %v4347
        %v4349 = vmul.f32 %v4153, 1.442695
        %v4350 = vpow.pop %v4349
        %v4351 = vmul.f32 %v4154, 1.442695
        %v4352 = vpow.pop %v4351
        %v4353 = vmul.f32 %v4155, 1.442695
        %v4354 = vpow.pop %v4353
        %v4355 = vmul.f32 %v4156, 1.442695
        %v4356 = vpow.pop %v4355
        %v4357 = vmul.f32 %v4157, 1.442695
        %v4358 = vpow.pop %v4357
        %v4359 = vmul.f32 %v4158, 1.442695
        %v4360 = vpow.pop %v4359
        %v4361 = vmul.f32 %v4159, 1.442695
        %v4362 = vpow.pop %v4361
        %v4363 = vmul.f32 %v4160, 1.442695
        %v4364 = vpow.pop %v4363
        %v4365 = vmul.f32 %v4161, 1.442695
        %v4366 = vpow.pop %v4365
        %v4367 = vmul.f32 %v4162, 1.442695
        %v4368 = vpow.pop %v4367
        %v4369 = vmul.f32 %v4163, 1.442695
        %v4370 = vpow.pop %v4369
        %v4371 = vmul.f32 %v4164, 1.442695
        %v4372 = vpow.pop %v4371
        %v4373 = vmul.f32 %v4165, 1.442695
        %v4374 = vpow.pop %v4373
        %v4375 = vmul.f32 %v4166, 1.442695
        %v4376 = vpow.pop %v4375
        %v4377 = vmul.f32 %v4167, 1.442695
        %v4378 = vpow.pop %v4377
        %v4379 = vmul.f32 %v4168, 1.442695
        %v4380 = vpow.pop %v4379
        %v4381 = vmul.f32 %v4169, 1.442695
        %v4382 = vpow.pop %v4381
        %v4383 = vmul.f32 %v4170, 1.442695
        %v4384 = vpow.pop %v4383
        %v4385 = vmul.f32 %v4171, 1.442695
        %v4386 = vpow.pop %v4385
        %v4387 = vmul.f32 %v4172, 1.442695
        %v4388 = vpow.pop %v4387
        %v4389 = vmul.f32 %v4173, 1.442695
        %v4390 = vpow.pop %v4389
        %v4391 = vmul.f32 %v4174, 1.442695
        %v4392 = vpow.pop %v4391
        %v4393 = vmul.f32 %v4175, 1.442695
        %v4394 = vpow.pop %v4393
        %v4395 = vmul.f32 %v4176, 1.442695
        %v4396 = vpow.pop %v4395
        %v4397 = vmul.f32 %v4177, 1.442695
        %v4398 = vpow.pop %v4397
        %v4399 = vmul.f32 %v4178, 1.442695
        %v4400 = vpow.pop %v4399
        %v4401 = vmul.f32 %v4179, 1.442695
        %v4402 = vpow.pop %v4401
        %v4403 = vmul.f32 %v4180, 1.442695
        %v4404 = vpow.pop %v4403
        %v4405 = vmul.f32 %v4181, 1.442695
        %v4406 = vpow.pop %v4405
        %v4407 = vmul.f32 %v4182, 1.442695
        %v4408 = vpow.pop %v4407
        %v4409 = vmul.f32 %v4183, 1.442695
        %v4410 = vpow.pop %v4409
        %v4411 = vmul.f32 %v4184, 1.442695
        %v4412 = vpow.pop %v4411
        %v4413 = vmul.f32 %v4185, 1.442695
        %v4414 = vpow.pop %v4413
        %v4415 = vmul.f32 %v4186, 1.442695
        %v4416 = vpow.pop %v4415
        %v4417 = vmul.f32 %v4187, 1.442695
        %v4418 = vpow.pop %v4417
        %v4419 = vmul.f32 %v4188, 1.442695
        %v4420 = vpow.pop %v4419
        %v4421 = vmul.f32 %v4189, 1.442695
        %v4422 = vpow.pop %v4421
        %v4423 = vmul.f32 %v4190, 1.442695
        %v4424 = vpow.pop %v4423
        %v4425 = vmul.f32 %v4191, 1.442695
        %v4426 = vpow.pop %v4425
        %v4427 = vmul.f32 %v4192, 1.442695
        %v4428 = vpow.pop %v4427
        %v4429 = vmul.f32 %v4193, 1.442695
        %v4430 = vpow.pop %v4429
        %v4431 = vmul.f32 %v4194, 1.442695
        %v4432 = vpow.pop %v4431
        %v4433 = vmul.f32 %v4195, 1.442695
        %v4434 = vpow.pop %v4433
        %v4435 = vmul.f32 %v4196, 1.442695
        %v4436 = vpow.pop %v4435
        %v4437 = vmul.f32 %v4197, 1.442695
        %v4438 = vpow.pop %v4437
        %v4439 = vmul.f32 %v4198, 1.442695
        %v4440 = vpow.pop %v4439
        %v4441 = vmul.f32 %v4199, 1.442695
        %v4442 = vpow.pop %v4441
        %v4443 = vmul.f32 %v4200, 1.442695
        %v4444 = vpow.pop %v4443
        %v4445 = vmul.f32 %v4201, 1.442695
        %v4446 = vpow.pop %v4445
        %v4447 = vmul.f32 %v4202, 1.442695
        %v4448 = vpow.pop %v4447
        %v4449 = vmul.f32 %v4203, 1.442695
        %v4450 = vpow.pop %v4449
        %v4451 = vmul.f32 %v4204, 1.442695
        %v4452 = vpow.pop %v4451
        %v4453 = vmul.f32 %v4205, 1.442695
        %v4454 = vpow.pop %v4453
        %v4455 = vmul.f32 %v4206, 1.442695
        %v4456 = vpow.pop %v4455
        %v4457 = vmul.f32 %v4207, 1.442695
        %v4458 = vpow.pop %v4457
        %v4459 = vmul.f32 %v4208, 1.442695
        %v4460 = vpow.pop %v4459
        %v4461 = vmul.f32 %v4209, 1.442695
        %v4462 = vpow.pop %v4461
        %v4463 = vmul.f32 %v4210, 1.442695
        %v4464 = vpow.pop %v4463
        %v4465 = vmul.f32 %v4211, 1.442695
        %v4466 = vpow.pop %v4465
        %v4467 = vmul.f32 %v4212, 1.442695
        %v4468 = vpow.pop %v4467
        %4597 = vset.pattern.permute.xlu0 0
        %4598 = vperm.xlu0 %4597, %v4214
        %v4599 = vpop.permute.xlu0 %4598
        %4600 = vset.pattern.permute.xlu0 0
        %4601 = vperm.xlu0 %4600, %v4216
        %v4602 = vpop.permute.xlu0 %4601
        %4603 = vset.pattern.permute.xlu0 0
        %4604 = vperm.xlu0 %4603, %v4218
        %v4605 = vpop.permute.xlu0 %4604
        %4606 = vset.pattern.permute.xlu0 0
        %4607 = vperm.xlu0 %4606, %v4220
        %v4608 = vpop.permute.xlu0 %4607
        %4609 = vset.pattern.permute.xlu0 0
        %4610 = vperm.xlu0 %4609, %v4222
        %v4611 = vpop.permute.xlu0 %4610
        %4612 = vset.pattern.permute.xlu0 0
        %4613 = vperm.xlu0 %4612, %v4224
        %v4614 = vpop.permute.xlu0 %4613
        %4615 = vset.pattern.permute.xlu0 0
        %4616 = vperm.xlu0 %4615, %v4226
        %v4617 = vpop.permute.xlu0 %4616
        %4618 = vset.pattern.permute.xlu0 0
        %4619 = vperm.xlu0 %4618, %v4228
        %v4620 = vpop.permute.xlu0 %4619
        %4621 = vset.pattern.permute.xlu0 0
        %4622 = vperm.xlu0 %4621, %v4230
        %v4623 = vpop.permute.xlu0 %4622
        %4624 = vset.pattern.permute.xlu0 0
        %4625 = vperm.xlu0 %4624, %v4232
        %v4626 = vpop.permute.xlu0 %4625
        %4627 = vset.pattern.permute.xlu0 0
        %4628 = vperm.xlu0 %4627, %v4234
        %v4629 = vpop.permute.xlu0 %4628
        %4630 = vset.pattern.permute.xlu0 0
        %4631 = vperm.xlu0 %4630, %v4236
        %v4632 = vpop.permute.xlu0 %4631
        %4633 = vset.pattern.permute.xlu0 0
        %4634 = vperm.xlu0 %4633, %v4238
        %v4635 = vpop.permute.xlu0 %4634
        %4636 = vset.pattern.permute.xlu0 0
        %4637 = vperm.xlu0 %4636, %v4240
        %v4638 = vpop.permute.xlu0 %4637
        %4639 = vset.pattern.permute.xlu0 0
        %4640 = vperm.xlu0 %4639, %v4242
        %v4641 = vpop.permute.xlu0 %4640
        %4642 = vset.pattern.permute.xlu0 0
        %4643 = vperm.xlu0 %4642, %v4244
        %v4644 = vpop.permute.xlu0 %4643
        %4645 = vset.pattern.permute.xlu0 0
        %4646 = vperm.xlu0 %4645, %v4246
        %v4647 = vpop.permute.xlu0 %4646
        %4648 = vset.pattern.permute.xlu0 0
        %4649 = vperm.xlu0 %4648, %v4248
        %v4650 = vpop.permute.xlu0 %4649
        %4651 = vset.pattern.permute.xlu0 0
        %4652 = vperm.xlu0 %4651, %v4250
        %v4653 = vpop.permute.xlu0 %4652
        %4654 = vset.pattern.permute.xlu0 0
        %4655 = vperm.xlu0 %4654, %v4252
        %v4656 = vpop.permute.xlu0 %4655
        %4657 = vset.pattern.permute.xlu0 0
        %4658 = vperm.xlu0 %4657, %v4254
        %v4659 = vpop.permute.xlu0 %4658
        %4660 = vset.pattern.permute.xlu0 0
        %4661 = vperm.xlu0 %4660, %v4256
        %v4662 = vpop.permute.xlu0 %4661
        %4663 = vset.pattern.permute.xlu0 0
        %4664 = vperm.xlu0 %4663, %v4258
        %v4665 = vpop.permute.xlu0 %4664
        %4666 = vset.pattern.permute.xlu0 0
        %4667 = vperm.xlu0 %4666, %v4260
        %v4668 = vpop.permute.xlu0 %4667
        %4669 = vset.pattern.permute.xlu0 0
        %4670 = vperm.xlu0 %4669, %v4262
        %v4671 = vpop.permute.xlu0 %4670
        %4672 = vset.pattern.permute.xlu0 0
        %4673 = vperm.xlu0 %4672, %v4264
        %v4674 = vpop.permute.xlu0 %4673
        %4675 = vset.pattern.permute.xlu0 0
        %4676 = vperm.xlu0 %4675, %v4266
        %v4677 = vpop.permute.xlu0 %4676
        %4678 = vset.pattern.permute.xlu0 0
        %4679 = vperm.xlu0 %4678, %v4268
        %v4680 = vpop.permute.xlu0 %4679
        %4681 = vset.pattern.permute.xlu0 0
        %4682 = vperm.xlu0 %4681, %v4270
        %v4683 = vpop.permute.xlu0 %4682
        %4684 = vset.pattern.permute.xlu0 0
        %4685 = vperm.xlu0 %4684, %v4272
        %v4686 = vpop.permute.xlu0 %4685
        %4687 = vset.pattern.permute.xlu0 0
        %4688 = vperm.xlu0 %4687, %v4274
        %v4689 = vpop.permute.xlu0 %4688
        %4690 = vset.pattern.permute.xlu0 0
        %4691 = vperm.xlu0 %4690, %v4276
        %v4692 = vpop.permute.xlu0 %4691
        %4693 = vset.pattern.permute.xlu0 0
        %4694 = vperm.xlu0 %4693, %v4278
        %v4695 = vpop.permute.xlu0 %4694
        %4696 = vset.pattern.permute.xlu0 0
        %4697 = vperm.xlu0 %4696, %v4280
        %v4698 = vpop.permute.xlu0 %4697
        %4699 = vset.pattern.permute.xlu0 0
        %4700 = vperm.xlu0 %4699, %v4282
        %v4701 = vpop.permute.xlu0 %4700
        %4702 = vset.pattern.permute.xlu0 0
        %4703 = vperm.xlu0 %4702, %v4284
        %v4704 = vpop.permute.xlu0 %4703
        %4705 = vset.pattern.permute.xlu0 0
        %4706 = vperm.xlu0 %4705, %v4286
        %v4707 = vpop.permute.xlu0 %4706
        %4708 = vset.pattern.permute.xlu0 0
        %4709 = vperm.xlu0 %4708, %v4288
        %v4710 = vpop.permute.xlu0 %4709
        %4711 = vset.pattern.permute.xlu0 0
        %4712 = vperm.xlu0 %4711, %v4290
        %v4713 = vpop.permute.xlu0 %4712
        %4714 = vset.pattern.permute.xlu0 0
        %4715 = vperm.xlu0 %4714, %v4292
        %v4716 = vpop.permute.xlu0 %4715
        %4717 = vset.pattern.permute.xlu0 0
        %4718 = vperm.xlu0 %4717, %v4294
        %v4719 = vpop.permute.xlu0 %4718
        %4720 = vset.pattern.permute.xlu0 0
        %4721 = vperm.xlu0 %4720, %v4296
        %v4722 = vpop.permute.xlu0 %4721
        %4723 = vset.pattern.permute.xlu0 0
        %4724 = vperm.xlu0 %4723, %v4298
        %v4725 = vpop.permute.xlu0 %4724
        %4726 = vset.pattern.permute.xlu0 0
        %4727 = vperm.xlu0 %4726, %v4300
        %v4728 = vpop.permute.xlu0 %4727
        %4729 = vset.pattern.permute.xlu0 0
        %4730 = vperm.xlu0 %4729, %v4302
        %v4731 = vpop.permute.xlu0 %4730
        %4732 = vset.pattern.permute.xlu0 0
        %4733 = vperm.xlu0 %4732, %v4304
        %v4734 = vpop.permute.xlu0 %4733
        %4735 = vset.pattern.permute.xlu0 0
        %4736 = vperm.xlu0 %4735, %v4306
        %v4737 = vpop.permute.xlu0 %4736
        %4738 = vset.pattern.permute.xlu0 0
        %4739 = vperm.xlu0 %4738, %v4308
        %v4740 = vpop.permute.xlu0 %4739
        %4741 = vset.pattern.permute.xlu0 0
        %4742 = vperm.xlu0 %4741, %v4310
        %v4743 = vpop.permute.xlu0 %4742
        %4744 = vset.pattern.permute.xlu0 0
        %4745 = vperm.xlu0 %4744, %v4312
        %v4746 = vpop.permute.xlu0 %4745
        %4747 = vset.pattern.permute.xlu0 0
        %4748 = vperm.xlu0 %4747, %v4314
        %v4749 = vpop.permute.xlu0 %4748
        %4750 = vset.pattern.permute.xlu0 0
        %4751 = vperm.xlu0 %4750, %v4316
        %v4752 = vpop.permute.xlu0 %4751
        %4753 = vset.pattern.permute.xlu0 0
        %4754 = vperm.xlu0 %4753, %v4318
        %v4755 = vpop.permute.xlu0 %4754
        %4756 = vset.pattern.permute.xlu0 0
        %4757 = vperm.xlu0 %4756, %v4320
        %v4758 = vpop.permute.xlu0 %4757
        %4759 = vset.pattern.permute.xlu0 0
        %4760 = vperm.xlu0 %4759, %v4322
        %v4761 = vpop.permute.xlu0 %4760
        %4762 = vset.pattern.permute.xlu0 0
        %4763 = vperm.xlu0 %4762, %v4324
        %v4764 = vpop.permute.xlu0 %4763
        %4765 = vset.pattern.permute.xlu0 0
        %4766 = vperm.xlu0 %4765, %v4326
        %v4767 = vpop.permute.xlu0 %4766
        %4768 = vset.pattern.permute.xlu0 0
        %4769 = vperm.xlu0 %4768, %v4328
        %v4770 = vpop.permute.xlu0 %4769
        %4771 = vset.pattern.permute.xlu0 0
        %4772 = vperm.xlu0 %4771, %v4330
        %v4773 = vpop.permute.xlu0 %4772
        %4774 = vset.pattern.permute.xlu0 0
        %4775 = vperm.xlu0 %4774, %v4332
        %v4776 = vpop.permute.xlu0 %4775
        %4777 = vset.pattern.permute.xlu0 0
        %4778 = vperm.xlu0 %4777, %v4334
        %v4779 = vpop.permute.xlu0 %4778
        %4780 = vset.pattern.permute.xlu0 0
        %4781 = vperm.xlu0 %4780, %v4336
        %v4782 = vpop.permute.xlu0 %4781
        %4783 = vset.pattern.permute.xlu0 0
        %4784 = vperm.xlu0 %4783, %v4338
        %v4785 = vpop.permute.xlu0 %4784
        %4786 = vset.pattern.permute.xlu0 0
        %4787 = vperm.xlu0 %4786, %v4340
        %v4788 = vpop.permute.xlu0 %4787
        %4789 = vset.pattern.permute.xlu0 0
        %4790 = vperm.xlu0 %4789, %v4342
        %v4791 = vpop.permute.xlu0 %4790
        %4792 = vset.pattern.permute.xlu0 0
        %4793 = vperm.xlu0 %4792, %v4344
        %v4794 = vpop.permute.xlu0 %4793
        %4795 = vset.pattern.permute.xlu0 0
        %4796 = vperm.xlu0 %4795, %v4346
        %v4797 = vpop.permute.xlu0 %4796
        %4798 = vset.pattern.permute.xlu0 0
        %4799 = vperm.xlu0 %4798, %v4348
        %v4800 = vpop.permute.xlu0 %4799
        %4801 = vset.pattern.permute.xlu0 0
        %4802 = vperm.xlu0 %4801, %v4350
        %v4803 = vpop.permute.xlu0 %4802
        %4804 = vset.pattern.permute.xlu0 0
        %4805 = vperm.xlu0 %4804, %v4352
        %v4806 = vpop.permute.xlu0 %4805
        %4807 = vset.pattern.permute.xlu0 0
        %4808 = vperm.xlu0 %4807, %v4354
        %v4809 = vpop.permute.xlu0 %4808
        %4810 = vset.pattern.permute.xlu0 0
        %4811 = vperm.xlu0 %4810, %v4356
        %v4812 = vpop.permute.xlu0 %4811
        %4813 = vset.pattern.permute.xlu0 0
        %4814 = vperm.xlu0 %4813, %v4358
        %v4815 = vpop.permute.xlu0 %4814
        %4816 = vset.pattern.permute.xlu0 0
        %4817 = vperm.xlu0 %4816, %v4360
        %v4818 = vpop.permute.xlu0 %4817
        %4819 = vset.pattern.permute.xlu0 0
        %4820 = vperm.xlu0 %4819, %v4362
        %v4821 = vpop.permute.xlu0 %4820
        %4822 = vset.pattern.permute.xlu0 0
        %4823 = vperm.xlu0 %4822, %v4364
        %v4824 = vpop.permute.xlu0 %4823
        %4825 = vset.pattern.permute.xlu0 0
        %4826 = vperm.xlu0 %4825, %v4366
        %v4827 = vpop.permute.xlu0 %4826
        %4828 = vset.pattern.permute.xlu0 0
        %4829 = vperm.xlu0 %4828, %v4368
        %v4830 = vpop.permute.xlu0 %4829
        %4831 = vset.pattern.permute.xlu0 0
        %4832 = vperm.xlu0 %4831, %v4370
        %v4833 = vpop.permute.xlu0 %4832
        %4834 = vset.pattern.permute.xlu0 0
        %4835 = vperm.xlu0 %4834, %v4372
        %v4836 = vpop.permute.xlu0 %4835
        %4837 = vset.pattern.permute.xlu0 0
        %4838 = vperm.xlu0 %4837, %v4374
        %v4839 = vpop.permute.xlu0 %4838
        %4840 = vset.pattern.permute.xlu0 0
        %4841 = vperm.xlu0 %4840, %v4376
        %v4842 = vpop.permute.xlu0 %4841
        %4843 = vset.pattern.permute.xlu0 0
        %4844 = vperm.xlu0 %4843, %v4378
        %v4845 = vpop.permute.xlu0 %4844
        %4846 = vset.pattern.permute.xlu0 0
        %4847 = vperm.xlu0 %4846, %v4380
        %v4848 = vpop.permute.xlu0 %4847
        %4849 = vset.pattern.permute.xlu0 0
        %4850 = vperm.xlu0 %4849, %v4382
        %v4851 = vpop.permute.xlu0 %4850
        %4852 = vset.pattern.permute.xlu0 0
        %4853 = vperm.xlu0 %4852, %v4384
        %v4854 = vpop.permute.xlu0 %4853
        %4855 = vset.pattern.permute.xlu0 0
        %4856 = vperm.xlu0 %4855, %v4386
        %v4857 = vpop.permute.xlu0 %4856
        %4858 = vset.pattern.permute.xlu0 0
        %4859 = vperm.xlu0 %4858, %v4388
        %v4860 = vpop.permute.xlu0 %4859
        %4861 = vset.pattern.permute.xlu0 0
        %4862 = vperm.xlu0 %4861, %v4390
        %v4863 = vpop.permute.xlu0 %4862
        %4864 = vset.pattern.permute.xlu0 0
        %4865 = vperm.xlu0 %4864, %v4392
        %v4866 = vpop.permute.xlu0 %4865
        %4867 = vset.pattern.permute.xlu0 0
        %4868 = vperm.xlu0 %4867, %v4394
        %v4869 = vpop.permute.xlu0 %4868
        %4870 = vset.pattern.permute.xlu0 0
        %4871 = vperm.xlu0 %4870, %v4396
        %v4872 = vpop.permute.xlu0 %4871
        %4873 = vset.pattern.permute.xlu0 0
        %4874 = vperm.xlu0 %4873, %v4398
        %v4875 = vpop.permute.xlu0 %4874
        %4876 = vset.pattern.permute.xlu0 0
        %4877 = vperm.xlu0 %4876, %v4400
        %v4878 = vpop.permute.xlu0 %4877
        %4879 = vset.pattern.permute.xlu0 0
        %4880 = vperm.xlu0 %4879, %v4402
        %v4881 = vpop.permute.xlu0 %4880
        %4882 = vset.pattern.permute.xlu0 0
        %4883 = vperm.xlu0 %4882, %v4404
        %v4884 = vpop.permute.xlu0 %4883
        %4885 = vset.pattern.permute.xlu0 0
        %4886 = vperm.xlu0 %4885, %v4406
        %v4887 = vpop.permute.xlu0 %4886
        %4888 = vset.pattern.permute.xlu0 0
        %4889 = vperm.xlu0 %4888, %v4408
        %v4890 = vpop.permute.xlu0 %4889
        %4891 = vset.pattern.permute.xlu0 0
        %4892 = vperm.xlu0 %4891, %v4410
        %v4893 = vpop.permute.xlu0 %4892
        %4894 = vset.pattern.permute.xlu0 0
        %4895 = vperm.xlu0 %4894, %v4412
        %v4896 = vpop.permute.xlu0 %4895
        %4897 = vset.pattern.permute.xlu0 0
        %4898 = vperm.xlu0 %4897, %v4414
        %v4899 = vpop.permute.xlu0 %4898
        %4900 = vset.pattern.permute.xlu0 0
        %4901 = vperm.xlu0 %4900, %v4416
        %v4902 = vpop.permute.xlu0 %4901
        %4903 = vset.pattern.permute.xlu0 0
        %4904 = vperm.xlu0 %4903, %v4418
        %v4905 = vpop.permute.xlu0 %4904
        %4906 = vset.pattern.permute.xlu0 0
        %4907 = vperm.xlu0 %4906, %v4420
        %v4908 = vpop.permute.xlu0 %4907
        %4909 = vset.pattern.permute.xlu0 0
        %4910 = vperm.xlu0 %4909, %v4422
        %v4911 = vpop.permute.xlu0 %4910
        %4912 = vset.pattern.permute.xlu0 0
        %4913 = vperm.xlu0 %4912, %v4424
        %v4914 = vpop.permute.xlu0 %4913
        %4915 = vset.pattern.permute.xlu0 0
        %4916 = vperm.xlu0 %4915, %v4426
        %v4917 = vpop.permute.xlu0 %4916
        %4918 = vset.pattern.permute.xlu0 0
        %4919 = vperm.xlu0 %4918, %v4428
        %v4920 = vpop.permute.xlu0 %4919
        %4921 = vset.pattern.permute.xlu0 0
        %4922 = vperm.xlu0 %4921, %v4430
        %v4923 = vpop.permute.xlu0 %4922
        %4924 = vset.pattern.permute.xlu0 0
        %4925 = vperm.xlu0 %4924, %v4432
        %v4926 = vpop.permute.xlu0 %4925
        %4927 = vset.pattern.permute.xlu0 0
        %4928 = vperm.xlu0 %4927, %v4434
        %v4929 = vpop.permute.xlu0 %4928
        %4930 = vset.pattern.permute.xlu0 0
        %4931 = vperm.xlu0 %4930, %v4436
        %v4932 = vpop.permute.xlu0 %4931
        %4933 = vset.pattern.permute.xlu0 0
        %4934 = vperm.xlu0 %4933, %v4438
        %v4935 = vpop.permute.xlu0 %4934
        %4936 = vset.pattern.permute.xlu0 0
        %4937 = vperm.xlu0 %4936, %v4440
        %v4938 = vpop.permute.xlu0 %4937
        %4939 = vset.pattern.permute.xlu0 0
        %4940 = vperm.xlu0 %4939, %v4442
        %v4941 = vpop.permute.xlu0 %4940
        %4942 = vset.pattern.permute.xlu0 0
        %4943 = vperm.xlu0 %4942, %v4444
        %v4944 = vpop.permute.xlu0 %4943
        %4945 = vset.pattern.permute.xlu0 0
        %4946 = vperm.xlu0 %4945, %v4446
        %v4947 = vpop.permute.xlu0 %4946
        %4948 = vset.pattern.permute.xlu0 0
        %4949 = vperm.xlu0 %4948, %v4448
        %v4950 = vpop.permute.xlu0 %4949
        %4951 = vset.pattern.permute.xlu0 0
        %4952 = vperm.xlu0 %4951, %v4450
        %v4953 = vpop.permute.xlu0 %4952
        %4954 = vset.pattern.permute.xlu0 0
        %4955 = vperm.xlu0 %4954, %v4452
        %v4956 = vpop.permute.xlu0 %4955
        %4957 = vset.pattern.permute.xlu0 0
        %4958 = vperm.xlu0 %4957, %v4454
        %v4959 = vpop.permute.xlu0 %4958
        %4960 = vset.pattern.permute.xlu0 0
        %4961 = vperm.xlu0 %4960, %v4456
        %v4962 = vpop.permute.xlu0 %4961
        %4963 = vset.pattern.permute.xlu0 0
        %4964 = vperm.xlu0 %4963, %v4458
        %v4965 = vpop.permute.xlu0 %4964
        %4966 = vset.pattern.permute.xlu0 0
        %4967 = vperm.xlu0 %4966, %v4460
        %v4968 = vpop.permute.xlu0 %4967
        %4969 = vset.pattern.permute.xlu0 0
        %4970 = vperm.xlu0 %4969, %v4462
        %v4971 = vpop.permute.xlu0 %4970
        %4972 = vset.pattern.permute.xlu0 0
        %4973 = vperm.xlu0 %4972, %v4464
        %v4974 = vpop.permute.xlu0 %4973
        %4975 = vset.pattern.permute.xlu0 0
        %4976 = vperm.xlu0 %4975, %v4466
        %v4977 = vpop.permute.xlu0 %4976
        %4978 = vset.pattern.permute.xlu0 0
        %4979 = vperm.xlu0 %4978, %v4468
        %v4980 = vpop.permute.xlu0 %4979
        %v4981 = vlaneseq
        %v4982 = vand.u32 %v4981, 127
        %v4983 = vlaneseq
        %v4984 = vshrl.u32 %v4983, 7
        %v4985 = vsub.s32 %v4982, %v4984
        %v4986 = vrot.slane %v4599, %v4985
        %v4987 = vlaneseq
        %v4988 = vshrl.u32 %v4987, 7
        %v4989 = vsub.s32 %v4982, %v4988
        %v4990 = vrot.slane %v4602, %v4989
        %v4991 = vlaneseq
        %v4992 = vshrl.u32 %v4991, 7
        %v4993 = vsub.s32 %v4982, %v4992
        %v4994 = vrot.slane %v4605, %v4993
        %v4995 = vlaneseq
        %v4996 = vshrl.u32 %v4995, 7
        %v4997 = vsub.s32 %v4982, %v4996
        %v4998 = vrot.slane %v4608, %v4997
        %v4999 = vlaneseq
        %v5000 = vshrl.u32 %v4999, 7
        %v5001 = vsub.s32 %v4982, %v5000
        %v5002 = vrot.slane %v4611, %v5001
        %v5003 = vlaneseq
        %v5004 = vshrl.u32 %v5003, 7
        %v5005 = vsub.s32 %v4982, %v5004
        %v5006 = vrot.slane %v4614, %v5005
        %v5007 = vlaneseq
        %v5008 = vshrl.u32 %v5007, 7
        %v5009 = vsub.s32 %v4982, %v5008
        %v5010 = vrot.slane %v4617, %v5009
        %v5011 = vlaneseq
        %v5012 = vshrl.u32 %v5011, 7
        %v5013 = vsub.s32 %v4982, %v5012
        %v5014 = vrot.slane %v4620, %v5013
        %v5015 = vlaneseq
        %v5016 = vshrl.u32 %v5015, 7
        %v5017 = vsub.s32 %v4982, %v5016
        %v5018 = vrot.slane %v4623, %v5017
        %v5019 = vlaneseq
        %v5020 = vshrl.u32 %v5019, 7
        %v5021 = vsub.s32 %v4982, %v5020
        %v5022 = vrot.slane %v4626, %v5021
        %v5023 = vlaneseq
        %v5024 = vshrl.u32 %v5023, 7
        %v5025 = vsub.s32 %v4982, %v5024
        %v5026 = vrot.slane %v4629, %v5025
        %v5027 = vlaneseq
        %v5028 = vshrl.u32 %v5027, 7
        %v5029 = vsub.s32 %v4982, %v5028
        %v5030 = vrot.slane %v4632, %v5029
        %v5031 = vlaneseq
        %v5032 = vshrl.u32 %v5031, 7
        %v5033 = vsub.s32 %v4982, %v5032
        %v5034 = vrot.slane %v4635, %v5033
        %v5035 = vlaneseq
        %v5036 = vshrl.u32 %v5035, 7
        %v5037 = vsub.s32 %v4982, %v5036
        %v5038 = vrot.slane %v4638, %v5037
        %v5039 = vlaneseq
        %v5040 = vshrl.u32 %v5039, 7
        %v5041 = vsub.s32 %v4982, %v5040
        %v5042 = vrot.slane %v4641, %v5041
        %v5043 = vlaneseq
        %v5044 = vshrl.u32 %v5043, 7
        %v5045 = vsub.s32 %v4982, %v5044
        %v5046 = vrot.slane %v4644, %v5045
        %v5047 = vlaneseq
        %v5048 = vshrl.u32 %v5047, 7
        %v5049 = vsub.s32 %v4982, %v5048
        %v5050 = vrot.slane %v4647, %v5049
        %v5051 = vlaneseq
        %v5052 = vshrl.u32 %v5051, 7
        %v5053 = vsub.s32 %v4982, %v5052
        %v5054 = vrot.slane %v4650, %v5053
        %v5055 = vlaneseq
        %v5056 = vshrl.u32 %v5055, 7
        %v5057 = vsub.s32 %v4982, %v5056
        %v5058 = vrot.slane %v4653, %v5057
        %v5059 = vlaneseq
        %v5060 = vshrl.u32 %v5059, 7
        %v5061 = vsub.s32 %v4982, %v5060
        %v5062 = vrot.slane %v4656, %v5061
        %v5063 = vlaneseq
        %v5064 = vshrl.u32 %v5063, 7
        %v5065 = vsub.s32 %v4982, %v5064
        %v5066 = vrot.slane %v4659, %v5065
        %v5067 = vlaneseq
        %v5068 = vshrl.u32 %v5067, 7
        %v5069 = vsub.s32 %v4982, %v5068
        %v5070 = vrot.slane %v4662, %v5069
        %v5071 = vlaneseq
        %v5072 = vshrl.u32 %v5071, 7
        %v5073 = vsub.s32 %v4982, %v5072
        %v5074 = vrot.slane %v4665, %v5073
        %v5075 = vlaneseq
        %v5076 = vshrl.u32 %v5075, 7
        %v5077 = vsub.s32 %v4982, %v5076
        %v5078 = vrot.slane %v4668, %v5077
        %v5079 = vlaneseq
        %v5080 = vshrl.u32 %v5079, 7
        %v5081 = vsub.s32 %v4982, %v5080
        %v5082 = vrot.slane %v4671, %v5081
        %v5083 = vlaneseq
        %v5084 = vshrl.u32 %v5083, 7
        %v5085 = vsub.s32 %v4982, %v5084
        %v5086 = vrot.slane %v4674, %v5085
        %v5087 = vlaneseq
        %v5088 = vshrl.u32 %v5087, 7
        %v5089 = vsub.s32 %v4982, %v5088
        %v5090 = vrot.slane %v4677, %v5089
        %v5091 = vlaneseq
        %v5092 = vshrl.u32 %v5091, 7
        %v5093 = vsub.s32 %v4982, %v5092
        %v5094 = vrot.slane %v4680, %v5093
        %v5095 = vlaneseq
        %v5096 = vshrl.u32 %v5095, 7
        %v5097 = vsub.s32 %v4982, %v5096
        %v5098 = vrot.slane %v4683, %v5097
        %v5099 = vlaneseq
        %v5100 = vshrl.u32 %v5099, 7
        %v5101 = vsub.s32 %v4982, %v5100
        %v5102 = vrot.slane %v4686, %v5101
        %v5103 = vlaneseq
        %v5104 = vshrl.u32 %v5103, 7
        %v5105 = vsub.s32 %v4982, %v5104
        %v5106 = vrot.slane %v4689, %v5105
        %v5107 = vlaneseq
        %v5108 = vshrl.u32 %v5107, 7
        %v5109 = vsub.s32 %v4982, %v5108
        %v5110 = vrot.slane %v4692, %v5109
        %v5111 = vlaneseq
        %v5112 = vshrl.u32 %v5111, 7
        %v5113 = vsub.s32 %v4982, %v5112
        %v5114 = vrot.slane %v4695, %v5113
        %v5115 = vlaneseq
        %v5116 = vshrl.u32 %v5115, 7
        %v5117 = vsub.s32 %v4982, %v5116
        %v5118 = vrot.slane %v4698, %v5117
        %v5119 = vlaneseq
        %v5120 = vshrl.u32 %v5119, 7
        %v5121 = vsub.s32 %v4982, %v5120
        %v5122 = vrot.slane %v4701, %v5121
        %v5123 = vlaneseq
        %v5124 = vshrl.u32 %v5123, 7
        %v5125 = vsub.s32 %v4982, %v5124
        %v5126 = vrot.slane %v4704, %v5125
        %v5127 = vlaneseq
        %v5128 = vshrl.u32 %v5127, 7
        %v5129 = vsub.s32 %v4982, %v5128
        %v5130 = vrot.slane %v4707, %v5129
        %v5131 = vlaneseq
        %v5132 = vshrl.u32 %v5131, 7
        %v5133 = vsub.s32 %v4982, %v5132
        %v5134 = vrot.slane %v4710, %v5133
        %v5135 = vlaneseq
        %v5136 = vshrl.u32 %v5135, 7
        %v5137 = vsub.s32 %v4982, %v5136
        %v5138 = vrot.slane %v4713, %v5137
        %v5139 = vlaneseq
        %v5140 = vshrl.u32 %v5139, 7
        %v5141 = vsub.s32 %v4982, %v5140
        %v5142 = vrot.slane %v4716, %v5141
        %v5143 = vlaneseq
        %v5144 = vshrl.u32 %v5143, 7
        %v5145 = vsub.s32 %v4982, %v5144
        %v5146 = vrot.slane %v4719, %v5145
        %v5147 = vlaneseq
        %v5148 = vshrl.u32 %v5147, 7
        %v5149 = vsub.s32 %v4982, %v5148
        %v5150 = vrot.slane %v4722, %v5149
        %v5151 = vlaneseq
        %v5152 = vshrl.u32 %v5151, 7
        %v5153 = vsub.s32 %v4982, %v5152
        %v5154 = vrot.slane %v4725, %v5153
        %v5155 = vlaneseq
        %v5156 = vshrl.u32 %v5155, 7
        %v5157 = vsub.s32 %v4982, %v5156
        %v5158 = vrot.slane %v4728, %v5157
        %v5159 = vlaneseq
        %v5160 = vshrl.u32 %v5159, 7
        %v5161 = vsub.s32 %v4982, %v5160
        %v5162 = vrot.slane %v4731, %v5161
        %v5163 = vlaneseq
        %v5164 = vshrl.u32 %v5163, 7
        %v5165 = vsub.s32 %v4982, %v5164
        %v5166 = vrot.slane %v4734, %v5165
        %v5167 = vlaneseq
        %v5168 = vshrl.u32 %v5167, 7
        %v5169 = vsub.s32 %v4982, %v5168
        %v5170 = vrot.slane %v4737, %v5169
        %v5171 = vlaneseq
        %v5172 = vshrl.u32 %v5171, 7
        %v5173 = vsub.s32 %v4982, %v5172
        %v5174 = vrot.slane %v4740, %v5173
        %v5175 = vlaneseq
        %v5176 = vshrl.u32 %v5175, 7
        %v5177 = vsub.s32 %v4982, %v5176
        %v5178 = vrot.slane %v4743, %v5177
        %v5179 = vlaneseq
        %v5180 = vshrl.u32 %v5179, 7
        %v5181 = vsub.s32 %v4982, %v5180
        %v5182 = vrot.slane %v4746, %v5181
        %v5183 = vlaneseq
        %v5184 = vshrl.u32 %v5183, 7
        %v5185 = vsub.s32 %v4982, %v5184
        %v5186 = vrot.slane %v4749, %v5185
        %v5187 = vlaneseq
        %v5188 = vshrl.u32 %v5187, 7
        %v5189 = vsub.s32 %v4982, %v5188
        %v5190 = vrot.slane %v4752, %v5189
        %v5191 = vlaneseq
        %v5192 = vshrl.u32 %v5191, 7
        %v5193 = vsub.s32 %v4982, %v5192
        %v5194 = vrot.slane %v4755, %v5193
        %v5195 = vlaneseq
        %v5196 = vshrl.u32 %v5195, 7
        %v5197 = vsub.s32 %v4982, %v5196
        %v5198 = vrot.slane %v4758, %v5197
        %v5199 = vlaneseq
        %v5200 = vshrl.u32 %v5199, 7
        %v5201 = vsub.s32 %v4982, %v5200
        %v5202 = vrot.slane %v4761, %v5201
        %v5203 = vlaneseq
        %v5204 = vshrl.u32 %v5203, 7
        %v5205 = vsub.s32 %v4982, %v5204
        %v5206 = vrot.slane %v4764, %v5205
        %v5207 = vlaneseq
        %v5208 = vshrl.u32 %v5207, 7
        %v5209 = vsub.s32 %v4982, %v5208
        %v5210 = vrot.slane %v4767, %v5209
        %v5211 = vlaneseq
        %v5212 = vshrl.u32 %v5211, 7
        %v5213 = vsub.s32 %v4982, %v5212
        %v5214 = vrot.slane %v4770, %v5213
        %v5215 = vlaneseq
        %v5216 = vshrl.u32 %v5215, 7
        %v5217 = vsub.s32 %v4982, %v5216
        %v5218 = vrot.slane %v4773, %v5217
        %v5219 = vlaneseq
        %v5220 = vshrl.u32 %v5219, 7
        %v5221 = vsub.s32 %v4982, %v5220
        %v5222 = vrot.slane %v4776, %v5221
        %v5223 = vlaneseq
        %v5224 = vshrl.u32 %v5223, 7
        %v5225 = vsub.s32 %v4982, %v5224
        %v5226 = vrot.slane %v4779, %v5225
        %v5227 = vlaneseq
        %v5228 = vshrl.u32 %v5227, 7
        %v5229 = vsub.s32 %v4982, %v5228
        %v5230 = vrot.slane %v4782, %v5229
        %v5231 = vlaneseq
        %v5232 = vshrl.u32 %v5231, 7
        %v5233 = vsub.s32 %v4982, %v5232
        %v5234 = vrot.slane %v4785, %v5233
        %v5235 = vlaneseq
        %v5236 = vshrl.u32 %v5235, 7
        %v5237 = vsub.s32 %v4982, %v5236
        %v5238 = vrot.slane %v4788, %v5237
        %v5239 = vlaneseq
        %v5240 = vshrl.u32 %v5239, 7
        %v5241 = vsub.s32 %v4982, %v5240
        %v5242 = vrot.slane %v4791, %v5241
        %v5243 = vlaneseq
        %v5244 = vshrl.u32 %v5243, 7
        %v5245 = vsub.s32 %v4982, %v5244
        %v5246 = vrot.slane %v4794, %v5245
        %v5247 = vlaneseq
        %v5248 = vshrl.u32 %v5247, 7
        %v5249 = vsub.s32 %v4982, %v5248
        %v5250 = vrot.slane %v4797, %v5249
        %v5251 = vlaneseq
        %v5252 = vshrl.u32 %v5251, 7
        %v5253 = vsub.s32 %v4982, %v5252
        %v5254 = vrot.slane %v4800, %v5253
        %v5255 = vlaneseq
        %v5256 = vshrl.u32 %v5255, 7
        %v5257 = vsub.s32 %v4982, %v5256
        %v5258 = vrot.slane %v4803, %v5257
        %v5259 = vlaneseq
        %v5260 = vshrl.u32 %v5259, 7
        %v5261 = vsub.s32 %v4982, %v5260
        %v5262 = vrot.slane %v4806, %v5261
        %v5263 = vlaneseq
        %v5264 = vshrl.u32 %v5263, 7
        %v5265 = vsub.s32 %v4982, %v5264
        %v5266 = vrot.slane %v4809, %v5265
        %v5267 = vlaneseq
        %v5268 = vshrl.u32 %v5267, 7
        %v5269 = vsub.s32 %v4982, %v5268
        %v5270 = vrot.slane %v4812, %v5269
        %v5271 = vlaneseq
        %v5272 = vshrl.u32 %v5271, 7
        %v5273 = vsub.s32 %v4982, %v5272
        %v5274 = vrot.slane %v4815, %v5273
        %v5275 = vlaneseq
        %v5276 = vshrl.u32 %v5275, 7
        %v5277 = vsub.s32 %v4982, %v5276
        %v5278 = vrot.slane %v4818, %v5277
        %v5279 = vlaneseq
        %v5280 = vshrl.u32 %v5279, 7
        %v5281 = vsub.s32 %v4982, %v5280
        %v5282 = vrot.slane %v4821, %v5281
        %v5283 = vlaneseq
        %v5284 = vshrl.u32 %v5283, 7
        %v5285 = vsub.s32 %v4982, %v5284
        %v5286 = vrot.slane %v4824, %v5285
        %v5287 = vlaneseq
        %v5288 = vshrl.u32 %v5287, 7
        %v5289 = vsub.s32 %v4982, %v5288
        %v5290 = vrot.slane %v4827, %v5289
        %v5291 = vlaneseq
        %v5292 = vshrl.u32 %v5291, 7
        %v5293 = vsub.s32 %v4982, %v5292
        %v5294 = vrot.slane %v4830, %v5293
        %v5295 = vlaneseq
        %v5296 = vshrl.u32 %v5295, 7
        %v5297 = vsub.s32 %v4982, %v5296
        %v5298 = vrot.slane %v4833, %v5297
        %v5299 = vlaneseq
        %v5300 = vshrl.u32 %v5299, 7
        %v5301 = vsub.s32 %v4982, %v5300
        %v5302 = vrot.slane %v4836, %v5301
        %v5303 = vlaneseq
        %v5304 = vshrl.u32 %v5303, 7
        %v5305 = vsub.s32 %v4982, %v5304
        %v5306 = vrot.slane %v4839, %v5305
        %v5307 = vlaneseq
        %v5308 = vshrl.u32 %v5307, 7
        %v5309 = vsub.s32 %v4982, %v5308
        %v5310 = vrot.slane %v4842, %v5309
        %v5311 = vlaneseq
        %v5312 = vshrl.u32 %v5311, 7
        %v5313 = vsub.s32 %v4982, %v5312
        %v5314 = vrot.slane %v4845, %v5313
        %v5315 = vlaneseq
        %v5316 = vshrl.u32 %v5315, 7
        %v5317 = vsub.s32 %v4982, %v5316
        %v5318 = vrot.slane %v4848, %v5317
        %v5319 = vlaneseq
        %v5320 = vshrl.u32 %v5319, 7
        %v5321 = vsub.s32 %v4982, %v5320
        %v5322 = vrot.slane %v4851, %v5321
        %v5323 = vlaneseq
        %v5324 = vshrl.u32 %v5323, 7
        %v5325 = vsub.s32 %v4982, %v5324
        %v5326 = vrot.slane %v4854, %v5325
        %v5327 = vlaneseq
        %v5328 = vshrl.u32 %v5327, 7
        %v5329 = vsub.s32 %v4982, %v5328
        %v5330 = vrot.slane %v4857, %v5329
        %v5331 = vlaneseq
        %v5332 = vshrl.u32 %v5331, 7
        %v5333 = vsub.s32 %v4982, %v5332
        %v5334 = vrot.slane %v4860, %v5333
        %v5335 = vlaneseq
        %v5336 = vshrl.u32 %v5335, 7
        %v5337 = vsub.s32 %v4982, %v5336
        %v5338 = vrot.slane %v4863, %v5337
        %v5339 = vlaneseq
        %v5340 = vshrl.u32 %v5339, 7
        %v5341 = vsub.s32 %v4982, %v5340
        %v5342 = vrot.slane %v4866, %v5341
        %v5343 = vlaneseq
        %v5344 = vshrl.u32 %v5343, 7
        %v5345 = vsub.s32 %v4982, %v5344
        %v5346 = vrot.slane %v4869, %v5345
        %v5347 = vlaneseq
        %v5348 = vshrl.u32 %v5347, 7
        %v5349 = vsub.s32 %v4982, %v5348
        %v5350 = vrot.slane %v4872, %v5349
        %v5351 = vlaneseq
        %v5352 = vshrl.u32 %v5351, 7
        %v5353 = vsub.s32 %v4982, %v5352
        %v5354 = vrot.slane %v4875, %v5353
        %v5355 = vlaneseq
        %v5356 = vshrl.u32 %v5355, 7
        %v5357 = vsub.s32 %v4982, %v5356
        %v5358 = vrot.slane %v4878, %v5357
        %v5359 = vlaneseq
        %v5360 = vshrl.u32 %v5359, 7
        %v5361 = vsub.s32 %v4982, %v5360
        %v5362 = vrot.slane %v4881, %v5361
        %v5363 = vlaneseq
        %v5364 = vshrl.u32 %v5363, 7
        %v5365 = vsub.s32 %v4982, %v5364
        %v5366 = vrot.slane %v4884, %v5365
        %v5367 = vlaneseq
        %v5368 = vshrl.u32 %v5367, 7
        %v5369 = vsub.s32 %v4982, %v5368
        %v5370 = vrot.slane %v4887, %v5369
        %v5371 = vlaneseq
        %v5372 = vshrl.u32 %v5371, 7
        %v5373 = vsub.s32 %v4982, %v5372
        %v5374 = vrot.slane %v4890, %v5373
        %v5375 = vlaneseq
        %v5376 = vshrl.u32 %v5375, 7
        %v5377 = vsub.s32 %v4982, %v5376
        %v5378 = vrot.slane %v4893, %v5377
        %v5379 = vlaneseq
        %v5380 = vshrl.u32 %v5379, 7
        %v5381 = vsub.s32 %v4982, %v5380
        %v5382 = vrot.slane %v4896, %v5381
        %v5383 = vlaneseq
        %v5384 = vshrl.u32 %v5383, 7
        %v5385 = vsub.s32 %v4982, %v5384
        %v5386 = vrot.slane %v4899, %v5385
        %v5387 = vlaneseq
        %v5388 = vshrl.u32 %v5387, 7
        %v5389 = vsub.s32 %v4982, %v5388
        %v5390 = vrot.slane %v4902, %v5389
        %v5391 = vlaneseq
        %v5392 = vshrl.u32 %v5391, 7
        %v5393 = vsub.s32 %v4982, %v5392
        %v5394 = vrot.slane %v4905, %v5393
        %v5395 = vlaneseq
        %v5396 = vshrl.u32 %v5395, 7
        %v5397 = vsub.s32 %v4982, %v5396
        %v5398 = vrot.slane %v4908, %v5397
        %v5399 = vlaneseq
        %v5400 = vshrl.u32 %v5399, 7
        %v5401 = vsub.s32 %v4982, %v5400
        %v5402 = vrot.slane %v4911, %v5401
        %v5403 = vlaneseq
        %v5404 = vshrl.u32 %v5403, 7
        %v5405 = vsub.s32 %v4982, %v5404
        %v5406 = vrot.slane %v4914, %v5405
        %v5407 = vlaneseq
        %v5408 = vshrl.u32 %v5407, 7
        %v5409 = vsub.s32 %v4982, %v5408
        %v5410 = vrot.slane %v4917, %v5409
        %v5411 = vlaneseq
        %v5412 = vshrl.u32 %v5411, 7
        %v5413 = vsub.s32 %v4982, %v5412
        %v5414 = vrot.slane %v4920, %v5413
        %v5415 = vlaneseq
        %v5416 = vshrl.u32 %v5415, 7
        %v5417 = vsub.s32 %v4982, %v5416
        %v5418 = vrot.slane %v4923, %v5417
        %v5419 = vlaneseq
        %v5420 = vshrl.u32 %v5419, 7
        %v5421 = vsub.s32 %v4982, %v5420
        %v5422 = vrot.slane %v4926, %v5421
        %v5423 = vlaneseq
        %v5424 = vshrl.u32 %v5423, 7
        %v5425 = vsub.s32 %v4982, %v5424
        %v5426 = vrot.slane %v4929, %v5425
        %v5427 = vlaneseq
        %v5428 = vshrl.u32 %v5427, 7
        %v5429 = vsub.s32 %v4982, %v5428
        %v5430 = vrot.slane %v4932, %v5429
        %v5431 = vlaneseq
        %v5432 = vshrl.u32 %v5431, 7
        %v5433 = vsub.s32 %v4982, %v5432
        %v5434 = vrot.slane %v4935, %v5433
        %v5435 = vlaneseq
        %v5436 = vshrl.u32 %v5435, 7
        %v5437 = vsub.s32 %v4982, %v5436
        %v5438 = vrot.slane %v4938, %v5437
        %v5439 = vlaneseq
        %v5440 = vshrl.u32 %v5439, 7
        %v5441 = vsub.s32 %v4982, %v5440
        %v5442 = vrot.slane %v4941, %v5441
        %v5443 = vlaneseq
        %v5444 = vshrl.u32 %v5443, 7
        %v5445 = vsub.s32 %v4982, %v5444
        %v5446 = vrot.slane %v4944, %v5445
        %v5447 = vlaneseq
        %v5448 = vshrl.u32 %v5447, 7
        %v5449 = vsub.s32 %v4982, %v5448
        %v5450 = vrot.slane %v4947, %v5449
        %v5451 = vlaneseq
        %v5452 = vshrl.u32 %v5451, 7
        %v5453 = vsub.s32 %v4982, %v5452
        %v5454 = vrot.slane %v4950, %v5453
        %v5455 = vlaneseq
        %v5456 = vshrl.u32 %v5455, 7
        %v5457 = vsub.s32 %v4982, %v5456
        %v5458 = vrot.slane %v4953, %v5457
        %v5459 = vlaneseq
        %v5460 = vshrl.u32 %v5459, 7
        %v5461 = vsub.s32 %v4982, %v5460
        %v5462 = vrot.slane %v4956, %v5461
        %v5463 = vlaneseq
        %v5464 = vshrl.u32 %v5463, 7
        %v5465 = vsub.s32 %v4982, %v5464
        %v5466 = vrot.slane %v4959, %v5465
        %v5467 = vlaneseq
        %v5468 = vshrl.u32 %v5467, 7
        %v5469 = vsub.s32 %v4982, %v5468
        %v5470 = vrot.slane %v4962, %v5469
        %v5471 = vlaneseq
        %v5472 = vshrl.u32 %v5471, 7
        %v5473 = vsub.s32 %v4982, %v5472
        %v5474 = vrot.slane %v4965, %v5473
        %v5475 = vlaneseq
        %v5476 = vshrl.u32 %v5475, 7
        %v5477 = vsub.s32 %v4982, %v5476
        %v5478 = vrot.slane %v4968, %v5477
        %v5479 = vlaneseq
        %v5480 = vshrl.u32 %v5479, 7
        %v5481 = vsub.s32 %v4982, %v5480
        %v5482 = vrot.slane %v4971, %v5481
        %v5483 = vlaneseq
        %v5484 = vshrl.u32 %v5483, 7
        %v5485 = vsub.s32 %v4982, %v5484
        %v5486 = vrot.slane %v4974, %v5485
        %v5487 = vlaneseq
        %v5488 = vshrl.u32 %v5487, 7
        %v5489 = vsub.s32 %v4982, %v5488
        %v5490 = vrot.slane %v4977, %v5489
        %v5491 = vlaneseq
        %v5492 = vshrl.u32 %v5491, 7
        %v5493 = vsub.s32 %v4982, %v5492
        %v5494 = vrot.slane %v4980, %v5493
        %vm5495 = vcmask 1041409
        %v5496 = vsel %vm5495, %v4990, %v4986
        %vm5497 = vcmask 1042434
        %v5498 = vsel %vm5497, %v4994, %v5496
        %vm5499 = vcmask 1043459
        %v5500 = vsel %vm5499, %v4998, %v5498
        %vm5501 = vcmask 1044484
        %v5502 = vsel %vm5501, %v5002, %v5500
        %vm5503 = vcmask 1045509
        %v5504 = vsel %vm5503, %v5006, %v5502
        %vm5505 = vcmask 1046534
        %v5506 = vsel %vm5505, %v5010, %v5504
        %vm5507 = vcmask 1047559
        %v5508 = vsel %vm5507, %v5014, %v5506
        %v5509 = vsel %vm5495, %v5022, %v5018
        %v5510 = vsel %vm5497, %v5026, %v5509
        %v5511 = vsel %vm5499, %v5030, %v5510
        %v5512 = vsel %vm5501, %v5034, %v5511
        %v5513 = vsel %vm5503, %v5038, %v5512
        %v5514 = vsel %vm5505, %v5042, %v5513
        %v5515 = vsel %vm5507, %v5046, %v5514
        %v5516 = vsel %vm5495, %v5054, %v5050
        %v5517 = vsel %vm5497, %v5058, %v5516
        %v5518 = vsel %vm5499, %v5062, %v5517
        %v5519 = vsel %vm5501, %v5066, %v5518
        %v5520 = vsel %vm5503, %v5070, %v5519
        %v5521 = vsel %vm5505, %v5074, %v5520
        %v5522 = vsel %vm5507, %v5078, %v5521
        %v5523 = vsel %vm5495, %v5086, %v5082
        %v5524 = vsel %vm5497, %v5090, %v5523
        %v5525 = vsel %vm5499, %v5094, %v5524
        %v5526 = vsel %vm5501, %v5098, %v5525
        %v5527 = vsel %vm5503, %v5102, %v5526
        %v5528 = vsel %vm5505, %v5106, %v5527
        %v5529 = vsel %vm5507, %v5110, %v5528
        %v5530 = vsel %vm5495, %v5118, %v5114
        %v5531 = vsel %vm5497, %v5122, %v5530
        %v5532 = vsel %vm5499, %v5126, %v5531
        %v5533 = vsel %vm5501, %v5130, %v5532
        %v5534 = vsel %vm5503, %v5134, %v5533
        %v5535 = vsel %vm5505, %v5138, %v5534
        %v5536 = vsel %vm5507, %v5142, %v5535
        %v5537 = vsel %vm5495, %v5150, %v5146
        %v5538 = vsel %vm5497, %v5154, %v5537
        %v5539 = vsel %vm5499, %v5158, %v5538
        %v5540 = vsel %vm5501, %v5162, %v5539
        %v5541 = vsel %vm5503, %v5166, %v5540
        %v5542 = vsel %vm5505, %v5170, %v5541
        %v5543 = vsel %vm5507, %v5174, %v5542
        %v5544 = vsel %vm5495, %v5182, %v5178
        %v5545 = vsel %vm5497, %v5186, %v5544
        %v5546 = vsel %vm5499, %v5190, %v5545
        %v5547 = vsel %vm5501, %v5194, %v5546
        %v5548 = vsel %vm5503, %v5198, %v5547
        %v5549 = vsel %vm5505, %v5202, %v5548
        %v5550 = vsel %vm5507, %v5206, %v5549
        %v5551 = vsel %vm5495, %v5214, %v5210
        %v5552 = vsel %vm5497, %v5218, %v5551
        %v5553 = vsel %vm5499, %v5222, %v5552
        %v5554 = vsel %vm5501, %v5226, %v5553
        %v5555 = vsel %vm5503, %v5230, %v5554
        %v5556 = vsel %vm5505, %v5234, %v5555
        %v5557 = vsel %vm5507, %v5238, %v5556
        %v5558 = vsel %vm5495, %v5246, %v5242
        %v5559 = vsel %vm5497, %v5250, %v5558
        %v5560 = vsel %vm5499, %v5254, %v5559
        %v5561 = vsel %vm5501, %v5258, %v5560
        %v5562 = vsel %vm5503, %v5262, %v5561
        %v5563 = vsel %vm5505, %v5266, %v5562
        %v5564 = vsel %vm5507, %v5270, %v5563
        %v5565 = vsel %vm5495, %v5278, %v5274
        %v5566 = vsel %vm5497, %v5282, %v5565
        %v5567 = vsel %vm5499, %v5286, %v5566
        %v5568 = vsel %vm5501, %v5290, %v5567
        %v5569 = vsel %vm5503, %v5294, %v5568
        %v5570 = vsel %vm5505, %v5298, %v5569
        %v5571 = vsel %vm5507, %v5302, %v5570
        %v5572 = vsel %vm5495, %v5310, %v5306
        %v5573 = vsel %vm5497, %v5314, %v5572
        %v5574 = vsel %vm5499, %v5318, %v5573
        %v5575 = vsel %vm5501, %v5322, %v5574
        %v5576 = vsel %vm5503, %v5326, %v5575
        %v5577 = vsel %vm5505, %v5330, %v5576
        %v5578 = vsel %vm5507, %v5334, %v5577
        %v5579 = vsel %vm5495, %v5342, %v5338
        %v5580 = vsel %vm5497, %v5346, %v5579
        %v5581 = vsel %vm5499, %v5350, %v5580
        %v5582 = vsel %vm5501, %v5354, %v5581
        %v5583 = vsel %vm5503, %v5358, %v5582
        %v5584 = vsel %vm5505, %v5362, %v5583
        %v5585 = vsel %vm5507, %v5366, %v5584
        %v5586 = vsel %vm5495, %v5374, %v5370
        %v5587 = vsel %vm5497, %v5378, %v5586
        %v5588 = vsel %vm5499, %v5382, %v5587
        %v5589 = vsel %vm5501, %v5386, %v5588
        %v5590 = vsel %vm5503, %v5390, %v5589
        %v5591 = vsel %vm5505, %v5394, %v5590
        %v5592 = vsel %vm5507, %v5398, %v5591
        %v5593 = vsel %vm5495, %v5406, %v5402
        %v5594 = vsel %vm5497, %v5410, %v5593
        %v5595 = vsel %vm5499, %v5414, %v5594
        %v5596 = vsel %vm5501, %v5418, %v5595
        %v5597 = vsel %vm5503, %v5422, %v5596
        %v5598 = vsel %vm5505, %v5426, %v5597
        %v5599 = vsel %vm5507, %v5430, %v5598
        %v5600 = vsel %vm5495, %v5438, %v5434
        %v5601 = vsel %vm5497, %v5442, %v5600
        %v5602 = vsel %vm5499, %v5446, %v5601
        %v5603 = vsel %vm5501, %v5450, %v5602
        %v5604 = vsel %vm5503, %v5454, %v5603
        %v5605 = vsel %vm5505, %v5458, %v5604
        %v5606 = vsel %vm5507, %v5462, %v5605
        %v5607 = vsel %vm5495, %v5470, %v5466
        %v5608 = vsel %vm5497, %v5474, %v5607
        %v5609 = vsel %vm5499, %v5478, %v5608
        %v5610 = vsel %vm5501, %v5482, %v5609
        %v5611 = vsel %vm5503, %v5486, %v5610
        %v5612 = vsel %vm5505, %v5490, %v5611
        %v5613 = vsel %vm5507, %v5494, %v5612
        %vm5630 = vcmask 64512
        %v5631 = vsel %vm5630, %v5508, 0.0
        %5632 = vadd.xlane.f32.xlu0 %v5631
        %v5633 = vpop.xlane.xlu0 %5632
        %v5634 = vsel %vm5630, %v5515, 0.0
        %5635 = vadd.xlane.f32.xlu0 %v5634
        %v5636 = vpop.xlane.xlu0 %5635
        %v5637 = vsel %vm5630, %v5522, 0.0
        %5638 = vadd.xlane.f32.xlu0 %v5637
        %v5639 = vpop.xlane.xlu0 %5638
        %v5640 = vsel %vm5630, %v5529, 0.0
        %5641 = vadd.xlane.f32.xlu0 %v5640
        %v5642 = vpop.xlane.xlu0 %5641
        %v5643 = vsel %vm5630, %v5536, 0.0
        %5644 = vadd.xlane.f32.xlu0 %v5643
        %v5645 = vpop.xlane.xlu0 %5644
        %v5646 = vsel %vm5630, %v5543, 0.0
        %5647 = vadd.xlane.f32.xlu0 %v5646
        %v5648 = vpop.xlane.xlu0 %5647
        %v5649 = vsel %vm5630, %v5550, 0.0
        %5650 = vadd.xlane.f32.xlu0 %v5649
        %v5651 = vpop.xlane.xlu0 %5650
        %v5652 = vsel %vm5630, %v5557, 0.0
        %5653 = vadd.xlane.f32.xlu0 %v5652
        %v5654 = vpop.xlane.xlu0 %5653
        %v5655 = vsel %vm5630, %v5564, 0.0
        %5656 = vadd.xlane.f32.xlu0 %v5655
        %v5657 = vpop.xlane.xlu0 %5656
        %v5658 = vsel %vm5630, %v5571, 0.0
        %5659 = vadd.xlane.f32.xlu0 %v5658
        %v5660 = vpop.xlane.xlu0 %5659
        %v5661 = vsel %vm5630, %v5578, 0.0
        %5662 = vadd.xlane.f32.xlu0 %v5661
        %v5663 = vpop.xlane.xlu0 %5662
        %v5664 = vsel %vm5630, %v5585, 0.0
        %5665 = vadd.xlane.f32.xlu0 %v5664
        %v5666 = vpop.xlane.xlu0 %5665
        %v5667 = vsel %vm5630, %v5592, 0.0
        %5668 = vadd.xlane.f32.xlu0 %v5667
        %v5669 = vpop.xlane.xlu0 %5668
        %v5670 = vsel %vm5630, %v5599, 0.0
        %5671 = vadd.xlane.f32.xlu0 %v5670
        %v5672 = vpop.xlane.xlu0 %5671
        %v5673 = vsel %vm5630, %v5606, 0.0
        %5674 = vadd.xlane.f32.xlu0 %v5673
        %v5675 = vpop.xlane.xlu0 %5674
        %v5676 = vsel %vm5630, %v5613, 0.0
        %5677 = vadd.xlane.f32.xlu0 %v5676
        %v5678 = vpop.xlane.xlu0 %5677
        %v5679 = vmul.f32 %v5633, 8.0
        %v5680 = vmul.f32 %v5636, 8.0
        %v5681 = vmul.f32 %v5639, 8.0
        %v5682 = vmul.f32 %v5642, 8.0
        %v5683 = vmul.f32 %v5645, 8.0
        %v5684 = vmul.f32 %v5648, 8.0
        %v5685 = vmul.f32 %v5651, 8.0
        %v5686 = vmul.f32 %v5654, 8.0
        %v5687 = vmul.f32 %v5657, 8.0
        %v5688 = vmul.f32 %v5660, 8.0
        %v5689 = vmul.f32 %v5663, 8.0
        %v5690 = vmul.f32 %v5666, 8.0
        %v5691 = vmul.f32 %v5669, 8.0
        %v5692 = vmul.f32 %v5672, 8.0
        %v5693 = vmul.f32 %v5675, 8.0
        %v5694 = vmul.f32 %v5678, 8.0
        %v5695 = vrcp.pop %v5679
        %v5696 = vrcp.pop %v5680
        %v5697 = vrcp.pop %v5681
        %v5698 = vrcp.pop %v5682
        %v5699 = vrcp.pop %v5683
        %v5700 = vrcp.pop %v5684
        %v5701 = vrcp.pop %v5685
        %v5702 = vrcp.pop %v5686
        %v5703 = vrcp.pop %v5687
        %v5704 = vrcp.pop %v5688
        %v5705 = vrcp.pop %v5689
        %v5706 = vrcp.pop %v5690
        %v5707 = vrcp.pop %v5691
        %v5708 = vrcp.pop %v5692
        %v5709 = vrcp.pop %v5693
        %v5710 = vrcp.pop %v5694
        %v5711 = vmul.f32 %v5679, %v5695
        %v5712 = vmul.f32 %v5680, %v5696
        %v5713 = vmul.f32 %v5681, %v5697
        %v5714 = vmul.f32 %v5682, %v5698
        %v5715 = vmul.f32 %v5683, %v5699
        %v5716 = vmul.f32 %v5684, %v5700
        %v5717 = vmul.f32 %v5685, %v5701
        %v5718 = vmul.f32 %v5686, %v5702
        %v5719 = vmul.f32 %v5687, %v5703
        %v5720 = vmul.f32 %v5688, %v5704
        %v5721 = vmul.f32 %v5689, %v5705
        %v5722 = vmul.f32 %v5690, %v5706
        %v5723 = vmul.f32 %v5691, %v5707
        %v5724 = vmul.f32 %v5692, %v5708
        %v5725 = vmul.f32 %v5693, %v5709
        %v5726 = vmul.f32 %v5694, %v5710
        %v5727 = vsub.f32 2.0, %v5711
        %v5728 = vsub.f32 2.0, %v5712
        %v5729 = vsub.f32 2.0, %v5713
        %v5730 = vsub.f32 2.0, %v5714
        %v5731 = vsub.f32 2.0, %v5715
        %v5732 = vsub.f32 2.0, %v5716
        %v5733 = vsub.f32 2.0, %v5717
        %v5734 = vsub.f32 2.0, %v5718
        %v5735 = vsub.f32 2.0, %v5719
        %v5736 = vsub.f32 2.0, %v5720
        %v5737 = vsub.f32 2.0, %v5721
        %v5738 = vsub.f32 2.0, %v5722
        %v5739 = vsub.f32 2.0, %v5723
        %v5740 = vsub.f32 2.0, %v5724
        %v5741 = vsub.f32 2.0, %v5725
        %v5742 = vsub.f32 2.0, %v5726
        %v5743 = vmul.f32 %v5695, %v5727
        %v5744 = vmul.f32 %v5696, %v5728
        %v5745 = vmul.f32 %v5697, %v5729
        %v5746 = vmul.f32 %v5698, %v5730
        %v5747 = vmul.f32 %v5699, %v5731
        %v5748 = vmul.f32 %v5700, %v5732
        %v5749 = vmul.f32 %v5701, %v5733
        %v5750 = vmul.f32 %v5702, %v5734
        %v5751 = vmul.f32 %v5703, %v5735
        %v5752 = vmul.f32 %v5704, %v5736
        %v5753 = vmul.f32 %v5705, %v5737
        %v5754 = vmul.f32 %v5706, %v5738
        %v5755 = vmul.f32 %v5707, %v5739
        %v5756 = vmul.f32 %v5708, %v5740
        %v5757 = vmul.f32 %v5709, %v5741
        %v5758 = vmul.f32 %v5710, %v5742
        %v5775 = vlaneseq
        %v5776 = vshrl.u32 %v5775, 7
        %v5777 = vsub.s32 0, %v5776
        %v5778 = vrot.slane %v5743, %v5777
        %v5779 = vlaneseq
        %v5780 = vshrl.u32 %v5779, 7
        %v5781 = vsub.s32 1, %v5780
        %v5782 = vrot.slane %v5743, %v5781
        %v5783 = vlaneseq
        %v5784 = vshrl.u32 %v5783, 7
        %v5785 = vsub.s32 2, %v5784
        %v5786 = vrot.slane %v5743, %v5785
        %v5787 = vlaneseq
        %v5788 = vshrl.u32 %v5787, 7
        %v5789 = vsub.s32 3, %v5788
        %v5790 = vrot.slane %v5743, %v5789
        %v5791 = vlaneseq
        %v5792 = vshrl.u32 %v5791, 7
        %v5793 = vsub.s32 4, %v5792
        %v5794 = vrot.slane %v5743, %v5793
        %v5795 = vlaneseq
        %v5796 = vshrl.u32 %v5795, 7
        %v5797 = vsub.s32 5, %v5796
        %v5798 = vrot.slane %v5743, %v5797
        %v5799 = vlaneseq
        %v5800 = vshrl.u32 %v5799, 7
        %v5801 = vsub.s32 6, %v5800
        %v5802 = vrot.slane %v5743, %v5801
        %v5803 = vlaneseq
        %v5804 = vshrl.u32 %v5803, 7
        %v5805 = vsub.s32 7, %v5804
        %v5806 = vrot.slane %v5743, %v5805
        %v5807 = vlaneseq
        %v5808 = vshrl.u32 %v5807, 7
        %v5809 = vsub.s32 0, %v5808
        %v5810 = vrot.slane %v5744, %v5809
        %v5811 = vlaneseq
        %v5812 = vshrl.u32 %v5811, 7
        %v5813 = vsub.s32 1, %v5812
        %v5814 = vrot.slane %v5744, %v5813
        %v5815 = vlaneseq
        %v5816 = vshrl.u32 %v5815, 7
        %v5817 = vsub.s32 2, %v5816
        %v5818 = vrot.slane %v5744, %v5817
        %v5819 = vlaneseq
        %v5820 = vshrl.u32 %v5819, 7
        %v5821 = vsub.s32 3, %v5820
        %v5822 = vrot.slane %v5744, %v5821
        %v5823 = vlaneseq
        %v5824 = vshrl.u32 %v5823, 7
        %v5825 = vsub.s32 4, %v5824
        %v5826 = vrot.slane %v5744, %v5825
        %v5827 = vlaneseq
        %v5828 = vshrl.u32 %v5827, 7
        %v5829 = vsub.s32 5, %v5828
        %v5830 = vrot.slane %v5744, %v5829
        %v5831 = vlaneseq
        %v5832 = vshrl.u32 %v5831, 7
        %v5833 = vsub.s32 6, %v5832
        %v5834 = vrot.slane %v5744, %v5833
        %v5835 = vlaneseq
        %v5836 = vshrl.u32 %v5835, 7
        %v5837 = vsub.s32 7, %v5836
        %v5838 = vrot.slane %v5744, %v5837
        %v5839 = vlaneseq
        %v5840 = vshrl.u32 %v5839, 7
        %v5841 = vsub.s32 0, %v5840
        %v5842 = vrot.slane %v5745, %v5841
        %v5843 = vlaneseq
        %v5844 = vshrl.u32 %v5843, 7
        %v5845 = vsub.s32 1, %v5844
        %v5846 = vrot.slane %v5745, %v5845
        %v5847 = vlaneseq
        %v5848 = vshrl.u32 %v5847, 7
        %v5849 = vsub.s32 2, %v5848
        %v5850 = vrot.slane %v5745, %v5849
        %v5851 = vlaneseq
        %v5852 = vshrl.u32 %v5851, 7
        %v5853 = vsub.s32 3, %v5852
        %v5854 = vrot.slane %v5745, %v5853
        %v5855 = vlaneseq
        %v5856 = vshrl.u32 %v5855, 7
        %v5857 = vsub.s32 4, %v5856
        %v5858 = vrot.slane %v5745, %v5857
        %v5859 = vlaneseq
        %v5860 = vshrl.u32 %v5859, 7
        %v5861 = vsub.s32 5, %v5860
        %v5862 = vrot.slane %v5745, %v5861
        %v5863 = vlaneseq
        %v5864 = vshrl.u32 %v5863, 7
        %v5865 = vsub.s32 6, %v5864
        %v5866 = vrot.slane %v5745, %v5865
        %v5867 = vlaneseq
        %v5868 = vshrl.u32 %v5867, 7
        %v5869 = vsub.s32 7, %v5868
        %v5870 = vrot.slane %v5745, %v5869
        %v5871 = vlaneseq
        %v5872 = vshrl.u32 %v5871, 7
        %v5873 = vsub.s32 0, %v5872
        %v5874 = vrot.slane %v5746, %v5873
        %v5875 = vlaneseq
        %v5876 = vshrl.u32 %v5875, 7
        %v5877 = vsub.s32 1, %v5876
        %v5878 = vrot.slane %v5746, %v5877
        %v5879 = vlaneseq
        %v5880 = vshrl.u32 %v5879, 7
        %v5881 = vsub.s32 2, %v5880
        %v5882 = vrot.slane %v5746, %v5881
        %v5883 = vlaneseq
        %v5884 = vshrl.u32 %v5883, 7
        %v5885 = vsub.s32 3, %v5884
        %v5886 = vrot.slane %v5746, %v5885
        %v5887 = vlaneseq
        %v5888 = vshrl.u32 %v5887, 7
        %v5889 = vsub.s32 4, %v5888
        %v5890 = vrot.slane %v5746, %v5889
        %v5891 = vlaneseq
        %v5892 = vshrl.u32 %v5891, 7
        %v5893 = vsub.s32 5, %v5892
        %v5894 = vrot.slane %v5746, %v5893
        %v5895 = vlaneseq
        %v5896 = vshrl.u32 %v5895, 7
        %v5897 = vsub.s32 6, %v5896
        %v5898 = vrot.slane %v5746, %v5897
        %v5899 = vlaneseq
        %v5900 = vshrl.u32 %v5899, 7
        %v5901 = vsub.s32 7, %v5900
        %v5902 = vrot.slane %v5746, %v5901
        %v5903 = vlaneseq
        %v5904 = vshrl.u32 %v5903, 7
        %v5905 = vsub.s32 0, %v5904
        %v5906 = vrot.slane %v5747, %v5905
        %v5907 = vlaneseq
        %v5908 = vshrl.u32 %v5907, 7
        %v5909 = vsub.s32 1, %v5908
        %v5910 = vrot.slane %v5747, %v5909
        %v5911 = vlaneseq
        %v5912 = vshrl.u32 %v5911, 7
        %v5913 = vsub.s32 2, %v5912
        %v5914 = vrot.slane %v5747, %v5913
        %v5915 = vlaneseq
        %v5916 = vshrl.u32 %v5915, 7
        %v5917 = vsub.s32 3, %v5916
        %v5918 = vrot.slane %v5747, %v5917
        %v5919 = vlaneseq
        %v5920 = vshrl.u32 %v5919, 7
        %v5921 = vsub.s32 4, %v5920
        %v5922 = vrot.slane %v5747, %v5921
        %v5923 = vlaneseq
        %v5924 = vshrl.u32 %v5923, 7
        %v5925 = vsub.s32 5, %v5924
        %v5926 = vrot.slane %v5747, %v5925
        %v5927 = vlaneseq
        %v5928 = vshrl.u32 %v5927, 7
        %v5929 = vsub.s32 6, %v5928
        %v5930 = vrot.slane %v5747, %v5929
        %v5931 = vlaneseq
        %v5932 = vshrl.u32 %v5931, 7
        %v5933 = vsub.s32 7, %v5932
        %v5934 = vrot.slane %v5747, %v5933
        %v5935 = vlaneseq
        %v5936 = vshrl.u32 %v5935, 7
        %v5937 = vsub.s32 0, %v5936
        %v5938 = vrot.slane %v5748, %v5937
        %v5939 = vlaneseq
        %v5940 = vshrl.u32 %v5939, 7
        %v5941 = vsub.s32 1, %v5940
        %v5942 = vrot.slane %v5748, %v5941
        %v5943 = vlaneseq
        %v5944 = vshrl.u32 %v5943, 7
        %v5945 = vsub.s32 2, %v5944
        %v5946 = vrot.slane %v5748, %v5945
        %v5947 = vlaneseq
        %v5948 = vshrl.u32 %v5947, 7
        %v5949 = vsub.s32 3, %v5948
        %v5950 = vrot.slane %v5748, %v5949
        %v5951 = vlaneseq
        %v5952 = vshrl.u32 %v5951, 7
        %v5953 = vsub.s32 4, %v5952
        %v5954 = vrot.slane %v5748, %v5953
        %v5955 = vlaneseq
        %v5956 = vshrl.u32 %v5955, 7
        %v5957 = vsub.s32 5, %v5956
        %v5958 = vrot.slane %v5748, %v5957
        %v5959 = vlaneseq
        %v5960 = vshrl.u32 %v5959, 7
        %v5961 = vsub.s32 6, %v5960
        %v5962 = vrot.slane %v5748, %v5961
        %v5963 = vlaneseq
        %v5964 = vshrl.u32 %v5963, 7
        %v5965 = vsub.s32 7, %v5964
        %v5966 = vrot.slane %v5748, %v5965
        %v5967 = vlaneseq
        %v5968 = vshrl.u32 %v5967, 7
        %v5969 = vsub.s32 0, %v5968
        %v5970 = vrot.slane %v5749, %v5969
        %v5971 = vlaneseq
        %v5972 = vshrl.u32 %v5971, 7
        %v5973 = vsub.s32 1, %v5972
        %v5974 = vrot.slane %v5749, %v5973
        %v5975 = vlaneseq
        %v5976 = vshrl.u32 %v5975, 7
        %v5977 = vsub.s32 2, %v5976
        %v5978 = vrot.slane %v5749, %v5977
        %v5979 = vlaneseq
        %v5980 = vshrl.u32 %v5979, 7
        %v5981 = vsub.s32 3, %v5980
        %v5982 = vrot.slane %v5749, %v5981
        %v5983 = vlaneseq
        %v5984 = vshrl.u32 %v5983, 7
        %v5985 = vsub.s32 4, %v5984
        %v5986 = vrot.slane %v5749, %v5985
        %v5987 = vlaneseq
        %v5988 = vshrl.u32 %v5987, 7
        %v5989 = vsub.s32 5, %v5988
        %v5990 = vrot.slane %v5749, %v5989
        %v5991 = vlaneseq
        %v5992 = vshrl.u32 %v5991, 7
        %v5993 = vsub.s32 6, %v5992
        %v5994 = vrot.slane %v5749, %v5993
        %v5995 = vlaneseq
        %v5996 = vshrl.u32 %v5995, 7
        %v5997 = vsub.s32 7, %v5996
        %v5998 = vrot.slane %v5749, %v5997
        %v5999 = vlaneseq
        %v6000 = vshrl.u32 %v5999, 7
        %v6001 = vsub.s32 0, %v6000
        %v6002 = vrot.slane %v5750, %v6001
        %v6003 = vlaneseq
        %v6004 = vshrl.u32 %v6003, 7
        %v6005 = vsub.s32 1, %v6004
        %v6006 = vrot.slane %v5750, %v6005
        %v6007 = vlaneseq
        %v6008 = vshrl.u32 %v6007, 7
        %v6009 = vsub.s32 2, %v6008
        %v6010 = vrot.slane %v5750, %v6009
        %v6011 = vlaneseq
        %v6012 = vshrl.u32 %v6011, 7
        %v6013 = vsub.s32 3, %v6012
        %v6014 = vrot.slane %v5750, %v6013
        %v6015 = vlaneseq
        %v6016 = vshrl.u32 %v6015, 7
        %v6017 = vsub.s32 4, %v6016
        %v6018 = vrot.slane %v5750, %v6017
        %v6019 = vlaneseq
        %v6020 = vshrl.u32 %v6019, 7
        %v6021 = vsub.s32 5, %v6020
        %v6022 = vrot.slane %v5750, %v6021
        %v6023 = vlaneseq
        %v6024 = vshrl.u32 %v6023, 7
        %v6025 = vsub.s32 6, %v6024
        %v6026 = vrot.slane %v5750, %v6025
        %v6027 = vlaneseq
        %v6028 = vshrl.u32 %v6027, 7
        %v6029 = vsub.s32 7, %v6028
        %v6030 = vrot.slane %v5750, %v6029
        %v6031 = vlaneseq
        %v6032 = vshrl.u32 %v6031, 7
        %v6033 = vsub.s32 0, %v6032
        %v6034 = vrot.slane %v5751, %v6033
        %v6035 = vlaneseq
        %v6036 = vshrl.u32 %v6035, 7
        %v6037 = vsub.s32 1, %v6036
        %v6038 = vrot.slane %v5751, %v6037
        %v6039 = vlaneseq
        %v6040 = vshrl.u32 %v6039, 7
        %v6041 = vsub.s32 2, %v6040
        %v6042 = vrot.slane %v5751, %v6041
        %v6043 = vlaneseq
        %v6044 = vshrl.u32 %v6043, 7
        %v6045 = vsub.s32 3, %v6044
        %v6046 = vrot.slane %v5751, %v6045
        %v6047 = vlaneseq
        %v6048 = vshrl.u32 %v6047, 7
        %v6049 = vsub.s32 4, %v6048
        %v6050 = vrot.slane %v5751, %v6049
        %v6051 = vlaneseq
        %v6052 = vshrl.u32 %v6051, 7
        %v6053 = vsub.s32 5, %v6052
        %v6054 = vrot.slane %v5751, %v6053
        %v6055 = vlaneseq
        %v6056 = vshrl.u32 %v6055, 7
        %v6057 = vsub.s32 6, %v6056
        %v6058 = vrot.slane %v5751, %v6057
        %v6059 = vlaneseq
        %v6060 = vshrl.u32 %v6059, 7
        %v6061 = vsub.s32 7, %v6060
        %v6062 = vrot.slane %v5751, %v6061
        %v6063 = vlaneseq
        %v6064 = vshrl.u32 %v6063, 7
        %v6065 = vsub.s32 0, %v6064
        %v6066 = vrot.slane %v5752, %v6065
        %v6067 = vlaneseq
        %v6068 = vshrl.u32 %v6067, 7
        %v6069 = vsub.s32 1, %v6068
        %v6070 = vrot.slane %v5752, %v6069
        %v6071 = vlaneseq
        %v6072 = vshrl.u32 %v6071, 7
        %v6073 = vsub.s32 2, %v6072
        %v6074 = vrot.slane %v5752, %v6073
        %v6075 = vlaneseq
        %v6076 = vshrl.u32 %v6075, 7
        %v6077 = vsub.s32 3, %v6076
        %v6078 = vrot.slane %v5752, %v6077
        %v6079 = vlaneseq
        %v6080 = vshrl.u32 %v6079, 7
        %v6081 = vsub.s32 4, %v6080
        %v6082 = vrot.slane %v5752, %v6081
        %v6083 = vlaneseq
        %v6084 = vshrl.u32 %v6083, 7
        %v6085 = vsub.s32 5, %v6084
        %v6086 = vrot.slane %v5752, %v6085
        %v6087 = vlaneseq
        %v6088 = vshrl.u32 %v6087, 7
        %v6089 = vsub.s32 6, %v6088
        %v6090 = vrot.slane %v5752, %v6089
        %v6091 = vlaneseq
        %v6092 = vshrl.u32 %v6091, 7
        %v6093 = vsub.s32 7, %v6092
        %v6094 = vrot.slane %v5752, %v6093
        %v6095 = vlaneseq
        %v6096 = vshrl.u32 %v6095, 7
        %v6097 = vsub.s32 0, %v6096
        %v6098 = vrot.slane %v5753, %v6097
        %v6099 = vlaneseq
        %v6100 = vshrl.u32 %v6099, 7
        %v6101 = vsub.s32 1, %v6100
        %v6102 = vrot.slane %v5753, %v6101
        %v6103 = vlaneseq
        %v6104 = vshrl.u32 %v6103, 7
        %v6105 = vsub.s32 2, %v6104
        %v6106 = vrot.slane %v5753, %v6105
        %v6107 = vlaneseq
        %v6108 = vshrl.u32 %v6107, 7
        %v6109 = vsub.s32 3, %v6108
        %v6110 = vrot.slane %v5753, %v6109
        %v6111 = vlaneseq
        %v6112 = vshrl.u32 %v6111, 7
        %v6113 = vsub.s32 4, %v6112
        %v6114 = vrot.slane %v5753, %v6113
        %v6115 = vlaneseq
        %v6116 = vshrl.u32 %v6115, 7
        %v6117 = vsub.s32 5, %v6116
        %v6118 = vrot.slane %v5753, %v6117
        %v6119 = vlaneseq
        %v6120 = vshrl.u32 %v6119, 7
        %v6121 = vsub.s32 6, %v6120
        %v6122 = vrot.slane %v5753, %v6121
        %v6123 = vlaneseq
        %v6124 = vshrl.u32 %v6123, 7
        %v6125 = vsub.s32 7, %v6124
        %v6126 = vrot.slane %v5753, %v6125
        %v6127 = vlaneseq
        %v6128 = vshrl.u32 %v6127, 7
        %v6129 = vsub.s32 0, %v6128
        %v6130 = vrot.slane %v5754, %v6129
        %v6131 = vlaneseq
        %v6132 = vshrl.u32 %v6131, 7
        %v6133 = vsub.s32 1, %v6132
        %v6134 = vrot.slane %v5754, %v6133
        %v6135 = vlaneseq
        %v6136 = vshrl.u32 %v6135, 7
        %v6137 = vsub.s32 2, %v6136
        %v6138 = vrot.slane %v5754, %v6137
        %v6139 = vlaneseq
        %v6140 = vshrl.u32 %v6139, 7
        %v6141 = vsub.s32 3, %v6140
        %v6142 = vrot.slane %v5754, %v6141
        %v6143 = vlaneseq
        %v6144 = vshrl.u32 %v6143, 7
        %v6145 = vsub.s32 4, %v6144
        %v6146 = vrot.slane %v5754, %v6145
        %v6147 = vlaneseq
        %v6148 = vshrl.u32 %v6147, 7
        %v6149 = vsub.s32 5, %v6148
        %v6150 = vrot.slane %v5754, %v6149
        %v6151 = vlaneseq
        %v6152 = vshrl.u32 %v6151, 7
        %v6153 = vsub.s32 6, %v6152
        %v6154 = vrot.slane %v5754, %v6153
        %v6155 = vlaneseq
        %v6156 = vshrl.u32 %v6155, 7
        %v6157 = vsub.s32 7, %v6156
        %v6158 = vrot.slane %v5754, %v6157
        %v6159 = vlaneseq
        %v6160 = vshrl.u32 %v6159, 7
        %v6161 = vsub.s32 0, %v6160
        %v6162 = vrot.slane %v5755, %v6161
        %v6163 = vlaneseq
        %v6164 = vshrl.u32 %v6163, 7
        %v6165 = vsub.s32 1, %v6164
        %v6166 = vrot.slane %v5755, %v6165
        %v6167 = vlaneseq
        %v6168 = vshrl.u32 %v6167, 7
        %v6169 = vsub.s32 2, %v6168
        %v6170 = vrot.slane %v5755, %v6169
        %v6171 = vlaneseq
        %v6172 = vshrl.u32 %v6171, 7
        %v6173 = vsub.s32 3, %v6172
        %v6174 = vrot.slane %v5755, %v6173
        %v6175 = vlaneseq
        %v6176 = vshrl.u32 %v6175, 7
        %v6177 = vsub.s32 4, %v6176
        %v6178 = vrot.slane %v5755, %v6177
        %v6179 = vlaneseq
        %v6180 = vshrl.u32 %v6179, 7
        %v6181 = vsub.s32 5, %v6180
        %v6182 = vrot.slane %v5755, %v6181
        %v6183 = vlaneseq
        %v6184 = vshrl.u32 %v6183, 7
        %v6185 = vsub.s32 6, %v6184
        %v6186 = vrot.slane %v5755, %v6185
        %v6187 = vlaneseq
        %v6188 = vshrl.u32 %v6187, 7
        %v6189 = vsub.s32 7, %v6188
        %v6190 = vrot.slane %v5755, %v6189
        %v6191 = vlaneseq
        %v6192 = vshrl.u32 %v6191, 7
        %v6193 = vsub.s32 0, %v6192
        %v6194 = vrot.slane %v5756, %v6193
        %v6195 = vlaneseq
        %v6196 = vshrl.u32 %v6195, 7
        %v6197 = vsub.s32 1, %v6196
        %v6198 = vrot.slane %v5756, %v6197
        %v6199 = vlaneseq
        %v6200 = vshrl.u32 %v6199, 7
        %v6201 = vsub.s32 2, %v6200
        %v6202 = vrot.slane %v5756, %v6201
        %v6203 = vlaneseq
        %v6204 = vshrl.u32 %v6203, 7
        %v6205 = vsub.s32 3, %v6204
        %v6206 = vrot.slane %v5756, %v6205
        %v6207 = vlaneseq
        %v6208 = vshrl.u32 %v6207, 7
        %v6209 = vsub.s32 4, %v6208
        %v6210 = vrot.slane %v5756, %v6209
        %v6211 = vlaneseq
        %v6212 = vshrl.u32 %v6211, 7
        %v6213 = vsub.s32 5, %v6212
        %v6214 = vrot.slane %v5756, %v6213
        %v6215 = vlaneseq
        %v6216 = vshrl.u32 %v6215, 7
        %v6217 = vsub.s32 6, %v6216
        %v6218 = vrot.slane %v5756, %v6217
        %v6219 = vlaneseq
        %v6220 = vshrl.u32 %v6219, 7
        %v6221 = vsub.s32 7, %v6220
        %v6222 = vrot.slane %v5756, %v6221
        %v6223 = vlaneseq
        %v6224 = vshrl.u32 %v6223, 7
        %v6225 = vsub.s32 0, %v6224
        %v6226 = vrot.slane %v5757, %v6225
        %v6227 = vlaneseq
        %v6228 = vshrl.u32 %v6227, 7
        %v6229 = vsub.s32 1, %v6228
        %v6230 = vrot.slane %v5757, %v6229
        %v6231 = vlaneseq
        %v6232 = vshrl.u32 %v6231, 7
        %v6233 = vsub.s32 2, %v6232
        %v6234 = vrot.slane %v5757, %v6233
        %v6235 = vlaneseq
        %v6236 = vshrl.u32 %v6235, 7
        %v6237 = vsub.s32 3, %v6236
        %v6238 = vrot.slane %v5757, %v6237
        %v6239 = vlaneseq
        %v6240 = vshrl.u32 %v6239, 7
        %v6241 = vsub.s32 4, %v6240
        %v6242 = vrot.slane %v5757, %v6241
        %v6243 = vlaneseq
        %v6244 = vshrl.u32 %v6243, 7
        %v6245 = vsub.s32 5, %v6244
        %v6246 = vrot.slane %v5757, %v6245
        %v6247 = vlaneseq
        %v6248 = vshrl.u32 %v6247, 7
        %v6249 = vsub.s32 6, %v6248
        %v6250 = vrot.slane %v5757, %v6249
        %v6251 = vlaneseq
        %v6252 = vshrl.u32 %v6251, 7
        %v6253 = vsub.s32 7, %v6252
        %v6254 = vrot.slane %v5757, %v6253
        %v6255 = vlaneseq
        %v6256 = vshrl.u32 %v6255, 7
        %v6257 = vsub.s32 0, %v6256
        %v6258 = vrot.slane %v5758, %v6257
        %v6259 = vlaneseq
        %v6260 = vshrl.u32 %v6259, 7
        %v6261 = vsub.s32 1, %v6260
        %v6262 = vrot.slane %v5758, %v6261
        %v6263 = vlaneseq
        %v6264 = vshrl.u32 %v6263, 7
        %v6265 = vsub.s32 2, %v6264
        %v6266 = vrot.slane %v5758, %v6265
        %v6267 = vlaneseq
        %v6268 = vshrl.u32 %v6267, 7
        %v6269 = vsub.s32 3, %v6268
        %v6270 = vrot.slane %v5758, %v6269
        %v6271 = vlaneseq
        %v6272 = vshrl.u32 %v6271, 7
        %v6273 = vsub.s32 4, %v6272
        %v6274 = vrot.slane %v5758, %v6273
        %v6275 = vlaneseq
        %v6276 = vshrl.u32 %v6275, 7
        %v6277 = vsub.s32 5, %v6276
        %v6278 = vrot.slane %v5758, %v6277
        %v6279 = vlaneseq
        %v6280 = vshrl.u32 %v6279, 7
        %v6281 = vsub.s32 6, %v6280
        %v6282 = vrot.slane %v5758, %v6281
        %v6283 = vlaneseq
        %v6284 = vshrl.u32 %v6283, 7
        %v6285 = vsub.s32 7, %v6284
        %v6286 = vrot.slane %v5758, %v6285
        %v6415 = vmul.f32 %v4214, %v5778
        %v6416 = vmul.f32 %v4216, %v5782
        %v6417 = vmul.f32 %v4218, %v5786
        %v6418 = vmul.f32 %v4220, %v5790
        %v6419 = vmul.f32 %v4222, %v5794
        %v6420 = vmul.f32 %v4224, %v5798
        %v6421 = vmul.f32 %v4226, %v5802
        %v6422 = vmul.f32 %v4228, %v5806
        %v6423 = vmul.f32 %v4230, %v5810
        %v6424 = vmul.f32 %v4232, %v5814
        %v6425 = vmul.f32 %v4234, %v5818
        %v6426 = vmul.f32 %v4236, %v5822
        %v6427 = vmul.f32 %v4238, %v5826
        %v6428 = vmul.f32 %v4240, %v5830
        %v6429 = vmul.f32 %v4242, %v5834
        %v6430 = vmul.f32 %v4244, %v5838
        %v6431 = vmul.f32 %v4246, %v5842
        %v6432 = vmul.f32 %v4248, %v5846
        %v6433 = vmul.f32 %v4250, %v5850
        %v6434 = vmul.f32 %v4252, %v5854
        %v6435 = vmul.f32 %v4254, %v5858
        %v6436 = vmul.f32 %v4256, %v5862
        %v6437 = vmul.f32 %v4258, %v5866
        %v6438 = vmul.f32 %v4260, %v5870
        %v6439 = vmul.f32 %v4262, %v5874
        %v6440 = vmul.f32 %v4264, %v5878
        %v6441 = vmul.f32 %v4266, %v5882
        %v6442 = vmul.f32 %v4268, %v5886
        %v6443 = vmul.f32 %v4270, %v5890
        %v6444 = vmul.f32 %v4272, %v5894
        %v6445 = vmul.f32 %v4274, %v5898
        %v6446 = vmul.f32 %v4276, %v5902
        %v6447 = vmul.f32 %v4278, %v5906
        %v6448 = vmul.f32 %v4280, %v5910
        %v6449 = vmul.f32 %v4282, %v5914
        %v6450 = vmul.f32 %v4284, %v5918
        %v6451 = vmul.f32 %v4286, %v5922
        %v6452 = vmul.f32 %v4288, %v5926
        %v6453 = vmul.f32 %v4290, %v5930
        %v6454 = vmul.f32 %v4292, %v5934
        %v6455 = vmul.f32 %v4294, %v5938
        %v6456 = vmul.f32 %v4296, %v5942
        %v6457 = vmul.f32 %v4298, %v5946
        %v6458 = vmul.f32 %v4300, %v5950
        %v6459 = vmul.f32 %v4302, %v5954
        %v6460 = vmul.f32 %v4304, %v5958
        %v6461 = vmul.f32 %v4306, %v5962
        %v6462 = vmul.f32 %v4308, %v5966
        %v6463 = vmul.f32 %v4310, %v5970
        %v6464 = vmul.f32 %v4312, %v5974
        %v6465 = vmul.f32 %v4314, %v5978
        %v6466 = vmul.f32 %v4316, %v5982
        %v6467 = vmul.f32 %v4318, %v5986
        %v6468 = vmul.f32 %v4320, %v5990
        %v6469 = vmul.f32 %v4322, %v5994
        %v6470 = vmul.f32 %v4324, %v5998
        %v6471 = vmul.f32 %v4326, %v6002
        %v6472 = vmul.f32 %v4328, %v6006
        %v6473 = vmul.f32 %v4330, %v6010
        %v6474 = vmul.f32 %v4332, %v6014
        %v6475 = vmul.f32 %v4334, %v6018
        %v6476 = vmul.f32 %v4336, %v6022
        %v6477 = vmul.f32 %v4338, %v6026
        %v6478 = vmul.f32 %v4340, %v6030
        %v6479 = vmul.f32 %v4342, %v6034
        %v6480 = vmul.f32 %v4344, %v6038
        %v6481 = vmul.f32 %v4346, %v6042
        %v6482 = vmul.f32 %v4348, %v6046
        %v6483 = vmul.f32 %v4350, %v6050
        %v6484 = vmul.f32 %v4352, %v6054
        %v6485 = vmul.f32 %v4354, %v6058
        %v6486 = vmul.f32 %v4356, %v6062
        %v6487 = vmul.f32 %v4358, %v6066
        %v6488 = vmul.f32 %v4360, %v6070
        %v6489 = vmul.f32 %v4362, %v6074
        %v6490 = vmul.f32 %v4364, %v6078
        %v6491 = vmul.f32 %v4366, %v6082
        %v6492 = vmul.f32 %v4368, %v6086
        %v6493 = vmul.f32 %v4370, %v6090
        %v6494 = vmul.f32 %v4372, %v6094
        %v6495 = vmul.f32 %v4374, %v6098
        %v6496 = vmul.f32 %v4376, %v6102
        %v6497 = vmul.f32 %v4378, %v6106
        %v6498 = vmul.f32 %v4380, %v6110
        %v6499 = vmul.f32 %v4382, %v6114
        %v6500 = vmul.f32 %v4384, %v6118
        %v6501 = vmul.f32 %v4386, %v6122
        %v6502 = vmul.f32 %v4388, %v6126
        %v6503 = vmul.f32 %v4390, %v6130
        %v6504 = vmul.f32 %v4392, %v6134
        %v6505 = vmul.f32 %v4394, %v6138
        %v6506 = vmul.f32 %v4396, %v6142
        %v6507 = vmul.f32 %v4398, %v6146
        %v6508 = vmul.f32 %v4400, %v6150
        %v6509 = vmul.f32 %v4402, %v6154
        %v6510 = vmul.f32 %v4404, %v6158
        %v6511 = vmul.f32 %v4406, %v6162
        %v6512 = vmul.f32 %v4408, %v6166
        %v6513 = vmul.f32 %v4410, %v6170
        %v6514 = vmul.f32 %v4412, %v6174
        %v6515 = vmul.f32 %v4414, %v6178
        %v6516 = vmul.f32 %v4416, %v6182
        %v6517 = vmul.f32 %v4418, %v6186
        %v6518 = vmul.f32 %v4420, %v6190
        %v6519 = vmul.f32 %v4422, %v6194
        %v6520 = vmul.f32 %v4424, %v6198
        %v6521 = vmul.f32 %v4426, %v6202
        %v6522 = vmul.f32 %v4428, %v6206
        %v6523 = vmul.f32 %v4430, %v6210
        %v6524 = vmul.f32 %v4432, %v6214
        %v6525 = vmul.f32 %v4434, %v6218
        %v6526 = vmul.f32 %v4436, %v6222
        %v6527 = vmul.f32 %v4438, %v6226
        %v6528 = vmul.f32 %v4440, %v6230
        %v6529 = vmul.f32 %v4442, %v6234
        %v6530 = vmul.f32 %v4444, %v6238
        %v6531 = vmul.f32 %v4446, %v6242
        %v6532 = vmul.f32 %v4448, %v6246
        %v6533 = vmul.f32 %v4450, %v6250
        %v6534 = vmul.f32 %v4452, %v6254
        %v6535 = vmul.f32 %v4454, %v6258
        %v6536 = vmul.f32 %v4456, %v6262
        %v6537 = vmul.f32 %v4458, %v6266
        %v6538 = vmul.f32 %v4460, %v6270
        %v6539 = vmul.f32 %v4462, %v6274
        %v6540 = vmul.f32 %v4464, %v6278
        %v6541 = vmul.f32 %v4466, %v6282
        %v6542 = vmul.f32 %v4468, %v6286
        %6544 = vset.pattern.permute.xlu0 0
        %6545 = vperm.xlu0 %6544, %v6415
        %v6546 = vpop.permute.xlu0 %6545
        %6549 = vset.pattern.permute.xlu0 0
        %6550 = vperm.xlu0 %6549, %v6416
        %v6551 = vpop.permute.xlu0 %6550
        %6554 = vset.pattern.permute.xlu0 0
        %6555 = vperm.xlu0 %6554, %v6417
        %v6556 = vpop.permute.xlu0 %6555
        %6559 = vset.pattern.permute.xlu0 0
        %6560 = vperm.xlu0 %6559, %v6418
        %v6561 = vpop.permute.xlu0 %6560
        %6564 = vset.pattern.permute.xlu0 0
        %6565 = vperm.xlu0 %6564, %v6419
        %v6566 = vpop.permute.xlu0 %6565
        %6569 = vset.pattern.permute.xlu0 0
        %6570 = vperm.xlu0 %6569, %v6420
        %v6571 = vpop.permute.xlu0 %6570
        %6574 = vset.pattern.permute.xlu0 0
        %6575 = vperm.xlu0 %6574, %v6421
        %v6576 = vpop.permute.xlu0 %6575
        %6579 = vset.pattern.permute.xlu0 0
        %6580 = vperm.xlu0 %6579, %v6422
        %v6581 = vpop.permute.xlu0 %6580
        %6584 = vset.pattern.permute.xlu0 0
        %6585 = vperm.xlu0 %6584, %v6423
        %v6586 = vpop.permute.xlu0 %6585
        %6589 = vset.pattern.permute.xlu0 0
        %6590 = vperm.xlu0 %6589, %v6424
        %v6591 = vpop.permute.xlu0 %6590
        %6594 = vset.pattern.permute.xlu0 0
        %6595 = vperm.xlu0 %6594, %v6425
        %v6596 = vpop.permute.xlu0 %6595
        %6599 = vset.pattern.permute.xlu0 0
        %6600 = vperm.xlu0 %6599, %v6426
        %v6601 = vpop.permute.xlu0 %6600
        %6604 = vset.pattern.permute.xlu0 0
        %6605 = vperm.xlu0 %6604, %v6427
        %v6606 = vpop.permute.xlu0 %6605
        %6609 = vset.pattern.permute.xlu0 0
        %6610 = vperm.xlu0 %6609, %v6428
        %v6611 = vpop.permute.xlu0 %6610
        %6614 = vset.pattern.permute.xlu0 0
        %6615 = vperm.xlu0 %6614, %v6429
        %v6616 = vpop.permute.xlu0 %6615
        %6619 = vset.pattern.permute.xlu0 0
        %6620 = vperm.xlu0 %6619, %v6430
        %v6621 = vpop.permute.xlu0 %6620
        %6624 = vset.pattern.permute.xlu0 0
        %6625 = vperm.xlu0 %6624, %v6431
        %v6626 = vpop.permute.xlu0 %6625
        %6629 = vset.pattern.permute.xlu0 0
        %6630 = vperm.xlu0 %6629, %v6432
        %v6631 = vpop.permute.xlu0 %6630
        %6634 = vset.pattern.permute.xlu0 0
        %6635 = vperm.xlu0 %6634, %v6433
        %v6636 = vpop.permute.xlu0 %6635
        %6639 = vset.pattern.permute.xlu0 0
        %6640 = vperm.xlu0 %6639, %v6434
        %v6641 = vpop.permute.xlu0 %6640
        %6644 = vset.pattern.permute.xlu0 0
        %6645 = vperm.xlu0 %6644, %v6435
        %v6646 = vpop.permute.xlu0 %6645
        %6649 = vset.pattern.permute.xlu0 0
        %6650 = vperm.xlu0 %6649, %v6436
        %v6651 = vpop.permute.xlu0 %6650
        %6654 = vset.pattern.permute.xlu0 0
        %6655 = vperm.xlu0 %6654, %v6437
        %v6656 = vpop.permute.xlu0 %6655
        %6659 = vset.pattern.permute.xlu0 0
        %6660 = vperm.xlu0 %6659, %v6438
        %v6661 = vpop.permute.xlu0 %6660
        %6664 = vset.pattern.permute.xlu0 0
        %6665 = vperm.xlu0 %6664, %v6439
        %v6666 = vpop.permute.xlu0 %6665
        %6669 = vset.pattern.permute.xlu0 0
        %6670 = vperm.xlu0 %6669, %v6440
        %v6671 = vpop.permute.xlu0 %6670
        %6674 = vset.pattern.permute.xlu0 0
        %6675 = vperm.xlu0 %6674, %v6441
        %v6676 = vpop.permute.xlu0 %6675
        %6679 = vset.pattern.permute.xlu0 0
        %6680 = vperm.xlu0 %6679, %v6442
        %v6681 = vpop.permute.xlu0 %6680
        %6684 = vset.pattern.permute.xlu0 0
        %6685 = vperm.xlu0 %6684, %v6443
        %v6686 = vpop.permute.xlu0 %6685
        %6689 = vset.pattern.permute.xlu0 0
        %6690 = vperm.xlu0 %6689, %v6444
        %v6691 = vpop.permute.xlu0 %6690
        %6694 = vset.pattern.permute.xlu0 0
        %6695 = vperm.xlu0 %6694, %v6445
        %v6696 = vpop.permute.xlu0 %6695
        %6699 = vset.pattern.permute.xlu0 0
        %6700 = vperm.xlu0 %6699, %v6446
        %v6701 = vpop.permute.xlu0 %6700
        %6704 = vset.pattern.permute.xlu0 0
        %6705 = vperm.xlu0 %6704, %v6447
        %v6706 = vpop.permute.xlu0 %6705
        %6709 = vset.pattern.permute.xlu0 0
        %6710 = vperm.xlu0 %6709, %v6448
        %v6711 = vpop.permute.xlu0 %6710
        %6714 = vset.pattern.permute.xlu0 0
        %6715 = vperm.xlu0 %6714, %v6449
        %v6716 = vpop.permute.xlu0 %6715
        %6719 = vset.pattern.permute.xlu0 0
        %6720 = vperm.xlu0 %6719, %v6450
        %v6721 = vpop.permute.xlu0 %6720
        %6724 = vset.pattern.permute.xlu0 0
        %6725 = vperm.xlu0 %6724, %v6451
        %v6726 = vpop.permute.xlu0 %6725
        %6729 = vset.pattern.permute.xlu0 0
        %6730 = vperm.xlu0 %6729, %v6452
        %v6731 = vpop.permute.xlu0 %6730
        %6734 = vset.pattern.permute.xlu0 0
        %6735 = vperm.xlu0 %6734, %v6453
        %v6736 = vpop.permute.xlu0 %6735
        %6739 = vset.pattern.permute.xlu0 0
        %6740 = vperm.xlu0 %6739, %v6454
        %v6741 = vpop.permute.xlu0 %6740
        %6744 = vset.pattern.permute.xlu0 0
        %6745 = vperm.xlu0 %6744, %v6455
        %v6746 = vpop.permute.xlu0 %6745
        %6749 = vset.pattern.permute.xlu0 0
        %6750 = vperm.xlu0 %6749, %v6456
        %v6751 = vpop.permute.xlu0 %6750
        %6754 = vset.pattern.permute.xlu0 0
        %6755 = vperm.xlu0 %6754, %v6457
        %v6756 = vpop.permute.xlu0 %6755
        %6759 = vset.pattern.permute.xlu0 0
        %6760 = vperm.xlu0 %6759, %v6458
        %v6761 = vpop.permute.xlu0 %6760
        %6764 = vset.pattern.permute.xlu0 0
        %6765 = vperm.xlu0 %6764, %v6459
        %v6766 = vpop.permute.xlu0 %6765
        %6769 = vset.pattern.permute.xlu0 0
        %6770 = vperm.xlu0 %6769, %v6460
        %v6771 = vpop.permute.xlu0 %6770
        %6774 = vset.pattern.permute.xlu0 0
        %6775 = vperm.xlu0 %6774, %v6461
        %v6776 = vpop.permute.xlu0 %6775
        %6779 = vset.pattern.permute.xlu0 0
        %6780 = vperm.xlu0 %6779, %v6462
        %v6781 = vpop.permute.xlu0 %6780
        %6784 = vset.pattern.permute.xlu0 0
        %6785 = vperm.xlu0 %6784, %v6463
        %v6786 = vpop.permute.xlu0 %6785
        %6789 = vset.pattern.permute.xlu0 0
        %6790 = vperm.xlu0 %6789, %v6464
        %v6791 = vpop.permute.xlu0 %6790
        %6794 = vset.pattern.permute.xlu0 0
        %6795 = vperm.xlu0 %6794, %v6465
        %v6796 = vpop.permute.xlu0 %6795
        %6799 = vset.pattern.permute.xlu0 0
        %6800 = vperm.xlu0 %6799, %v6466
        %v6801 = vpop.permute.xlu0 %6800
        %6804 = vset.pattern.permute.xlu0 0
        %6805 = vperm.xlu0 %6804, %v6467
        %v6806 = vpop.permute.xlu0 %6805
        %6809 = vset.pattern.permute.xlu0 0
        %6810 = vperm.xlu0 %6809, %v6468
        %v6811 = vpop.permute.xlu0 %6810
        %6814 = vset.pattern.permute.xlu0 0
        %6815 = vperm.xlu0 %6814, %v6469
        %v6816 = vpop.permute.xlu0 %6815
        %6819 = vset.pattern.permute.xlu0 0
        %6820 = vperm.xlu0 %6819, %v6470
        %v6821 = vpop.permute.xlu0 %6820
        %6824 = vset.pattern.permute.xlu0 0
        %6825 = vperm.xlu0 %6824, %v6471
        %v6826 = vpop.permute.xlu0 %6825
        %6829 = vset.pattern.permute.xlu0 0
        %6830 = vperm.xlu0 %6829, %v6472
        %v6831 = vpop.permute.xlu0 %6830
        %6834 = vset.pattern.permute.xlu0 0
        %6835 = vperm.xlu0 %6834, %v6473
        %v6836 = vpop.permute.xlu0 %6835
        %6839 = vset.pattern.permute.xlu0 0
        %6840 = vperm.xlu0 %6839, %v6474
        %v6841 = vpop.permute.xlu0 %6840
        %6844 = vset.pattern.permute.xlu0 0
        %6845 = vperm.xlu0 %6844, %v6475
        %v6846 = vpop.permute.xlu0 %6845
        %6849 = vset.pattern.permute.xlu0 0
        %6850 = vperm.xlu0 %6849, %v6476
        %v6851 = vpop.permute.xlu0 %6850
        %6854 = vset.pattern.permute.xlu0 0
        %6855 = vperm.xlu0 %6854, %v6477
        %v6856 = vpop.permute.xlu0 %6855
        %6859 = vset.pattern.permute.xlu0 0
        %6860 = vperm.xlu0 %6859, %v6478
        %v6861 = vpop.permute.xlu0 %6860
        %6864 = vset.pattern.permute.xlu0 0
        %6865 = vperm.xlu0 %6864, %v6479
        %v6866 = vpop.permute.xlu0 %6865
        %6869 = vset.pattern.permute.xlu0 0
        %6870 = vperm.xlu0 %6869, %v6480
        %v6871 = vpop.permute.xlu0 %6870
        %6874 = vset.pattern.permute.xlu0 0
        %6875 = vperm.xlu0 %6874, %v6481
        %v6876 = vpop.permute.xlu0 %6875
        %6879 = vset.pattern.permute.xlu0 0
        %6880 = vperm.xlu0 %6879, %v6482
        %v6881 = vpop.permute.xlu0 %6880
        %6884 = vset.pattern.permute.xlu0 0
        %6885 = vperm.xlu0 %6884, %v6483
        %v6886 = vpop.permute.xlu0 %6885
        %6889 = vset.pattern.permute.xlu0 0
        %6890 = vperm.xlu0 %6889, %v6484
        %v6891 = vpop.permute.xlu0 %6890
        %6894 = vset.pattern.permute.xlu0 0
        %6895 = vperm.xlu0 %6894, %v6485
        %v6896 = vpop.permute.xlu0 %6895
        %6899 = vset.pattern.permute.xlu0 0
        %6900 = vperm.xlu0 %6899, %v6486
        %v6901 = vpop.permute.xlu0 %6900
        %6904 = vset.pattern.permute.xlu0 0
        %6905 = vperm.xlu0 %6904, %v6487
        %v6906 = vpop.permute.xlu0 %6905
        %6909 = vset.pattern.permute.xlu0 0
        %6910 = vperm.xlu0 %6909, %v6488
        %v6911 = vpop.permute.xlu0 %6910
        %6914 = vset.pattern.permute.xlu0 0
        %6915 = vperm.xlu0 %6914, %v6489
        %v6916 = vpop.permute.xlu0 %6915
        %6919 = vset.pattern.permute.xlu0 0
        %6920 = vperm.xlu0 %6919, %v6490
        %v6921 = vpop.permute.xlu0 %6920
        %6924 = vset.pattern.permute.xlu0 0
        %6925 = vperm.xlu0 %6924, %v6491
        %v6926 = vpop.permute.xlu0 %6925
        %6929 = vset.pattern.permute.xlu0 0
        %6930 = vperm.xlu0 %6929, %v6492
        %v6931 = vpop.permute.xlu0 %6930
        %6934 = vset.pattern.permute.xlu0 0
        %6935 = vperm.xlu0 %6934, %v6493
        %v6936 = vpop.permute.xlu0 %6935
        %6939 = vset.pattern.permute.xlu0 0
        %6940 = vperm.xlu0 %6939, %v6494
        %v6941 = vpop.permute.xlu0 %6940
        %6944 = vset.pattern.permute.xlu0 0
        %6945 = vperm.xlu0 %6944, %v6495
        %v6946 = vpop.permute.xlu0 %6945
        %6949 = vset.pattern.permute.xlu0 0
        %6950 = vperm.xlu0 %6949, %v6496
        %v6951 = vpop.permute.xlu0 %6950
        %6954 = vset.pattern.permute.xlu0 0
        %6955 = vperm.xlu0 %6954, %v6497
        %v6956 = vpop.permute.xlu0 %6955
        %6959 = vset.pattern.permute.xlu0 0
        %6960 = vperm.xlu0 %6959, %v6498
        %v6961 = vpop.permute.xlu0 %6960
        %6964 = vset.pattern.permute.xlu0 0
        %6965 = vperm.xlu0 %6964, %v6499
        %v6966 = vpop.permute.xlu0 %6965
        %6969 = vset.pattern.permute.xlu0 0
        %6970 = vperm.xlu0 %6969, %v6500
        %v6971 = vpop.permute.xlu0 %6970
        %6974 = vset.pattern.permute.xlu0 0
        %6975 = vperm.xlu0 %6974, %v6501
        %v6976 = vpop.permute.xlu0 %6975
        %6979 = vset.pattern.permute.xlu0 0
        %6980 = vperm.xlu0 %6979, %v6502
        %v6981 = vpop.permute.xlu0 %6980
        %6984 = vset.pattern.permute.xlu0 0
        %6985 = vperm.xlu0 %6984, %v6503
        %v6986 = vpop.permute.xlu0 %6985
        %6989 = vset.pattern.permute.xlu0 0
        %6990 = vperm.xlu0 %6989, %v6504
        %v6991 = vpop.permute.xlu0 %6990
        %6994 = vset.pattern.permute.xlu0 0
        %6995 = vperm.xlu0 %6994, %v6505
        %v6996 = vpop.permute.xlu0 %6995
        %6999 = vset.pattern.permute.xlu0 0
        %7000 = vperm.xlu0 %6999, %v6506
        %v7001 = vpop.permute.xlu0 %7000
        %7004 = vset.pattern.permute.xlu0 0
        %7005 = vperm.xlu0 %7004, %v6507
        %v7006 = vpop.permute.xlu0 %7005
        %7009 = vset.pattern.permute.xlu0 0
        %7010 = vperm.xlu0 %7009, %v6508
        %v7011 = vpop.permute.xlu0 %7010
        %7014 = vset.pattern.permute.xlu0 0
        %7015 = vperm.xlu0 %7014, %v6509
        %v7016 = vpop.permute.xlu0 %7015
        %7019 = vset.pattern.permute.xlu0 0
        %7020 = vperm.xlu0 %7019, %v6510
        %v7021 = vpop.permute.xlu0 %7020
        %7024 = vset.pattern.permute.xlu0 0
        %7025 = vperm.xlu0 %7024, %v6511
        %v7026 = vpop.permute.xlu0 %7025
        %7029 = vset.pattern.permute.xlu0 0
        %7030 = vperm.xlu0 %7029, %v6512
        %v7031 = vpop.permute.xlu0 %7030
        %7034 = vset.pattern.permute.xlu0 0
        %7035 = vperm.xlu0 %7034, %v6513
        %v7036 = vpop.permute.xlu0 %7035
        %7039 = vset.pattern.permute.xlu0 0
        %7040 = vperm.xlu0 %7039, %v6514
        %v7041 = vpop.permute.xlu0 %7040
        %7044 = vset.pattern.permute.xlu0 0
        %7045 = vperm.xlu0 %7044, %v6515
        %v7046 = vpop.permute.xlu0 %7045
        %7049 = vset.pattern.permute.xlu0 0
        %7050 = vperm.xlu0 %7049, %v6516
        %v7051 = vpop.permute.xlu0 %7050
        %7054 = vset.pattern.permute.xlu0 0
        %7055 = vperm.xlu0 %7054, %v6517
        %v7056 = vpop.permute.xlu0 %7055
        %7059 = vset.pattern.permute.xlu0 0
        %7060 = vperm.xlu0 %7059, %v6518
        %v7061 = vpop.permute.xlu0 %7060
        %7064 = vset.pattern.permute.xlu0 0
        %7065 = vperm.xlu0 %7064, %v6519
        %v7066 = vpop.permute.xlu0 %7065
        %7069 = vset.pattern.permute.xlu0 0
        %7070 = vperm.xlu0 %7069, %v6520
        %v7071 = vpop.permute.xlu0 %7070
        %7074 = vset.pattern.permute.xlu0 0
        %7075 = vperm.xlu0 %7074, %v6521
        %v7076 = vpop.permute.xlu0 %7075
        %7079 = vset.pattern.permute.xlu0 0
        %7080 = vperm.xlu0 %7079, %v6522
        %v7081 = vpop.permute.xlu0 %7080
        %7084 = vset.pattern.permute.xlu0 0
        %7085 = vperm.xlu0 %7084, %v6523
        %v7086 = vpop.permute.xlu0 %7085
        %7089 = vset.pattern.permute.xlu0 0
        %7090 = vperm.xlu0 %7089, %v6524
        %v7091 = vpop.permute.xlu0 %7090
        %7094 = vset.pattern.permute.xlu0 0
        %7095 = vperm.xlu0 %7094, %v6525
        %v7096 = vpop.permute.xlu0 %7095
        %7099 = vset.pattern.permute.xlu0 0
        %7100 = vperm.xlu0 %7099, %v6526
        %v7101 = vpop.permute.xlu0 %7100
        %7104 = vset.pattern.permute.xlu0 0
        %7105 = vperm.xlu0 %7104, %v6527
        %v7106 = vpop.permute.xlu0 %7105
        %7109 = vset.pattern.permute.xlu0 0
        %7110 = vperm.xlu0 %7109, %v6528
        %v7111 = vpop.permute.xlu0 %7110
        %7114 = vset.pattern.permute.xlu0 0
        %7115 = vperm.xlu0 %7114, %v6529
        %v7116 = vpop.permute.xlu0 %7115
        %7119 = vset.pattern.permute.xlu0 0
        %7120 = vperm.xlu0 %7119, %v6530
        %v7121 = vpop.permute.xlu0 %7120
        %7124 = vset.pattern.permute.xlu0 0
        %7125 = vperm.xlu0 %7124, %v6531
        %v7126 = vpop.permute.xlu0 %7125
        %7129 = vset.pattern.permute.xlu0 0
        %7130 = vperm.xlu0 %7129, %v6532
        %v7131 = vpop.permute.xlu0 %7130
        %7134 = vset.pattern.permute.xlu0 0
        %7135 = vperm.xlu0 %7134, %v6533
        %v7136 = vpop.permute.xlu0 %7135
        %7139 = vset.pattern.permute.xlu0 0
        %7140 = vperm.xlu0 %7139, %v6534
        %v7141 = vpop.permute.xlu0 %7140
        %7144 = vset.pattern.permute.xlu0 0
        %7145 = vperm.xlu0 %7144, %v6535
        %v7146 = vpop.permute.xlu0 %7145
        %7149 = vset.pattern.permute.xlu0 0
        %7150 = vperm.xlu0 %7149, %v6536
        %v7151 = vpop.permute.xlu0 %7150
        %7154 = vset.pattern.permute.xlu0 0
        %7155 = vperm.xlu0 %7154, %v6537
        %v7156 = vpop.permute.xlu0 %7155
        %7159 = vset.pattern.permute.xlu0 0
        %7160 = vperm.xlu0 %7159, %v6538
        %v7161 = vpop.permute.xlu0 %7160
        %7164 = vset.pattern.permute.xlu0 0
        %7165 = vperm.xlu0 %7164, %v6539
        %v7166 = vpop.permute.xlu0 %7165
        %7169 = vset.pattern.permute.xlu0 0
        %7170 = vperm.xlu0 %7169, %v6540
        %v7171 = vpop.permute.xlu0 %7170
        %7174 = vset.pattern.permute.xlu0 0
        %7175 = vperm.xlu0 %7174, %v6541
        %v7176 = vpop.permute.xlu0 %7175
        %7179 = vset.pattern.permute.xlu0 0
        %7180 = vperm.xlu0 %7179, %v6542
        %v7181 = vpop.permute.xlu0 %7180
        %v7183 = vmul.f32 %v440, %v6546
        %v7184 = vmul.f32 %v441, %v6551
        %v7185 = vmul.f32 %v442, %v6556
        %v7186 = vmul.f32 %v443, %v6561
        %v7187 = vmul.f32 %v444, %v6566
        %v7188 = vmul.f32 %v445, %v6571
        %v7189 = vmul.f32 %v446, %v6576
        %v7190 = vmul.f32 %v447, %v6581
        %v7191 = vmul.f32 %v448, %v6586
        %v7192 = vmul.f32 %v449, %v6591
        %v7193 = vmul.f32 %v450, %v6596
        %v7194 = vmul.f32 %v451, %v6601
        %v7195 = vmul.f32 %v452, %v6606
        %v7196 = vmul.f32 %v453, %v6611
        %v7197 = vmul.f32 %v454, %v6616
        %v7198 = vmul.f32 %v455, %v6621
        %v7199 = vmul.f32 %v456, %v6626
        %v7200 = vmul.f32 %v457, %v6631
        %v7201 = vmul.f32 %v458, %v6636
        %v7202 = vmul.f32 %v459, %v6641
        %v7203 = vmul.f32 %v460, %v6646
        %v7204 = vmul.f32 %v461, %v6651
        %v7205 = vmul.f32 %v462, %v6656
        %v7206 = vmul.f32 %v463, %v6661
        %v7207 = vmul.f32 %v464, %v6666
        %v7208 = vmul.f32 %v465, %v6671
        %v7209 = vmul.f32 %v466, %v6676
        %v7210 = vmul.f32 %v467, %v6681
        %v7211 = vmul.f32 %v468, %v6686
        %v7212 = vmul.f32 %v469, %v6691
        %v7213 = vmul.f32 %v470, %v6696
        %v7214 = vmul.f32 %v471, %v6701
        %v7215 = vmul.f32 %v472, %v6706
        %v7216 = vmul.f32 %v473, %v6711
        %v7217 = vmul.f32 %v474, %v6716
        %v7218 = vmul.f32 %v475, %v6721
        %v7219 = vmul.f32 %v476, %v6726
        %v7220 = vmul.f32 %v477, %v6731
        %v7221 = vmul.f32 %v478, %v6736
        %v7222 = vmul.f32 %v479, %v6741
        %v7223 = vmul.f32 %v480, %v6746
        %v7224 = vmul.f32 %v481, %v6751
        %v7225 = vmul.f32 %v482, %v6756
        %v7226 = vmul.f32 %v483, %v6761
        %v7227 = vmul.f32 %v484, %v6766
        %v7228 = vmul.f32 %v485, %v6771
        %v7229 = vmul.f32 %v486, %v6776
        %v7230 = vmul.f32 %v487, %v6781
        %v7231 = vmul.f32 %v488, %v6786
        %v7232 = vmul.f32 %v489, %v6791
        %v7233 = vmul.f32 %v490, %v6796
        %v7234 = vmul.f32 %v491, %v6801
        %v7235 = vmul.f32 %v492, %v6806
        %v7236 = vmul.f32 %v493, %v6811
        %v7237 = vmul.f32 %v494, %v6816
        %v7238 = vmul.f32 %v495, %v6821
        %v7239 = vmul.f32 %v496, %v6826
        %v7240 = vmul.f32 %v497, %v6831
        %v7241 = vmul.f32 %v498, %v6836
        %v7242 = vmul.f32 %v499, %v6841
        %v7243 = vmul.f32 %v500, %v6846
        %v7244 = vmul.f32 %v501, %v6851
        %v7245 = vmul.f32 %v502, %v6856
        %v7246 = vmul.f32 %v503, %v6861
        %v7247 = vmul.f32 %v504, %v6866
        %v7248 = vmul.f32 %v505, %v6871
        %v7249 = vmul.f32 %v506, %v6876
        %v7250 = vmul.f32 %v507, %v6881
        %v7251 = vmul.f32 %v508, %v6886
        %v7252 = vmul.f32 %v509, %v6891
        %v7253 = vmul.f32 %v510, %v6896
        %v7254 = vmul.f32 %v511, %v6901
        %v7255 = vmul.f32 %v512, %v6906
        %v7256 = vmul.f32 %v513, %v6911
        %v7257 = vmul.f32 %v514, %v6916
        %v7258 = vmul.f32 %v515, %v6921
        %v7259 = vmul.f32 %v516, %v6926
        %v7260 = vmul.f32 %v517, %v6931
        %v7261 = vmul.f32 %v518, %v6936
        %v7262 = vmul.f32 %v519, %v6941
        %v7263 = vmul.f32 %v520, %v6946
        %v7264 = vmul.f32 %v521, %v6951
        %v7265 = vmul.f32 %v522, %v6956
        %v7266 = vmul.f32 %v523, %v6961
        %v7267 = vmul.f32 %v524, %v6966
        %v7268 = vmul.f32 %v525, %v6971
        %v7269 = vmul.f32 %v526, %v6976
        %v7270 = vmul.f32 %v527, %v6981
        %v7271 = vmul.f32 %v528, %v6986
        %v7272 = vmul.f32 %v529, %v6991
        %v7273 = vmul.f32 %v530, %v6996
        %v7274 = vmul.f32 %v531, %v7001
        %v7275 = vmul.f32 %v532, %v7006
        %v7276 = vmul.f32 %v533, %v7011
        %v7277 = vmul.f32 %v534, %v7016
        %v7278 = vmul.f32 %v535, %v7021
        %v7279 = vmul.f32 %v536, %v7026
        %v7280 = vmul.f32 %v537, %v7031
        %v7281 = vmul.f32 %v538, %v7036
        %v7282 = vmul.f32 %v539, %v7041
        %v7283 = vmul.f32 %v540, %v7046
        %v7284 = vmul.f32 %v541, %v7051
        %v7285 = vmul.f32 %v542, %v7056
        %v7286 = vmul.f32 %v543, %v7061
        %v7287 = vmul.f32 %v544, %v7066
        %v7288 = vmul.f32 %v545, %v7071
        %v7289 = vmul.f32 %v546, %v7076
        %v7290 = vmul.f32 %v547, %v7081
        %v7291 = vmul.f32 %v548, %v7086
        %v7292 = vmul.f32 %v549, %v7091
        %v7293 = vmul.f32 %v550, %v7096
        %v7294 = vmul.f32 %v551, %v7101
        %v7295 = vmul.f32 %v552, %v7106
        %v7296 = vmul.f32 %v553, %v7111
        %v7297 = vmul.f32 %v554, %v7116
        %v7298 = vmul.f32 %v555, %v7121
        %v7299 = vmul.f32 %v556, %v7126
        %v7300 = vmul.f32 %v557, %v7131
        %v7301 = vmul.f32 %v558, %v7136
        %v7302 = vmul.f32 %v559, %v7141
        %v7303 = vmul.f32 %v560, %v7146
        %v7304 = vmul.f32 %v561, %v7151
        %v7305 = vmul.f32 %v562, %v7156
        %v7306 = vmul.f32 %v563, %v7161
        %v7307 = vmul.f32 %v564, %v7166
        %v7308 = vmul.f32 %v565, %v7171
        %v7309 = vmul.f32 %v566, %v7176
        %v7310 = vmul.f32 %v567, %v7181
        %v7311 = vrot.slane %v7183, 4
        %v7312 = vadd.f32 %v7183, %v7311
        %v7313 = vrot.slane %v7312, 2
        %v7314 = vadd.f32 %v7312, %v7313
        %v7315 = vrot.slane %v7314, 1
        %v7316 = vadd.f32 %v7314, %v7315
        %v7317 = vrot.slane %v7184, 4
        %v7318 = vadd.f32 %v7184, %v7317
        %v7319 = vrot.slane %v7318, 2
        %v7320 = vadd.f32 %v7318, %v7319
        %v7321 = vrot.slane %v7320, 1
        %v7322 = vadd.f32 %v7320, %v7321
        %v7323 = vrot.slane %v7185, 4
        %v7324 = vadd.f32 %v7185, %v7323
        %v7325 = vrot.slane %v7324, 2
        %v7326 = vadd.f32 %v7324, %v7325
        %v7327 = vrot.slane %v7326, 1
        %v7328 = vadd.f32 %v7326, %v7327
        %v7329 = vrot.slane %v7186, 4
        %v7330 = vadd.f32 %v7186, %v7329
        %v7331 = vrot.slane %v7330, 2
        %v7332 = vadd.f32 %v7330, %v7331
        %v7333 = vrot.slane %v7332, 1
        %v7334 = vadd.f32 %v7332, %v7333
        %v7335 = vrot.slane %v7187, 4
        %v7336 = vadd.f32 %v7187, %v7335
        %v7337 = vrot.slane %v7336, 2
        %v7338 = vadd.f32 %v7336, %v7337
        %v7339 = vrot.slane %v7338, 1
        %v7340 = vadd.f32 %v7338, %v7339
        %v7341 = vrot.slane %v7188, 4
        %v7342 = vadd.f32 %v7188, %v7341
        %v7343 = vrot.slane %v7342, 2
        %v7344 = vadd.f32 %v7342, %v7343
        %v7345 = vrot.slane %v7344, 1
        %v7346 = vadd.f32 %v7344, %v7345
        %v7347 = vrot.slane %v7189, 4
        %v7348 = vadd.f32 %v7189, %v7347
        %v7349 = vrot.slane %v7348, 2
        %v7350 = vadd.f32 %v7348, %v7349
        %v7351 = vrot.slane %v7350, 1
        %v7352 = vadd.f32 %v7350, %v7351
        %v7353 = vrot.slane %v7190, 4
        %v7354 = vadd.f32 %v7190, %v7353
        %v7355 = vrot.slane %v7354, 2
        %v7356 = vadd.f32 %v7354, %v7355
        %v7357 = vrot.slane %v7356, 1
        %v7358 = vadd.f32 %v7356, %v7357
        %v7359 = vrot.slane %v7191, 4
        %v7360 = vadd.f32 %v7191, %v7359
        %v7361 = vrot.slane %v7360, 2
        %v7362 = vadd.f32 %v7360, %v7361
        %v7363 = vrot.slane %v7362, 1
        %v7364 = vadd.f32 %v7362, %v7363
        %v7365 = vrot.slane %v7192, 4
        %v7366 = vadd.f32 %v7192, %v7365
        %v7367 = vrot.slane %v7366, 2
        %v7368 = vadd.f32 %v7366, %v7367
        %v7369 = vrot.slane %v7368, 1
        %v7370 = vadd.f32 %v7368, %v7369
        %v7371 = vrot.slane %v7193, 4
        %v7372 = vadd.f32 %v7193, %v7371
        %v7373 = vrot.slane %v7372, 2
        %v7374 = vadd.f32 %v7372, %v7373
        %v7375 = vrot.slane %v7374, 1
        %v7376 = vadd.f32 %v7374, %v7375
        %v7377 = vrot.slane %v7194, 4
        %v7378 = vadd.f32 %v7194, %v7377
        %v7379 = vrot.slane %v7378, 2
        %v7380 = vadd.f32 %v7378, %v7379
        %v7381 = vrot.slane %v7380, 1
        %v7382 = vadd.f32 %v7380, %v7381
        %v7383 = vrot.slane %v7195, 4
        %v7384 = vadd.f32 %v7195, %v7383
        %v7385 = vrot.slane %v7384, 2
        %v7386 = vadd.f32 %v7384, %v7385
        %v7387 = vrot.slane %v7386, 1
        %v7388 = vadd.f32 %v7386, %v7387
        %v7389 = vrot.slane %v7196, 4
        %v7390 = vadd.f32 %v7196, %v7389
        %v7391 = vrot.slane %v7390, 2
        %v7392 = vadd.f32 %v7390, %v7391
        %v7393 = vrot.slane %v7392, 1
        %v7394 = vadd.f32 %v7392, %v7393
        %v7395 = vrot.slane %v7197, 4
        %v7396 = vadd.f32 %v7197, %v7395
        %v7397 = vrot.slane %v7396, 2
        %v7398 = vadd.f32 %v7396, %v7397
        %v7399 = vrot.slane %v7398, 1
        %v7400 = vadd.f32 %v7398, %v7399
        %v7401 = vrot.slane %v7198, 4
        %v7402 = vadd.f32 %v7198, %v7401
        %v7403 = vrot.slane %v7402, 2
        %v7404 = vadd.f32 %v7402, %v7403
        %v7405 = vrot.slane %v7404, 1
        %v7406 = vadd.f32 %v7404, %v7405
        %v7407 = vrot.slane %v7199, 4
        %v7408 = vadd.f32 %v7199, %v7407
        %v7409 = vrot.slane %v7408, 2
        %v7410 = vadd.f32 %v7408, %v7409
        %v7411 = vrot.slane %v7410, 1
        %v7412 = vadd.f32 %v7410, %v7411
        %v7413 = vrot.slane %v7200, 4
        %v7414 = vadd.f32 %v7200, %v7413
        %v7415 = vrot.slane %v7414, 2
        %v7416 = vadd.f32 %v7414, %v7415
        %v7417 = vrot.slane %v7416, 1
        %v7418 = vadd.f32 %v7416, %v7417
        %v7419 = vrot.slane %v7201, 4
        %v7420 = vadd.f32 %v7201, %v7419
        %v7421 = vrot.slane %v7420, 2
        %v7422 = vadd.f32 %v7420, %v7421
        %v7423 = vrot.slane %v7422, 1
        %v7424 = vadd.f32 %v7422, %v7423
        %v7425 = vrot.slane %v7202, 4
        %v7426 = vadd.f32 %v7202, %v7425
        %v7427 = vrot.slane %v7426, 2
        %v7428 = vadd.f32 %v7426, %v7427
        %v7429 = vrot.slane %v7428, 1
        %v7430 = vadd.f32 %v7428, %v7429
        %v7431 = vrot.slane %v7203, 4
        %v7432 = vadd.f32 %v7203, %v7431
        %v7433 = vrot.slane %v7432, 2
        %v7434 = vadd.f32 %v7432, %v7433
        %v7435 = vrot.slane %v7434, 1
        %v7436 = vadd.f32 %v7434, %v7435
        %v7437 = vrot.slane %v7204, 4
        %v7438 = vadd.f32 %v7204, %v7437
        %v7439 = vrot.slane %v7438, 2
        %v7440 = vadd.f32 %v7438, %v7439
        %v7441 = vrot.slane %v7440, 1
        %v7442 = vadd.f32 %v7440, %v7441
        %v7443 = vrot.slane %v7205, 4
        %v7444 = vadd.f32 %v7205, %v7443
        %v7445 = vrot.slane %v7444, 2
        %v7446 = vadd.f32 %v7444, %v7445
        %v7447 = vrot.slane %v7446, 1
        %v7448 = vadd.f32 %v7446, %v7447
        %v7449 = vrot.slane %v7206, 4
        %v7450 = vadd.f32 %v7206, %v7449
        %v7451 = vrot.slane %v7450, 2
        %v7452 = vadd.f32 %v7450, %v7451
        %v7453 = vrot.slane %v7452, 1
        %v7454 = vadd.f32 %v7452, %v7453
        %v7455 = vrot.slane %v7207, 4
        %v7456 = vadd.f32 %v7207, %v7455
        %v7457 = vrot.slane %v7456, 2
        %v7458 = vadd.f32 %v7456, %v7457
        %v7459 = vrot.slane %v7458, 1
        %v7460 = vadd.f32 %v7458, %v7459
        %v7461 = vrot.slane %v7208, 4
        %v7462 = vadd.f32 %v7208, %v7461
        %v7463 = vrot.slane %v7462, 2
        %v7464 = vadd.f32 %v7462, %v7463
        %v7465 = vrot.slane %v7464, 1
        %v7466 = vadd.f32 %v7464, %v7465
        %v7467 = vrot.slane %v7209, 4
        %v7468 = vadd.f32 %v7209, %v7467
        %v7469 = vrot.slane %v7468, 2
        %v7470 = vadd.f32 %v7468, %v7469
        %v7471 = vrot.slane %v7470, 1
        %v7472 = vadd.f32 %v7470, %v7471
        %v7473 = vrot.slane %v7210, 4
        %v7474 = vadd.f32 %v7210, %v7473
        %v7475 = vrot.slane %v7474, 2
        %v7476 = vadd.f32 %v7474, %v7475
        %v7477 = vrot.slane %v7476, 1
        %v7478 = vadd.f32 %v7476, %v7477
        %v7479 = vrot.slane %v7211, 4
        %v7480 = vadd.f32 %v7211, %v7479
        %v7481 = vrot.slane %v7480, 2
        %v7482 = vadd.f32 %v7480, %v7481
        %v7483 = vrot.slane %v7482, 1
        %v7484 = vadd.f32 %v7482, %v7483
        %v7485 = vrot.slane %v7212, 4
        %v7486 = vadd.f32 %v7212, %v7485
        %v7487 = vrot.slane %v7486, 2
        %v7488 = vadd.f32 %v7486, %v7487
        %v7489 = vrot.slane %v7488, 1
        %v7490 = vadd.f32 %v7488, %v7489
        %v7491 = vrot.slane %v7213, 4
        %v7492 = vadd.f32 %v7213, %v7491
        %v7493 = vrot.slane %v7492, 2
        %v7494 = vadd.f32 %v7492, %v7493
        %v7495 = vrot.slane %v7494, 1
        %v7496 = vadd.f32 %v7494, %v7495
        %v7497 = vrot.slane %v7214, 4
        %v7498 = vadd.f32 %v7214, %v7497
        %v7499 = vrot.slane %v7498, 2
        %v7500 = vadd.f32 %v7498, %v7499
        %v7501 = vrot.slane %v7500, 1
        %v7502 = vadd.f32 %v7500, %v7501
        %v7503 = vrot.slane %v7215, 4
        %v7504 = vadd.f32 %v7215, %v7503
        %v7505 = vrot.slane %v7504, 2
        %v7506 = vadd.f32 %v7504, %v7505
        %v7507 = vrot.slane %v7506, 1
        %v7508 = vadd.f32 %v7506, %v7507
        %v7509 = vrot.slane %v7216, 4
        %v7510 = vadd.f32 %v7216, %v7509
        %v7511 = vrot.slane %v7510, 2
        %v7512 = vadd.f32 %v7510, %v7511
        %v7513 = vrot.slane %v7512, 1
        %v7514 = vadd.f32 %v7512, %v7513
        %v7515 = vrot.slane %v7217, 4
        %v7516 = vadd.f32 %v7217, %v7515
        %v7517 = vrot.slane %v7516, 2
        %v7518 = vadd.f32 %v7516, %v7517
        %v7519 = vrot.slane %v7518, 1
        %v7520 = vadd.f32 %v7518, %v7519
        %v7521 = vrot.slane %v7218, 4
        %v7522 = vadd.f32 %v7218, %v7521
        %v7523 = vrot.slane %v7522, 2
        %v7524 = vadd.f32 %v7522, %v7523
        %v7525 = vrot.slane %v7524, 1
        %v7526 = vadd.f32 %v7524, %v7525
        %v7527 = vrot.slane %v7219, 4
        %v7528 = vadd.f32 %v7219, %v7527
        %v7529 = vrot.slane %v7528, 2
        %v7530 = vadd.f32 %v7528, %v7529
        %v7531 = vrot.slane %v7530, 1
        %v7532 = vadd.f32 %v7530, %v7531
        %v7533 = vrot.slane %v7220, 4
        %v7534 = vadd.f32 %v7220, %v7533
        %v7535 = vrot.slane %v7534, 2
        %v7536 = vadd.f32 %v7534, %v7535
        %v7537 = vrot.slane %v7536, 1
        %v7538 = vadd.f32 %v7536, %v7537
        %v7539 = vrot.slane %v7221, 4
        %v7540 = vadd.f32 %v7221, %v7539
        %v7541 = vrot.slane %v7540, 2
        %v7542 = vadd.f32 %v7540, %v7541
        %v7543 = vrot.slane %v7542, 1
        %v7544 = vadd.f32 %v7542, %v7543
        %v7545 = vrot.slane %v7222, 4
        %v7546 = vadd.f32 %v7222, %v7545
        %v7547 = vrot.slane %v7546, 2
        %v7548 = vadd.f32 %v7546, %v7547
        %v7549 = vrot.slane %v7548, 1
        %v7550 = vadd.f32 %v7548, %v7549
        %v7551 = vrot.slane %v7223, 4
        %v7552 = vadd.f32 %v7223, %v7551
        %v7553 = vrot.slane %v7552, 2
        %v7554 = vadd.f32 %v7552, %v7553
        %v7555 = vrot.slane %v7554, 1
        %v7556 = vadd.f32 %v7554, %v7555
        %v7557 = vrot.slane %v7224, 4
        %v7558 = vadd.f32 %v7224, %v7557
        %v7559 = vrot.slane %v7558, 2
        %v7560 = vadd.f32 %v7558, %v7559
        %v7561 = vrot.slane %v7560, 1
        %v7562 = vadd.f32 %v7560, %v7561
        %v7563 = vrot.slane %v7225, 4
        %v7564 = vadd.f32 %v7225, %v7563
        %v7565 = vrot.slane %v7564, 2
        %v7566 = vadd.f32 %v7564, %v7565
        %v7567 = vrot.slane %v7566, 1
        %v7568 = vadd.f32 %v7566, %v7567
        %v7569 = vrot.slane %v7226, 4
        %v7570 = vadd.f32 %v7226, %v7569
        %v7571 = vrot.slane %v7570, 2
        %v7572 = vadd.f32 %v7570, %v7571
        %v7573 = vrot.slane %v7572, 1
        %v7574 = vadd.f32 %v7572, %v7573
        %v7575 = vrot.slane %v7227, 4
        %v7576 = vadd.f32 %v7227, %v7575
        %v7577 = vrot.slane %v7576, 2
        %v7578 = vadd.f32 %v7576, %v7577
        %v7579 = vrot.slane %v7578, 1
        %v7580 = vadd.f32 %v7578, %v7579
        %v7581 = vrot.slane %v7228, 4
        %v7582 = vadd.f32 %v7228, %v7581
        %v7583 = vrot.slane %v7582, 2
        %v7584 = vadd.f32 %v7582, %v7583
        %v7585 = vrot.slane %v7584, 1
        %v7586 = vadd.f32 %v7584, %v7585
        %v7587 = vrot.slane %v7229, 4
        %v7588 = vadd.f32 %v7229, %v7587
        %v7589 = vrot.slane %v7588, 2
        %v7590 = vadd.f32 %v7588, %v7589
        %v7591 = vrot.slane %v7590, 1
        %v7592 = vadd.f32 %v7590, %v7591
        %v7593 = vrot.slane %v7230, 4
        %v7594 = vadd.f32 %v7230, %v7593
        %v7595 = vrot.slane %v7594, 2
        %v7596 = vadd.f32 %v7594, %v7595
        %v7597 = vrot.slane %v7596, 1
        %v7598 = vadd.f32 %v7596, %v7597
        %v7599 = vrot.slane %v7231, 4
        %v7600 = vadd.f32 %v7231, %v7599
        %v7601 = vrot.slane %v7600, 2
        %v7602 = vadd.f32 %v7600, %v7601
        %v7603 = vrot.slane %v7602, 1
        %v7604 = vadd.f32 %v7602, %v7603
        %v7605 = vrot.slane %v7232, 4
        %v7606 = vadd.f32 %v7232, %v7605
        %v7607 = vrot.slane %v7606, 2
        %v7608 = vadd.f32 %v7606, %v7607
        %v7609 = vrot.slane %v7608, 1
        %v7610 = vadd.f32 %v7608, %v7609
        %v7611 = vrot.slane %v7233, 4
        %v7612 = vadd.f32 %v7233, %v7611
        %v7613 = vrot.slane %v7612, 2
        %v7614 = vadd.f32 %v7612, %v7613
        %v7615 = vrot.slane %v7614, 1
        %v7616 = vadd.f32 %v7614, %v7615
        %v7617 = vrot.slane %v7234, 4
        %v7618 = vadd.f32 %v7234, %v7617
        %v7619 = vrot.slane %v7618, 2
        %v7620 = vadd.f32 %v7618, %v7619
        %v7621 = vrot.slane %v7620, 1
        %v7622 = vadd.f32 %v7620, %v7621
        %v7623 = vrot.slane %v7235, 4
        %v7624 = vadd.f32 %v7235, %v7623
        %v7625 = vrot.slane %v7624, 2
        %v7626 = vadd.f32 %v7624, %v7625
        %v7627 = vrot.slane %v7626, 1
        %v7628 = vadd.f32 %v7626, %v7627
        %v7629 = vrot.slane %v7236, 4
        %v7630 = vadd.f32 %v7236, %v7629
        %v7631 = vrot.slane %v7630, 2
        %v7632 = vadd.f32 %v7630, %v7631
        %v7633 = vrot.slane %v7632, 1
        %v7634 = vadd.f32 %v7632, %v7633
        %v7635 = vrot.slane %v7237, 4
        %v7636 = vadd.f32 %v7237, %v7635
        %v7637 = vrot.slane %v7636, 2
        %v7638 = vadd.f32 %v7636, %v7637
        %v7639 = vrot.slane %v7638, 1
        %v7640 = vadd.f32 %v7638, %v7639
        %v7641 = vrot.slane %v7238, 4
        %v7642 = vadd.f32 %v7238, %v7641
        %v7643 = vrot.slane %v7642, 2
        %v7644 = vadd.f32 %v7642, %v7643
        %v7645 = vrot.slane %v7644, 1
        %v7646 = vadd.f32 %v7644, %v7645
        %v7647 = vrot.slane %v7239, 4
        %v7648 = vadd.f32 %v7239, %v7647
        %v7649 = vrot.slane %v7648, 2
        %v7650 = vadd.f32 %v7648, %v7649
        %v7651 = vrot.slane %v7650, 1
        %v7652 = vadd.f32 %v7650, %v7651
        %v7653 = vrot.slane %v7240, 4
        %v7654 = vadd.f32 %v7240, %v7653
        %v7655 = vrot.slane %v7654, 2
        %v7656 = vadd.f32 %v7654, %v7655
        %v7657 = vrot.slane %v7656, 1
        %v7658 = vadd.f32 %v7656, %v7657
        %v7659 = vrot.slane %v7241, 4
        %v7660 = vadd.f32 %v7241, %v7659
        %v7661 = vrot.slane %v7660, 2
        %v7662 = vadd.f32 %v7660, %v7661
        %v7663 = vrot.slane %v7662, 1
        %v7664 = vadd.f32 %v7662, %v7663
        %v7665 = vrot.slane %v7242, 4
        %v7666 = vadd.f32 %v7242, %v7665
        %v7667 = vrot.slane %v7666, 2
        %v7668 = vadd.f32 %v7666, %v7667
        %v7669 = vrot.slane %v7668, 1
        %v7670 = vadd.f32 %v7668, %v7669
        %v7671 = vrot.slane %v7243, 4
        %v7672 = vadd.f32 %v7243, %v7671
        %v7673 = vrot.slane %v7672, 2
        %v7674 = vadd.f32 %v7672, %v7673
        %v7675 = vrot.slane %v7674, 1
        %v7676 = vadd.f32 %v7674, %v7675
        %v7677 = vrot.slane %v7244, 4
        %v7678 = vadd.f32 %v7244, %v7677
        %v7679 = vrot.slane %v7678, 2
        %v7680 = vadd.f32 %v7678, %v7679
        %v7681 = vrot.slane %v7680, 1
        %v7682 = vadd.f32 %v7680, %v7681
        %v7683 = vrot.slane %v7245, 4
        %v7684 = vadd.f32 %v7245, %v7683
        %v7685 = vrot.slane %v7684, 2
        %v7686 = vadd.f32 %v7684, %v7685
        %v7687 = vrot.slane %v7686, 1
        %v7688 = vadd.f32 %v7686, %v7687
        %v7689 = vrot.slane %v7246, 4
        %v7690 = vadd.f32 %v7246, %v7689
        %v7691 = vrot.slane %v7690, 2
        %v7692 = vadd.f32 %v7690, %v7691
        %v7693 = vrot.slane %v7692, 1
        %v7694 = vadd.f32 %v7692, %v7693
        %v7695 = vrot.slane %v7247, 4
        %v7696 = vadd.f32 %v7247, %v7695
        %v7697 = vrot.slane %v7696, 2
        %v7698 = vadd.f32 %v7696, %v7697
        %v7699 = vrot.slane %v7698, 1
        %v7700 = vadd.f32 %v7698, %v7699
        %v7701 = vrot.slane %v7248, 4
        %v7702 = vadd.f32 %v7248, %v7701
        %v7703 = vrot.slane %v7702, 2
        %v7704 = vadd.f32 %v7702, %v7703
        %v7705 = vrot.slane %v7704, 1
        %v7706 = vadd.f32 %v7704, %v7705
        %v7707 = vrot.slane %v7249, 4
        %v7708 = vadd.f32 %v7249, %v7707
        %v7709 = vrot.slane %v7708, 2
        %v7710 = vadd.f32 %v7708, %v7709
        %v7711 = vrot.slane %v7710, 1
        %v7712 = vadd.f32 %v7710, %v7711
        %v7713 = vrot.slane %v7250, 4
        %v7714 = vadd.f32 %v7250, %v7713
        %v7715 = vrot.slane %v7714, 2
        %v7716 = vadd.f32 %v7714, %v7715
        %v7717 = vrot.slane %v7716, 1
        %v7718 = vadd.f32 %v7716, %v7717
        %v7719 = vrot.slane %v7251, 4
        %v7720 = vadd.f32 %v7251, %v7719
        %v7721 = vrot.slane %v7720, 2
        %v7722 = vadd.f32 %v7720, %v7721
        %v7723 = vrot.slane %v7722, 1
        %v7724 = vadd.f32 %v7722, %v7723
        %v7725 = vrot.slane %v7252, 4
        %v7726 = vadd.f32 %v7252, %v7725
        %v7727 = vrot.slane %v7726, 2
        %v7728 = vadd.f32 %v7726, %v7727
        %v7729 = vrot.slane %v7728, 1
        %v7730 = vadd.f32 %v7728, %v7729
        %v7731 = vrot.slane %v7253, 4
        %v7732 = vadd.f32 %v7253, %v7731
        %v7733 = vrot.slane %v7732, 2
        %v7734 = vadd.f32 %v7732, %v7733
        %v7735 = vrot.slane %v7734, 1
        %v7736 = vadd.f32 %v7734, %v7735
        %v7737 = vrot.slane %v7254, 4
        %v7738 = vadd.f32 %v7254, %v7737
        %v7739 = vrot.slane %v7738, 2
        %v7740 = vadd.f32 %v7738, %v7739
        %v7741 = vrot.slane %v7740, 1
        %v7742 = vadd.f32 %v7740, %v7741
        %v7743 = vrot.slane %v7255, 4
        %v7744 = vadd.f32 %v7255, %v7743
        %v7745 = vrot.slane %v7744, 2
        %v7746 = vadd.f32 %v7744, %v7745
        %v7747 = vrot.slane %v7746, 1
        %v7748 = vadd.f32 %v7746, %v7747
        %v7749 = vrot.slane %v7256, 4
        %v7750 = vadd.f32 %v7256, %v7749
        %v7751 = vrot.slane %v7750, 2
        %v7752 = vadd.f32 %v7750, %v7751
        %v7753 = vrot.slane %v7752, 1
        %v7754 = vadd.f32 %v7752, %v7753
        %v7755 = vrot.slane %v7257, 4
        %v7756 = vadd.f32 %v7257, %v7755
        %v7757 = vrot.slane %v7756, 2
        %v7758 = vadd.f32 %v7756, %v7757
        %v7759 = vrot.slane %v7758, 1
        %v7760 = vadd.f32 %v7758, %v7759
        %v7761 = vrot.slane %v7258, 4
        %v7762 = vadd.f32 %v7258, %v7761
        %v7763 = vrot.slane %v7762, 2
        %v7764 = vadd.f32 %v7762, %v7763
        %v7765 = vrot.slane %v7764, 1
        %v7766 = vadd.f32 %v7764, %v7765
        %v7767 = vrot.slane %v7259, 4
        %v7768 = vadd.f32 %v7259, %v7767
        %v7769 = vrot.slane %v7768, 2
        %v7770 = vadd.f32 %v7768, %v7769
        %v7771 = vrot.slane %v7770, 1
        %v7772 = vadd.f32 %v7770, %v7771
        %v7773 = vrot.slane %v7260, 4
        %v7774 = vadd.f32 %v7260, %v7773
        %v7775 = vrot.slane %v7774, 2
        %v7776 = vadd.f32 %v7774, %v7775
        %v7777 = vrot.slane %v7776, 1
        %v7778 = vadd.f32 %v7776, %v7777
        %v7779 = vrot.slane %v7261, 4
        %v7780 = vadd.f32 %v7261, %v7779
        %v7781 = vrot.slane %v7780, 2
        %v7782 = vadd.f32 %v7780, %v7781
        %v7783 = vrot.slane %v7782, 1
        %v7784 = vadd.f32 %v7782, %v7783
        %v7785 = vrot.slane %v7262, 4
        %v7786 = vadd.f32 %v7262, %v7785
        %v7787 = vrot.slane %v7786, 2
        %v7788 = vadd.f32 %v7786, %v7787
        %v7789 = vrot.slane %v7788, 1
        %v7790 = vadd.f32 %v7788, %v7789
        %v7791 = vrot.slane %v7263, 4
        %v7792 = vadd.f32 %v7263, %v7791
        %v7793 = vrot.slane %v7792, 2
        %v7794 = vadd.f32 %v7792, %v7793
        %v7795 = vrot.slane %v7794, 1
        %v7796 = vadd.f32 %v7794, %v7795
        %v7797 = vrot.slane %v7264, 4
        %v7798 = vadd.f32 %v7264, %v7797
        %v7799 = vrot.slane %v7798, 2
        %v7800 = vadd.f32 %v7798, %v7799
        %v7801 = vrot.slane %v7800, 1
        %v7802 = vadd.f32 %v7800, %v7801
        %v7803 = vrot.slane %v7265, 4
        %v7804 = vadd.f32 %v7265, %v7803
        %v7805 = vrot.slane %v7804, 2
        %v7806 = vadd.f32 %v7804, %v7805
        %v7807 = vrot.slane %v7806, 1
        %v7808 = vadd.f32 %v7806, %v7807
        %v7809 = vrot.slane %v7266, 4
        %v7810 = vadd.f32 %v7266, %v7809
        %v7811 = vrot.slane %v7810, 2
        %v7812 = vadd.f32 %v7810, %v7811
        %v7813 = vrot.slane %v7812, 1
        %v7814 = vadd.f32 %v7812, %v7813
        %v7815 = vrot.slane %v7267, 4
        %v7816 = vadd.f32 %v7267, %v7815
        %v7817 = vrot.slane %v7816, 2
        %v7818 = vadd.f32 %v7816, %v7817
        %v7819 = vrot.slane %v7818, 1
        %v7820 = vadd.f32 %v7818, %v7819
        %v7821 = vrot.slane %v7268, 4
        %v7822 = vadd.f32 %v7268, %v7821
        %v7823 = vrot.slane %v7822, 2
        %v7824 = vadd.f32 %v7822, %v7823
        %v7825 = vrot.slane %v7824, 1
        %v7826 = vadd.f32 %v7824, %v7825
        %v7827 = vrot.slane %v7269, 4
        %v7828 = vadd.f32 %v7269, %v7827
        %v7829 = vrot.slane %v7828, 2
        %v7830 = vadd.f32 %v7828, %v7829
        %v7831 = vrot.slane %v7830, 1
        %v7832 = vadd.f32 %v7830, %v7831
        %v7833 = vrot.slane %v7270, 4
        %v7834 = vadd.f32 %v7270, %v7833
        %v7835 = vrot.slane %v7834, 2
        %v7836 = vadd.f32 %v7834, %v7835
        %v7837 = vrot.slane %v7836, 1
        %v7838 = vadd.f32 %v7836, %v7837
        %v7839 = vrot.slane %v7271, 4
        %v7840 = vadd.f32 %v7271, %v7839
        %v7841 = vrot.slane %v7840, 2
        %v7842 = vadd.f32 %v7840, %v7841
        %v7843 = vrot.slane %v7842, 1
        %v7844 = vadd.f32 %v7842, %v7843
        %v7845 = vrot.slane %v7272, 4
        %v7846 = vadd.f32 %v7272, %v7845
        %v7847 = vrot.slane %v7846, 2
        %v7848 = vadd.f32 %v7846, %v7847
        %v7849 = vrot.slane %v7848, 1
        %v7850 = vadd.f32 %v7848, %v7849
        %v7851 = vrot.slane %v7273, 4
        %v7852 = vadd.f32 %v7273, %v7851
        %v7853 = vrot.slane %v7852, 2
        %v7854 = vadd.f32 %v7852, %v7853
        %v7855 = vrot.slane %v7854, 1
        %v7856 = vadd.f32 %v7854, %v7855
        %v7857 = vrot.slane %v7274, 4
        %v7858 = vadd.f32 %v7274, %v7857
        %v7859 = vrot.slane %v7858, 2
        %v7860 = vadd.f32 %v7858, %v7859
        %v7861 = vrot.slane %v7860, 1
        %v7862 = vadd.f32 %v7860, %v7861
        %v7863 = vrot.slane %v7275, 4
        %v7864 = vadd.f32 %v7275, %v7863
        %v7865 = vrot.slane %v7864, 2
        %v7866 = vadd.f32 %v7864, %v7865
        %v7867 = vrot.slane %v7866, 1
        %v7868 = vadd.f32 %v7866, %v7867
        %v7869 = vrot.slane %v7276, 4
        %v7870 = vadd.f32 %v7276, %v7869
        %v7871 = vrot.slane %v7870, 2
        %v7872 = vadd.f32 %v7870, %v7871
        %v7873 = vrot.slane %v7872, 1
        %v7874 = vadd.f32 %v7872, %v7873
        %v7875 = vrot.slane %v7277, 4
        %v7876 = vadd.f32 %v7277, %v7875
        %v7877 = vrot.slane %v7876, 2
        %v7878 = vadd.f32 %v7876, %v7877
        %v7879 = vrot.slane %v7878, 1
        %v7880 = vadd.f32 %v7878, %v7879
        %v7881 = vrot.slane %v7278, 4
        %v7882 = vadd.f32 %v7278, %v7881
        %v7883 = vrot.slane %v7882, 2
        %v7884 = vadd.f32 %v7882, %v7883
        %v7885 = vrot.slane %v7884, 1
        %v7886 = vadd.f32 %v7884, %v7885
        %v7887 = vrot.slane %v7279, 4
        %v7888 = vadd.f32 %v7279, %v7887
        %v7889 = vrot.slane %v7888, 2
        %v7890 = vadd.f32 %v7888, %v7889
        %v7891 = vrot.slane %v7890, 1
        %v7892 = vadd.f32 %v7890, %v7891
        %v7893 = vrot.slane %v7280, 4
        %v7894 = vadd.f32 %v7280, %v7893
        %v7895 = vrot.slane %v7894, 2
        %v7896 = vadd.f32 %v7894, %v7895
        %v7897 = vrot.slane %v7896, 1
        %v7898 = vadd.f32 %v7896, %v7897
        %v7899 = vrot.slane %v7281, 4
        %v7900 = vadd.f32 %v7281, %v7899
        %v7901 = vrot.slane %v7900, 2
        %v7902 = vadd.f32 %v7900, %v7901
        %v7903 = vrot.slane %v7902, 1
        %v7904 = vadd.f32 %v7902, %v7903
        %v7905 = vrot.slane %v7282, 4
        %v7906 = vadd.f32 %v7282, %v7905
        %v7907 = vrot.slane %v7906, 2
        %v7908 = vadd.f32 %v7906, %v7907
        %v7909 = vrot.slane %v7908, 1
        %v7910 = vadd.f32 %v7908, %v7909
        %v7911 = vrot.slane %v7283, 4
        %v7912 = vadd.f32 %v7283, %v7911
        %v7913 = vrot.slane %v7912, 2
        %v7914 = vadd.f32 %v7912, %v7913
        %v7915 = vrot.slane %v7914, 1
        %v7916 = vadd.f32 %v7914, %v7915
        %v7917 = vrot.slane %v7284, 4
        %v7918 = vadd.f32 %v7284, %v7917
        %v7919 = vrot.slane %v7918, 2
        %v7920 = vadd.f32 %v7918, %v7919
        %v7921 = vrot.slane %v7920, 1
        %v7922 = vadd.f32 %v7920, %v7921
        %v7923 = vrot.slane %v7285, 4
        %v7924 = vadd.f32 %v7285, %v7923
        %v7925 = vrot.slane %v7924, 2
        %v7926 = vadd.f32 %v7924, %v7925
        %v7927 = vrot.slane %v7926, 1
        %v7928 = vadd.f32 %v7926, %v7927
        %v7929 = vrot.slane %v7286, 4
        %v7930 = vadd.f32 %v7286, %v7929
        %v7931 = vrot.slane %v7930, 2
        %v7932 = vadd.f32 %v7930, %v7931
        %v7933 = vrot.slane %v7932, 1
        %v7934 = vadd.f32 %v7932, %v7933
        %v7935 = vrot.slane %v7287, 4
        %v7936 = vadd.f32 %v7287, %v7935
        %v7937 = vrot.slane %v7936, 2
        %v7938 = vadd.f32 %v7936, %v7937
        %v7939 = vrot.slane %v7938, 1
        %v7940 = vadd.f32 %v7938, %v7939
        %v7941 = vrot.slane %v7288, 4
        %v7942 = vadd.f32 %v7288, %v7941
        %v7943 = vrot.slane %v7942, 2
        %v7944 = vadd.f32 %v7942, %v7943
        %v7945 = vrot.slane %v7944, 1
        %v7946 = vadd.f32 %v7944, %v7945
        %v7947 = vrot.slane %v7289, 4
        %v7948 = vadd.f32 %v7289, %v7947
        %v7949 = vrot.slane %v7948, 2
        %v7950 = vadd.f32 %v7948, %v7949
        %v7951 = vrot.slane %v7950, 1
        %v7952 = vadd.f32 %v7950, %v7951
        %v7953 = vrot.slane %v7290, 4
        %v7954 = vadd.f32 %v7290, %v7953
        %v7955 = vrot.slane %v7954, 2
        %v7956 = vadd.f32 %v7954, %v7955
        %v7957 = vrot.slane %v7956, 1
        %v7958 = vadd.f32 %v7956, %v7957
        %v7959 = vrot.slane %v7291, 4
        %v7960 = vadd.f32 %v7291, %v7959
        %v7961 = vrot.slane %v7960, 2
        %v7962 = vadd.f32 %v7960, %v7961
        %v7963 = vrot.slane %v7962, 1
        %v7964 = vadd.f32 %v7962, %v7963
        %v7965 = vrot.slane %v7292, 4
        %v7966 = vadd.f32 %v7292, %v7965
        %v7967 = vrot.slane %v7966, 2
        %v7968 = vadd.f32 %v7966, %v7967
        %v7969 = vrot.slane %v7968, 1
        %v7970 = vadd.f32 %v7968, %v7969
        %v7971 = vrot.slane %v7293, 4
        %v7972 = vadd.f32 %v7293, %v7971
        %v7973 = vrot.slane %v7972, 2
        %v7974 = vadd.f32 %v7972, %v7973
        %v7975 = vrot.slane %v7974, 1
        %v7976 = vadd.f32 %v7974, %v7975
        %v7977 = vrot.slane %v7294, 4
        %v7978 = vadd.f32 %v7294, %v7977
        %v7979 = vrot.slane %v7978, 2
        %v7980 = vadd.f32 %v7978, %v7979
        %v7981 = vrot.slane %v7980, 1
        %v7982 = vadd.f32 %v7980, %v7981
        %v7983 = vrot.slane %v7295, 4
        %v7984 = vadd.f32 %v7295, %v7983
        %v7985 = vrot.slane %v7984, 2
        %v7986 = vadd.f32 %v7984, %v7985
        %v7987 = vrot.slane %v7986, 1
        %v7988 = vadd.f32 %v7986, %v7987
        %v7989 = vrot.slane %v7296, 4
        %v7990 = vadd.f32 %v7296, %v7989
        %v7991 = vrot.slane %v7990, 2
        %v7992 = vadd.f32 %v7990, %v7991
        %v7993 = vrot.slane %v7992, 1
        %v7994 = vadd.f32 %v7992, %v7993
        %v7995 = vrot.slane %v7297, 4
        %v7996 = vadd.f32 %v7297, %v7995
        %v7997 = vrot.slane %v7996, 2
        %v7998 = vadd.f32 %v7996, %v7997
        %v7999 = vrot.slane %v7998, 1
        %v8000 = vadd.f32 %v7998, %v7999
        %v8001 = vrot.slane %v7298, 4
        %v8002 = vadd.f32 %v7298, %v8001
        %v8003 = vrot.slane %v8002, 2
        %v8004 = vadd.f32 %v8002, %v8003
        %v8005 = vrot.slane %v8004, 1
        %v8006 = vadd.f32 %v8004, %v8005
        %v8007 = vrot.slane %v7299, 4
        %v8008 = vadd.f32 %v7299, %v8007
        %v8009 = vrot.slane %v8008, 2
        %v8010 = vadd.f32 %v8008, %v8009
        %v8011 = vrot.slane %v8010, 1
        %v8012 = vadd.f32 %v8010, %v8011
        %v8013 = vrot.slane %v7300, 4
        %v8014 = vadd.f32 %v7300, %v8013
        %v8015 = vrot.slane %v8014, 2
        %v8016 = vadd.f32 %v8014, %v8015
        %v8017 = vrot.slane %v8016, 1
        %v8018 = vadd.f32 %v8016, %v8017
        %v8019 = vrot.slane %v7301, 4
        %v8020 = vadd.f32 %v7301, %v8019
        %v8021 = vrot.slane %v8020, 2
        %v8022 = vadd.f32 %v8020, %v8021
        %v8023 = vrot.slane %v8022, 1
        %v8024 = vadd.f32 %v8022, %v8023
        %v8025 = vrot.slane %v7302, 4
        %v8026 = vadd.f32 %v7302, %v8025
        %v8027 = vrot.slane %v8026, 2
        %v8028 = vadd.f32 %v8026, %v8027
        %v8029 = vrot.slane %v8028, 1
        %v8030 = vadd.f32 %v8028, %v8029
        %v8031 = vrot.slane %v7303, 4
        %v8032 = vadd.f32 %v7303, %v8031
        %v8033 = vrot.slane %v8032, 2
        %v8034 = vadd.f32 %v8032, %v8033
        %v8035 = vrot.slane %v8034, 1
        %v8036 = vadd.f32 %v8034, %v8035
        %v8037 = vrot.slane %v7304, 4
        %v8038 = vadd.f32 %v7304, %v8037
        %v8039 = vrot.slane %v8038, 2
        %v8040 = vadd.f32 %v8038, %v8039
        %v8041 = vrot.slane %v8040, 1
        %v8042 = vadd.f32 %v8040, %v8041
        %v8043 = vrot.slane %v7305, 4
        %v8044 = vadd.f32 %v7305, %v8043
        %v8045 = vrot.slane %v8044, 2
        %v8046 = vadd.f32 %v8044, %v8045
        %v8047 = vrot.slane %v8046, 1
        %v8048 = vadd.f32 %v8046, %v8047
        %v8049 = vrot.slane %v7306, 4
        %v8050 = vadd.f32 %v7306, %v8049
        %v8051 = vrot.slane %v8050, 2
        %v8052 = vadd.f32 %v8050, %v8051
        %v8053 = vrot.slane %v8052, 1
        %v8054 = vadd.f32 %v8052, %v8053
        %v8055 = vrot.slane %v7307, 4
        %v8056 = vadd.f32 %v7307, %v8055
        %v8057 = vrot.slane %v8056, 2
        %v8058 = vadd.f32 %v8056, %v8057
        %v8059 = vrot.slane %v8058, 1
        %v8060 = vadd.f32 %v8058, %v8059
        %v8061 = vrot.slane %v7308, 4
        %v8062 = vadd.f32 %v7308, %v8061
        %v8063 = vrot.slane %v8062, 2
        %v8064 = vadd.f32 %v8062, %v8063
        %v8065 = vrot.slane %v8064, 1
        %v8066 = vadd.f32 %v8064, %v8065
        %v8067 = vrot.slane %v7309, 4
        %v8068 = vadd.f32 %v7309, %v8067
        %v8069 = vrot.slane %v8068, 2
        %v8070 = vadd.f32 %v8068, %v8069
        %v8071 = vrot.slane %v8070, 1
        %v8072 = vadd.f32 %v8070, %v8071
        %v8073 = vrot.slane %v7310, 4
        %v8074 = vadd.f32 %v7310, %v8073
        %v8075 = vrot.slane %v8074, 2
        %v8076 = vadd.f32 %v8074, %v8075
        %v8077 = vrot.slane %v8076, 1
        %v8078 = vadd.f32 %v8076, %v8077
        %v8079 = vrot.slane %v773, 1
        %v8080 = vrot.slane %v773, 2
        %v8081 = vrot.slane %v773, 3
        %v8082 = vrot.slane %v773, 4
        %v8083 = vrot.slane %v773, 5
        %v8084 = vrot.slane %v773, 6
        %v8085 = vrot.slane %v773, 7
        %v8086 = vrot.slane %v774, 1
        %v8087 = vrot.slane %v774, 2
        %v8088 = vrot.slane %v774, 3
        %v8089 = vrot.slane %v774, 4
        %v8090 = vrot.slane %v774, 5
        %v8091 = vrot.slane %v774, 6
        %v8092 = vrot.slane %v774, 7
        %v8093 = vrot.slane %v775, 1
        %v8094 = vrot.slane %v775, 2
        %v8095 = vrot.slane %v775, 3
        %v8096 = vrot.slane %v775, 4
        %v8097 = vrot.slane %v775, 5
        %v8098 = vrot.slane %v775, 6
        %v8099 = vrot.slane %v775, 7
        %v8100 = vrot.slane %v776, 1
        %v8101 = vrot.slane %v776, 2
        %v8102 = vrot.slane %v776, 3
        %v8103 = vrot.slane %v776, 4
        %v8104 = vrot.slane %v776, 5
        %v8105 = vrot.slane %v776, 6
        %v8106 = vrot.slane %v776, 7
        %v8107 = vrot.slane %v777, 1
        %v8108 = vrot.slane %v777, 2
        %v8109 = vrot.slane %v777, 3
        %v8110 = vrot.slane %v777, 4
        %v8111 = vrot.slane %v777, 5
        %v8112 = vrot.slane %v777, 6
        %v8113 = vrot.slane %v777, 7
        %v8114 = vrot.slane %v778, 1
        %v8115 = vrot.slane %v778, 2
        %v8116 = vrot.slane %v778, 3
        %v8117 = vrot.slane %v778, 4
        %v8118 = vrot.slane %v778, 5
        %v8119 = vrot.slane %v778, 6
        %v8120 = vrot.slane %v778, 7
        %v8121 = vrot.slane %v779, 1
        %v8122 = vrot.slane %v779, 2
        %v8123 = vrot.slane %v779, 3
        %v8124 = vrot.slane %v779, 4
        %v8125 = vrot.slane %v779, 5
        %v8126 = vrot.slane %v779, 6
        %v8127 = vrot.slane %v779, 7
        %v8128 = vrot.slane %v780, 1
        %v8129 = vrot.slane %v780, 2
        %v8130 = vrot.slane %v780, 3
        %v8131 = vrot.slane %v780, 4
        %v8132 = vrot.slane %v780, 5
        %v8133 = vrot.slane %v780, 6
        %v8134 = vrot.slane %v780, 7
        %v8135 = vrot.slane %v781, 1
        %v8136 = vrot.slane %v781, 2
        %v8137 = vrot.slane %v781, 3
        %v8138 = vrot.slane %v781, 4
        %v8139 = vrot.slane %v781, 5
        %v8140 = vrot.slane %v781, 6
        %v8141 = vrot.slane %v781, 7
        %v8142 = vrot.slane %v782, 1
        %v8143 = vrot.slane %v782, 2
        %v8144 = vrot.slane %v782, 3
        %v8145 = vrot.slane %v782, 4
        %v8146 = vrot.slane %v782, 5
        %v8147 = vrot.slane %v782, 6
        %v8148 = vrot.slane %v782, 7
        %v8149 = vrot.slane %v783, 1
        %v8150 = vrot.slane %v783, 2
        %v8151 = vrot.slane %v783, 3
        %v8152 = vrot.slane %v783, 4
        %v8153 = vrot.slane %v783, 5
        %v8154 = vrot.slane %v783, 6
        %v8155 = vrot.slane %v783, 7
        %v8156 = vrot.slane %v784, 1
        %v8157 = vrot.slane %v784, 2
        %v8158 = vrot.slane %v784, 3
        %v8159 = vrot.slane %v784, 4
        %v8160 = vrot.slane %v784, 5
        %v8161 = vrot.slane %v784, 6
        %v8162 = vrot.slane %v784, 7
        %v8163 = vrot.slane %v785, 1
        %v8164 = vrot.slane %v785, 2
        %v8165 = vrot.slane %v785, 3
        %v8166 = vrot.slane %v785, 4
        %v8167 = vrot.slane %v785, 5
        %v8168 = vrot.slane %v785, 6
        %v8169 = vrot.slane %v785, 7
        %v8170 = vrot.slane %v786, 1
        %v8171 = vrot.slane %v786, 2
        %v8172 = vrot.slane %v786, 3
        %v8173 = vrot.slane %v786, 4
        %v8174 = vrot.slane %v786, 5
        %v8175 = vrot.slane %v786, 6
        %v8176 = vrot.slane %v786, 7
        %v8177 = vrot.slane %v787, 1
        %v8178 = vrot.slane %v787, 2
        %v8179 = vrot.slane %v787, 3
        %v8180 = vrot.slane %v787, 4
        %v8181 = vrot.slane %v787, 5
        %v8182 = vrot.slane %v787, 6
        %v8183 = vrot.slane %v787, 7
        %v8184 = vrot.slane %v788, 1
        %v8185 = vrot.slane %v788, 2
        %v8186 = vrot.slane %v788, 3
        %v8187 = vrot.slane %v788, 4
        %v8188 = vrot.slane %v788, 5
        %v8189 = vrot.slane %v788, 6
        %v8190 = vrot.slane %v788, 7
        %v8319 = vmul.f32 %v7316, %v773
        %v8320 = vmul.f32 %v7322, %v8079
        %v8321 = vmul.f32 %v7328, %v8080
        %v8322 = vmul.f32 %v7334, %v8081
        %v8323 = vmul.f32 %v7340, %v8082
        %v8324 = vmul.f32 %v7346, %v8083
        %v8325 = vmul.f32 %v7352, %v8084
        %v8326 = vmul.f32 %v7358, %v8085
        %v8327 = vmul.f32 %v7364, %v774
        %v8328 = vmul.f32 %v7370, %v8086
        %v8329 = vmul.f32 %v7376, %v8087
        %v8330 = vmul.f32 %v7382, %v8088
        %v8331 = vmul.f32 %v7388, %v8089
        %v8332 = vmul.f32 %v7394, %v8090
        %v8333 = vmul.f32 %v7400, %v8091
        %v8334 = vmul.f32 %v7406, %v8092
        %v8335 = vmul.f32 %v7412, %v775
        %v8336 = vmul.f32 %v7418, %v8093
        %v8337 = vmul.f32 %v7424, %v8094
        %v8338 = vmul.f32 %v7430, %v8095
        %v8339 = vmul.f32 %v7436, %v8096
        %v8340 = vmul.f32 %v7442, %v8097
        %v8341 = vmul.f32 %v7448, %v8098
        %v8342 = vmul.f32 %v7454, %v8099
        %v8343 = vmul.f32 %v7460, %v776
        %v8344 = vmul.f32 %v7466, %v8100
        %v8345 = vmul.f32 %v7472, %v8101
        %v8346 = vmul.f32 %v7478, %v8102
        %v8347 = vmul.f32 %v7484, %v8103
        %v8348 = vmul.f32 %v7490, %v8104
        %v8349 = vmul.f32 %v7496, %v8105
        %v8350 = vmul.f32 %v7502, %v8106
        %v8351 = vmul.f32 %v7508, %v777
        %v8352 = vmul.f32 %v7514, %v8107
        %v8353 = vmul.f32 %v7520, %v8108
        %v8354 = vmul.f32 %v7526, %v8109
        %v8355 = vmul.f32 %v7532, %v8110
        %v8356 = vmul.f32 %v7538, %v8111
        %v8357 = vmul.f32 %v7544, %v8112
        %v8358 = vmul.f32 %v7550, %v8113
        %v8359 = vmul.f32 %v7556, %v778
        %v8360 = vmul.f32 %v7562, %v8114
        %v8361 = vmul.f32 %v7568, %v8115
        %v8362 = vmul.f32 %v7574, %v8116
        %v8363 = vmul.f32 %v7580, %v8117
        %v8364 = vmul.f32 %v7586, %v8118
        %v8365 = vmul.f32 %v7592, %v8119
        %v8366 = vmul.f32 %v7598, %v8120
        %v8367 = vmul.f32 %v7604, %v779
        %v8368 = vmul.f32 %v7610, %v8121
        %v8369 = vmul.f32 %v7616, %v8122
        %v8370 = vmul.f32 %v7622, %v8123
        %v8371 = vmul.f32 %v7628, %v8124
        %v8372 = vmul.f32 %v7634, %v8125
        %v8373 = vmul.f32 %v7640, %v8126
        %v8374 = vmul.f32 %v7646, %v8127
        %v8375 = vmul.f32 %v7652, %v780
        %v8376 = vmul.f32 %v7658, %v8128
        %v8377 = vmul.f32 %v7664, %v8129
        %v8378 = vmul.f32 %v7670, %v8130
        %v8379 = vmul.f32 %v7676, %v8131
        %v8380 = vmul.f32 %v7682, %v8132
        %v8381 = vmul.f32 %v7688, %v8133
        %v8382 = vmul.f32 %v7694, %v8134
        %v8383 = vmul.f32 %v7700, %v781
        %v8384 = vmul.f32 %v7706, %v8135
        %v8385 = vmul.f32 %v7712, %v8136
        %v8386 = vmul.f32 %v7718, %v8137
        %v8387 = vmul.f32 %v7724, %v8138
        %v8388 = vmul.f32 %v7730, %v8139
        %v8389 = vmul.f32 %v7736, %v8140
        %v8390 = vmul.f32 %v7742, %v8141
        %v8391 = vmul.f32 %v7748, %v782
        %v8392 = vmul.f32 %v7754, %v8142
        %v8393 = vmul.f32 %v7760, %v8143
        %v8394 = vmul.f32 %v7766, %v8144
        %v8395 = vmul.f32 %v7772, %v8145
        %v8396 = vmul.f32 %v7778, %v8146
        %v8397 = vmul.f32 %v7784, %v8147
        %v8398 = vmul.f32 %v7790, %v8148
        %v8399 = vmul.f32 %v7796, %v783
        %v8400 = vmul.f32 %v7802, %v8149
        %v8401 = vmul.f32 %v7808, %v8150
        %v8402 = vmul.f32 %v7814, %v8151
        %v8403 = vmul.f32 %v7820, %v8152
        %v8404 = vmul.f32 %v7826, %v8153
        %v8405 = vmul.f32 %v7832, %v8154
        %v8406 = vmul.f32 %v7838, %v8155
        %v8407 = vmul.f32 %v7844, %v784
        %v8408 = vmul.f32 %v7850, %v8156
        %v8409 = vmul.f32 %v7856, %v8157
        %v8410 = vmul.f32 %v7862, %v8158
        %v8411 = vmul.f32 %v7868, %v8159
        %v8412 = vmul.f32 %v7874, %v8160
        %v8413 = vmul.f32 %v7880, %v8161
        %v8414 = vmul.f32 %v7886, %v8162
        %v8415 = vmul.f32 %v7892, %v785
        %v8416 = vmul.f32 %v7898, %v8163
        %v8417 = vmul.f32 %v7904, %v8164
        %v8418 = vmul.f32 %v7910, %v8165
        %v8419 = vmul.f32 %v7916, %v8166
        %v8420 = vmul.f32 %v7922, %v8167
        %v8421 = vmul.f32 %v7928, %v8168
        %v8422 = vmul.f32 %v7934, %v8169
        %v8423 = vmul.f32 %v7940, %v786
        %v8424 = vmul.f32 %v7946, %v8170
        %v8425 = vmul.f32 %v7952, %v8171
        %v8426 = vmul.f32 %v7958, %v8172
        %v8427 = vmul.f32 %v7964, %v8173
        %v8428 = vmul.f32 %v7970, %v8174
        %v8429 = vmul.f32 %v7976, %v8175
        %v8430 = vmul.f32 %v7982, %v8176
        %v8431 = vmul.f32 %v7988, %v787
        %v8432 = vmul.f32 %v7994, %v8177
        %v8433 = vmul.f32 %v8000, %v8178
        %v8434 = vmul.f32 %v8006, %v8179
        %v8435 = vmul.f32 %v8012, %v8180
        %v8436 = vmul.f32 %v8018, %v8181
        %v8437 = vmul.f32 %v8024, %v8182
        %v8438 = vmul.f32 %v8030, %v8183
        %v8439 = vmul.f32 %v8036, %v788
        %v8440 = vmul.f32 %v8042, %v8184
        %v8441 = vmul.f32 %v8048, %v8185
        %v8442 = vmul.f32 %v8054, %v8186
        %v8443 = vmul.f32 %v8060, %v8187
        %v8444 = vmul.f32 %v8066, %v8188
        %v8445 = vmul.f32 %v8072, %v8189
        %v8446 = vmul.f32 %v8078, %v8190
        %v8447 = vld [vmem:[%s4] sm:$0xff]
        %v8448 = vld [vmem:[%s4 + $0x8] sm:$0xff]
        %v8449 = vld [vmem:[%s4 + $0x10] sm:$0xff]
        %v8450 = vld [vmem:[%s4 + $0x18] sm:$0xff]
        %v8451 = vld [vmem:[%s4 + $0x20] sm:$0xff]
        %v8452 = vld [vmem:[%s4 + $0x28] sm:$0xff]
        %v8453 = vld [vmem:[%s4 + $0x30] sm:$0xff]
        %v8454 = vld [vmem:[%s4 + $0x38] sm:$0xff]
        %v8455 = vld [vmem:[%s4 + $0x40] sm:$0xff]
        %v8456 = vld [vmem:[%s4 + $0x48] sm:$0xff]
        %v8457 = vld [vmem:[%s4 + $0x50] sm:$0xff]
        %v8458 = vld [vmem:[%s4 + $0x58] sm:$0xff]
        %v8459 = vld [vmem:[%s4 + $0x60] sm:$0xff]
        %v8460 = vld [vmem:[%s4 + $0x68] sm:$0xff]
        %v8461 = vld [vmem:[%s4 + $0x70] sm:$0xff]
        %v8462 = vld [vmem:[%s4 + $0x78] sm:$0xff]
        %v8463 = vld [vmem:[%s5] sm:$0x1]
        %v8465 = vlaneseq
        %v8466 = vshrl.u32 %v8465, 7
        %v8467 = vsub.s32 0, %v8466
        %v8468 = vrot.slane %v8463, %v8467
        %v8598 = vrot.slane %v8320, 7
        %v8599 = vsel %vm5495, %v8598, %v8319
        %v8600 = vrot.slane %v8321, 6
        %v8601 = vsel %vm5497, %v8600, %v8599
        %v8602 = vrot.slane %v8322, 5
        %v8603 = vsel %vm5499, %v8602, %v8601
        %v8604 = vrot.slane %v8323, 4
        %v8605 = vsel %vm5501, %v8604, %v8603
        %v8606 = vrot.slane %v8324, 3
        %v8607 = vsel %vm5503, %v8606, %v8605
        %v8608 = vrot.slane %v8325, 2
        %v8609 = vsel %vm5505, %v8608, %v8607
        %v8610 = vrot.slane %v8326, 1
        %v8611 = vsel %vm5507, %v8610, %v8609
        %v8612 = vrot.slane %v8328, 7
        %v8613 = vsel %vm5495, %v8612, %v8327
        %v8614 = vrot.slane %v8329, 6
        %v8615 = vsel %vm5497, %v8614, %v8613
        %v8616 = vrot.slane %v8330, 5
        %v8617 = vsel %vm5499, %v8616, %v8615
        %v8618 = vrot.slane %v8331, 4
        %v8619 = vsel %vm5501, %v8618, %v8617
        %v8620 = vrot.slane %v8332, 3
        %v8621 = vsel %vm5503, %v8620, %v8619
        %v8622 = vrot.slane %v8333, 2
        %v8623 = vsel %vm5505, %v8622, %v8621
        %v8624 = vrot.slane %v8334, 1
        %v8625 = vsel %vm5507, %v8624, %v8623
        %v8626 = vrot.slane %v8336, 7
        %v8627 = vsel %vm5495, %v8626, %v8335
        %v8628 = vrot.slane %v8337, 6
        %v8629 = vsel %vm5497, %v8628, %v8627
        %v8630 = vrot.slane %v8338, 5
        %v8631 = vsel %vm5499, %v8630, %v8629
        %v8632 = vrot.slane %v8339, 4
        %v8633 = vsel %vm5501, %v8632, %v8631
        %v8634 = vrot.slane %v8340, 3
        %v8635 = vsel %vm5503, %v8634, %v8633
        %v8636 = vrot.slane %v8341, 2
        %v8637 = vsel %vm5505, %v8636, %v8635
        %v8638 = vrot.slane %v8342, 1
        %v8639 = vsel %vm5507, %v8638, %v8637
        %v8640 = vrot.slane %v8344, 7
        %v8641 = vsel %vm5495, %v8640, %v8343
        %v8642 = vrot.slane %v8345, 6
        %v8643 = vsel %vm5497, %v8642, %v8641
        %v8644 = vrot.slane %v8346, 5
        %v8645 = vsel %vm5499, %v8644, %v8643
        %v8646 = vrot.slane %v8347, 4
        %v8647 = vsel %vm5501, %v8646, %v8645
        %v8648 = vrot.slane %v8348, 3
        %v8649 = vsel %vm5503, %v8648, %v8647
        %v8650 = vrot.slane %v8349, 2
        %v8651 = vsel %vm5505, %v8650, %v8649
        %v8652 = vrot.slane %v8350, 1
        %v8653 = vsel %vm5507, %v8652, %v8651
        %v8654 = vrot.slane %v8352, 7
        %v8655 = vsel %vm5495, %v8654, %v8351
        %v8656 = vrot.slane %v8353, 6
        %v8657 = vsel %vm5497, %v8656, %v8655
        %v8658 = vrot.slane %v8354, 5
        %v8659 = vsel %vm5499, %v8658, %v8657
        %v8660 = vrot.slane %v8355, 4
        %v8661 = vsel %vm5501, %v8660, %v8659
        %v8662 = vrot.slane %v8356, 3
        %v8663 = vsel %vm5503, %v8662, %v8661
        %v8664 = vrot.slane %v8357, 2
        %v8665 = vsel %vm5505, %v8664, %v8663
        %v8666 = vrot.slane %v8358, 1
        %v8667 = vsel %vm5507, %v8666, %v8665
        %v8668 = vrot.slane %v8360, 7
        %v8669 = vsel %vm5495, %v8668, %v8359
        %v8670 = vrot.slane %v8361, 6
        %v8671 = vsel %vm5497, %v8670, %v8669
        %v8672 = vrot.slane %v8362, 5
        %v8673 = vsel %vm5499, %v8672, %v8671
        %v8674 = vrot.slane %v8363, 4
        %v8675 = vsel %vm5501, %v8674, %v8673
        %v8676 = vrot.slane %v8364, 3
        %v8677 = vsel %vm5503, %v8676, %v8675
        %v8678 = vrot.slane %v8365, 2
        %v8679 = vsel %vm5505, %v8678, %v8677
        %v8680 = vrot.slane %v8366, 1
        %v8681 = vsel %vm5507, %v8680, %v8679
        %v8682 = vrot.slane %v8368, 7
        %v8683 = vsel %vm5495, %v8682, %v8367
        %v8684 = vrot.slane %v8369, 6
        %v8685 = vsel %vm5497, %v8684, %v8683
        %v8686 = vrot.slane %v8370, 5
        %v8687 = vsel %vm5499, %v8686, %v8685
        %v8688 = vrot.slane %v8371, 4
        %v8689 = vsel %vm5501, %v8688, %v8687
        %v8690 = vrot.slane %v8372, 3
        %v8691 = vsel %vm5503, %v8690, %v8689
        %v8692 = vrot.slane %v8373, 2
        %v8693 = vsel %vm5505, %v8692, %v8691
        %v8694 = vrot.slane %v8374, 1
        %v8695 = vsel %vm5507, %v8694, %v8693
        %v8696 = vrot.slane %v8376, 7
        %v8697 = vsel %vm5495, %v8696, %v8375
        %v8698 = vrot.slane %v8377, 6
        %v8699 = vsel %vm5497, %v8698, %v8697
        %v8700 = vrot.slane %v8378, 5
        %v8701 = vsel %vm5499, %v8700, %v8699
        %v8702 = vrot.slane %v8379, 4
        %v8703 = vsel %vm5501, %v8702, %v8701
        %v8704 = vrot.slane %v8380, 3
        %v8705 = vsel %vm5503, %v8704, %v8703
        %v8706 = vrot.slane %v8381, 2
        %v8707 = vsel %vm5505, %v8706, %v8705
        %v8708 = vrot.slane %v8382, 1
        %v8709 = vsel %vm5507, %v8708, %v8707
        %v8710 = vrot.slane %v8384, 7
        %v8711 = vsel %vm5495, %v8710, %v8383
        %v8712 = vrot.slane %v8385, 6
        %v8713 = vsel %vm5497, %v8712, %v8711
        %v8714 = vrot.slane %v8386, 5
        %v8715 = vsel %vm5499, %v8714, %v8713
        %v8716 = vrot.slane %v8387, 4
        %v8717 = vsel %vm5501, %v8716, %v8715
        %v8718 = vrot.slane %v8388, 3
        %v8719 = vsel %vm5503, %v8718, %v8717
        %v8720 = vrot.slane %v8389, 2
        %v8721 = vsel %vm5505, %v8720, %v8719
        %v8722 = vrot.slane %v8390, 1
        %v8723 = vsel %vm5507, %v8722, %v8721
        %v8724 = vrot.slane %v8392, 7
        %v8725 = vsel %vm5495, %v8724, %v8391
        %v8726 = vrot.slane %v8393, 6
        %v8727 = vsel %vm5497, %v8726, %v8725
        %v8728 = vrot.slane %v8394, 5
        %v8729 = vsel %vm5499, %v8728, %v8727
        %v8730 = vrot.slane %v8395, 4
        %v8731 = vsel %vm5501, %v8730, %v8729
        %v8732 = vrot.slane %v8396, 3
        %v8733 = vsel %vm5503, %v8732, %v8731
        %v8734 = vrot.slane %v8397, 2
        %v8735 = vsel %vm5505, %v8734, %v8733
        %v8736 = vrot.slane %v8398, 1
        %v8737 = vsel %vm5507, %v8736, %v8735
        %v8738 = vrot.slane %v8400, 7
        %v8739 = vsel %vm5495, %v8738, %v8399
        %v8740 = vrot.slane %v8401, 6
        %v8741 = vsel %vm5497, %v8740, %v8739
        %v8742 = vrot.slane %v8402, 5
        %v8743 = vsel %vm5499, %v8742, %v8741
        %v8744 = vrot.slane %v8403, 4
        %v8745 = vsel %vm5501, %v8744, %v8743
        %v8746 = vrot.slane %v8404, 3
        %v8747 = vsel %vm5503, %v8746, %v8745
        %v8748 = vrot.slane %v8405, 2
        %v8749 = vsel %vm5505, %v8748, %v8747
        %v8750 = vrot.slane %v8406, 1
        %v8751 = vsel %vm5507, %v8750, %v8749
        %v8752 = vrot.slane %v8408, 7
        %v8753 = vsel %vm5495, %v8752, %v8407
        %v8754 = vrot.slane %v8409, 6
        %v8755 = vsel %vm5497, %v8754, %v8753
        %v8756 = vrot.slane %v8410, 5
        %v8757 = vsel %vm5499, %v8756, %v8755
        %v8758 = vrot.slane %v8411, 4
        %v8759 = vsel %vm5501, %v8758, %v8757
        %v8760 = vrot.slane %v8412, 3
        %v8761 = vsel %vm5503, %v8760, %v8759
        %v8762 = vrot.slane %v8413, 2
        %v8763 = vsel %vm5505, %v8762, %v8761
        %v8764 = vrot.slane %v8414, 1
        %v8765 = vsel %vm5507, %v8764, %v8763
        %v8766 = vrot.slane %v8416, 7
        %v8767 = vsel %vm5495, %v8766, %v8415
        %v8768 = vrot.slane %v8417, 6
        %v8769 = vsel %vm5497, %v8768, %v8767
        %v8770 = vrot.slane %v8418, 5
        %v8771 = vsel %vm5499, %v8770, %v8769
        %v8772 = vrot.slane %v8419, 4
        %v8773 = vsel %vm5501, %v8772, %v8771
        %v8774 = vrot.slane %v8420, 3
        %v8775 = vsel %vm5503, %v8774, %v8773
        %v8776 = vrot.slane %v8421, 2
        %v8777 = vsel %vm5505, %v8776, %v8775
        %v8778 = vrot.slane %v8422, 1
        %v8779 = vsel %vm5507, %v8778, %v8777
        %v8780 = vrot.slane %v8424, 7
        %v8781 = vsel %vm5495, %v8780, %v8423
        %v8782 = vrot.slane %v8425, 6
        %v8783 = vsel %vm5497, %v8782, %v8781
        %v8784 = vrot.slane %v8426, 5
        %v8785 = vsel %vm5499, %v8784, %v8783
        %v8786 = vrot.slane %v8427, 4
        %v8787 = vsel %vm5501, %v8786, %v8785
        %v8788 = vrot.slane %v8428, 3
        %v8789 = vsel %vm5503, %v8788, %v8787
        %v8790 = vrot.slane %v8429, 2
        %v8791 = vsel %vm5505, %v8790, %v8789
        %v8792 = vrot.slane %v8430, 1
        %v8793 = vsel %vm5507, %v8792, %v8791
        %v8794 = vrot.slane %v8432, 7
        %v8795 = vsel %vm5495, %v8794, %v8431
        %v8796 = vrot.slane %v8433, 6
        %v8797 = vsel %vm5497, %v8796, %v8795
        %v8798 = vrot.slane %v8434, 5
        %v8799 = vsel %vm5499, %v8798, %v8797
        %v8800 = vrot.slane %v8435, 4
        %v8801 = vsel %vm5501, %v8800, %v8799
        %v8802 = vrot.slane %v8436, 3
        %v8803 = vsel %vm5503, %v8802, %v8801
        %v8804 = vrot.slane %v8437, 2
        %v8805 = vsel %vm5505, %v8804, %v8803
        %v8806 = vrot.slane %v8438, 1
        %v8807 = vsel %vm5507, %v8806, %v8805
        %v8808 = vrot.slane %v8440, 7
        %v8809 = vsel %vm5495, %v8808, %v8439
        %v8810 = vrot.slane %v8441, 6
        %v8811 = vsel %vm5497, %v8810, %v8809
        %v8812 = vrot.slane %v8442, 5
        %v8813 = vsel %vm5499, %v8812, %v8811
        %v8814 = vrot.slane %v8443, 4
        %v8815 = vsel %vm5501, %v8814, %v8813
        %v8816 = vrot.slane %v8444, 3
        %v8817 = vsel %vm5503, %v8816, %v8815
        %v8818 = vrot.slane %v8445, 2
        %v8819 = vsel %vm5505, %v8818, %v8817
        %v8820 = vrot.slane %v8446, 1
        %v8821 = vsel %vm5507, %v8820, %v8819
        %8838 = vmatprep.subr.mxu0 0.0
        %8839 = vmatpush1.msra.mxu0 %v8462
        %8840 = vmatprep.subr.mxu0 0.0
        %8841 = vmatpush1.msra.mxu0 %v8461
        %8842 = vmatprep.subr.mxu0 0.0
        %8843 = vmatpush1.msra.mxu0 %v8460
        %8844 = vmatprep.subr.mxu0 0.0
        %8845 = vmatpush1.msra.mxu0 %v8459
        %8846 = vmatprep.subr.mxu0 0.0
        %8847 = vmatpush1.msra.mxu0 %v8458
        %8848 = vmatprep.subr.mxu0 0.0
        %8849 = vmatpush1.msra.mxu0 %v8457
        %8850 = vmatprep.subr.mxu0 0.0
        %8851 = vmatpush1.msra.mxu0 %v8456
        %8852 = vmatprep.subr.mxu0 0.0
        %8853 = vmatpush1.msra.mxu0 %v8455
        %8854 = vmatprep.subr.mxu0 0.0
        %8855 = vmatpush1.msra.mxu0 %v8454
        %8856 = vmatprep.subr.mxu0 0.0
        %8857 = vmatpush1.msra.mxu0 %v8453
        %8858 = vmatprep.subr.mxu0 0.0
        %8859 = vmatpush1.msra.mxu0 %v8452
        %8860 = vmatprep.subr.mxu0 0.0
        %8861 = vmatpush1.msra.mxu0 %v8451
        %8862 = vmatprep.subr.mxu0 0.0
        %8863 = vmatpush1.msra.mxu0 %v8450
        %8864 = vmatprep.subr.mxu0 0.0
        %8865 = vmatpush1.msra.mxu0 %v8449
        %8866 = vmatprep.subr.mxu0 0.0
        %8867 = vmatpush1.msra.mxu0 %v8448
        %8868 = vmatprep.subr.mxu0 0.0
        %8869 = vmatpush1.msra.mxu0 %v8447
        %8870 = vmatprep.subr.mxu0 0.0
        %8871 = vmatpush2.msra.mxu0 0.0
        %8872 = vmatprep.subr.mxu0 0.0
        %8873 = vmatpush2.msra.mxu0 0.0
        %8874 = vmatprep.subr.mxu0 0.0
        %8875 = vmatpush2.msra.mxu0 0.0
        %8876 = vmatprep.subr.mxu0 0.0
        %8877 = vmatpush2.msra.mxu0 0.0
        %8878 = vmatprep.subr.mxu0 0.0
        %8879 = vmatpush2.msra.mxu0 0.0
        %8880 = vmatprep.subr.mxu0 0.0
        %8881 = vmatpush2.msra.mxu0 0.0
        %8882 = vmatprep.subr.mxu0 0.0
        %8883 = vmatpush2.msra.mxu0 0.0
        %8884 = vmatprep.subr.mxu0 0.0
        %8885 = vmatpush2.msra.mxu0 0.0
        %8886 = vmatprep.subr.mxu0 0.0
        %8887 = vmatpush2.msra.mxu0 0.0
        %8888 = vmatprep.subr.mxu0 0.0
        %8889 = vmatpush2.msra.mxu0 0.0
        %8890 = vmatprep.subr.mxu0 0.0
        %8891 = vmatpush2.msra.mxu0 0.0
        %8892 = vmatprep.subr.mxu0 0.0
        %8893 = vmatpush2.msra.mxu0 0.0
        %8894 = vmatprep.subr.mxu0 0.0
        %8895 = vmatpush2.msra.mxu0 0.0
        %8896 = vmatprep.subr.mxu0 0.0
        %8897 = vmatpush2.msra.mxu0 0.0
        %8898 = vmatprep.subr.mxu0 0.0
        %8899 = vmatpush2.msra.mxu0 0.0
        %8900 = vmatprep.subr.mxu0 0.0
        %8901 = vmatpush2.msra.mxu0 0.0
        %8902 = vmatprep.mubr.f32.mxu0 0.0
        %8903 = vmatmul.mubr.f32.gmra.mxu0 %v8611
        %v8904 = vpop.f32.mrf.mxu0
        %v8905 = vadd.f32 %v8468, %v8904
        %v8906 = vpop.f32.mrf.mxu0
        %8907 = vmatprep.mubr.f32.mxu0 0.0
        %8908 = vmatmul.mubr.f32.gmra.mxu0 %v8625
        %v8909 = vpop.f32.mrf.mxu0
        %v8910 = vadd.f32 %v8468, %v8909
        %v8911 = vpop.f32.mrf.mxu0
        %8912 = vmatprep.mubr.f32.mxu0 0.0
        %8913 = vmatmul.mubr.f32.gmra.mxu0 %v8639
        %v8914 = vpop.f32.mrf.mxu0
        %v8915 = vadd.f32 %v8468, %v8914
        %v8916 = vpop.f32.mrf.mxu0
        %8917 = vmatprep.mubr.f32.mxu0 0.0
        %8918 = vmatmul.mubr.f32.gmra.mxu0 %v8653
        %v8919 = vpop.f32.mrf.mxu0
        %v8920 = vadd.f32 %v8468, %v8919
        %v8921 = vpop.f32.mrf.mxu0
        %8922 = vmatprep.mubr.f32.mxu0 0.0
        %8923 = vmatmul.mubr.f32.gmra.mxu0 %v8667
        %v8924 = vpop.f32.mrf.mxu0
        %v8925 = vadd.f32 %v8468, %v8924
        %v8926 = vpop.f32.mrf.mxu0
        %8927 = vmatprep.mubr.f32.mxu0 0.0
        %8928 = vmatmul.mubr.f32.gmra.mxu0 %v8681
        %v8929 = vpop.f32.mrf.mxu0
        %v8930 = vadd.f32 %v8468, %v8929
        %v8931 = vpop.f32.mrf.mxu0
        %8932 = vmatprep.mubr.f32.mxu0 0.0
        %8933 = vmatmul.mubr.f32.gmra.mxu0 %v8695
        %v8934 = vpop.f32.mrf.mxu0
        %v8935 = vadd.f32 %v8468, %v8934
        %v8936 = vpop.f32.mrf.mxu0
        %8937 = vmatprep.mubr.f32.mxu0 0.0
        %8938 = vmatmul.mubr.f32.gmra.mxu0 %v8709
        %v8939 = vpop.f32.mrf.mxu0
        %v8940 = vadd.f32 %v8468, %v8939
        %v8941 = vpop.f32.mrf.mxu0
        %8942 = vmatprep.mubr.f32.mxu0 0.0
        %8943 = vmatmul.mubr.f32.gmra.mxu0 %v8723
        %v8944 = vpop.f32.mrf.mxu0
        %v8945 = vadd.f32 %v8468, %v8944
        %v8946 = vpop.f32.mrf.mxu0
        %8947 = vmatprep.mubr.f32.mxu0 0.0
        %8948 = vmatmul.mubr.f32.gmra.mxu0 %v8737
        %v8949 = vpop.f32.mrf.mxu0
        %v8950 = vadd.f32 %v8468, %v8949
        %v8951 = vpop.f32.mrf.mxu0
        %8952 = vmatprep.mubr.f32.mxu0 0.0
        %8953 = vmatmul.mubr.f32.gmra.mxu0 %v8751
        %v8954 = vpop.f32.mrf.mxu0
        %v8955 = vadd.f32 %v8468, %v8954
        %v8956 = vpop.f32.mrf.mxu0
        %8957 = vmatprep.mubr.f32.mxu0 0.0
        %8958 = vmatmul.mubr.f32.gmra.mxu0 %v8765
        %v8959 = vpop.f32.mrf.mxu0
        %v8960 = vadd.f32 %v8468, %v8959
        %v8961 = vpop.f32.mrf.mxu0
        %8962 = vmatprep.mubr.f32.mxu0 0.0
        %8963 = vmatmul.mubr.f32.gmra.mxu0 %v8779
        %v8964 = vpop.f32.mrf.mxu0
        %v8965 = vadd.f32 %v8468, %v8964
        %v8966 = vpop.f32.mrf.mxu0
        %8967 = vmatprep.mubr.f32.mxu0 0.0
        %8968 = vmatmul.mubr.f32.gmra.mxu0 %v8793
        %v8969 = vpop.f32.mrf.mxu0
        %v8970 = vadd.f32 %v8468, %v8969
        %v8971 = vpop.f32.mrf.mxu0
        %8972 = vmatprep.mubr.f32.mxu0 0.0
        %8973 = vmatmul.mubr.f32.gmra.mxu0 %v8807
        %v8974 = vpop.f32.mrf.mxu0
        %v8975 = vadd.f32 %v8468, %v8974
        %v8976 = vpop.f32.mrf.mxu0
        %8977 = vmatprep.mubr.f32.mxu0 0.0
        %8978 = vmatmul.mubr.f32.gmra.mxu0 %v8821
        %v8979 = vpop.f32.mrf.mxu0
        %v8980 = vadd.f32 %v8468, %v8979
        %v8981 = vpop.f32.mrf.mxu0
        %8982 = vdwg.mxu0
        %v8983 = vmax.f32 %v8905, 0.0
        %v8984 = vmax.f32 %v8910, 0.0
        %v8985 = vmax.f32 %v8915, 0.0
        %v8986 = vmax.f32 %v8920, 0.0
        %v8987 = vmax.f32 %v8925, 0.0
        %v8988 = vmax.f32 %v8930, 0.0
        %v8989 = vmax.f32 %v8935, 0.0
        %v8990 = vmax.f32 %v8940, 0.0
        %v8991 = vmax.f32 %v8945, 0.0
        %v8992 = vmax.f32 %v8950, 0.0
        %v8993 = vmax.f32 %v8955, 0.0
        %v8994 = vmax.f32 %v8960, 0.0
        %v8995 = vmax.f32 %v8965, 0.0
        %v8996 = vmax.f32 %v8970, 0.0
        %v8997 = vmax.f32 %v8975, 0.0
        %v8998 = vmax.f32 %v8980, 0.0
        %8999 = vst.msk [vmem:[%s294] sm:$0xff] %vm579, %v8983
        %9000 = vst.msk [vmem:[%s294 + $0x8] sm:$0xff] %vm579, %v8984
        %9001 = vst.msk [vmem:[%s294 + $0x10] sm:$0xff] %vm579, %v8985
        %9002 = vst.msk [vmem:[%s294 + $0x18] sm:$0xff] %vm579, %v8986
        %9003 = vst.msk [vmem:[%s294 + $0x20] sm:$0xff] %vm579, %v8987
        %9004 = vst.msk [vmem:[%s294 + $0x28] sm:$0xff] %vm579, %v8988
        %9005 = vst.msk [vmem:[%s294 + $0x30] sm:$0xff] %vm579, %v8989
        %9006 = vst.msk [vmem:[%s294 + $0x38] sm:$0xff] %vm579, %v8990
        %9007 = vst.msk [vmem:[%s294 + $0x40] sm:$0xff] %vm579, %v8991
        %9008 = vst.msk [vmem:[%s294 + $0x48] sm:$0xff] %vm579, %v8992
        %9009 = vst.msk [vmem:[%s294 + $0x50] sm:$0xff] %vm579, %v8993
        %9010 = vst.msk [vmem:[%s294 + $0x58] sm:$0xff] %vm579, %v8994
        %9011 = vst.msk [vmem:[%s294 + $0x60] sm:$0xff] %vm579, %v8995
        %9012 = vst.msk [vmem:[%s294 + $0x68] sm:$0xff] %vm579, %v8996
        %9013 = vst.msk [vmem:[%s294 + $0x70] sm:$0xff] %vm579, %v8997
        %9014 = vst.msk [vmem:[%s294 + $0x78] sm:$0xff] %vm579, %v8998
        %s9015 = smul.u32 16, %s20
        %p9016 = scmp.lt.s32.totalorder %s9015, 31
        %s9017 = scalar_select %p9016, %s9015, 31
        %s9018 = smul.addr %s9017, 8
        %s9019 = scalar_lea.vmem %s6, %s9018
        // Predicated region
        $region49: #{mem_attention.1} parent=43 // pred_check
          %p9020 = pneg %p174
        $region50: #{mem_attention.1} parent=43 // pred_check_branch
          %9022 = sbr.rel (%p9020) target = $region52
        $region51: #{mem_attention.1} parent=43 // pred_region
          %s9023 = smul.u32 16, %s20
        $region52: #{mem_attention.1} parent=43 // pred_fallthru
          _
      $region44: #{mem_attention.1} parent=5 // pred_fallthru
        _
      %p9024 = scmp.le.s32.totalorder 2, %s15
      // Predicated region
      $region53: #{mem_attention.1} parent=5 // pred_check
        %p9025 = pneg %p9024
      $region54: #{mem_attention.1} parent=5 // pred_check_branch
        %9027 = sbr.rel (%p9025) target = $region56
      $region55: #{mem_attention.1} parent=5 // pred_region
        %s9028 = ssub.s32 %s15, 2
        // Predicated region
        $region57: #{mem_attention.1} parent=55 // pred_check
          %p9029 = pneg %p180
        $region58: #{mem_attention.1} parent=55 // pred_check_branch
          %9031 = sbr.rel (%p9029) target = $region60
        $region59: #{mem_attention.1} parent=55 // pred_region
          %s9032 = smul.u32 16, %s21
          %p9033 = scmp.lt.s32.totalorder %s9032, 31
          %s9034 = scalar_select %p9033, %s9032, 31
          %s9035 = smul.addr %s9034, 8
          %s9036 = scalar_lea.vmem %s6, %s9035
        $region60: #{mem_attention.1} parent=55 // pred_fallthru
          _
      $region56: #{mem_attention.1} parent=5 // pred_fallthru
        _
    $region6: #{mem_attention.1} parent=1 // loop_footer
      %s19 = sadd.s32 1, %s15
    $region7: #{mem_attention.1} parent=1 // loop_footer_branch
      %14 = sbr.rel target = $region3
    $region8: #{mem_attention.1} parent=1 // loop_exit
      _
    %9037 = vsyncpa [#allocation3], 1
    %s9038 = scalar_lea.sflag [#allocation3], 1
    %9039 = vsyncpa %s9038, 1

</llo_original>
